<compile_context>
chip_gen: v7x
topology: tpu7x:2x2x1
jax: 0.10.0
libtpu: 0.0.40
codegen_flags: <defaults>
</compile_context>

<pallas_src>
import functools

import jax
import jax.numpy as jnp
import numpy as np
from jax.experimental import pallas as pl
from jax.experimental.pallas import tpu as pltpu


def _round_up(x, m):
    return (x + m - 1) // m * m


# ----------------------------------------------------------------------------
# Pallas kernel: fused BasicBlock (conv1+BN1+ReLU -> conv2+BN2 -> +sc -> ReLU)
# ----------------------------------------------------------------------------
def _basic_block_kernel(*refs, ho, wo, stride, matmul_shortcut):
    if matmul_shortcut:
        (x_ref, w1_ref, s1_ref, b1_ref, w2_ref, s2_ref, b2_ref,
         ws_ref, ss_ref, bs_ref, o_ref, pad_ref) = refs
    else:
        (x_ref, w1_ref, s1_ref, b1_ref, w2_ref, s2_ref, b2_ref,
         o_ref, pad_ref) = refs

    s = stride
    hw = ho * wo
    cip = x_ref.shape[-1]          # padded input channels  (multiple of 128)
    cp = w2_ref.shape[-1]          # padded output channels (multiple of 128)

    # Zero the conv2 halo scratch ONCE: the border is never written afterwards
    # and the interior is fully overwritten every grid step.  This relies on
    # the batch grid axis being sequential ("arbitrary" dimension semantics).
    @pl.when(pl.program_id(0) == 0)
    def _():
        pad_ref[...] = jnp.zeros_like(pad_ref)

    # conv1 tap (kh, kw) = x_padded[s*i + kh, s*j + kw] for every output pixel
    # (i, j).  The input arrives polyphase-packed as (s*s, Hp/s, Wp/s, cip), so
    # this is a CONTIGUOUS slice of phase (kh % s, kw % s) even when s == 2.
    def in_tap(kh, kw):
        ph = (kh % s) * s + (kw % s)
        r0, c0 = kh // s, kw // s
        return x_ref[0, ph, r0:r0 + ho, c0:c0 + wo, :].reshape(hw, cip)

    # ---- conv1 (+ folded BN1 + ReLU): single K-packed MXU contraction, K = 9*cip
    x1 = jnp.concatenate([in_tap(kh, kw) for kh in range(3) for kw in range(3)],
                         axis=-1)                                   # (hw, 9*cip) bf16
    y1 = jnp.dot(x1, w1_ref[...], preferred_element_type=jnp.float32)
    y1 = jnp.maximum(y1 * s1_ref[...] + b1_ref[...], 0.0)           # f32 epilogue

    # Keep conv1's activation VMEM-resident: store it (bf16) into the zero-halo
    # scratch at a sublane-aligned column offset (8); halo columns 7 and 8+wo
    # and halo rows 0 / ho+1 stay zero from the one-time init.
    pad_ref[1:ho + 1, 8:8 + wo, :] = y1.reshape(ho, wo, cp).astype(pad_ref.dtype)

    # ---- conv2 (+ folded BN2): single K-packed MXU contraction, K = 9*cp
    x2 = jnp.concatenate(
        [pad_ref[kh:kh + ho, kw + 7:kw + 7 + wo, :].reshape(hw, cp)
         for kh in range(3) for kw in range(3)], axis=-1)           # (hw, 9*cp) bf16
    y2 = jnp.dot(x2, w2_ref[...], preferred_element_type=jnp.float32)
    y2 = y2 * s2_ref[...] + b2_ref[...]                             # f32 epilogue

    # ---- shortcut, formed from the same VMEM-resident input tile
    p_sc = (1 % s) * s + (1 % s)
    o_sc = 1 // s
    xs = x_ref[0, p_sc, o_sc:o_sc + ho, o_sc:o_sc + wo, :]          # downsampled x
    if matmul_shortcut:
        # option 'B' (1x1 conv + BN) or option 'A' (constant 0/1 channel-shift matrix)
        sc = jnp.dot(xs.reshape(hw, cip), ws_ref[...],
                     preferred_element_type=jnp.float32)
        sc = sc * ss_ref[...] + bs_ref[...]
    else:                                                           # identity
        sc = xs.reshape(hw, cip).astype(jnp.float32)

    o_ref[0] = jnp.maximum(y2 + sc, 0.0).astype(o_ref.dtype)        # bf16 writeback


# ----------------------------------------------------------------------------
# Plain-JAX glue: BN folding, param init
# ----------------------------------------------------------------------------
def fold_bn(gamma, beta, mean, var, eps=1e-5):
    s = gamma / jnp.sqrt(var + eps)
    return s, beta - mean * s


def _pad1(v, cp):
    return jnp.pad(v, (0, cp - v.shape[0])).reshape(1, cp).astype(jnp.float32)


def _init_bn(keys, c):
    return dict(
        gamma=1.0 + 0.1 * jax.random.normal(keys[0], (c,), jnp.float32),
        beta=0.1 * jax.random.normal(keys[1], (c,), jnp.float32),
        mean=0.05 * jax.random.normal(keys[2], (c,), jnp.float32),
        var=0.5 + 0.2 * jnp.abs(jax.random.normal(keys[3], (c,), jnp.float32)),
    )


def init_basic_block(key, in_planes, planes, stride, option):
    keys = jax.random.split(key, 16)
    p = {
        'w1': 0.1 * jax.random.normal(keys[0], (planes, in_planes, 3, 3), jnp.float32),
        'bn1': _init_bn(keys[1:5], planes),
        'w2': 0.1 * jax.random.normal(keys[5], (planes, planes, 3, 3), jnp.float32),
        'bn2': _init_bn(keys[6:10], planes),
    }
    if (stride != 1 or in_planes != planes) and option == 'B':
        p['ws'] = 0.1 * jax.random.normal(keys[10], (planes, in_planes, 1, 1), jnp.float32)
        p['bns'] = _init_bn(keys[11:15], planes)
    return p


# ----------------------------------------------------------------------------
# BasicBlock forward (single fused pallas_call)
# ----------------------------------------------------------------------------
def basic_block_forward_pallas(x_nchw, p, in_planes, planes, stride, option):
    n, cin, hi, wi = x_nchw.shape
    assert cin == in_planes and hi % stride == 0 and wi % stride == 0
    s = stride
    ho, wo = hi // s, wi // s
    hwo = ho * wo

    cip = _round_up(in_planes, 128)                                 # lane-dense channels
    cp = _round_up(planes, 128)

    needs_short = (stride != 1 or in_planes != planes)
    if needs_short and option == 'A':
        # PyTorch's LambdaLayer always downsamples by ::2 -> only stride==2 is shape-consistent.
        assert stride == 2, "option 'A' shortcut is only shape-consistent for stride == 2"
        assert planes // 4 + in_planes <= cp
    if not needs_short:
        assert cip == cp

    # ---- input: NHWC, +1 spatial halo, channels padded to 128, bf16, packed into
    #      s*s spatial polyphase planes -> all in-kernel tap reads are contiguous.
    x = jnp.transpose(x_nchw, (0, 2, 3, 1))
    hp = _round_up(hi + 2, s)
    wp = _round_up(wi + 2, s)
    xpad = jnp.pad(x, ((0, 0), (1, hp - hi - 1), (1, wp - wi - 1),
                       (0, cip - in_planes))).astype(jnp.bfloat16)
    hpoly, wpoly = hp // s, wp // s
    xpoly = xpad.reshape(n, hpoly, s, wpoly, s, cip).transpose(0, 2, 4, 1, 3, 5)
    xpoly = xpoly.reshape(n, s * s, hpoly, wpoly, cip)

    # ---- conv1 weights, K-packed tap-major / channel-minor: (9*cip, cp)
    w1 = jnp.transpose(p['w1'], (2, 3, 1, 0))                       # (3,3,Cin,Cout)
    w1 = jnp.pad(w1, ((0, 0), (0, 0), (0, cip - in_planes), (0, cp - planes)))
    w1 = w1.reshape(9 * cip, cp).astype(jnp.bfloat16)
    s1, b1 = fold_bn(**p['bn1'])
    s1, b1 = _pad1(s1, cp), _pad1(b1, cp)

    # ---- conv2 weights, K-packed: (9*cp, cp)
    w2 = jnp.transpose(p['w2'], (2, 3, 1, 0))
    w2 = jnp.pad(w2, ((0, 0), (0, 0), (0, cp - planes), (0, cp - planes)))
    w2 = w2.reshape(9 * cp, cp).astype(jnp.bfloat16)
    s2, b2 = fold_bn(**p['bn2'])
    s2, b2 = _pad1(s2, cp), _pad1(b2, cp)

    # ---- shortcut operands (reuse the one matmul path for both options)
    matmul_shortcut = needs_short
    if matmul_shortcut:
        if option == 'B':                                           # 1x1 conv + BN projection
            ws = jnp.transpose(p['ws'], (2, 3, 1, 0)).reshape(in_planes, planes)
            ws = jnp.pad(ws, ((0, cip - in_planes), (0, cp - planes))).astype(jnp.bfloat16)
            ss, bs = fold_bn(**p['bns'])
            ss, bs = _pad1(ss, cp), _pad1(bs, cp)
        else:                                                       # option 'A': channel shift by planes//4
            shift = planes // 4
            ws = jnp.zeros((cip, cp), jnp.float32)
            ws = ws.at[jnp.arange(in_planes), shift + jnp.arange(in_planes)].set(1.0)
            ws = ws.astype(jnp.bfloat16)
            ss = jnp.ones((1, cp), jnp.float32)
            bs = jnp.zeros((1, cp), jnp.float32)
        extra_args = [ws, ss, bs]
        extra_specs = [pl.BlockSpec((cip, cp), lambda i: (0, 0)),
                       pl.BlockSpec((1, cp), lambda i: (0, 0)),
                       pl.BlockSpec((1, cp), lambda i: (0, 0))]
    else:
        extra_args, extra_specs = [], []

    # conv2 halo scratch: activation at rows [1:ho+1], sublane-aligned cols [8:8+wo]
    w_scr = _round_up(wo + 9, 8)

    # ---- VMEM budget derived from the actual block/scratch/intermediate sizes.
    def _nbytes(shape, itemsize):
        return int(np.prod(shape)) * itemsize

    need = (2 * _nbytes((1, s * s, hpoly, wpoly, cip), 2)           # input  (double-buffered)
            + 2 * _nbytes((1, hwo, cp), 2)                          # output (double-buffered)
            + 2 * (_nbytes((9 * cip, cp), 2) + _nbytes((9 * cp, cp), 2)
                   + (_nbytes((cip, cp), 2) if matmul_shortcut else 0))
            + 10 * _nbytes((1, cp), 4)
            + _nbytes((ho + 2, w_scr, cp), 2)                       # halo scratch
            + _nbytes((hwo, 9 * cip), 2) + _nbytes((hwo, 9 * cp), 2)  # K-packed tap slabs
            + 4 * _nbytes((hwo, cp), 4))                            # f32 live activations
    vmem_limit = int(min(max(2 * need, 16 * 1024 * 1024), 96 * 1024 * 1024))

    kernel = functools.partial(_basic_block_kernel, ho=ho, wo=wo, stride=s,
                               matmul_shortcut=matmul_shortcut)

    out = pl.pallas_call(
        kernel,
        out_shape=jax.ShapeDtypeStruct((n, hwo, cp), jnp.bfloat16),
        grid=(n,),
        in_specs=[
            pl.BlockSpec((1, s * s, hpoly, wpoly, cip), lambda i: (i, 0, 0, 0, 0)),
            pl.BlockSpec((9 * cip, cp), lambda i: (0, 0)),          # conv1 packed weights
            pl.BlockSpec((1, cp), lambda i: (0, 0)),                # BN1 scale
            pl.BlockSpec((1, cp), lambda i: (0, 0)),                # BN1 bias
            pl.BlockSpec((9 * cp, cp), lambda i: (0, 0)),           # conv2 packed weights
            pl.BlockSpec((1, cp), lambda i: (0, 0)),                # BN2 scale
            pl.BlockSpec((1, cp), lambda i: (0, 0)),                # BN2 bias
        ] + extra_specs,
        out_specs=pl.BlockSpec((1, hwo, cp), lambda i: (i, 0, 0)),
        scratch_shapes=[pltpu.VMEM((ho + 2, w_scr, cp), jnp.bfloat16)],
        compiler_params=pltpu.CompilerParams(
            # "arbitrary": the one-time halo-scratch zeroing at program_id==0 requires
            # the batch axis to run sequentially on one core (scratch persists).
            dimension_semantics=("arbitrary",),
            vmem_limit_bytes=vmem_limit),
    )(xpoly, w1, s1, b1, w2, s2, b2, *extra_args)

    out = out[:, :, :planes].astype(jnp.float32).reshape(n, ho, wo, planes)
    return jnp.transpose(out, (0, 3, 1, 2))                         # back to NCHW


# ----------------------------------------------------------------------------
# Pure-JAX f32 reference (for verification)
# ----------------------------------------------------------------------------
def basic_block_forward_ref(x, p, in_planes, planes, stride, option):
    def conv(x, w, s, pad):
        return jax.lax.conv_general_dilated(
            x, w, (s, s), ((pad, pad), (pad, pad)),
            dimension_numbers=('NCHW', 'OIHW', 'NCHW'))

    def bn(x, d):
        s, b = fold_bn(**d)
        return x * s[None, :, None, None] + b[None, :, None, None]

    out = jax.nn.relu(bn(conv(x, p['w1'], stride, 1), p['bn1']))
    out = bn(conv(out, p['w2'], 1, 1), p['bn2'])
    if stride != 1 or in_planes != planes:
        if option == 'A':
            sc = x[:, :, ::2, ::2]
            pad = planes // 4
            sc = jnp.pad(sc, ((0, 0), (pad, pad), (0, 0), (0, 0)))
        else:
            sc = bn(conv(x, p['ws'], stride, 0), p['bns'])
    else:
        sc = x
    return jax.nn.relu(out + sc)


if __name__ == "__main__":
    key = jax.random.PRNGKey(0)
    kx, kp1, kp2, kp3 = jax.random.split(key, 4)

    x = jax.random.normal(kx, (2, 4, 16, 16), jnp.float32)          # NCHW, like PyTorch

    configs = [
        dict(in_planes=4, planes=4, stride=1, option='A'),          # identity shortcut
        dict(in_planes=4, planes=8, stride=2, option='A'),          # option-A downsample
        dict(in_planes=4, planes=8, stride=2, option='B'),          # option-B 1x1-conv shortcut
    ]
    for cfg, kp in zip(configs, [kp1, kp2, kp3]):
        params = init_basic_block(kp, cfg['in_planes'], cfg['planes'],
                                  cfg['stride'], cfg['option'])
        y = basic_block_forward_pallas(x, params, **cfg)
        y = jax.block_until_ready(y)
        y_ref = basic_block_forward_ref(x, params, **cfg)
        # bf16 matmul operands / bf16 output vs. the f32 reference -> loosened tolerance.
        np.testing.assert_allclose(np.asarray(y), np.asarray(y_ref),
                                   atol=1e-1, rtol=5e-2)

    print("KERNEL_OK")
</pallas_src>

<mosaic_0001>
module attributes {stable_mosaic.version = 11 : i64} {
  func.func @_basic_block_kernel(%arg0: i32, %arg1: memref<1x1x18x18x128xbf16, #tpu.memory_space<vmem>>, %arg2: memref<1152x128xbf16, #tpu.memory_space<vmem>>, %arg3: memref<1x128xf32, #tpu.memory_space<vmem>>, %arg4: memref<1x128xf32, #tpu.memory_space<vmem>>, %arg5: memref<1152x128xbf16, #tpu.memory_space<vmem>>, %arg6: memref<1x128xf32, #tpu.memory_space<vmem>>, %arg7: memref<1x128xf32, #tpu.memory_space<vmem>>, %arg8: memref<1x256x128xbf16, #tpu.memory_space<vmem>>, %arg9: memref<18x32x128xbf16, #tpu.memory_space<vmem>>) attributes {dimension_semantics = [#tpu.dimension_semantics<arbitrary>], iteration_bounds = array<i64: 2>, scalar_prefetch = 0 : i64, scratch_operands = 1 : i64, tpu.core_type = #tpu.core_type<tc>, window_params = [{transform_indices = @transform_0, window_bounds = array<i64: 1, 1, 18, 18, 128>}, {pipeline_mode = #tpu.pipeline_mode<synchronous>, transform_indices = @transform_1, window_bounds = array<i64: 1152, 128>}, {pipeline_mode = #tpu.pipeline_mode<synchronous>, transform_indices = @transform_2, window_bounds = array<i64: 1, 128>}, {pipeline_mode = #tpu.pipeline_mode<synchronous>, transform_indices = @transform_3, window_bounds = array<i64: 1, 128>}, {pipeline_mode = #tpu.pipeline_mode<synchronous>, transform_indices = @transform_4, window_bounds = array<i64: 1152, 128>}, {pipeline_mode = #tpu.pipeline_mode<synchronous>, transform_indices = @transform_5, window_bounds = array<i64: 1, 128>}, {pipeline_mode = #tpu.pipeline_mode<synchronous>, transform_indices = @transform_6, window_bounds = array<i64: 1, 128>}, {transform_indices = @transform_7, window_bounds = array<i64: 1, 256, 128>}]} {
    %c0_i32 = arith.constant 0 : i32
    %0 = arith.cmpi eq, %arg0, %c0_i32 : i32
    %1 = arith.extui %0 : i1 to i32
    %c0_i32_0 = arith.constant 0 : i32
    %2 = arith.cmpi ne, %1, %c0_i32_0 : i32
    scf.if %2 {
      %cst_93 = arith.constant 0.000000e+00 : bf16
      %82 = vector.broadcast %cst_93 : bf16 to vector<18x32x128xbf16>
      %c0_94 = arith.constant 0 : index
      %c0_95 = arith.constant 0 : index
      %c0_96 = arith.constant 0 : index
      %83 = vector.load %arg9[%c0_94, %c0_95, %c0_96] : memref<18x32x128xbf16, #tpu.memory_space<vmem>>, vector<18x32x128xbf16>
      tpu.vector_store %arg9[%c0_94, %c0_95, %c0_96], %82 {strides = array<i32>} : memref<18x32x128xbf16, #tpu.memory_space<vmem>>, vector<18x32x128xbf16>,
    } else {
    }
    %c0 = arith.constant 0 : index
    %c0_1 = arith.constant 0 : index
    %c0_2 = arith.constant 0 : index
    %c0_3 = arith.constant 0 : index
    %c0_4 = arith.constant 0 : index
    %3 = vector.load %arg1[%c0, %c0_1, %c0_2, %c0_3, %c0_4] : memref<1x1x18x18x128xbf16, #tpu.memory_space<vmem>>, vector<1x1x16x16x128xbf16>
    %4 = vector.shape_cast %3 : vector<1x1x16x16x128xbf16> to vector<16x16x128xbf16>
    %5 = vector.shape_cast %4 : vector<16x16x128xbf16> to vector<256x128xbf16>
    %c0_5 = arith.constant 0 : index
    %c0_6 = arith.constant 0 : index
    %c0_7 = arith.constant 0 : index
    %c1 = arith.constant 1 : index
    %c0_8 = arith.constant 0 : index
    %6 = vector.load %arg1[%c0_5, %c0_6, %c0_7, %c1, %c0_8] : memref<1x1x18x18x128xbf16, #tpu.memory_space<vmem>>, vector<1x1x16x16x128xbf16>
    %7 = vector.shape_cast %6 : vector<1x1x16x16x128xbf16> to vector<16x16x128xbf16>
    %8 = vector.shape_cast %7 : vector<16x16x128xbf16> to vector<256x128xbf16>
    %c0_9 = arith.constant 0 : index
    %c0_10 = arith.constant 0 : index
    %c0_11 = arith.constant 0 : index
    %c2 = arith.constant 2 : index
    %c0_12 = arith.constant 0 : index
    %9 = vector.load %arg1[%c0_9, %c0_10, %c0_11, %c2, %c0_12] : memref<1x1x18x18x128xbf16, #tpu.memory_space<vmem>>, vector<1x1x16x16x128xbf16>
    %10 = vector.shape_cast %9 : vector<1x1x16x16x128xbf16> to vector<16x16x128xbf16>
    %11 = vector.shape_cast %10 : vector<16x16x128xbf16> to vector<256x128xbf16>
    %c0_13 = arith.constant 0 : index
    %c0_14 = arith.constant 0 : index
    %c1_15 = arith.constant 1 : index
    %c0_16 = arith.constant 0 : index
    %c0_17 = arith.constant 0 : index
    %12 = vector.load %arg1[%c0_13, %c0_14, %c1_15, %c0_16, %c0_17] : memref<1x1x18x18x128xbf16, #tpu.memory_space<vmem>>, vector<1x1x16x16x128xbf16>
    %13 = vector.shape_cast %12 : vector<1x1x16x16x128xbf16> to vector<16x16x128xbf16>
    %14 = vector.shape_cast %13 : vector<16x16x128xbf16> to vector<256x128xbf16>
    %c0_18 = arith.constant 0 : index
    %c0_19 = arith.constant 0 : index
    %c1_20 = arith.constant 1 : index
    %c1_21 = arith.constant 1 : index
    %c0_22 = arith.constant 0 : index
    %15 = vector.load %arg1[%c0_18, %c0_19, %c1_20, %c1_21, %c0_22] : memref<1x1x18x18x128xbf16, #tpu.memory_space<vmem>>, vector<1x1x16x16x128xbf16>
    %16 = vector.shape_cast %15 : vector<1x1x16x16x128xbf16> to vector<16x16x128xbf16>
    %17 = vector.shape_cast %16 : vector<16x16x128xbf16> to vector<256x128xbf16>
    %c0_23 = arith.constant 0 : index
    %c0_24 = arith.constant 0 : index
    %c1_25 = arith.constant 1 : index
    %c2_26 = arith.constant 2 : index
    %c0_27 = arith.constant 0 : index
    %18 = vector.load %arg1[%c0_23, %c0_24, %c1_25, %c2_26, %c0_27] : memref<1x1x18x18x128xbf16, #tpu.memory_space<vmem>>, vector<1x1x16x16x128xbf16>
    %19 = vector.shape_cast %18 : vector<1x1x16x16x128xbf16> to vector<16x16x128xbf16>
    %20 = vector.shape_cast %19 : vector<16x16x128xbf16> to vector<256x128xbf16>
    %c0_28 = arith.constant 0 : index
    %c0_29 = arith.constant 0 : index
    %c2_30 = arith.constant 2 : index
    %c0_31 = arith.constant 0 : index
    %c0_32 = arith.constant 0 : index
    %21 = vector.load %arg1[%c0_28, %c0_29, %c2_30, %c0_31, %c0_32] : memref<1x1x18x18x128xbf16, #tpu.memory_space<vmem>>, vector<1x1x16x16x128xbf16>
    %22 = vector.shape_cast %21 : vector<1x1x16x16x128xbf16> to vector<16x16x128xbf16>
    %23 = vector.shape_cast %22 : vector<16x16x128xbf16> to vector<256x128xbf16>
    %c0_33 = arith.constant 0 : index
    %c0_34 = arith.constant 0 : index
    %c2_35 = arith.constant 2 : index
    %c1_36 = arith.constant 1 : index
    %c0_37 = arith.constant 0 : index
    %24 = vector.load %arg1[%c0_33, %c0_34, %c2_35, %c1_36, %c0_37] : memref<1x1x18x18x128xbf16, #tpu.memory_space<vmem>>, vector<1x1x16x16x128xbf16>
    %25 = vector.shape_cast %24 : vector<1x1x16x16x128xbf16> to vector<16x16x128xbf16>
    %26 = vector.shape_cast %25 : vector<16x16x128xbf16> to vector<256x128xbf16>
    %c0_38 = arith.constant 0 : index
    %c0_39 = arith.constant 0 : index
    %c2_40 = arith.constant 2 : index
    %c2_41 = arith.constant 2 : index
    %c0_42 = arith.constant 0 : index
    %27 = vector.load %arg1[%c0_38, %c0_39, %c2_40, %c2_41, %c0_42] : memref<1x1x18x18x128xbf16, #tpu.memory_space<vmem>>, vector<1x1x16x16x128xbf16>
    %28 = vector.shape_cast %27 : vector<1x1x16x16x128xbf16> to vector<16x16x128xbf16>
    %29 = vector.shape_cast %28 : vector<16x16x128xbf16> to vector<256x128xbf16>
    %30 = tpu.concatenate %5, %8, %11, %14, %17, %20, %23, %26, %29 in 1 : vector<256x128xbf16>, vector<256x128xbf16>, vector<256x128xbf16>, vector<256x128xbf16>, vector<256x128xbf16>, vector<256x128xbf16>, vector<256x128xbf16>, vector<256x128xbf16>, vector<256x128xbf16> -> vector<256x1152xbf16>
    %c0_43 = arith.constant 0 : index
    %c0_44 = arith.constant 0 : index
    %31 = vector.load %arg2[%c0_43, %c0_44] : memref<1152x128xbf16, #tpu.memory_space<vmem>>, vector<1152x128xbf16>
    %cst = arith.constant dense<0.000000e+00> : vector<256x128xf32>
    %32 = tpu.matmul %30, %31, %cst {dimension_numbers = #tpu.dot_dimension_numbers<[1], [0], [0], [1], [0, 0, 1, 1], [], []>} : vector<256x1152xbf16>, vector<1152x128xbf16>, vector<256x128xf32> -> vector<256x128xf32>
    %c0_45 = arith.constant 0 : index
    %c0_46 = arith.constant 0 : index
    %33 = vector.load %arg3[%c0_45, %c0_46] : memref<1x128xf32, #tpu.memory_space<vmem>>, vector<1x128xf32>
    %34 = vector.broadcast %33 : vector<1x128xf32> to vector<256x128xf32>
    %35 = arith.mulf %32, %34 : vector<256x128xf32>
    %c0_47 = arith.constant 0 : index
    %c0_48 = arith.constant 0 : index
    %36 = vector.load %arg4[%c0_47, %c0_48] : memref<1x128xf32, #tpu.memory_space<vmem>>, vector<1x128xf32>
    %37 = vector.broadcast %36 : vector<1x128xf32> to vector<256x128xf32>
    %38 = arith.addf %35, %37 : vector<256x128xf32>
    %cst_49 = arith.constant 0.000000e+00 : f32
    %39 = vector.broadcast %cst_49 : f32 to vector<256x128xf32>
    %40 = arith.maximumf %38, %39 : vector<256x128xf32>
    %41 = vector.shape_cast %40 : vector<256x128xf32> to vector<16x16x128xf32>
    %42 = arith.truncf %41 : vector<16x16x128xf32> to vector<16x16x128xbf16>
    %c1_50 = arith.constant 1 : index
    %c8 = arith.constant 8 : index
    %c0_51 = arith.constant 0 : index
    %43 = vector.load %arg9[%c1_50, %c8, %c0_51] : memref<18x32x128xbf16, #tpu.memory_space<vmem>>, vector<16x16x128xbf16>
    tpu.vector_store %arg9[%c1_50, %c8, %c0_51], %42 {strides = array<i32>} : memref<18x32x128xbf16, #tpu.memory_space<vmem>>, vector<16x16x128xbf16>,
    %c0_52 = arith.constant 0 : index
    %c7 = arith.constant 7 : index
    %c0_53 = arith.constant 0 : index
    %44 = vector.load %arg9[%c0_52, %c7, %c0_53] : memref<18x32x128xbf16, #tpu.memory_space<vmem>>, vector<16x16x128xbf16>
    %45 = vector.shape_cast %44 : vector<16x16x128xbf16> to vector<256x128xbf16>
    %c0_54 = arith.constant 0 : index
    %c8_55 = arith.constant 8 : index
    %c0_56 = arith.constant 0 : index
    %46 = vector.load %arg9[%c0_54, %c8_55, %c0_56] : memref<18x32x128xbf16, #tpu.memory_space<vmem>>, vector<16x16x128xbf16>
    %47 = vector.shape_cast %46 : vector<16x16x128xbf16> to vector<256x128xbf16>
    %c0_57 = arith.constant 0 : index
    %c9 = arith.constant 9 : index
    %c0_58 = arith.constant 0 : index
    %48 = vector.load %arg9[%c0_57, %c9, %c0_58] : memref<18x32x128xbf16, #tpu.memory_space<vmem>>, vector<16x16x128xbf16>
    %49 = vector.shape_cast %48 : vector<16x16x128xbf16> to vector<256x128xbf16>
    %c1_59 = arith.constant 1 : index
    %c7_60 = arith.constant 7 : index
    %c0_61 = arith.constant 0 : index
    %50 = vector.load %arg9[%c1_59, %c7_60, %c0_61] : memref<18x32x128xbf16, #tpu.memory_space<vmem>>, vector<16x16x128xbf16>
    %51 = vector.shape_cast %50 : vector<16x16x128xbf16> to vector<256x128xbf16>
    %c1_62 = arith.constant 1 : index
    %c8_63 = arith.constant 8 : index
    %c0_64 = arith.constant 0 : index
    %52 = vector.load %arg9[%c1_62, %c8_63, %c0_64] : memref<18x32x128xbf16, #tpu.memory_space<vmem>>, vector<16x16x128xbf16>
    %53 = vector.shape_cast %52 : vector<16x16x128xbf16> to vector<256x128xbf16>
    %c1_65 = arith.constant 1 : index
    %c9_66 = arith.constant 9 : index
    %c0_67 = arith.constant 0 : index
    %54 = vector.load %arg9[%c1_65, %c9_66, %c0_67] : memref<18x32x128xbf16, #tpu.memory_space<vmem>>, vector<16x16x128xbf16>
    %55 = vector.shape_cast %54 : vector<16x16x128xbf16> to vector<256x128xbf16>
    %c2_68 = arith.constant 2 : index
    %c7_69 = arith.constant 7 : index
    %c0_70 = arith.constant 0 : index
    %56 = vector.load %arg9[%c2_68, %c7_69, %c0_70] : memref<18x32x128xbf16, #tpu.memory_space<vmem>>, vector<16x16x128xbf16>
    %57 = vector.shape_cast %56 : vector<16x16x128xbf16> to vector<256x128xbf16>
    %c2_71 = arith.constant 2 : index
    %c8_72 = arith.constant 8 : index
    %c0_73 = arith.constant 0 : index
    %58 = vector.load %arg9[%c2_71, %c8_72, %c0_73] : memref<18x32x128xbf16, #tpu.memory_space<vmem>>, vector<16x16x128xbf16>
    %59 = vector.shape_cast %58 : vector<16x16x128xbf16> to vector<256x128xbf16>
    %c2_74 = arith.constant 2 : index
    %c9_75 = arith.constant 9 : index
    %c0_76 = arith.constant 0 : index
    %60 = vector.load %arg9[%c2_74, %c9_75, %c0_76] : memref<18x32x128xbf16, #tpu.memory_space<vmem>>, vector<16x16x128xbf16>
    %61 = vector.shape_cast %60 : vector<16x16x128xbf16> to vector<256x128xbf16>
    %62 = tpu.concatenate %45, %47, %49, %51, %53, %55, %57, %59, %61 in 1 : vector<256x128xbf16>, vector<256x128xbf16>, vector<256x128xbf16>, vector<256x128xbf16>, vector<256x128xbf16>, vector<256x128xbf16>, vector<256x128xbf16>, vector<256x128xbf16>, vector<256x128xbf16> -> vector<256x1152xbf16>
    %c0_77 = arith.constant 0 : index
    %c0_78 = arith.constant 0 : index
    %63 = vector.load %arg5[%c0_77, %c0_78] : memref<1152x128xbf16, #tpu.memory_space<vmem>>, vector<1152x128xbf16>
    %cst_79 = arith.constant dense<0.000000e+00> : vector<256x128xf32>
    %64 = tpu.matmul %62, %63, %cst_79 {dimension_numbers = #tpu.dot_dimension_numbers<[1], [0], [0], [1], [0, 0, 1, 1], [], []>} : vector<256x1152xbf16>, vector<1152x128xbf16>, vector<256x128xf32> -> vector<256x128xf32>
    %c0_80 = arith.constant 0 : index
    %c0_81 = arith.constant 0 : index
    %65 = vector.load %arg6[%c0_80, %c0_81] : memref<1x128xf32, #tpu.memory_space<vmem>>, vector<1x128xf32>
    %66 = vector.broadcast %65 : vector<1x128xf32> to vector<256x128xf32>
    %67 = arith.mulf %64, %66 : vector<256x128xf32>
    %c0_82 = arith.constant 0 : index
    %c0_83 = arith.constant 0 : index
    %68 = vector.load %arg7[%c0_82, %c0_83] : memref<1x128xf32, #tpu.memory_space<vmem>>, vector<1x128xf32>
    %69 = vector.broadcast %68 : vector<1x128xf32> to vector<256x128xf32>
    %70 = arith.addf %67, %69 : vector<256x128xf32>
    %c0_84 = arith.constant 0 : index
    %c0_85 = arith.constant 0 : index
    %c1_86 = arith.constant 1 : index
    %c1_87 = arith.constant 1 : index
    %c0_88 = arith.constant 0 : index
    %71 = vector.load %arg1[%c0_84, %c0_85, %c1_86, %c1_87, %c0_88] : memref<1x1x18x18x128xbf16, #tpu.memory_space<vmem>>, vector<1x1x16x16x128xbf16>
    %72 = vector.shape_cast %71 : vector<1x1x16x16x128xbf16> to vector<16x16x128xbf16>
    %73 = vector.shape_cast %72 : vector<16x16x128xbf16> to vector<256x128xbf16>
    %74 = arith.extf %73 : vector<256x128xbf16> to vector<256x128xf32>
    %75 = arith.addf %70, %74 : vector<256x128xf32>
    %cst_89 = arith.constant 0.000000e+00 : f32
    %76 = vector.broadcast %cst_89 : f32 to vector<256x128xf32>
    %77 = arith.maximumf %75, %76 : vector<256x128xf32>
    %78 = arith.truncf %77 : vector<256x128xf32> to vector<256x128xbf16>
    %c0_90 = arith.constant 0 : index
    %c0_91 = arith.constant 0 : index
    %c0_92 = arith.constant 0 : index
    %79 = vector.load %arg8[%c0_90, %c0_91, %c0_92] : memref<1x256x128xbf16, #tpu.memory_space<vmem>>, vector<1x256x128xbf16>
    %80 = vector.shape_cast %79 : vector<1x256x128xbf16> to vector<256x128xbf16>
    %81 = vector.shape_cast %78 : vector<256x128xbf16> to vector<1x256x128xbf16>
    tpu.vector_store %arg8[%c0_90, %c0_91, %c0_92], %81 {strides = array<i32>} : memref<1x256x128xbf16, #tpu.memory_space<vmem>>, vector<1x256x128xbf16>,
    return
  }
  func.func @transform_0(%arg0: i32) -> (i32, i32, i32, i32, i32) {
    %c0_i32 = arith.constant 0 : i32
    %c0_i32_0 = arith.constant 0 : i32
    %c0_i32_1 = arith.constant 0 : i32
    %c0_i32_2 = arith.constant 0 : i32
    %c0_i32_3 = arith.constant 0 : i32
    return %arg0, %c0_i32, %c0_i32_0, %c0_i32_1, %c0_i32_2 : i32, i32, i32, i32, i32
  }
  func.func @transform_1(%arg0: i32) -> (i32, i32) {
    %c0_i32 = arith.constant 0 : i32
    %c0_i32_0 = arith.constant 0 : i32
    %c0_i32_1 = arith.constant 0 : i32
    return %c0_i32, %c0_i32_0 : i32, i32
  }
  func.func @transform_2(%arg0: i32) -> (i32, i32) {
    %c0_i32 = arith.constant 0 : i32
    %c0_i32_0 = arith.constant 0 : i32
    %c0_i32_1 = arith.constant 0 : i32
    return %c0_i32, %c0_i32_0 : i32, i32
  }
  func.func @transform_3(%arg0: i32) -> (i32, i32) {
    %c0_i32 = arith.constant 0 : i32
    %c0_i32_0 = arith.constant 0 : i32
    %c0_i32_1 = arith.constant 0 : i32
    return %c0_i32, %c0_i32_0 : i32, i32
  }
  func.func @transform_4(%arg0: i32) -> (i32, i32) {
    %c0_i32 = arith.constant 0 : i32
    %c0_i32_0 = arith.constant 0 : i32
    %c0_i32_1 = arith.constant 0 : i32
    return %c0_i32, %c0_i32_0 : i32, i32
  }
  func.func @transform_5(%arg0: i32) -> (i32, i32) {
    %c0_i32 = arith.constant 0 : i32
    %c0_i32_0 = arith.constant 0 : i32
    %c0_i32_1 = arith.constant 0 : i32
    return %c0_i32, %c0_i32_0 : i32, i32
  }
  func.func @transform_6(%arg0: i32) -> (i32, i32) {
    %c0_i32 = arith.constant 0 : i32
    %c0_i32_0 = arith.constant 0 : i32
    %c0_i32_1 = arith.constant 0 : i32
    return %c0_i32, %c0_i32_0 : i32, i32
  }
  func.func @transform_7(%arg0: i32) -> (i32, i32, i32) {
    %c0_i32 = arith.constant 0 : i32
    %c0_i32_0 = arith.constant 0 : i32
    %c0_i32_1 = arith.constant 0 : i32
    return %arg0, %c0_i32, %c0_i32_0 : i32, i32, i32
  }
}

</mosaic_0001>

<llo_original>
// kernel: tpu_custom_call.1
$region0: #{tpu_custom_call.1}
  #allocation0 [shape = 'u32[]', space=smem, size = 0x4, offset = 0x4, fixed_abs, tag = 'smem constant byte address 0x4 - core index']
  #allocation1 [shape = 'u32[144,128]{1,0:T(1,128)}', space=vmem, size = 0x12000, scoped, tag = 'internal scratch']
  #allocation2 [shape = 'bf16[18,32,128]{2,1,0:T(16,128)(2,1)}', space=vmem, size = 0x24000, scoped, tag = 'scratch operand']
  %s0 = inlined_call_operand.vmem [shape: bf16[2,1,18,18,128], index: 0, kind: input, shape index: {}]
  %s1 = inlined_call_operand.vmem [shape: bf16[1152,128], index: 1, kind: input, shape index: {}]
  %s2 = inlined_call_operand.vmem [shape: f32[1,128], index: 2, kind: input, shape index: {}]
  %s3 = inlined_call_operand.vmem [shape: f32[1,128], index: 3, kind: input, shape index: {}]
  %s4 = inlined_call_operand.hbm [shape: bf16[1152,128], index: 4, kind: input, shape index: {}]
  %s5 = inlined_call_operand.vmem [shape: f32[1,128], index: 5, kind: input, shape index: {}]
  %s6 = inlined_call_operand.vmem [shape: f32[1,128], index: 6, kind: input, shape index: {}]
  %s7 = inlined_call_operand.hbm [shape: bf16[2,256,128], index: 7, kind: output, shape index: {}]
  %s8 = sld [smem:[#allocation0]]
  $region69: #{tpu_custom_call.1} parent=0
    _
  %s10 = ssub.s32 1, %s8
  %s11 = scalar_select 0, %s10, %s8
  $region1: #{tpu_custom_call.1} parent=0
    #allocation3 [shape = 'u8[294912]{0}', space=vmem, size = 0x48000, scoped, tag = 'input window, operand 4, single buffered']
    #allocation4 [shape = 's32[2]{0}', space=sflag, size = 0x8, scoped, tag = 'scoped memory for tpu_custom_call.1']
    #allocation5 [shape = 's32[2]{0}', space=sflag, size = 0x8, scoped, tag = 'scoped memory for tpu_custom_call.1']
    #allocation6 [shape = 'u8[131072]{0}', space=vmem, size = 0x20000, scoped, tag = 'output window, operand 0']
    %12 = vsyncpa [#allocation4], 0
    %13 = vsyncpa [#allocation5], 0
    %s14 = scalar_lea.sflag [#allocation5], 1
    %15 = vsyncpa %s14, 0
    loop: start=0, step=1, limit=4
    $region2: #{tpu_custom_call.1} parent=1 // loop_pre_header
      _
    $region3: #{tpu_custom_call.1} parent=1 // loop_header
      %s17 = sphi 0, %s21
      %p18 = scmp.ge.s32.totalorder %s17, 4
      %s27 = sphi 0, %s29
      %s30 = sphi 0, %s27
      %s31 = sphi 0, %s30
      %s47 = sphi 0, %s31
      %s51 = sphi 0, %s51
      %s53 = sphi 0, %s51
      %s54 = sphi 0, %s53
      %s68 = sphi 0, %s54
      %s72 = sphi 0, %s72
      %s74 = sphi 0, %s72
      %s75 = sphi 0, %s74
      %s89 = sphi 0, %s75
      %s93 = sphi 0, %s93
      %s95 = sphi 0, %s93
      %s96 = sphi 0, %s95
      %s110 = sphi 0, %s96
      %s114 = sphi 0, %s114
      %s116 = sphi 0, %s114
      %s117 = sphi 0, %s116
      %s131 = sphi 0, %s117
      %s135 = sphi 0, %s135
      %s137 = sphi 0, %s135
      %s138 = sphi 0, %s137
      %s152 = sphi 0, %s138
      %s156 = sphi 0, %s156
      %s158 = sphi 0, %s156
      %s159 = sphi 0, %s158
      %s173 = sphi 0, %s159
      %s179 = sphi 0, %s181
      %s182 = sphi 0, %s179
      %s183 = sphi 0, %s182
      %s199 = sphi 0, %s183
    $region4: #{tpu_custom_call.1} parent=1 // loop_header_branch
      %20 = sbr.rel (%p18) target = $region8
    $region5: #{tpu_custom_call.1} parent=1 // loop_body
      %s22 = ssub.s32 %s17, 1
      %s23 = ssub.s32 %s17, 2
      %s24 = sadd.s32 %s17, 1
      %s25 = ssub.s32 %s17, %s24
      %p26 = scmp.eq.s32.totalorder %s25, 0
      %s28 = sadd.s32 %s27, 1
      %s29 = scalar_select %p26, %s27, %s28
      %p32 = pneg %p26
      %p33 = scmp.eq.s32.totalorder %s17, 1
      %p34 = por %p32, %p33
      %p35 = scmp.ne.s32.totalorder %s27, %s30
      %p36 = scmp.eq.s32.totalorder %s17, 0
      %p37 = por %p35, %p36
      %p38 = scmp.ne.s32.totalorder %s27, %s30
      %p39 = scmp.eq.s32.totalorder %s22, 1
      %p40 = por %p38, %p39
      %p41 = scmp.ne.s32.totalorder %s30, %s31
      %p42 = scmp.eq.s32.totalorder %s22, 0
      %p43 = por %p41, %p42
      %p44 = scmp.ne.s32.totalorder %s30, %s31
      %p45 = scmp.eq.s32.totalorder %s23, 1
      %p46 = por %p44, %p45
      %p48 = scmp.ne.s32.totalorder %s31, %s47
      %p49 = scmp.eq.s32.totalorder %s23, 0
      %p50 = por %p48, %p49
      %s52 = sadd.s32 %s51, 1
      %p55 = scmp.eq.s32.totalorder %s17, 1
      %p56 = scmp.ne.s32.totalorder %s51, %s53
      %p57 = scmp.eq.s32.totalorder %s17, 0
      %p58 = por %p56, %p57
      %p59 = scmp.ne.s32.totalorder %s51, %s53
      %p60 = scmp.eq.s32.totalorder %s22, 1
      %p61 = por %p59, %p60
      %p62 = scmp.ne.s32.totalorder %s53, %s54
      %p63 = scmp.eq.s32.totalorder %s22, 0
      %p64 = por %p62, %p63
      %p65 = scmp.ne.s32.totalorder %s53, %s54
      %p66 = scmp.eq.s32.totalorder %s23, 1
      %p67 = por %p65, %p66
      %p69 = scmp.ne.s32.totalorder %s54, %s68
      %p70 = scmp.eq.s32.totalorder %s23, 0
      %p71 = por %p69, %p70
      %s73 = sadd.s32 %s72, 1
      %p76 = scmp.eq.s32.totalorder %s17, 1
      %p77 = scmp.ne.s32.totalorder %s72, %s74
      %p78 = scmp.eq.s32.totalorder %s17, 0
      %p79 = por %p77, %p78
      %p80 = scmp.ne.s32.totalorder %s72, %s74
      %p81 = scmp.eq.s32.totalorder %s22, 1
      %p82 = por %p80, %p81
      %p83 = scmp.ne.s32.totalorder %s74, %s75
      %p84 = scmp.eq.s32.totalorder %s22, 0
      %p85 = por %p83, %p84
      %p86 = scmp.ne.s32.totalorder %s74, %s75
      %p87 = scmp.eq.s32.totalorder %s23, 1
      %p88 = por %p86, %p87
      %p90 = scmp.ne.s32.totalorder %s75, %s89
      %p91 = scmp.eq.s32.totalorder %s23, 0
      %p92 = por %p90, %p91
      %s94 = sadd.s32 %s93, 1
      %p97 = scmp.eq.s32.totalorder %s17, 1
      %p98 = scmp.ne.s32.totalorder %s93, %s95
      %p99 = scmp.eq.s32.totalorder %s17, 0
      %p100 = por %p98, %p99
      %p101 = scmp.ne.s32.totalorder %s93, %s95
      %p102 = scmp.eq.s32.totalorder %s22, 1
      %p103 = por %p101, %p102
      %p104 = scmp.ne.s32.totalorder %s95, %s96
      %p105 = scmp.eq.s32.totalorder %s22, 0
      %p106 = por %p104, %p105
      %p107 = scmp.ne.s32.totalorder %s95, %s96
      %p108 = scmp.eq.s32.totalorder %s23, 1
      %p109 = por %p107, %p108
      %p111 = scmp.ne.s32.totalorder %s96, %s110
      %p112 = scmp.eq.s32.totalorder %s23, 0
      %p113 = por %p111, %p112
      %s115 = sadd.s32 %s114, 1
      %p118 = scmp.eq.s32.totalorder %s17, 1
      %p119 = scmp.ne.s32.totalorder %s114, %s116
      %p120 = scmp.eq.s32.totalorder %s17, 0
      %p121 = por %p119, %p120
      %p122 = scmp.ne.s32.totalorder %s114, %s116
      %p123 = scmp.eq.s32.totalorder %s22, 1
      %p124 = por %p122, %p123
      %p125 = scmp.ne.s32.totalorder %s116, %s117
      %p126 = scmp.eq.s32.totalorder %s22, 0
      %p127 = por %p125, %p126
      %p128 = scmp.ne.s32.totalorder %s116, %s117
      %p129 = scmp.eq.s32.totalorder %s23, 1
      %p130 = por %p128, %p129
      %p132 = scmp.ne.s32.totalorder %s117, %s131
      %p133 = scmp.eq.s32.totalorder %s23, 0
      %p134 = por %p132, %p133
      %s136 = sadd.s32 %s135, 1
      %p139 = scmp.eq.s32.totalorder %s17, 1
      %p140 = scmp.ne.s32.totalorder %s135, %s137
      %p141 = scmp.eq.s32.totalorder %s17, 0
      %p142 = por %p140, %p141
      %p143 = scmp.ne.s32.totalorder %s135, %s137
      %p144 = scmp.eq.s32.totalorder %s22, 1
      %p145 = por %p143, %p144
      %p146 = scmp.ne.s32.totalorder %s137, %s138
      %p147 = scmp.eq.s32.totalorder %s22, 0
      %p148 = por %p146, %p147
      %p149 = scmp.ne.s32.totalorder %s137, %s138
      %p150 = scmp.eq.s32.totalorder %s23, 1
      %p151 = por %p149, %p150
      %p153 = scmp.ne.s32.totalorder %s138, %s152
      %p154 = scmp.eq.s32.totalorder %s23, 0
      %p155 = por %p153, %p154
      %s157 = sadd.s32 %s156, 1
      %p160 = scmp.eq.s32.totalorder %s17, 1
      %p161 = scmp.ne.s32.totalorder %s156, %s158
      %p162 = scmp.eq.s32.totalorder %s17, 0
      %p163 = por %p161, %p162
      %p164 = scmp.ne.s32.totalorder %s156, %s158
      %p165 = scmp.eq.s32.totalorder %s22, 1
      %p166 = por %p164, %p165
      %p167 = scmp.ne.s32.totalorder %s158, %s159
      %p168 = scmp.eq.s32.totalorder %s22, 0
      %p169 = por %p167, %p168
      %p170 = scmp.ne.s32.totalorder %s158, %s159
      %p171 = scmp.eq.s32.totalorder %s23, 1
      %p172 = por %p170, %p171
      %p174 = scmp.ne.s32.totalorder %s159, %s173
      %p175 = scmp.eq.s32.totalorder %s23, 0
      %p176 = por %p174, %p175
      %s177 = ssub.s32 %s17, %s24
      %p178 = scmp.eq.s32.totalorder %s177, 0
      %s180 = sadd.s32 %s179, 1
      %s181 = scalar_select %p178, %s179, %s180
      %p184 = pneg %p178
      %p185 = scmp.eq.s32.totalorder %s17, 1
      %p186 = por %p184, %p185
      %p187 = scmp.ne.s32.totalorder %s179, %s182
      %p188 = scmp.eq.s32.totalorder %s17, 0
      %p189 = por %p187, %p188
      %p190 = scmp.ne.s32.totalorder %s179, %s182
      %p191 = scmp.eq.s32.totalorder %s22, 1
      %p192 = por %p190, %p191
      %p193 = scmp.ne.s32.totalorder %s182, %s183
      %p194 = scmp.eq.s32.totalorder %s22, 0
      %p195 = por %p193, %p194
      %p196 = scmp.ne.s32.totalorder %s182, %s183
      %p197 = scmp.eq.s32.totalorder %s23, 1
      %p198 = por %p196, %p197
      %p200 = scmp.ne.s32.totalorder %s183, %s199
      %p201 = scmp.eq.s32.totalorder %s23, 0
      %p202 = por %p200, %p201
      %p203 = scmp.le.s32.totalorder 1, %s17
      %p204 = scmp.lt.s32.totalorder %s17, 3
      %p205 = pnand %p203, %p204
      %p206 = pneg %p205
      // Predicated region
      $region9: #{tpu_custom_call.1} parent=5 // pred_check
        _
      $region10: #{tpu_custom_call.1} parent=5 // pred_check_branch
        %208 = sbr.rel (%p205) target = $region12
      $region11: #{tpu_custom_call.1} parent=5 // pred_region
        %s209 = ssub.s32 %s17, 1
        // Predicated region
        $region13: #{tpu_custom_call.1} parent=11 // pred_check
          %p210 = pneg %p64
        $region14: #{tpu_custom_call.1} parent=11 // pred_check_branch
          %212 = sbr.rel (%p210) target = $region16
        $region15: #{tpu_custom_call.1} parent=11 // pred_region
          _
        $region16: #{tpu_custom_call.1} parent=11 // pred_fallthru
          _
        // Predicated region
        $region17: #{tpu_custom_call.1} parent=11 // pred_check
          %p213 = pneg %p85
        $region18: #{tpu_custom_call.1} parent=11 // pred_check_branch
          %215 = sbr.rel (%p213) target = $region20
        $region19: #{tpu_custom_call.1} parent=11 // pred_region
          _
        $region20: #{tpu_custom_call.1} parent=11 // pred_fallthru
          _
        // Predicated region
        $region21: #{tpu_custom_call.1} parent=11 // pred_check
          %p216 = pneg %p106
        $region22: #{tpu_custom_call.1} parent=11 // pred_check_branch
          %218 = sbr.rel (%p216) target = $region24
        $region23: #{tpu_custom_call.1} parent=11 // pred_region
          _
        $region24: #{tpu_custom_call.1} parent=11 // pred_fallthru
          _
        // Predicated region
        $region25: #{tpu_custom_call.1} parent=11 // pred_check
          %p219 = pneg %p127
        $region26: #{tpu_custom_call.1} parent=11 // pred_check_branch
          %221 = sbr.rel (%p219) target = $region28
        $region27: #{tpu_custom_call.1} parent=11 // pred_region
          %s223 = ssub.s32 9216, 9216
          %224 = vsyncadd [#allocation4], %s223
          %s225 = sshll.u32 [#allocation3], 4
          %s226 = int_to_ptr.vmem [resolvable:$true] %s225
          %231 = dma.hbm_to_vmem [thread:$0]  %s4, 9216, %s226, [#allocation4], 64, 64, 4
        $region28: #{tpu_custom_call.1} parent=11 // pred_fallthru
          _
        // Predicated region
        $region29: #{tpu_custom_call.1} parent=11 // pred_check
          %p232 = pneg %p148
        $region30: #{tpu_custom_call.1} parent=11 // pred_check_branch
          %234 = sbr.rel (%p232) target = $region32
        $region31: #{tpu_custom_call.1} parent=11 // pred_region
          _
        $region32: #{tpu_custom_call.1} parent=11 // pred_fallthru
          _
        // Predicated region
        $region33: #{tpu_custom_call.1} parent=11 // pred_check
          %p235 = pneg %p169
        $region34: #{tpu_custom_call.1} parent=11 // pred_check_branch
          %237 = sbr.rel (%p235) target = $region36
        $region35: #{tpu_custom_call.1} parent=11 // pred_region
          _
        $region36: #{tpu_custom_call.1} parent=11 // pred_fallthru
          _
      $region12: #{tpu_custom_call.1} parent=5 // pred_fallthru
        _
      %p238 = scmp.lt.s32.totalorder %s17, 2
      // Predicated region
      $region37: #{tpu_custom_call.1} parent=5 // pred_check
        %p239 = pneg %p238
      $region38: #{tpu_custom_call.1} parent=5 // pred_check_branch
        %241 = sbr.rel (%p239) target = $region40
      $region39: #{tpu_custom_call.1} parent=5 // pred_region
        // Predicated region
        $region41: #{tpu_custom_call.1} parent=39 // pred_check
          %p242 = pneg %p37
        $region42: #{tpu_custom_call.1} parent=39 // pred_check_branch
          %244 = sbr.rel (%p242) target = $region44
        $region43: #{tpu_custom_call.1} parent=39 // pred_region
          %p245 = scmp.lt.s32.totalorder %s17, 1
          %s246 = scalar_select %p245, %s17, 1
          %s247 = smul.addr %s246, 54
          %s248 = smul.addr %s247, 4
          %s249 = scalar_lea.vmem %s0, %s248
        $region44: #{tpu_custom_call.1} parent=39 // pred_fallthru
          _
      $region40: #{tpu_custom_call.1} parent=5 // pred_fallthru
        _
      %p250 = scmp.le.s32.totalorder 1, %s17
      %p251 = scmp.lt.s32.totalorder %s17, 3
      %p252 = pnand %p250, %p251
      %p253 = pneg %p252
      // Predicated region
      $region45: #{tpu_custom_call.1} parent=5 // pred_check
        _
      $region46: #{tpu_custom_call.1} parent=5 // pred_check_branch
        %255 = sbr.rel (%p252) target = $region48
      $region47: #{tpu_custom_call.1} parent=5 // pred_region
        %s256 = ssub.s32 %s17, 1
        // Predicated region
        $region49: #{tpu_custom_call.1} parent=47 // pred_check
          %p257 = pneg %p127
        $region50: #{tpu_custom_call.1} parent=47 // pred_check_branch
          %259 = sbr.rel (%p257) target = $region52
        $region51: #{tpu_custom_call.1} parent=47 // pred_region
          %260 = dma.done [#allocation4], 9216
        $region52: #{tpu_custom_call.1} parent=47 // pred_fallthru
          _
        %p261 = scmp.lt.s32.totalorder %s22, 1
        %s262 = scalar_select %p261, %s22, 1
        %s263 = smul.addr %s262, 54
        %s264 = smul.addr %s263, 4
        %s265 = scalar_lea.vmem %s0, %s264
        %p266 = pneg %p43
        %p267 = pneg %p40
        %p268 = pneg %p64
        %p269 = pneg %p61
        %p270 = pneg %p85
        %p271 = pneg %p82
        %p272 = pneg %p106
        %p273 = pneg %p103
        %p274 = pneg %p127
        %p275 = pneg %p124
        %p276 = pneg %p148
        %p277 = pneg %p145
        %p278 = pneg %p169
        %p279 = pneg %p166
        %p280 = pneg %p195
        %p281 = pneg %p192
        %s282 = sand.u32 %s182, 1
        %s283 = scalar_lea.sflag [#allocation5], %s282
        %s284 = sand.u32 %s182, 1
        %s285 = smul.addr %s284, 128
        %s286 = scalar_lea.vmem [#allocation6], %s285
        %p287 = scmp.lt.s32.totalorder %s22, 1
        %s288 = scalar_select %p287, %s22, 1
        %s289 = smul.addr %s288, 54
        %s290 = smul.addr %s289, 4
        %s291 = scalar_lea.vmem %s0, %s290
        %p293 = scmp.eq.s32.totalorder %s22, 0
        // Predicated region
        $region53: #{tpu_custom_call.1} parent=47 // pred_check
          %p294 = pneg %p293
        $region54: #{tpu_custom_call.1} parent=47 // pred_check_branch
          %296 = sbr.rel (%p294) target = $region56
        $region55: #{tpu_custom_call.1} parent=47 // pred_region
          %297 = vst [vmem:[#allocation2] sm:$0xff] 0
          %298 = vst [vmem:[#allocation2 + $0x8] sm:$0xff] 0
          %299 = vst [vmem:[#allocation2 + $0x10] sm:$0xff] 0
          %300 = vst [vmem:[#allocation2 + $0x18] sm:$0xff] 0
          %301 = vst [vmem:[#allocation2 + $0x20] sm:$0xff] 0
          %302 = vst [vmem:[#allocation2 + $0x28] sm:$0xff] 0
          %303 = vst [vmem:[#allocation2 + $0x30] sm:$0xff] 0
          %304 = vst [vmem:[#allocation2 + $0x38] sm:$0xff] 0
          %305 = vst [vmem:[#allocation2 + $0x40] sm:$0xff] 0
          %306 = vst [vmem:[#allocation2 + $0x48] sm:$0xff] 0
          %307 = vst [vmem:[#allocation2 + $0x50] sm:$0xff] 0
          %308 = vst [vmem:[#allocation2 + $0x58] sm:$0xff] 0
          %309 = vst [vmem:[#allocation2 + $0x60] sm:$0xff] 0
          %310 = vst [vmem:[#allocation2 + $0x68] sm:$0xff] 0
          %311 = vst [vmem:[#allocation2 + $0x70] sm:$0xff] 0
          %312 = vst [vmem:[#allocation2 + $0x78] sm:$0xff] 0
          %313 = vst [vmem:[#allocation2 + $0x80] sm:$0xff] 0
          %314 = vst [vmem:[#allocation2 + $0x88] sm:$0xff] 0
          %315 = vst [vmem:[#allocation2 + $0x90] sm:$0xff] 0
          %316 = vst [vmem:[#allocation2 + $0x98] sm:$0xff] 0
          %317 = vst [vmem:[#allocation2 + $0xa0] sm:$0xff] 0
          %318 = vst [vmem:[#allocation2 + $0xa8] sm:$0xff] 0
          %319 = vst [vmem:[#allocation2 + $0xb0] sm:$0xff] 0
          %320 = vst [vmem:[#allocation2 + $0xb8] sm:$0xff] 0
          %321 = vst [vmem:[#allocation2 + $0xc0] sm:$0xff] 0
          %322 = vst [vmem:[#allocation2 + $0xc8] sm:$0xff] 0
          %323 = vst [vmem:[#allocation2 + $0xd0] sm:$0xff] 0
          %324 = vst [vmem:[#allocation2 + $0xd8] sm:$0xff] 0
          %325 = vst [vmem:[#allocation2 + $0xe0] sm:$0xff] 0
          %326 = vst [vmem:[#allocation2 + $0xe8] sm:$0xff] 0
          %327 = vst [vmem:[#allocation2 + $0xf0] sm:$0xff] 0
          %328 = vst [vmem:[#allocation2 + $0xf8] sm:$0xff] 0
          %329 = vst [vmem:[#allocation2 + $0x100] sm:$0xff] 0
          %330 = vst [vmem:[#allocation2 + $0x108] sm:$0xff] 0
          %331 = vst [vmem:[#allocation2 + $0x110] sm:$0xff] 0
          %332 = vst [vmem:[#allocation2 + $0x118] sm:$0xff] 0
        $region56: #{tpu_custom_call.1} parent=47 // pred_fallthru
          _
        %v333 = vld [vmem:[%s291] sm:$0xf]
        %v334 = vld [vmem:[%s291 + $0x4] sm:$0xf]
        %v335 = vld [vmem:[%s291 + $0xc] sm:$0xf]
        %v336 = vld [vmem:[%s291 + $0x10] sm:$0xf]
        %v337 = vld [vmem:[%s291 + $0x18] sm:$0xf]
        %v338 = vld [vmem:[%s291 + $0x1c] sm:$0xf]
        %v339 = vld [vmem:[%s291 + $0x24] sm:$0xf]
        %v340 = vld [vmem:[%s291 + $0x28] sm:$0xf]
        %v341 = vld [vmem:[%s291 + $0x30] sm:$0xf]
        %v342 = vld [vmem:[%s291 + $0x34] sm:$0xf]
        %v343 = vld [vmem:[%s291 + $0x3c] sm:$0xf]
        %v344 = vld [vmem:[%s291 + $0x40] sm:$0xf]
        %v345 = vld [vmem:[%s291 + $0x48] sm:$0xf]
        %v346 = vld [vmem:[%s291 + $0x4c] sm:$0xf]
        %v347 = vld [vmem:[%s291 + $0x54] sm:$0xf]
        %v348 = vld [vmem:[%s291 + $0x58] sm:$0xf]
        %v349 = vld [vmem:[%s291 + $0x60] sm:$0xf]
        %v350 = vld [vmem:[%s291 + $0x64] sm:$0xf]
        %v351 = vld [vmem:[%s291 + $0x6c] sm:$0xf]
        %v352 = vld [vmem:[%s291 + $0x70] sm:$0xf]
        %v353 = vld [vmem:[%s291 + $0x78] sm:$0xf]
        %v354 = vld [vmem:[%s291 + $0x7c] sm:$0xf]
        %v355 = vld [vmem:[%s291 + $0x84] sm:$0xf]
        %v356 = vld [vmem:[%s291 + $0x88] sm:$0xf]
        %v357 = vld [vmem:[%s291 + $0x90] sm:$0xf]
        %v358 = vld [vmem:[%s291 + $0x94] sm:$0xf]
        %v359 = vld [vmem:[%s291 + $0x9c] sm:$0xf]
        %v360 = vld [vmem:[%s291 + $0xa0] sm:$0xf]
        %v361 = vld [vmem:[%s291 + $0xa8] sm:$0xf]
        %v362 = vld [vmem:[%s291 + $0xac] sm:$0xf]
        %v363 = vld [vmem:[%s291 + $0xb4] sm:$0xf]
        %v364 = vld [vmem:[%s291 + $0xb8] sm:$0xf]
        %v365 = vld [vmem:[%s291 + $0x8] sm:$0x1]
        %v366 = vld [vmem:[%s291 + $0x14] sm:$0x1]
        %v367 = vld [vmem:[%s291 + $0x20] sm:$0x1]
        %v368 = vld [vmem:[%s291 + $0x2c] sm:$0x1]
        %v369 = vld [vmem:[%s291 + $0x38] sm:$0x1]
        %v370 = vld [vmem:[%s291 + $0x44] sm:$0x1]
        %v371 = vld [vmem:[%s291 + $0x50] sm:$0x1]
        %v372 = vld [vmem:[%s291 + $0x5c] sm:$0x1]
        %v373 = vld [vmem:[%s291 + $0x68] sm:$0x1]
        %v374 = vld [vmem:[%s291 + $0x74] sm:$0x1]
        %v375 = vld [vmem:[%s291 + $0x80] sm:$0x1]
        %v376 = vld [vmem:[%s291 + $0x8c] sm:$0x1]
        %v377 = vld [vmem:[%s291 + $0x98] sm:$0x1]
        %v378 = vld [vmem:[%s291 + $0xa4] sm:$0x1]
        %v379 = vld [vmem:[%s291 + $0xb0] sm:$0x1]
        %v380 = vld [vmem:[%s291 + $0xbc] sm:$0x1]
        %vm381 = vsmask.f32 3328
        %vm382 = vsmask.f32 7440
        %vm383 = vmor %vm381, %vm382
        %v385 = vshrl.u32 %v333, 16
        %v387 = vrot.slane %v385, 4
        %v388 = vshll.u32 %v333, 16
        %v390 = vrot.slane %v388, 5
        %v391 = vor.u32 %v387, %v390
        %v392 = vrot.slane %v391, 4
        %v394 = vshll.u32 %v334, 16
        %v396 = vrot.slane %v394, 5
        %v397 = vsel %vm383, %v392, %v396
        %v398 = vshrl.u32 %v334, 16
        %v400 = vrot.slane %v398, 4
        %v401 = vor.u32 %v400, %v396
        %v402 = vrot.slane %v401, 4
        %v404 = vshll.u32 %v365, 16
        %v406 = vrot.slane %v404, 5
        %v407 = vsel %vm383, %v402, %v406
        %v409 = vshrl.u32 %v335, 16
        %v411 = vrot.slane %v409, 4
        %v412 = vshll.u32 %v335, 16
        %v414 = vrot.slane %v412, 5
        %v415 = vor.u32 %v411, %v414
        %v416 = vrot.slane %v415, 4
        %v418 = vshll.u32 %v336, 16
        %v420 = vrot.slane %v418, 5
        %v421 = vsel %vm383, %v416, %v420
        %v422 = vshrl.u32 %v336, 16
        %v424 = vrot.slane %v422, 4
        %v425 = vor.u32 %v424, %v420
        %v426 = vrot.slane %v425, 4
        %v428 = vshll.u32 %v366, 16
        %v430 = vrot.slane %v428, 5
        %v431 = vsel %vm383, %v426, %v430
        %v433 = vshrl.u32 %v337, 16
        %v435 = vrot.slane %v433, 4
        %v436 = vshll.u32 %v337, 16
        %v438 = vrot.slane %v436, 5
        %v439 = vor.u32 %v435, %v438
        %v440 = vrot.slane %v439, 4
        %v442 = vshll.u32 %v338, 16
        %v444 = vrot.slane %v442, 5
        %v445 = vsel %vm383, %v440, %v444
        %v446 = vshrl.u32 %v338, 16
        %v448 = vrot.slane %v446, 4
        %v449 = vor.u32 %v448, %v444
        %v450 = vrot.slane %v449, 4
        %v452 = vshll.u32 %v367, 16
        %v454 = vrot.slane %v452, 5
        %v455 = vsel %vm383, %v450, %v454
        %v457 = vshrl.u32 %v339, 16
        %v459 = vrot.slane %v457, 4
        %v460 = vshll.u32 %v339, 16
        %v462 = vrot.slane %v460, 5
        %v463 = vor.u32 %v459, %v462
        %v464 = vrot.slane %v463, 4
        %v466 = vshll.u32 %v340, 16
        %v468 = vrot.slane %v466, 5
        %v469 = vsel %vm383, %v464, %v468
        %v470 = vshrl.u32 %v340, 16
        %v472 = vrot.slane %v470, 4
        %v473 = vor.u32 %v472, %v468
        %v474 = vrot.slane %v473, 4
        %v476 = vshll.u32 %v368, 16
        %v478 = vrot.slane %v476, 5
        %v479 = vsel %vm383, %v474, %v478
        %v481 = vshrl.u32 %v341, 16
        %v483 = vrot.slane %v481, 4
        %v484 = vshll.u32 %v341, 16
        %v486 = vrot.slane %v484, 5
        %v487 = vor.u32 %v483, %v486
        %v488 = vrot.slane %v487, 4
        %v490 = vshll.u32 %v342, 16
        %v492 = vrot.slane %v490, 5
        %v493 = vsel %vm383, %v488, %v492
        %v494 = vshrl.u32 %v342, 16
        %v496 = vrot.slane %v494, 4
        %v497 = vor.u32 %v496, %v492
        %v498 = vrot.slane %v497, 4
        %v500 = vshll.u32 %v369, 16
        %v502 = vrot.slane %v500, 5
        %v503 = vsel %vm383, %v498, %v502
        %v505 = vshrl.u32 %v343, 16
        %v507 = vrot.slane %v505, 4
        %v508 = vshll.u32 %v343, 16
        %v510 = vrot.slane %v508, 5
        %v511 = vor.u32 %v507, %v510
        %v512 = vrot.slane %v511, 4
        %v514 = vshll.u32 %v344, 16
        %v516 = vrot.slane %v514, 5
        %v517 = vsel %vm383, %v512, %v516
        %v518 = vshrl.u32 %v344, 16
        %v520 = vrot.slane %v518, 4
        %v521 = vor.u32 %v520, %v516
        %v522 = vrot.slane %v521, 4
        %v524 = vshll.u32 %v370, 16
        %v526 = vrot.slane %v524, 5
        %v527 = vsel %vm383, %v522, %v526
        %v529 = vshrl.u32 %v345, 16
        %v531 = vrot.slane %v529, 4
        %v532 = vshll.u32 %v345, 16
        %v534 = vrot.slane %v532, 5
        %v535 = vor.u32 %v531, %v534
        %v536 = vrot.slane %v535, 4
        %v538 = vshll.u32 %v346, 16
        %v540 = vrot.slane %v538, 5
        %v541 = vsel %vm383, %v536, %v540
        %v542 = vshrl.u32 %v346, 16
        %v544 = vrot.slane %v542, 4
        %v545 = vor.u32 %v544, %v540
        %v546 = vrot.slane %v545, 4
        %v548 = vshll.u32 %v371, 16
        %v550 = vrot.slane %v548, 5
        %v551 = vsel %vm383, %v546, %v550
        %v553 = vshrl.u32 %v347, 16
        %v555 = vrot.slane %v553, 4
        %v556 = vshll.u32 %v347, 16
        %v558 = vrot.slane %v556, 5
        %v559 = vor.u32 %v555, %v558
        %v560 = vrot.slane %v559, 4
        %v562 = vshll.u32 %v348, 16
        %v564 = vrot.slane %v562, 5
        %v565 = vsel %vm383, %v560, %v564
        %v566 = vshrl.u32 %v348, 16
        %v568 = vrot.slane %v566, 4
        %v569 = vor.u32 %v568, %v564
        %v570 = vrot.slane %v569, 4
        %v572 = vshll.u32 %v372, 16
        %v574 = vrot.slane %v572, 5
        %v575 = vsel %vm383, %v570, %v574
        %v577 = vshrl.u32 %v349, 16
        %v579 = vrot.slane %v577, 4
        %v580 = vshll.u32 %v349, 16
        %v582 = vrot.slane %v580, 5
        %v583 = vor.u32 %v579, %v582
        %v584 = vrot.slane %v583, 4
        %v586 = vshll.u32 %v350, 16
        %v588 = vrot.slane %v586, 5
        %v589 = vsel %vm383, %v584, %v588
        %v590 = vshrl.u32 %v350, 16
        %v592 = vrot.slane %v590, 4
        %v593 = vor.u32 %v592, %v588
        %v594 = vrot.slane %v593, 4
        %v596 = vshll.u32 %v373, 16
        %v598 = vrot.slane %v596, 5
        %v599 = vsel %vm383, %v594, %v598
        %v601 = vshrl.u32 %v351, 16
        %v603 = vrot.slane %v601, 4
        %v604 = vshll.u32 %v351, 16
        %v606 = vrot.slane %v604, 5
        %v607 = vor.u32 %v603, %v606
        %v608 = vrot.slane %v607, 4
        %v610 = vshll.u32 %v352, 16
        %v612 = vrot.slane %v610, 5
        %v613 = vsel %vm383, %v608, %v612
        %v614 = vshrl.u32 %v352, 16
        %v616 = vrot.slane %v614, 4
        %v617 = vor.u32 %v616, %v612
        %v618 = vrot.slane %v617, 4
        %v620 = vshll.u32 %v374, 16
        %v622 = vrot.slane %v620, 5
        %v623 = vsel %vm383, %v618, %v622
        %v625 = vshrl.u32 %v353, 16
        %v627 = vrot.slane %v625, 4
        %v628 = vshll.u32 %v353, 16
        %v630 = vrot.slane %v628, 5
        %v631 = vor.u32 %v627, %v630
        %v632 = vrot.slane %v631, 4
        %v634 = vshll.u32 %v354, 16
        %v636 = vrot.slane %v634, 5
        %v637 = vsel %vm383, %v632, %v636
        %v638 = vshrl.u32 %v354, 16
        %v640 = vrot.slane %v638, 4
        %v641 = vor.u32 %v640, %v636
        %v642 = vrot.slane %v641, 4
        %v644 = vshll.u32 %v375, 16
        %v646 = vrot.slane %v644, 5
        %v647 = vsel %vm383, %v642, %v646
        %v649 = vshrl.u32 %v355, 16
        %v651 = vrot.slane %v649, 4
        %v652 = vshll.u32 %v355, 16
        %v654 = vrot.slane %v652, 5
        %v655 = vor.u32 %v651, %v654
        %v656 = vrot.slane %v655, 4
        %v658 = vshll.u32 %v356, 16
        %v660 = vrot.slane %v658, 5
        %v661 = vsel %vm383, %v656, %v660
        %v662 = vshrl.u32 %v356, 16
        %v664 = vrot.slane %v662, 4
        %v665 = vor.u32 %v664, %v660
        %v666 = vrot.slane %v665, 4
        %v668 = vshll.u32 %v376, 16
        %v670 = vrot.slane %v668, 5
        %v671 = vsel %vm383, %v666, %v670
        %v673 = vshrl.u32 %v357, 16
        %v675 = vrot.slane %v673, 4
        %v676 = vshll.u32 %v357, 16
        %v678 = vrot.slane %v676, 5
        %v679 = vor.u32 %v675, %v678
        %v680 = vrot.slane %v679, 4
        %v682 = vshll.u32 %v358, 16
        %v684 = vrot.slane %v682, 5
        %v685 = vsel %vm383, %v680, %v684
        %v686 = vshrl.u32 %v358, 16
        %v688 = vrot.slane %v686, 4
        %v689 = vor.u32 %v688, %v684
        %v690 = vrot.slane %v689, 4
        %v692 = vshll.u32 %v377, 16
        %v694 = vrot.slane %v692, 5
        %v695 = vsel %vm383, %v690, %v694
        %v697 = vshrl.u32 %v359, 16
        %v699 = vrot.slane %v697, 4
        %v700 = vshll.u32 %v359, 16
        %v702 = vrot.slane %v700, 5
        %v703 = vor.u32 %v699, %v702
        %v704 = vrot.slane %v703, 4
        %v706 = vshll.u32 %v360, 16
        %v708 = vrot.slane %v706, 5
        %v709 = vsel %vm383, %v704, %v708
        %v710 = vshrl.u32 %v360, 16
        %v712 = vrot.slane %v710, 4
        %v713 = vor.u32 %v712, %v708
        %v714 = vrot.slane %v713, 4
        %v716 = vshll.u32 %v378, 16
        %v718 = vrot.slane %v716, 5
        %v719 = vsel %vm383, %v714, %v718
        %v721 = vshrl.u32 %v361, 16
        %v723 = vrot.slane %v721, 4
        %v724 = vshll.u32 %v361, 16
        %v726 = vrot.slane %v724, 5
        %v727 = vor.u32 %v723, %v726
        %v728 = vrot.slane %v727, 4
        %v730 = vshll.u32 %v362, 16
        %v732 = vrot.slane %v730, 5
        %v733 = vsel %vm383, %v728, %v732
        %v734 = vshrl.u32 %v362, 16
        %v736 = vrot.slane %v734, 4
        %v737 = vor.u32 %v736, %v732
        %v738 = vrot.slane %v737, 4
        %v740 = vshll.u32 %v379, 16
        %v742 = vrot.slane %v740, 5
        %v743 = vsel %vm383, %v738, %v742
        %v745 = vshrl.u32 %v363, 16
        %v747 = vrot.slane %v745, 4
        %v748 = vshll.u32 %v363, 16
        %v750 = vrot.slane %v748, 5
        %v751 = vor.u32 %v747, %v750
        %v752 = vrot.slane %v751, 4
        %v754 = vshll.u32 %v364, 16
        %v756 = vrot.slane %v754, 5
        %v757 = vsel %vm383, %v752, %v756
        %v758 = vshrl.u32 %v364, 16
        %v760 = vrot.slane %v758, 4
        %v761 = vor.u32 %v760, %v756
        %v762 = vrot.slane %v761, 4
        %v764 = vshll.u32 %v380, 16
        %v766 = vrot.slane %v764, 5
        %v767 = vsel %vm383, %v762, %v766
        %v768 = vld [vmem:[%s291] sm:$0xe]
        %v769 = vld [vmem:[%s291 + $0xc] sm:$0xe]
        %v770 = vld [vmem:[%s291 + $0x18] sm:$0xe]
        %v771 = vld [vmem:[%s291 + $0x24] sm:$0xe]
        %v772 = vld [vmem:[%s291 + $0x30] sm:$0xe]
        %v773 = vld [vmem:[%s291 + $0x3c] sm:$0xe]
        %v774 = vld [vmem:[%s291 + $0x48] sm:$0xe]
        %v775 = vld [vmem:[%s291 + $0x54] sm:$0xe]
        %v776 = vld [vmem:[%s291 + $0x60] sm:$0xe]
        %v777 = vld [vmem:[%s291 + $0x6c] sm:$0xe]
        %v778 = vld [vmem:[%s291 + $0x78] sm:$0xe]
        %v779 = vld [vmem:[%s291 + $0x84] sm:$0xe]
        %v780 = vld [vmem:[%s291 + $0x90] sm:$0xe]
        %v781 = vld [vmem:[%s291 + $0x9c] sm:$0xe]
        %v782 = vld [vmem:[%s291 + $0xa8] sm:$0xe]
        %v783 = vld [vmem:[%s291 + $0xb4] sm:$0xe]
        %vm832 = vcmask 1042432
        %vm833 = vcmask 1046532
        %vm834 = vmor %vm832, %vm833
        %v835 = vrot.slane %v768, 5
        %v836 = vrot.slane %v835, 4
        %v837 = vrot.slane %v334, 5
        %v838 = vsel %vm834, %v836, %v837
        %v839 = vrot.slane %v837, 4
        %v840 = vrot.slane %v365, 5
        %v841 = vsel %vm834, %v839, %v840
        %v842 = vrot.slane %v769, 5
        %v843 = vrot.slane %v842, 4
        %v844 = vrot.slane %v336, 5
        %v845 = vsel %vm834, %v843, %v844
        %v846 = vrot.slane %v844, 4
        %v847 = vrot.slane %v366, 5
        %v848 = vsel %vm834, %v846, %v847
        %v849 = vrot.slane %v770, 5
        %v850 = vrot.slane %v849, 4
        %v851 = vrot.slane %v338, 5
        %v852 = vsel %vm834, %v850, %v851
        %v853 = vrot.slane %v851, 4
        %v854 = vrot.slane %v367, 5
        %v855 = vsel %vm834, %v853, %v854
        %v856 = vrot.slane %v771, 5
        %v857 = vrot.slane %v856, 4
        %v858 = vrot.slane %v340, 5
        %v859 = vsel %vm834, %v857, %v858
        %v860 = vrot.slane %v858, 4
        %v861 = vrot.slane %v368, 5
        %v862 = vsel %vm834, %v860, %v861
        %v863 = vrot.slane %v772, 5
        %v864 = vrot.slane %v863, 4
        %v865 = vrot.slane %v342, 5
        %v866 = vsel %vm834, %v864, %v865
        %v867 = vrot.slane %v865, 4
        %v868 = vrot.slane %v369, 5
        %v869 = vsel %vm834, %v867, %v868
        %v870 = vrot.slane %v773, 5
        %v871 = vrot.slane %v870, 4
        %v872 = vrot.slane %v344, 5
        %v873 = vsel %vm834, %v871, %v872
        %v874 = vrot.slane %v872, 4
        %v875 = vrot.slane %v370, 5
        %v876 = vsel %vm834, %v874, %v875
        %v877 = vrot.slane %v774, 5
        %v878 = vrot.slane %v877, 4
        %v879 = vrot.slane %v346, 5
        %v880 = vsel %vm834, %v878, %v879
        %v881 = vrot.slane %v879, 4
        %v882 = vrot.slane %v371, 5
        %v883 = vsel %vm834, %v881, %v882
        %v884 = vrot.slane %v775, 5
        %v885 = vrot.slane %v884, 4
        %v886 = vrot.slane %v348, 5
        %v887 = vsel %vm834, %v885, %v886
        %v888 = vrot.slane %v886, 4
        %v889 = vrot.slane %v372, 5
        %v890 = vsel %vm834, %v888, %v889
        %v891 = vrot.slane %v776, 5
        %v892 = vrot.slane %v891, 4
        %v893 = vrot.slane %v350, 5
        %v894 = vsel %vm834, %v892, %v893
        %v895 = vrot.slane %v893, 4
        %v896 = vrot.slane %v373, 5
        %v897 = vsel %vm834, %v895, %v896
        %v898 = vrot.slane %v777, 5
        %v899 = vrot.slane %v898, 4
        %v900 = vrot.slane %v352, 5
        %v901 = vsel %vm834, %v899, %v900
        %v902 = vrot.slane %v900, 4
        %v903 = vrot.slane %v374, 5
        %v904 = vsel %vm834, %v902, %v903
        %v905 = vrot.slane %v778, 5
        %v906 = vrot.slane %v905, 4
        %v907 = vrot.slane %v354, 5
        %v908 = vsel %vm834, %v906, %v907
        %v909 = vrot.slane %v907, 4
        %v910 = vrot.slane %v375, 5
        %v911 = vsel %vm834, %v909, %v910
        %v912 = vrot.slane %v779, 5
        %v913 = vrot.slane %v912, 4
        %v914 = vrot.slane %v356, 5
        %v915 = vsel %vm834, %v913, %v914
        %v916 = vrot.slane %v914, 4
        %v917 = vrot.slane %v376, 5
        %v918 = vsel %vm834, %v916, %v917
        %v919 = vrot.slane %v780, 5
        %v920 = vrot.slane %v919, 4
        %v921 = vrot.slane %v358, 5
        %v922 = vsel %vm834, %v920, %v921
        %v923 = vrot.slane %v921, 4
        %v924 = vrot.slane %v377, 5
        %v925 = vsel %vm834, %v923, %v924
        %v926 = vrot.slane %v781, 5
        %v927 = vrot.slane %v926, 4
        %v928 = vrot.slane %v360, 5
        %v929 = vsel %vm834, %v927, %v928
        %v930 = vrot.slane %v928, 4
        %v931 = vrot.slane %v378, 5
        %v932 = vsel %vm834, %v930, %v931
        %v933 = vrot.slane %v782, 5
        %v934 = vrot.slane %v933, 4
        %v935 = vrot.slane %v362, 5
        %v936 = vsel %vm834, %v934, %v935
        %v937 = vrot.slane %v935, 4
        %v938 = vrot.slane %v379, 5
        %v939 = vsel %vm834, %v937, %v938
        %v940 = vrot.slane %v783, 5
        %v941 = vrot.slane %v940, 4
        %v942 = vrot.slane %v364, 5
        %v943 = vsel %vm834, %v941, %v942
        %v944 = vrot.slane %v942, 4
        %v945 = vrot.slane %v380, 5
        %v946 = vsel %vm834, %v944, %v945
        %s947 = scalar_lea.vmem %s291, 12
        %v948 = vld [vmem:[%s947] sm:$0xf]
        %v949 = vld [vmem:[%s947 + $0x4] sm:$0xf]
        %v950 = vld [vmem:[%s947 + $0xc] sm:$0xf]
        %v951 = vld [vmem:[%s947 + $0x10] sm:$0xf]
        %v952 = vld [vmem:[%s947 + $0x18] sm:$0xf]
        %v953 = vld [vmem:[%s947 + $0x1c] sm:$0xf]
        %v954 = vld [vmem:[%s947 + $0x24] sm:$0xf]
        %v955 = vld [vmem:[%s947 + $0x28] sm:$0xf]
        %v956 = vld [vmem:[%s947 + $0x30] sm:$0xf]
        %v957 = vld [vmem:[%s947 + $0x34] sm:$0xf]
        %v958 = vld [vmem:[%s947 + $0x3c] sm:$0xf]
        %v959 = vld [vmem:[%s947 + $0x40] sm:$0xf]
        %v960 = vld [vmem:[%s947 + $0x48] sm:$0xf]
        %v961 = vld [vmem:[%s947 + $0x4c] sm:$0xf]
        %v962 = vld [vmem:[%s947 + $0x54] sm:$0xf]
        %v963 = vld [vmem:[%s947 + $0x58] sm:$0xf]
        %v964 = vld [vmem:[%s947 + $0x60] sm:$0xf]
        %v965 = vld [vmem:[%s947 + $0x64] sm:$0xf]
        %v966 = vld [vmem:[%s947 + $0x6c] sm:$0xf]
        %v967 = vld [vmem:[%s947 + $0x70] sm:$0xf]
        %v968 = vld [vmem:[%s947 + $0x78] sm:$0xf]
        %v969 = vld [vmem:[%s947 + $0x7c] sm:$0xf]
        %v970 = vld [vmem:[%s947 + $0x84] sm:$0xf]
        %v971 = vld [vmem:[%s947 + $0x88] sm:$0xf]
        %v972 = vld [vmem:[%s947 + $0x90] sm:$0xf]
        %v973 = vld [vmem:[%s947 + $0x94] sm:$0xf]
        %v974 = vld [vmem:[%s947 + $0x9c] sm:$0xf]
        %v975 = vld [vmem:[%s947 + $0xa0] sm:$0xf]
        %v976 = vld [vmem:[%s947 + $0xa8] sm:$0xf]
        %v977 = vld [vmem:[%s947 + $0xac] sm:$0xf]
        %v978 = vld [vmem:[%s947 + $0xb4] sm:$0xf]
        %v979 = vld [vmem:[%s947 + $0xb8] sm:$0xf]
        %v980 = vld [vmem:[%s947 + $0x8] sm:$0x1]
        %v981 = vld [vmem:[%s947 + $0x14] sm:$0x1]
        %v982 = vld [vmem:[%s947 + $0x20] sm:$0x1]
        %v983 = vld [vmem:[%s947 + $0x2c] sm:$0x1]
        %v984 = vld [vmem:[%s947 + $0x38] sm:$0x1]
        %v985 = vld [vmem:[%s947 + $0x44] sm:$0x1]
        %v986 = vld [vmem:[%s947 + $0x50] sm:$0x1]
        %v987 = vld [vmem:[%s947 + $0x5c] sm:$0x1]
        %v988 = vld [vmem:[%s947 + $0x68] sm:$0x1]
        %v989 = vld [vmem:[%s947 + $0x74] sm:$0x1]
        %v990 = vld [vmem:[%s947 + $0x80] sm:$0x1]
        %v991 = vld [vmem:[%s947 + $0x8c] sm:$0x1]
        %v992 = vld [vmem:[%s947 + $0x98] sm:$0x1]
        %v993 = vld [vmem:[%s947 + $0xa4] sm:$0x1]
        %v994 = vld [vmem:[%s947 + $0xb0] sm:$0x1]
        %v995 = vld [vmem:[%s947 + $0xbc] sm:$0x1]
        %v997 = vshrl.u32 %v948, 16
        %v999 = vrot.slane %v997, 4
        %v1000 = vshll.u32 %v948, 16
        %v1002 = vrot.slane %v1000, 5
        %v1003 = vor.u32 %v999, %v1002
        %v1004 = vrot.slane %v1003, 4
        %v1006 = vshll.u32 %v949, 16
        %v1008 = vrot.slane %v1006, 5
        %v1009 = vsel %vm383, %v1004, %v1008
        %v1010 = vshrl.u32 %v949, 16
        %v1012 = vrot.slane %v1010, 4
        %v1013 = vor.u32 %v1012, %v1008
        %v1014 = vrot.slane %v1013, 4
        %v1016 = vshll.u32 %v980, 16
        %v1018 = vrot.slane %v1016, 5
        %v1019 = vsel %vm383, %v1014, %v1018
        %v1021 = vshrl.u32 %v950, 16
        %v1023 = vrot.slane %v1021, 4
        %v1024 = vshll.u32 %v950, 16
        %v1026 = vrot.slane %v1024, 5
        %v1027 = vor.u32 %v1023, %v1026
        %v1028 = vrot.slane %v1027, 4
        %v1030 = vshll.u32 %v951, 16
        %v1032 = vrot.slane %v1030, 5
        %v1033 = vsel %vm383, %v1028, %v1032
        %v1034 = vshrl.u32 %v951, 16
        %v1036 = vrot.slane %v1034, 4
        %v1037 = vor.u32 %v1036, %v1032
        %v1038 = vrot.slane %v1037, 4
        %v1040 = vshll.u32 %v981, 16
        %v1042 = vrot.slane %v1040, 5
        %v1043 = vsel %vm383, %v1038, %v1042
        %v1045 = vshrl.u32 %v952, 16
        %v1047 = vrot.slane %v1045, 4
        %v1048 = vshll.u32 %v952, 16
        %v1050 = vrot.slane %v1048, 5
        %v1051 = vor.u32 %v1047, %v1050
        %v1052 = vrot.slane %v1051, 4
        %v1054 = vshll.u32 %v953, 16
        %v1056 = vrot.slane %v1054, 5
        %v1057 = vsel %vm383, %v1052, %v1056
        %v1058 = vshrl.u32 %v953, 16
        %v1060 = vrot.slane %v1058, 4
        %v1061 = vor.u32 %v1060, %v1056
        %v1062 = vrot.slane %v1061, 4
        %v1064 = vshll.u32 %v982, 16
        %v1066 = vrot.slane %v1064, 5
        %v1067 = vsel %vm383, %v1062, %v1066
        %v1069 = vshrl.u32 %v954, 16
        %v1071 = vrot.slane %v1069, 4
        %v1072 = vshll.u32 %v954, 16
        %v1074 = vrot.slane %v1072, 5
        %v1075 = vor.u32 %v1071, %v1074
        %v1076 = vrot.slane %v1075, 4
        %v1078 = vshll.u32 %v955, 16
        %v1080 = vrot.slane %v1078, 5
        %v1081 = vsel %vm383, %v1076, %v1080
        %v1082 = vshrl.u32 %v955, 16
        %v1084 = vrot.slane %v1082, 4
        %v1085 = vor.u32 %v1084, %v1080
        %v1086 = vrot.slane %v1085, 4
        %v1088 = vshll.u32 %v983, 16
        %v1090 = vrot.slane %v1088, 5
        %v1091 = vsel %vm383, %v1086, %v1090
        %v1093 = vshrl.u32 %v956, 16
        %v1095 = vrot.slane %v1093, 4
        %v1096 = vshll.u32 %v956, 16
        %v1098 = vrot.slane %v1096, 5
        %v1099 = vor.u32 %v1095, %v1098
        %v1100 = vrot.slane %v1099, 4
        %v1102 = vshll.u32 %v957, 16
        %v1104 = vrot.slane %v1102, 5
        %v1105 = vsel %vm383, %v1100, %v1104
        %v1106 = vshrl.u32 %v957, 16
        %v1108 = vrot.slane %v1106, 4
        %v1109 = vor.u32 %v1108, %v1104
        %v1110 = vrot.slane %v1109, 4
        %v1112 = vshll.u32 %v984, 16
        %v1114 = vrot.slane %v1112, 5
        %v1115 = vsel %vm383, %v1110, %v1114
        %v1117 = vshrl.u32 %v958, 16
        %v1119 = vrot.slane %v1117, 4
        %v1120 = vshll.u32 %v958, 16
        %v1122 = vrot.slane %v1120, 5
        %v1123 = vor.u32 %v1119, %v1122
        %v1124 = vrot.slane %v1123, 4
        %v1126 = vshll.u32 %v959, 16
        %v1128 = vrot.slane %v1126, 5
        %v1129 = vsel %vm383, %v1124, %v1128
        %v1130 = vshrl.u32 %v959, 16
        %v1132 = vrot.slane %v1130, 4
        %v1133 = vor.u32 %v1132, %v1128
        %v1134 = vrot.slane %v1133, 4
        %v1136 = vshll.u32 %v985, 16
        %v1138 = vrot.slane %v1136, 5
        %v1139 = vsel %vm383, %v1134, %v1138
        %v1141 = vshrl.u32 %v960, 16
        %v1143 = vrot.slane %v1141, 4
        %v1144 = vshll.u32 %v960, 16
        %v1146 = vrot.slane %v1144, 5
        %v1147 = vor.u32 %v1143, %v1146
        %v1148 = vrot.slane %v1147, 4
        %v1150 = vshll.u32 %v961, 16
        %v1152 = vrot.slane %v1150, 5
        %v1153 = vsel %vm383, %v1148, %v1152
        %v1154 = vshrl.u32 %v961, 16
        %v1156 = vrot.slane %v1154, 4
        %v1157 = vor.u32 %v1156, %v1152
        %v1158 = vrot.slane %v1157, 4
        %v1160 = vshll.u32 %v986, 16
        %v1162 = vrot.slane %v1160, 5
        %v1163 = vsel %vm383, %v1158, %v1162
        %v1165 = vshrl.u32 %v962, 16
        %v1167 = vrot.slane %v1165, 4
        %v1168 = vshll.u32 %v962, 16
        %v1170 = vrot.slane %v1168, 5
        %v1171 = vor.u32 %v1167, %v1170
        %v1172 = vrot.slane %v1171, 4
        %v1174 = vshll.u32 %v963, 16
        %v1176 = vrot.slane %v1174, 5
        %v1177 = vsel %vm383, %v1172, %v1176
        %v1178 = vshrl.u32 %v963, 16
        %v1180 = vrot.slane %v1178, 4
        %v1181 = vor.u32 %v1180, %v1176
        %v1182 = vrot.slane %v1181, 4
        %v1184 = vshll.u32 %v987, 16
        %v1186 = vrot.slane %v1184, 5
        %v1187 = vsel %vm383, %v1182, %v1186
        %v1189 = vshrl.u32 %v964, 16
        %v1191 = vrot.slane %v1189, 4
        %v1192 = vshll.u32 %v964, 16
        %v1194 = vrot.slane %v1192, 5
        %v1195 = vor.u32 %v1191, %v1194
        %v1196 = vrot.slane %v1195, 4
        %v1198 = vshll.u32 %v965, 16
        %v1200 = vrot.slane %v1198, 5
        %v1201 = vsel %vm383, %v1196, %v1200
        %v1202 = vshrl.u32 %v965, 16
        %v1204 = vrot.slane %v1202, 4
        %v1205 = vor.u32 %v1204, %v1200
        %v1206 = vrot.slane %v1205, 4
        %v1208 = vshll.u32 %v988, 16
        %v1210 = vrot.slane %v1208, 5
        %v1211 = vsel %vm383, %v1206, %v1210
        %v1213 = vshrl.u32 %v966, 16
        %v1215 = vrot.slane %v1213, 4
        %v1216 = vshll.u32 %v966, 16
        %v1218 = vrot.slane %v1216, 5
        %v1219 = vor.u32 %v1215, %v1218
        %v1220 = vrot.slane %v1219, 4
        %v1222 = vshll.u32 %v967, 16
        %v1224 = vrot.slane %v1222, 5
        %v1225 = vsel %vm383, %v1220, %v1224
        %v1226 = vshrl.u32 %v967, 16
        %v1228 = vrot.slane %v1226, 4
        %v1229 = vor.u32 %v1228, %v1224
        %v1230 = vrot.slane %v1229, 4
        %v1232 = vshll.u32 %v989, 16
        %v1234 = vrot.slane %v1232, 5
        %v1235 = vsel %vm383, %v1230, %v1234
        %v1237 = vshrl.u32 %v968, 16
        %v1239 = vrot.slane %v1237, 4
        %v1240 = vshll.u32 %v968, 16
        %v1242 = vrot.slane %v1240, 5
        %v1243 = vor.u32 %v1239, %v1242
        %v1244 = vrot.slane %v1243, 4
        %v1246 = vshll.u32 %v969, 16
        %v1248 = vrot.slane %v1246, 5
        %v1249 = vsel %vm383, %v1244, %v1248
        %v1250 = vshrl.u32 %v969, 16
        %v1252 = vrot.slane %v1250, 4
        %v1253 = vor.u32 %v1252, %v1248
        %v1254 = vrot.slane %v1253, 4
        %v1256 = vshll.u32 %v990, 16
        %v1258 = vrot.slane %v1256, 5
        %v1259 = vsel %vm383, %v1254, %v1258
        %v1261 = vshrl.u32 %v970, 16
        %v1263 = vrot.slane %v1261, 4
        %v1264 = vshll.u32 %v970, 16
        %v1266 = vrot.slane %v1264, 5
        %v1267 = vor.u32 %v1263, %v1266
        %v1268 = vrot.slane %v1267, 4
        %v1270 = vshll.u32 %v971, 16
        %v1272 = vrot.slane %v1270, 5
        %v1273 = vsel %vm383, %v1268, %v1272
        %v1274 = vshrl.u32 %v971, 16
        %v1276 = vrot.slane %v1274, 4
        %v1277 = vor.u32 %v1276, %v1272
        %v1278 = vrot.slane %v1277, 4
        %v1280 = vshll.u32 %v991, 16
        %v1282 = vrot.slane %v1280, 5
        %v1283 = vsel %vm383, %v1278, %v1282
        %v1285 = vshrl.u32 %v972, 16
        %v1287 = vrot.slane %v1285, 4
        %v1288 = vshll.u32 %v972, 16
        %v1290 = vrot.slane %v1288, 5
        %v1291 = vor.u32 %v1287, %v1290
        %v1292 = vrot.slane %v1291, 4
        %v1294 = vshll.u32 %v973, 16
        %v1296 = vrot.slane %v1294, 5
        %v1297 = vsel %vm383, %v1292, %v1296
        %v1298 = vshrl.u32 %v973, 16
        %v1300 = vrot.slane %v1298, 4
        %v1301 = vor.u32 %v1300, %v1296
        %v1302 = vrot.slane %v1301, 4
        %v1304 = vshll.u32 %v992, 16
        %v1306 = vrot.slane %v1304, 5
        %v1307 = vsel %vm383, %v1302, %v1306
        %v1309 = vshrl.u32 %v974, 16
        %v1311 = vrot.slane %v1309, 4
        %v1312 = vshll.u32 %v974, 16
        %v1314 = vrot.slane %v1312, 5
        %v1315 = vor.u32 %v1311, %v1314
        %v1316 = vrot.slane %v1315, 4
        %v1318 = vshll.u32 %v975, 16
        %v1320 = vrot.slane %v1318, 5
        %v1321 = vsel %vm383, %v1316, %v1320
        %v1322 = vshrl.u32 %v975, 16
        %v1324 = vrot.slane %v1322, 4
        %v1325 = vor.u32 %v1324, %v1320
        %v1326 = vrot.slane %v1325, 4
        %v1328 = vshll.u32 %v993, 16
        %v1330 = vrot.slane %v1328, 5
        %v1331 = vsel %vm383, %v1326, %v1330
        %v1333 = vshrl.u32 %v976, 16
        %v1335 = vrot.slane %v1333, 4
        %v1336 = vshll.u32 %v976, 16
        %v1338 = vrot.slane %v1336, 5
        %v1339 = vor.u32 %v1335, %v1338
        %v1340 = vrot.slane %v1339, 4
        %v1342 = vshll.u32 %v977, 16
        %v1344 = vrot.slane %v1342, 5
        %v1345 = vsel %vm383, %v1340, %v1344
        %v1346 = vshrl.u32 %v977, 16
        %v1348 = vrot.slane %v1346, 4
        %v1349 = vor.u32 %v1348, %v1344
        %v1350 = vrot.slane %v1349, 4
        %v1352 = vshll.u32 %v994, 16
        %v1354 = vrot.slane %v1352, 5
        %v1355 = vsel %vm383, %v1350, %v1354
        %v1357 = vshrl.u32 %v978, 16
        %v1359 = vrot.slane %v1357, 4
        %v1360 = vshll.u32 %v978, 16
        %v1362 = vrot.slane %v1360, 5
        %v1363 = vor.u32 %v1359, %v1362
        %v1364 = vrot.slane %v1363, 4
        %v1366 = vshll.u32 %v979, 16
        %v1368 = vrot.slane %v1366, 5
        %v1369 = vsel %vm383, %v1364, %v1368
        %v1370 = vshrl.u32 %v979, 16
        %v1372 = vrot.slane %v1370, 4
        %v1373 = vor.u32 %v1372, %v1368
        %v1374 = vrot.slane %v1373, 4
        %v1376 = vshll.u32 %v995, 16
        %v1378 = vrot.slane %v1376, 5
        %v1379 = vsel %vm383, %v1374, %v1378
        %v1380 = vld [vmem:[%s947] sm:$0xe]
        %v1381 = vld [vmem:[%s947 + $0xc] sm:$0xe]
        %v1382 = vld [vmem:[%s947 + $0x18] sm:$0xe]
        %v1383 = vld [vmem:[%s947 + $0x24] sm:$0xe]
        %v1384 = vld [vmem:[%s947 + $0x30] sm:$0xe]
        %v1385 = vld [vmem:[%s947 + $0x3c] sm:$0xe]
        %v1386 = vld [vmem:[%s947 + $0x48] sm:$0xe]
        %v1387 = vld [vmem:[%s947 + $0x54] sm:$0xe]
        %v1388 = vld [vmem:[%s947 + $0x60] sm:$0xe]
        %v1389 = vld [vmem:[%s947 + $0x6c] sm:$0xe]
        %v1390 = vld [vmem:[%s947 + $0x78] sm:$0xe]
        %v1391 = vld [vmem:[%s947 + $0x84] sm:$0xe]
        %v1392 = vld [vmem:[%s947 + $0x90] sm:$0xe]
        %v1393 = vld [vmem:[%s947 + $0x9c] sm:$0xe]
        %v1394 = vld [vmem:[%s947 + $0xa8] sm:$0xe]
        %v1395 = vld [vmem:[%s947 + $0xb4] sm:$0xe]
        %v1444 = vrot.slane %v1380, 5
        %v1445 = vrot.slane %v1444, 4
        %v1446 = vrot.slane %v949, 5
        %v1447 = vsel %vm834, %v1445, %v1446
        %v1448 = vrot.slane %v1446, 4
        %v1449 = vrot.slane %v980, 5
        %v1450 = vsel %vm834, %v1448, %v1449
        %v1451 = vrot.slane %v1381, 5
        %v1452 = vrot.slane %v1451, 4
        %v1453 = vrot.slane %v951, 5
        %v1454 = vsel %vm834, %v1452, %v1453
        %v1455 = vrot.slane %v1453, 4
        %v1456 = vrot.slane %v981, 5
        %v1457 = vsel %vm834, %v1455, %v1456
        %v1458 = vrot.slane %v1382, 5
        %v1459 = vrot.slane %v1458, 4
        %v1460 = vrot.slane %v953, 5
        %v1461 = vsel %vm834, %v1459, %v1460
        %v1462 = vrot.slane %v1460, 4
        %v1463 = vrot.slane %v982, 5
        %v1464 = vsel %vm834, %v1462, %v1463
        %v1465 = vrot.slane %v1383, 5
        %v1466 = vrot.slane %v1465, 4
        %v1467 = vrot.slane %v955, 5
        %v1468 = vsel %vm834, %v1466, %v1467
        %v1469 = vrot.slane %v1467, 4
        %v1470 = vrot.slane %v983, 5
        %v1471 = vsel %vm834, %v1469, %v1470
        %v1472 = vrot.slane %v1384, 5
        %v1473 = vrot.slane %v1472, 4
        %v1474 = vrot.slane %v957, 5
        %v1475 = vsel %vm834, %v1473, %v1474
        %v1476 = vrot.slane %v1474, 4
        %v1477 = vrot.slane %v984, 5
        %v1478 = vsel %vm834, %v1476, %v1477
        %v1479 = vrot.slane %v1385, 5
        %v1480 = vrot.slane %v1479, 4
        %v1481 = vrot.slane %v959, 5
        %v1482 = vsel %vm834, %v1480, %v1481
        %v1483 = vrot.slane %v1481, 4
        %v1484 = vrot.slane %v985, 5
        %v1485 = vsel %vm834, %v1483, %v1484
        %v1486 = vrot.slane %v1386, 5
        %v1487 = vrot.slane %v1486, 4
        %v1488 = vrot.slane %v961, 5
        %v1489 = vsel %vm834, %v1487, %v1488
        %v1490 = vrot.slane %v1488, 4
        %v1491 = vrot.slane %v986, 5
        %v1492 = vsel %vm834, %v1490, %v1491
        %v1493 = vrot.slane %v1387, 5
        %v1494 = vrot.slane %v1493, 4
        %v1495 = vrot.slane %v963, 5
        %v1496 = vsel %vm834, %v1494, %v1495
        %v1497 = vrot.slane %v1495, 4
        %v1498 = vrot.slane %v987, 5
        %v1499 = vsel %vm834, %v1497, %v1498
        %v1500 = vrot.slane %v1388, 5
        %v1501 = vrot.slane %v1500, 4
        %v1502 = vrot.slane %v965, 5
        %v1503 = vsel %vm834, %v1501, %v1502
        %v1504 = vrot.slane %v1502, 4
        %v1505 = vrot.slane %v988, 5
        %v1506 = vsel %vm834, %v1504, %v1505
        %v1507 = vrot.slane %v1389, 5
        %v1508 = vrot.slane %v1507, 4
        %v1509 = vrot.slane %v967, 5
        %v1510 = vsel %vm834, %v1508, %v1509
        %v1511 = vrot.slane %v1509, 4
        %v1512 = vrot.slane %v989, 5
        %v1513 = vsel %vm834, %v1511, %v1512
        %v1514 = vrot.slane %v1390, 5
        %v1515 = vrot.slane %v1514, 4
        %v1516 = vrot.slane %v969, 5
        %v1517 = vsel %vm834, %v1515, %v1516
        %v1518 = vrot.slane %v1516, 4
        %v1519 = vrot.slane %v990, 5
        %v1520 = vsel %vm834, %v1518, %v1519
        %v1521 = vrot.slane %v1391, 5
        %v1522 = vrot.slane %v1521, 4
        %v1523 = vrot.slane %v971, 5
        %v1524 = vsel %vm834, %v1522, %v1523
        %v1525 = vrot.slane %v1523, 4
        %v1526 = vrot.slane %v991, 5
        %v1527 = vsel %vm834, %v1525, %v1526
        %v1528 = vrot.slane %v1392, 5
        %v1529 = vrot.slane %v1528, 4
        %v1530 = vrot.slane %v973, 5
        %v1531 = vsel %vm834, %v1529, %v1530
        %v1532 = vrot.slane %v1530, 4
        %v1533 = vrot.slane %v992, 5
        %v1534 = vsel %vm834, %v1532, %v1533
        %v1535 = vrot.slane %v1393, 5
        %v1536 = vrot.slane %v1535, 4
        %v1537 = vrot.slane %v975, 5
        %v1538 = vsel %vm834, %v1536, %v1537
        %v1539 = vrot.slane %v1537, 4
        %v1540 = vrot.slane %v993, 5
        %v1541 = vsel %vm834, %v1539, %v1540
        %v1542 = vrot.slane %v1394, 5
        %v1543 = vrot.slane %v1542, 4
        %v1544 = vrot.slane %v977, 5
        %v1545 = vsel %vm834, %v1543, %v1544
        %v1546 = vrot.slane %v1544, 4
        %v1547 = vrot.slane %v994, 5
        %v1548 = vsel %vm834, %v1546, %v1547
        %v1549 = vrot.slane %v1395, 5
        %v1550 = vrot.slane %v1549, 4
        %v1551 = vrot.slane %v979, 5
        %v1552 = vsel %vm834, %v1550, %v1551
        %v1553 = vrot.slane %v1551, 4
        %v1554 = vrot.slane %v995, 5
        %v1555 = vsel %vm834, %v1553, %v1554
        %s1556 = scalar_lea.vmem %s291, 24
        %v1557 = vld [vmem:[%s1556] sm:$0xf]
        %v1558 = vld [vmem:[%s1556 + $0x4] sm:$0xf]
        %v1559 = vld [vmem:[%s1556 + $0xc] sm:$0xf]
        %v1560 = vld [vmem:[%s1556 + $0x10] sm:$0xf]
        %v1561 = vld [vmem:[%s1556 + $0x18] sm:$0xf]
        %v1562 = vld [vmem:[%s1556 + $0x1c] sm:$0xf]
        %v1563 = vld [vmem:[%s1556 + $0x24] sm:$0xf]
        %v1564 = vld [vmem:[%s1556 + $0x28] sm:$0xf]
        %v1565 = vld [vmem:[%s1556 + $0x30] sm:$0xf]
        %v1566 = vld [vmem:[%s1556 + $0x34] sm:$0xf]
        %v1567 = vld [vmem:[%s1556 + $0x3c] sm:$0xf]
        %v1568 = vld [vmem:[%s1556 + $0x40] sm:$0xf]
        %v1569 = vld [vmem:[%s1556 + $0x48] sm:$0xf]
        %v1570 = vld [vmem:[%s1556 + $0x4c] sm:$0xf]
        %v1571 = vld [vmem:[%s1556 + $0x54] sm:$0xf]
        %v1572 = vld [vmem:[%s1556 + $0x58] sm:$0xf]
        %v1573 = vld [vmem:[%s1556 + $0x60] sm:$0xf]
        %v1574 = vld [vmem:[%s1556 + $0x64] sm:$0xf]
        %v1575 = vld [vmem:[%s1556 + $0x6c] sm:$0xf]
        %v1576 = vld [vmem:[%s1556 + $0x70] sm:$0xf]
        %v1577 = vld [vmem:[%s1556 + $0x78] sm:$0xf]
        %v1578 = vld [vmem:[%s1556 + $0x7c] sm:$0xf]
        %v1579 = vld [vmem:[%s1556 + $0x84] sm:$0xf]
        %v1580 = vld [vmem:[%s1556 + $0x88] sm:$0xf]
        %v1581 = vld [vmem:[%s1556 + $0x90] sm:$0xf]
        %v1582 = vld [vmem:[%s1556 + $0x94] sm:$0xf]
        %v1583 = vld [vmem:[%s1556 + $0x9c] sm:$0xf]
        %v1584 = vld [vmem:[%s1556 + $0xa0] sm:$0xf]
        %v1585 = vld [vmem:[%s1556 + $0xa8] sm:$0xf]
        %v1586 = vld [vmem:[%s1556 + $0xac] sm:$0xf]
        %v1587 = vld [vmem:[%s1556 + $0xb4] sm:$0xf]
        %v1588 = vld [vmem:[%s1556 + $0xb8] sm:$0xf]
        %v1589 = vld [vmem:[%s1556 + $0x8] sm:$0x1]
        %v1590 = vld [vmem:[%s1556 + $0x14] sm:$0x1]
        %v1591 = vld [vmem:[%s1556 + $0x20] sm:$0x1]
        %v1592 = vld [vmem:[%s1556 + $0x2c] sm:$0x1]
        %v1593 = vld [vmem:[%s1556 + $0x38] sm:$0x1]
        %v1594 = vld [vmem:[%s1556 + $0x44] sm:$0x1]
        %v1595 = vld [vmem:[%s1556 + $0x50] sm:$0x1]
        %v1596 = vld [vmem:[%s1556 + $0x5c] sm:$0x1]
        %v1597 = vld [vmem:[%s1556 + $0x68] sm:$0x1]
        %v1598 = vld [vmem:[%s1556 + $0x74] sm:$0x1]
        %v1599 = vld [vmem:[%s1556 + $0x80] sm:$0x1]
        %v1600 = vld [vmem:[%s1556 + $0x8c] sm:$0x1]
        %v1601 = vld [vmem:[%s1556 + $0x98] sm:$0x1]
        %v1602 = vld [vmem:[%s1556 + $0xa4] sm:$0x1]
        %v1603 = vld [vmem:[%s1556 + $0xb0] sm:$0x1]
        %v1604 = vld [vmem:[%s1556 + $0xbc] sm:$0x1]
        %v1606 = vshrl.u32 %v1557, 16
        %v1608 = vrot.slane %v1606, 4
        %v1609 = vshll.u32 %v1557, 16
        %v1611 = vrot.slane %v1609, 5
        %v1612 = vor.u32 %v1608, %v1611
        %v1613 = vrot.slane %v1612, 4
        %v1615 = vshll.u32 %v1558, 16
        %v1617 = vrot.slane %v1615, 5
        %v1618 = vsel %vm383, %v1613, %v1617
        %v1619 = vshrl.u32 %v1558, 16
        %v1621 = vrot.slane %v1619, 4
        %v1622 = vor.u32 %v1621, %v1617
        %v1623 = vrot.slane %v1622, 4
        %v1625 = vshll.u32 %v1589, 16
        %v1627 = vrot.slane %v1625, 5
        %v1628 = vsel %vm383, %v1623, %v1627
        %v1630 = vshrl.u32 %v1559, 16
        %v1632 = vrot.slane %v1630, 4
        %v1633 = vshll.u32 %v1559, 16
        %v1635 = vrot.slane %v1633, 5
        %v1636 = vor.u32 %v1632, %v1635
        %v1637 = vrot.slane %v1636, 4
        %v1639 = vshll.u32 %v1560, 16
        %v1641 = vrot.slane %v1639, 5
        %v1642 = vsel %vm383, %v1637, %v1641
        %v1643 = vshrl.u32 %v1560, 16
        %v1645 = vrot.slane %v1643, 4
        %v1646 = vor.u32 %v1645, %v1641
        %v1647 = vrot.slane %v1646, 4
        %v1649 = vshll.u32 %v1590, 16
        %v1651 = vrot.slane %v1649, 5
        %v1652 = vsel %vm383, %v1647, %v1651
        %v1654 = vshrl.u32 %v1561, 16
        %v1656 = vrot.slane %v1654, 4
        %v1657 = vshll.u32 %v1561, 16
        %v1659 = vrot.slane %v1657, 5
        %v1660 = vor.u32 %v1656, %v1659
        %v1661 = vrot.slane %v1660, 4
        %v1663 = vshll.u32 %v1562, 16
        %v1665 = vrot.slane %v1663, 5
        %v1666 = vsel %vm383, %v1661, %v1665
        %v1667 = vshrl.u32 %v1562, 16
        %v1669 = vrot.slane %v1667, 4
        %v1670 = vor.u32 %v1669, %v1665
        %v1671 = vrot.slane %v1670, 4
        %v1673 = vshll.u32 %v1591, 16
        %v1675 = vrot.slane %v1673, 5
        %v1676 = vsel %vm383, %v1671, %v1675
        %v1678 = vshrl.u32 %v1563, 16
        %v1680 = vrot.slane %v1678, 4
        %v1681 = vshll.u32 %v1563, 16
        %v1683 = vrot.slane %v1681, 5
        %v1684 = vor.u32 %v1680, %v1683
        %v1685 = vrot.slane %v1684, 4
        %v1687 = vshll.u32 %v1564, 16
        %v1689 = vrot.slane %v1687, 5
        %v1690 = vsel %vm383, %v1685, %v1689
        %v1691 = vshrl.u32 %v1564, 16
        %v1693 = vrot.slane %v1691, 4
        %v1694 = vor.u32 %v1693, %v1689
        %v1695 = vrot.slane %v1694, 4
        %v1697 = vshll.u32 %v1592, 16
        %v1699 = vrot.slane %v1697, 5
        %v1700 = vsel %vm383, %v1695, %v1699
        %v1702 = vshrl.u32 %v1565, 16
        %v1704 = vrot.slane %v1702, 4
        %v1705 = vshll.u32 %v1565, 16
        %v1707 = vrot.slane %v1705, 5
        %v1708 = vor.u32 %v1704, %v1707
        %v1709 = vrot.slane %v1708, 4
        %v1711 = vshll.u32 %v1566, 16
        %v1713 = vrot.slane %v1711, 5
        %v1714 = vsel %vm383, %v1709, %v1713
        %v1715 = vshrl.u32 %v1566, 16
        %v1717 = vrot.slane %v1715, 4
        %v1718 = vor.u32 %v1717, %v1713
        %v1719 = vrot.slane %v1718, 4
        %v1721 = vshll.u32 %v1593, 16
        %v1723 = vrot.slane %v1721, 5
        %v1724 = vsel %vm383, %v1719, %v1723
        %v1726 = vshrl.u32 %v1567, 16
        %v1728 = vrot.slane %v1726, 4
        %v1729 = vshll.u32 %v1567, 16
        %v1731 = vrot.slane %v1729, 5
        %v1732 = vor.u32 %v1728, %v1731
        %v1733 = vrot.slane %v1732, 4
        %v1735 = vshll.u32 %v1568, 16
        %v1737 = vrot.slane %v1735, 5
        %v1738 = vsel %vm383, %v1733, %v1737
        %v1739 = vshrl.u32 %v1568, 16
        %v1741 = vrot.slane %v1739, 4
        %v1742 = vor.u32 %v1741, %v1737
        %v1743 = vrot.slane %v1742, 4
        %v1745 = vshll.u32 %v1594, 16
        %v1747 = vrot.slane %v1745, 5
        %v1748 = vsel %vm383, %v1743, %v1747
        %v1750 = vshrl.u32 %v1569, 16
        %v1752 = vrot.slane %v1750, 4
        %v1753 = vshll.u32 %v1569, 16
        %v1755 = vrot.slane %v1753, 5
        %v1756 = vor.u32 %v1752, %v1755
        %v1757 = vrot.slane %v1756, 4
        %v1759 = vshll.u32 %v1570, 16
        %v1761 = vrot.slane %v1759, 5
        %v1762 = vsel %vm383, %v1757, %v1761
        %v1763 = vshrl.u32 %v1570, 16
        %v1765 = vrot.slane %v1763, 4
        %v1766 = vor.u32 %v1765, %v1761
        %v1767 = vrot.slane %v1766, 4
        %v1769 = vshll.u32 %v1595, 16
        %v1771 = vrot.slane %v1769, 5
        %v1772 = vsel %vm383, %v1767, %v1771
        %v1774 = vshrl.u32 %v1571, 16
        %v1776 = vrot.slane %v1774, 4
        %v1777 = vshll.u32 %v1571, 16
        %v1779 = vrot.slane %v1777, 5
        %v1780 = vor.u32 %v1776, %v1779
        %v1781 = vrot.slane %v1780, 4
        %v1783 = vshll.u32 %v1572, 16
        %v1785 = vrot.slane %v1783, 5
        %v1786 = vsel %vm383, %v1781, %v1785
        %v1787 = vshrl.u32 %v1572, 16
        %v1789 = vrot.slane %v1787, 4
        %v1790 = vor.u32 %v1789, %v1785
        %v1791 = vrot.slane %v1790, 4
        %v1793 = vshll.u32 %v1596, 16
        %v1795 = vrot.slane %v1793, 5
        %v1796 = vsel %vm383, %v1791, %v1795
        %v1798 = vshrl.u32 %v1573, 16
        %v1800 = vrot.slane %v1798, 4
        %v1801 = vshll.u32 %v1573, 16
        %v1803 = vrot.slane %v1801, 5
        %v1804 = vor.u32 %v1800, %v1803
        %v1805 = vrot.slane %v1804, 4
        %v1807 = vshll.u32 %v1574, 16
        %v1809 = vrot.slane %v1807, 5
        %v1810 = vsel %vm383, %v1805, %v1809
        %v1811 = vshrl.u32 %v1574, 16
        %v1813 = vrot.slane %v1811, 4
        %v1814 = vor.u32 %v1813, %v1809
        %v1815 = vrot.slane %v1814, 4
        %v1817 = vshll.u32 %v1597, 16
        %v1819 = vrot.slane %v1817, 5
        %v1820 = vsel %vm383, %v1815, %v1819
        %v1822 = vshrl.u32 %v1575, 16
        %v1824 = vrot.slane %v1822, 4
        %v1825 = vshll.u32 %v1575, 16
        %v1827 = vrot.slane %v1825, 5
        %v1828 = vor.u32 %v1824, %v1827
        %v1829 = vrot.slane %v1828, 4
        %v1831 = vshll.u32 %v1576, 16
        %v1833 = vrot.slane %v1831, 5
        %v1834 = vsel %vm383, %v1829, %v1833
        %v1835 = vshrl.u32 %v1576, 16
        %v1837 = vrot.slane %v1835, 4
        %v1838 = vor.u32 %v1837, %v1833
        %v1839 = vrot.slane %v1838, 4
        %v1841 = vshll.u32 %v1598, 16
        %v1843 = vrot.slane %v1841, 5
        %v1844 = vsel %vm383, %v1839, %v1843
        %v1846 = vshrl.u32 %v1577, 16
        %v1848 = vrot.slane %v1846, 4
        %v1849 = vshll.u32 %v1577, 16
        %v1851 = vrot.slane %v1849, 5
        %v1852 = vor.u32 %v1848, %v1851
        %v1853 = vrot.slane %v1852, 4
        %v1855 = vshll.u32 %v1578, 16
        %v1857 = vrot.slane %v1855, 5
        %v1858 = vsel %vm383, %v1853, %v1857
        %v1859 = vshrl.u32 %v1578, 16
        %v1861 = vrot.slane %v1859, 4
        %v1862 = vor.u32 %v1861, %v1857
        %v1863 = vrot.slane %v1862, 4
        %v1865 = vshll.u32 %v1599, 16
        %v1867 = vrot.slane %v1865, 5
        %v1868 = vsel %vm383, %v1863, %v1867
        %v1870 = vshrl.u32 %v1579, 16
        %v1872 = vrot.slane %v1870, 4
        %v1873 = vshll.u32 %v1579, 16
        %v1875 = vrot.slane %v1873, 5
        %v1876 = vor.u32 %v1872, %v1875
        %v1877 = vrot.slane %v1876, 4
        %v1879 = vshll.u32 %v1580, 16
        %v1881 = vrot.slane %v1879, 5
        %v1882 = vsel %vm383, %v1877, %v1881
        %v1883 = vshrl.u32 %v1580, 16
        %v1885 = vrot.slane %v1883, 4
        %v1886 = vor.u32 %v1885, %v1881
        %v1887 = vrot.slane %v1886, 4
        %v1889 = vshll.u32 %v1600, 16
        %v1891 = vrot.slane %v1889, 5
        %v1892 = vsel %vm383, %v1887, %v1891
        %v1894 = vshrl.u32 %v1581, 16
        %v1896 = vrot.slane %v1894, 4
        %v1897 = vshll.u32 %v1581, 16
        %v1899 = vrot.slane %v1897, 5
        %v1900 = vor.u32 %v1896, %v1899
        %v1901 = vrot.slane %v1900, 4
        %v1903 = vshll.u32 %v1582, 16
        %v1905 = vrot.slane %v1903, 5
        %v1906 = vsel %vm383, %v1901, %v1905
        %v1907 = vshrl.u32 %v1582, 16
        %v1909 = vrot.slane %v1907, 4
        %v1910 = vor.u32 %v1909, %v1905
        %v1911 = vrot.slane %v1910, 4
        %v1913 = vshll.u32 %v1601, 16
        %v1915 = vrot.slane %v1913, 5
        %v1916 = vsel %vm383, %v1911, %v1915
        %v1918 = vshrl.u32 %v1583, 16
        %v1920 = vrot.slane %v1918, 4
        %v1921 = vshll.u32 %v1583, 16
        %v1923 = vrot.slane %v1921, 5
        %v1924 = vor.u32 %v1920, %v1923
        %v1925 = vrot.slane %v1924, 4
        %v1927 = vshll.u32 %v1584, 16
        %v1929 = vrot.slane %v1927, 5
        %v1930 = vsel %vm383, %v1925, %v1929
        %v1931 = vshrl.u32 %v1584, 16
        %v1933 = vrot.slane %v1931, 4
        %v1934 = vor.u32 %v1933, %v1929
        %v1935 = vrot.slane %v1934, 4
        %v1937 = vshll.u32 %v1602, 16
        %v1939 = vrot.slane %v1937, 5
        %v1940 = vsel %vm383, %v1935, %v1939
        %v1942 = vshrl.u32 %v1585, 16
        %v1944 = vrot.slane %v1942, 4
        %v1945 = vshll.u32 %v1585, 16
        %v1947 = vrot.slane %v1945, 5
        %v1948 = vor.u32 %v1944, %v1947
        %v1949 = vrot.slane %v1948, 4
        %v1951 = vshll.u32 %v1586, 16
        %v1953 = vrot.slane %v1951, 5
        %v1954 = vsel %vm383, %v1949, %v1953
        %v1955 = vshrl.u32 %v1586, 16
        %v1957 = vrot.slane %v1955, 4
        %v1958 = vor.u32 %v1957, %v1953
        %v1959 = vrot.slane %v1958, 4
        %v1961 = vshll.u32 %v1603, 16
        %v1963 = vrot.slane %v1961, 5
        %v1964 = vsel %vm383, %v1959, %v1963
        %v1966 = vshrl.u32 %v1587, 16
        %v1968 = vrot.slane %v1966, 4
        %v1969 = vshll.u32 %v1587, 16
        %v1971 = vrot.slane %v1969, 5
        %v1972 = vor.u32 %v1968, %v1971
        %v1973 = vrot.slane %v1972, 4
        %v1975 = vshll.u32 %v1588, 16
        %v1977 = vrot.slane %v1975, 5
        %v1978 = vsel %vm383, %v1973, %v1977
        %v1979 = vshrl.u32 %v1588, 16
        %v1981 = vrot.slane %v1979, 4
        %v1982 = vor.u32 %v1981, %v1977
        %v1983 = vrot.slane %v1982, 4
        %v1985 = vshll.u32 %v1604, 16
        %v1987 = vrot.slane %v1985, 5
        %v1988 = vsel %vm383, %v1983, %v1987
        %v1989 = vld [vmem:[%s1556] sm:$0xe]
        %v1990 = vld [vmem:[%s1556 + $0xc] sm:$0xe]
        %v1991 = vld [vmem:[%s1556 + $0x18] sm:$0xe]
        %v1992 = vld [vmem:[%s1556 + $0x24] sm:$0xe]
        %v1993 = vld [vmem:[%s1556 + $0x30] sm:$0xe]
        %v1994 = vld [vmem:[%s1556 + $0x3c] sm:$0xe]
        %v1995 = vld [vmem:[%s1556 + $0x48] sm:$0xe]
        %v1996 = vld [vmem:[%s1556 + $0x54] sm:$0xe]
        %v1997 = vld [vmem:[%s1556 + $0x60] sm:$0xe]
        %v1998 = vld [vmem:[%s1556 + $0x6c] sm:$0xe]
        %v1999 = vld [vmem:[%s1556 + $0x78] sm:$0xe]
        %v2000 = vld [vmem:[%s1556 + $0x84] sm:$0xe]
        %v2001 = vld [vmem:[%s1556 + $0x90] sm:$0xe]
        %v2002 = vld [vmem:[%s1556 + $0x9c] sm:$0xe]
        %v2003 = vld [vmem:[%s1556 + $0xa8] sm:$0xe]
        %v2004 = vld [vmem:[%s1556 + $0xb4] sm:$0xe]
        %v2053 = vrot.slane %v1989, 5
        %v2054 = vrot.slane %v2053, 4
        %v2055 = vrot.slane %v1558, 5
        %v2056 = vsel %vm834, %v2054, %v2055
        %v2057 = vrot.slane %v2055, 4
        %v2058 = vrot.slane %v1589, 5
        %v2059 = vsel %vm834, %v2057, %v2058
        %v2060 = vrot.slane %v1990, 5
        %v2061 = vrot.slane %v2060, 4
        %v2062 = vrot.slane %v1560, 5
        %v2063 = vsel %vm834, %v2061, %v2062
        %v2064 = vrot.slane %v2062, 4
        %v2065 = vrot.slane %v1590, 5
        %v2066 = vsel %vm834, %v2064, %v2065
        %v2067 = vrot.slane %v1991, 5
        %v2068 = vrot.slane %v2067, 4
        %v2069 = vrot.slane %v1562, 5
        %v2070 = vsel %vm834, %v2068, %v2069
        %v2071 = vrot.slane %v2069, 4
        %v2072 = vrot.slane %v1591, 5
        %v2073 = vsel %vm834, %v2071, %v2072
        %v2074 = vrot.slane %v1992, 5
        %v2075 = vrot.slane %v2074, 4
        %v2076 = vrot.slane %v1564, 5
        %v2077 = vsel %vm834, %v2075, %v2076
        %v2078 = vrot.slane %v2076, 4
        %v2079 = vrot.slane %v1592, 5
        %v2080 = vsel %vm834, %v2078, %v2079
        %v2081 = vrot.slane %v1993, 5
        %v2082 = vrot.slane %v2081, 4
        %v2083 = vrot.slane %v1566, 5
        %v2084 = vsel %vm834, %v2082, %v2083
        %v2085 = vrot.slane %v2083, 4
        %v2086 = vrot.slane %v1593, 5
        %v2087 = vsel %vm834, %v2085, %v2086
        %v2088 = vrot.slane %v1994, 5
        %v2089 = vrot.slane %v2088, 4
        %v2090 = vrot.slane %v1568, 5
        %v2091 = vsel %vm834, %v2089, %v2090
        %v2092 = vrot.slane %v2090, 4
        %v2093 = vrot.slane %v1594, 5
        %v2094 = vsel %vm834, %v2092, %v2093
        %v2095 = vrot.slane %v1995, 5
        %v2096 = vrot.slane %v2095, 4
        %v2097 = vrot.slane %v1570, 5
        %v2098 = vsel %vm834, %v2096, %v2097
        %v2099 = vrot.slane %v2097, 4
        %v2100 = vrot.slane %v1595, 5
        %v2101 = vsel %vm834, %v2099, %v2100
        %v2102 = vrot.slane %v1996, 5
        %v2103 = vrot.slane %v2102, 4
        %v2104 = vrot.slane %v1572, 5
        %v2105 = vsel %vm834, %v2103, %v2104
        %v2106 = vrot.slane %v2104, 4
        %v2107 = vrot.slane %v1596, 5
        %v2108 = vsel %vm834, %v2106, %v2107
        %v2109 = vrot.slane %v1997, 5
        %v2110 = vrot.slane %v2109, 4
        %v2111 = vrot.slane %v1574, 5
        %v2112 = vsel %vm834, %v2110, %v2111
        %v2113 = vrot.slane %v2111, 4
        %v2114 = vrot.slane %v1597, 5
        %v2115 = vsel %vm834, %v2113, %v2114
        %v2116 = vrot.slane %v1998, 5
        %v2117 = vrot.slane %v2116, 4
        %v2118 = vrot.slane %v1576, 5
        %v2119 = vsel %vm834, %v2117, %v2118
        %v2120 = vrot.slane %v2118, 4
        %v2121 = vrot.slane %v1598, 5
        %v2122 = vsel %vm834, %v2120, %v2121
        %v2123 = vrot.slane %v1999, 5
        %v2124 = vrot.slane %v2123, 4
        %v2125 = vrot.slane %v1578, 5
        %v2126 = vsel %vm834, %v2124, %v2125
        %v2127 = vrot.slane %v2125, 4
        %v2128 = vrot.slane %v1599, 5
        %v2129 = vsel %vm834, %v2127, %v2128
        %v2130 = vrot.slane %v2000, 5
        %v2131 = vrot.slane %v2130, 4
        %v2132 = vrot.slane %v1580, 5
        %v2133 = vsel %vm834, %v2131, %v2132
        %v2134 = vrot.slane %v2132, 4
        %v2135 = vrot.slane %v1600, 5
        %v2136 = vsel %vm834, %v2134, %v2135
        %v2137 = vrot.slane %v2001, 5
        %v2138 = vrot.slane %v2137, 4
        %v2139 = vrot.slane %v1582, 5
        %v2140 = vsel %vm834, %v2138, %v2139
        %v2141 = vrot.slane %v2139, 4
        %v2142 = vrot.slane %v1601, 5
        %v2143 = vsel %vm834, %v2141, %v2142
        %v2144 = vrot.slane %v2002, 5
        %v2145 = vrot.slane %v2144, 4
        %v2146 = vrot.slane %v1584, 5
        %v2147 = vsel %vm834, %v2145, %v2146
        %v2148 = vrot.slane %v2146, 4
        %v2149 = vrot.slane %v1602, 5
        %v2150 = vsel %vm834, %v2148, %v2149
        %v2151 = vrot.slane %v2003, 5
        %v2152 = vrot.slane %v2151, 4
        %v2153 = vrot.slane %v1586, 5
        %v2154 = vsel %vm834, %v2152, %v2153
        %v2155 = vrot.slane %v2153, 4
        %v2156 = vrot.slane %v1603, 5
        %v2157 = vsel %vm834, %v2155, %v2156
        %v2158 = vrot.slane %v2004, 5
        %v2159 = vrot.slane %v2158, 4
        %v2160 = vrot.slane %v1588, 5
        %v2161 = vsel %vm834, %v2159, %v2160
        %v2162 = vrot.slane %v2160, 4
        %v2163 = vrot.slane %v1604, 5
        %v2164 = vsel %vm834, %v2162, %v2163
        %v2181 = vunpack.c.l.b16 %v333
        %v2182 = vunpack.c.l.b16 %v334
        %v2183 = vunpack.c.l.b16 %v335
        %v2184 = vunpack.c.l.b16 %v336
        %v2185 = vunpack.c.l.b16 %v337
        %v2186 = vunpack.c.l.b16 %v338
        %v2187 = vunpack.c.l.b16 %v339
        %v2188 = vunpack.c.l.b16 %v340
        %v2189 = vunpack.c.l.b16 %v341
        %v2190 = vunpack.c.l.b16 %v342
        %v2191 = vunpack.c.l.b16 %v343
        %v2192 = vunpack.c.l.b16 %v344
        %v2193 = vunpack.c.l.b16 %v345
        %v2194 = vunpack.c.l.b16 %v346
        %v2195 = vunpack.c.l.b16 %v347
        %v2196 = vunpack.c.l.b16 %v348
        %v2197 = vunpack.c.l.b16 %v349
        %v2198 = vunpack.c.l.b16 %v350
        %v2199 = vunpack.c.l.b16 %v351
        %v2200 = vunpack.c.l.b16 %v352
        %v2201 = vunpack.c.l.b16 %v353
        %v2202 = vunpack.c.l.b16 %v354
        %v2203 = vunpack.c.l.b16 %v355
        %v2204 = vunpack.c.l.b16 %v356
        %v2205 = vunpack.c.l.b16 %v357
        %v2206 = vunpack.c.l.b16 %v358
        %v2207 = vunpack.c.l.b16 %v359
        %v2208 = vunpack.c.l.b16 %v360
        %v2209 = vunpack.c.l.b16 %v361
        %v2210 = vunpack.c.l.b16 %v362
        %v2211 = vunpack.c.l.b16 %v363
        %v2212 = vunpack.c.l.b16 %v364
        %v2213 = vpack.c.b16 %v2182, %v2181
        %v2214 = vpack.c.b16 %v2184, %v2183
        %v2215 = vpack.c.b16 %v2186, %v2185
        %v2216 = vpack.c.b16 %v2188, %v2187
        %v2217 = vpack.c.b16 %v2190, %v2189
        %v2218 = vpack.c.b16 %v2192, %v2191
        %v2219 = vpack.c.b16 %v2194, %v2193
        %v2220 = vpack.c.b16 %v2196, %v2195
        %v2221 = vpack.c.b16 %v2198, %v2197
        %v2222 = vpack.c.b16 %v2200, %v2199
        %v2223 = vpack.c.b16 %v2202, %v2201
        %v2224 = vpack.c.b16 %v2204, %v2203
        %v2225 = vpack.c.b16 %v2206, %v2205
        %v2226 = vpack.c.b16 %v2208, %v2207
        %v2227 = vpack.c.b16 %v2210, %v2209
        %v2228 = vpack.c.b16 %v2212, %v2211
        %v2245 = vunpack.c.l.b16 %v397
        %v2246 = vunpack.c.l.b16 %v407
        %v2247 = vunpack.c.l.b16 %v421
        %v2248 = vunpack.c.l.b16 %v431
        %v2249 = vunpack.c.l.b16 %v445
        %v2250 = vunpack.c.l.b16 %v455
        %v2251 = vunpack.c.l.b16 %v469
        %v2252 = vunpack.c.l.b16 %v479
        %v2253 = vunpack.c.l.b16 %v493
        %v2254 = vunpack.c.l.b16 %v503
        %v2255 = vunpack.c.l.b16 %v517
        %v2256 = vunpack.c.l.b16 %v527
        %v2257 = vunpack.c.l.b16 %v541
        %v2258 = vunpack.c.l.b16 %v551
        %v2259 = vunpack.c.l.b16 %v565
        %v2260 = vunpack.c.l.b16 %v575
        %v2261 = vunpack.c.l.b16 %v589
        %v2262 = vunpack.c.l.b16 %v599
        %v2263 = vunpack.c.l.b16 %v613
        %v2264 = vunpack.c.l.b16 %v623
        %v2265 = vunpack.c.l.b16 %v637
        %v2266 = vunpack.c.l.b16 %v647
        %v2267 = vunpack.c.l.b16 %v661
        %v2268 = vunpack.c.l.b16 %v671
        %v2269 = vunpack.c.l.b16 %v685
        %v2270 = vunpack.c.l.b16 %v695
        %v2271 = vunpack.c.l.b16 %v709
        %v2272 = vunpack.c.l.b16 %v719
        %v2273 = vunpack.c.l.b16 %v733
        %v2274 = vunpack.c.l.b16 %v743
        %v2275 = vunpack.c.l.b16 %v757
        %v2276 = vunpack.c.l.b16 %v767
        %v2277 = vpack.c.b16 %v2246, %v2245
        %v2278 = vpack.c.b16 %v2248, %v2247
        %v2279 = vpack.c.b16 %v2250, %v2249
        %v2280 = vpack.c.b16 %v2252, %v2251
        %v2281 = vpack.c.b16 %v2254, %v2253
        %v2282 = vpack.c.b16 %v2256, %v2255
        %v2283 = vpack.c.b16 %v2258, %v2257
        %v2284 = vpack.c.b16 %v2260, %v2259
        %v2285 = vpack.c.b16 %v2262, %v2261
        %v2286 = vpack.c.b16 %v2264, %v2263
        %v2287 = vpack.c.b16 %v2266, %v2265
        %v2288 = vpack.c.b16 %v2268, %v2267
        %v2289 = vpack.c.b16 %v2270, %v2269
        %v2290 = vpack.c.b16 %v2272, %v2271
        %v2291 = vpack.c.b16 %v2274, %v2273
        %v2292 = vpack.c.b16 %v2276, %v2275
        %v2309 = vunpack.c.l.b16 %v838
        %v2310 = vunpack.c.l.b16 %v841
        %v2311 = vunpack.c.l.b16 %v845
        %v2312 = vunpack.c.l.b16 %v848
        %v2313 = vunpack.c.l.b16 %v852
        %v2314 = vunpack.c.l.b16 %v855
        %v2315 = vunpack.c.l.b16 %v859
        %v2316 = vunpack.c.l.b16 %v862
        %v2317 = vunpack.c.l.b16 %v866
        %v2318 = vunpack.c.l.b16 %v869
        %v2319 = vunpack.c.l.b16 %v873
        %v2320 = vunpack.c.l.b16 %v876
        %v2321 = vunpack.c.l.b16 %v880
        %v2322 = vunpack.c.l.b16 %v883
        %v2323 = vunpack.c.l.b16 %v887
        %v2324 = vunpack.c.l.b16 %v890
        %v2325 = vunpack.c.l.b16 %v894
        %v2326 = vunpack.c.l.b16 %v897
        %v2327 = vunpack.c.l.b16 %v901
        %v2328 = vunpack.c.l.b16 %v904
        %v2329 = vunpack.c.l.b16 %v908
        %v2330 = vunpack.c.l.b16 %v911
        %v2331 = vunpack.c.l.b16 %v915
        %v2332 = vunpack.c.l.b16 %v918
        %v2333 = vunpack.c.l.b16 %v922
        %v2334 = vunpack.c.l.b16 %v925
        %v2335 = vunpack.c.l.b16 %v929
        %v2336 = vunpack.c.l.b16 %v932
        %v2337 = vunpack.c.l.b16 %v936
        %v2338 = vunpack.c.l.b16 %v939
        %v2339 = vunpack.c.l.b16 %v943
        %v2340 = vunpack.c.l.b16 %v946
        %v2341 = vpack.c.b16 %v2310, %v2309
        %v2342 = vpack.c.b16 %v2312, %v2311
        %v2343 = vpack.c.b16 %v2314, %v2313
        %v2344 = vpack.c.b16 %v2316, %v2315
        %v2345 = vpack.c.b16 %v2318, %v2317
        %v2346 = vpack.c.b16 %v2320, %v2319
        %v2347 = vpack.c.b16 %v2322, %v2321
        %v2348 = vpack.c.b16 %v2324, %v2323
        %v2349 = vpack.c.b16 %v2326, %v2325
        %v2350 = vpack.c.b16 %v2328, %v2327
        %v2351 = vpack.c.b16 %v2330, %v2329
        %v2352 = vpack.c.b16 %v2332, %v2331
        %v2353 = vpack.c.b16 %v2334, %v2333
        %v2354 = vpack.c.b16 %v2336, %v2335
        %v2355 = vpack.c.b16 %v2338, %v2337
        %v2356 = vpack.c.b16 %v2340, %v2339
        %v2389 = vunpack.c.l.b16 %v948
        %v2390 = vunpack.c.l.b16 %v949
        %v2391 = vunpack.c.l.b16 %v950
        %v2392 = vunpack.c.l.b16 %v951
        %v2393 = vunpack.c.l.b16 %v952
        %v2394 = vunpack.c.l.b16 %v953
        %v2395 = vunpack.c.l.b16 %v954
        %v2396 = vunpack.c.l.b16 %v955
        %v2397 = vunpack.c.l.b16 %v956
        %v2398 = vunpack.c.l.b16 %v957
        %v2399 = vunpack.c.l.b16 %v958
        %v2400 = vunpack.c.l.b16 %v959
        %v2401 = vunpack.c.l.b16 %v960
        %v2402 = vunpack.c.l.b16 %v961
        %v2403 = vunpack.c.l.b16 %v962
        %v2404 = vunpack.c.l.b16 %v963
        %v2405 = vunpack.c.l.b16 %v964
        %v2406 = vunpack.c.l.b16 %v965
        %v2407 = vunpack.c.l.b16 %v966
        %v2408 = vunpack.c.l.b16 %v967
        %v2409 = vunpack.c.l.b16 %v968
        %v2410 = vunpack.c.l.b16 %v969
        %v2411 = vunpack.c.l.b16 %v970
        %v2412 = vunpack.c.l.b16 %v971
        %v2413 = vunpack.c.l.b16 %v972
        %v2414 = vunpack.c.l.b16 %v973
        %v2415 = vunpack.c.l.b16 %v974
        %v2416 = vunpack.c.l.b16 %v975
        %v2417 = vunpack.c.l.b16 %v976
        %v2418 = vunpack.c.l.b16 %v977
        %v2419 = vunpack.c.l.b16 %v978
        %v2420 = vunpack.c.l.b16 %v979
        %v2421 = vpack.c.b16 %v2390, %v2389
        %v2422 = vpack.c.b16 %v2392, %v2391
        %v2423 = vpack.c.b16 %v2394, %v2393
        %v2424 = vpack.c.b16 %v2396, %v2395
        %v2425 = vpack.c.b16 %v2398, %v2397
        %v2426 = vpack.c.b16 %v2400, %v2399
        %v2427 = vpack.c.b16 %v2402, %v2401
        %v2428 = vpack.c.b16 %v2404, %v2403
        %v2429 = vpack.c.b16 %v2406, %v2405
        %v2430 = vpack.c.b16 %v2408, %v2407
        %v2431 = vpack.c.b16 %v2410, %v2409
        %v2432 = vpack.c.b16 %v2412, %v2411
        %v2433 = vpack.c.b16 %v2414, %v2413
        %v2434 = vpack.c.b16 %v2416, %v2415
        %v2435 = vpack.c.b16 %v2418, %v2417
        %v2436 = vpack.c.b16 %v2420, %v2419
        %v2453 = vunpack.c.l.b16 %v1009
        %v2454 = vunpack.c.l.b16 %v1019
        %v2455 = vunpack.c.l.b16 %v1033
        %v2456 = vunpack.c.l.b16 %v1043
        %v2457 = vunpack.c.l.b16 %v1057
        %v2458 = vunpack.c.l.b16 %v1067
        %v2459 = vunpack.c.l.b16 %v1081
        %v2460 = vunpack.c.l.b16 %v1091
        %v2461 = vunpack.c.l.b16 %v1105
        %v2462 = vunpack.c.l.b16 %v1115
        %v2463 = vunpack.c.l.b16 %v1129
        %v2464 = vunpack.c.l.b16 %v1139
        %v2465 = vunpack.c.l.b16 %v1153
        %v2466 = vunpack.c.l.b16 %v1163
        %v2467 = vunpack.c.l.b16 %v1177
        %v2468 = vunpack.c.l.b16 %v1187
        %v2469 = vunpack.c.l.b16 %v1201
        %v2470 = vunpack.c.l.b16 %v1211
        %v2471 = vunpack.c.l.b16 %v1225
        %v2472 = vunpack.c.l.b16 %v1235
        %v2473 = vunpack.c.l.b16 %v1249
        %v2474 = vunpack.c.l.b16 %v1259
        %v2475 = vunpack.c.l.b16 %v1273
        %v2476 = vunpack.c.l.b16 %v1283
        %v2477 = vunpack.c.l.b16 %v1297
        %v2478 = vunpack.c.l.b16 %v1307
        %v2479 = vunpack.c.l.b16 %v1321
        %v2480 = vunpack.c.l.b16 %v1331
        %v2481 = vunpack.c.l.b16 %v1345
        %v2482 = vunpack.c.l.b16 %v1355
        %v2483 = vunpack.c.l.b16 %v1369
        %v2484 = vunpack.c.l.b16 %v1379
        %v2485 = vpack.c.b16 %v2454, %v2453
        %v2486 = vpack.c.b16 %v2456, %v2455
        %v2487 = vpack.c.b16 %v2458, %v2457
        %v2488 = vpack.c.b16 %v2460, %v2459
        %v2489 = vpack.c.b16 %v2462, %v2461
        %v2490 = vpack.c.b16 %v2464, %v2463
        %v2491 = vpack.c.b16 %v2466, %v2465
        %v2492 = vpack.c.b16 %v2468, %v2467
        %v2493 = vpack.c.b16 %v2470, %v2469
        %v2494 = vpack.c.b16 %v2472, %v2471
        %v2495 = vpack.c.b16 %v2474, %v2473
        %v2496 = vpack.c.b16 %v2476, %v2475
        %v2497 = vpack.c.b16 %v2478, %v2477
        %v2498 = vpack.c.b16 %v2480, %v2479
        %v2499 = vpack.c.b16 %v2482, %v2481
        %v2500 = vpack.c.b16 %v2484, %v2483
        %v2517 = vunpack.c.l.b16 %v1447
        %v2518 = vunpack.c.l.b16 %v1450
        %v2519 = vunpack.c.l.b16 %v1454
        %v2520 = vunpack.c.l.b16 %v1457
        %v2521 = vunpack.c.l.b16 %v1461
        %v2522 = vunpack.c.l.b16 %v1464
        %v2523 = vunpack.c.l.b16 %v1468
        %v2524 = vunpack.c.l.b16 %v1471
        %v2525 = vunpack.c.l.b16 %v1475
        %v2526 = vunpack.c.l.b16 %v1478
        %v2527 = vunpack.c.l.b16 %v1482
        %v2528 = vunpack.c.l.b16 %v1485
        %v2529 = vunpack.c.l.b16 %v1489
        %v2530 = vunpack.c.l.b16 %v1492
        %v2531 = vunpack.c.l.b16 %v1496
        %v2532 = vunpack.c.l.b16 %v1499
        %v2533 = vunpack.c.l.b16 %v1503
        %v2534 = vunpack.c.l.b16 %v1506
        %v2535 = vunpack.c.l.b16 %v1510
        %v2536 = vunpack.c.l.b16 %v1513
        %v2537 = vunpack.c.l.b16 %v1517
        %v2538 = vunpack.c.l.b16 %v1520
        %v2539 = vunpack.c.l.b16 %v1524
        %v2540 = vunpack.c.l.b16 %v1527
        %v2541 = vunpack.c.l.b16 %v1531
        %v2542 = vunpack.c.l.b16 %v1534
        %v2543 = vunpack.c.l.b16 %v1538
        %v2544 = vunpack.c.l.b16 %v1541
        %v2545 = vunpack.c.l.b16 %v1545
        %v2546 = vunpack.c.l.b16 %v1548
        %v2547 = vunpack.c.l.b16 %v1552
        %v2548 = vunpack.c.l.b16 %v1555
        %v2549 = vpack.c.b16 %v2518, %v2517
        %v2550 = vpack.c.b16 %v2520, %v2519
        %v2551 = vpack.c.b16 %v2522, %v2521
        %v2552 = vpack.c.b16 %v2524, %v2523
        %v2553 = vpack.c.b16 %v2526, %v2525
        %v2554 = vpack.c.b16 %v2528, %v2527
        %v2555 = vpack.c.b16 %v2530, %v2529
        %v2556 = vpack.c.b16 %v2532, %v2531
        %v2557 = vpack.c.b16 %v2534, %v2533
        %v2558 = vpack.c.b16 %v2536, %v2535
        %v2559 = vpack.c.b16 %v2538, %v2537
        %v2560 = vpack.c.b16 %v2540, %v2539
        %v2561 = vpack.c.b16 %v2542, %v2541
        %v2562 = vpack.c.b16 %v2544, %v2543
        %v2563 = vpack.c.b16 %v2546, %v2545
        %v2564 = vpack.c.b16 %v2548, %v2547
        %v2597 = vunpack.c.l.b16 %v1557
        %v2598 = vunpack.c.l.b16 %v1558
        %v2599 = vunpack.c.l.b16 %v1559
        %v2600 = vunpack.c.l.b16 %v1560
        %v2601 = vunpack.c.l.b16 %v1561
        %v2602 = vunpack.c.l.b16 %v1562
        %v2603 = vunpack.c.l.b16 %v1563
        %v2604 = vunpack.c.l.b16 %v1564
        %v2605 = vunpack.c.l.b16 %v1565
        %v2606 = vunpack.c.l.b16 %v1566
        %v2607 = vunpack.c.l.b16 %v1567
        %v2608 = vunpack.c.l.b16 %v1568
        %v2609 = vunpack.c.l.b16 %v1569
        %v2610 = vunpack.c.l.b16 %v1570
        %v2611 = vunpack.c.l.b16 %v1571
        %v2612 = vunpack.c.l.b16 %v1572
        %v2613 = vunpack.c.l.b16 %v1573
        %v2614 = vunpack.c.l.b16 %v1574
        %v2615 = vunpack.c.l.b16 %v1575
        %v2616 = vunpack.c.l.b16 %v1576
        %v2617 = vunpack.c.l.b16 %v1577
        %v2618 = vunpack.c.l.b16 %v1578
        %v2619 = vunpack.c.l.b16 %v1579
        %v2620 = vunpack.c.l.b16 %v1580
        %v2621 = vunpack.c.l.b16 %v1581
        %v2622 = vunpack.c.l.b16 %v1582
        %v2623 = vunpack.c.l.b16 %v1583
        %v2624 = vunpack.c.l.b16 %v1584
        %v2625 = vunpack.c.l.b16 %v1585
        %v2626 = vunpack.c.l.b16 %v1586
        %v2627 = vunpack.c.l.b16 %v1587
        %v2628 = vunpack.c.l.b16 %v1588
        %v2629 = vpack.c.b16 %v2598, %v2597
        %v2630 = vpack.c.b16 %v2600, %v2599
        %v2631 = vpack.c.b16 %v2602, %v2601
        %v2632 = vpack.c.b16 %v2604, %v2603
        %v2633 = vpack.c.b16 %v2606, %v2605
        %v2634 = vpack.c.b16 %v2608, %v2607
        %v2635 = vpack.c.b16 %v2610, %v2609
        %v2636 = vpack.c.b16 %v2612, %v2611
        %v2637 = vpack.c.b16 %v2614, %v2613
        %v2638 = vpack.c.b16 %v2616, %v2615
        %v2639 = vpack.c.b16 %v2618, %v2617
        %v2640 = vpack.c.b16 %v2620, %v2619
        %v2641 = vpack.c.b16 %v2622, %v2621
        %v2642 = vpack.c.b16 %v2624, %v2623
        %v2643 = vpack.c.b16 %v2626, %v2625
        %v2644 = vpack.c.b16 %v2628, %v2627
        %v2661 = vunpack.c.l.b16 %v1618
        %v2662 = vunpack.c.l.b16 %v1628
        %v2663 = vunpack.c.l.b16 %v1642
        %v2664 = vunpack.c.l.b16 %v1652
        %v2665 = vunpack.c.l.b16 %v1666
        %v2666 = vunpack.c.l.b16 %v1676
        %v2667 = vunpack.c.l.b16 %v1690
        %v2668 = vunpack.c.l.b16 %v1700
        %v2669 = vunpack.c.l.b16 %v1714
        %v2670 = vunpack.c.l.b16 %v1724
        %v2671 = vunpack.c.l.b16 %v1738
        %v2672 = vunpack.c.l.b16 %v1748
        %v2673 = vunpack.c.l.b16 %v1762
        %v2674 = vunpack.c.l.b16 %v1772
        %v2675 = vunpack.c.l.b16 %v1786
        %v2676 = vunpack.c.l.b16 %v1796
        %v2677 = vunpack.c.l.b16 %v1810
        %v2678 = vunpack.c.l.b16 %v1820
        %v2679 = vunpack.c.l.b16 %v1834
        %v2680 = vunpack.c.l.b16 %v1844
        %v2681 = vunpack.c.l.b16 %v1858
        %v2682 = vunpack.c.l.b16 %v1868
        %v2683 = vunpack.c.l.b16 %v1882
        %v2684 = vunpack.c.l.b16 %v1892
        %v2685 = vunpack.c.l.b16 %v1906
        %v2686 = vunpack.c.l.b16 %v1916
        %v2687 = vunpack.c.l.b16 %v1930
        %v2688 = vunpack.c.l.b16 %v1940
        %v2689 = vunpack.c.l.b16 %v1954
        %v2690 = vunpack.c.l.b16 %v1964
        %v2691 = vunpack.c.l.b16 %v1978
        %v2692 = vunpack.c.l.b16 %v1988
        %v2693 = vpack.c.b16 %v2662, %v2661
        %v2694 = vpack.c.b16 %v2664, %v2663
        %v2695 = vpack.c.b16 %v2666, %v2665
        %v2696 = vpack.c.b16 %v2668, %v2667
        %v2697 = vpack.c.b16 %v2670, %v2669
        %v2698 = vpack.c.b16 %v2672, %v2671
        %v2699 = vpack.c.b16 %v2674, %v2673
        %v2700 = vpack.c.b16 %v2676, %v2675
        %v2701 = vpack.c.b16 %v2678, %v2677
        %v2702 = vpack.c.b16 %v2680, %v2679
        %v2703 = vpack.c.b16 %v2682, %v2681
        %v2704 = vpack.c.b16 %v2684, %v2683
        %v2705 = vpack.c.b16 %v2686, %v2685
        %v2706 = vpack.c.b16 %v2688, %v2687
        %v2707 = vpack.c.b16 %v2690, %v2689
        %v2708 = vpack.c.b16 %v2692, %v2691
        %v2725 = vunpack.c.l.b16 %v2056
        %v2726 = vunpack.c.l.b16 %v2059
        %v2727 = vunpack.c.l.b16 %v2063
        %v2728 = vunpack.c.l.b16 %v2066
        %v2729 = vunpack.c.l.b16 %v2070
        %v2730 = vunpack.c.l.b16 %v2073
        %v2731 = vunpack.c.l.b16 %v2077
        %v2732 = vunpack.c.l.b16 %v2080
        %v2733 = vunpack.c.l.b16 %v2084
        %v2734 = vunpack.c.l.b16 %v2087
        %v2735 = vunpack.c.l.b16 %v2091
        %v2736 = vunpack.c.l.b16 %v2094
        %v2737 = vunpack.c.l.b16 %v2098
        %v2738 = vunpack.c.l.b16 %v2101
        %v2739 = vunpack.c.l.b16 %v2105
        %v2740 = vunpack.c.l.b16 %v2108
        %v2741 = vunpack.c.l.b16 %v2112
        %v2742 = vunpack.c.l.b16 %v2115
        %v2743 = vunpack.c.l.b16 %v2119
        %v2744 = vunpack.c.l.b16 %v2122
        %v2745 = vunpack.c.l.b16 %v2126
        %v2746 = vunpack.c.l.b16 %v2129
        %v2747 = vunpack.c.l.b16 %v2133
        %v2748 = vunpack.c.l.b16 %v2136
        %v2749 = vunpack.c.l.b16 %v2140
        %v2750 = vunpack.c.l.b16 %v2143
        %v2751 = vunpack.c.l.b16 %v2147
        %v2752 = vunpack.c.l.b16 %v2150
        %v2753 = vunpack.c.l.b16 %v2154
        %v2754 = vunpack.c.l.b16 %v2157
        %v2755 = vunpack.c.l.b16 %v2161
        %v2756 = vunpack.c.l.b16 %v2164
        %v2757 = vpack.c.b16 %v2726, %v2725
        %v2758 = vpack.c.b16 %v2728, %v2727
        %v2759 = vpack.c.b16 %v2730, %v2729
        %v2760 = vpack.c.b16 %v2732, %v2731
        %v2761 = vpack.c.b16 %v2734, %v2733
        %v2762 = vpack.c.b16 %v2736, %v2735
        %v2763 = vpack.c.b16 %v2738, %v2737
        %v2764 = vpack.c.b16 %v2740, %v2739
        %v2765 = vpack.c.b16 %v2742, %v2741
        %v2766 = vpack.c.b16 %v2744, %v2743
        %v2767 = vpack.c.b16 %v2746, %v2745
        %v2768 = vpack.c.b16 %v2748, %v2747
        %v2769 = vpack.c.b16 %v2750, %v2749
        %v2770 = vpack.c.b16 %v2752, %v2751
        %v2771 = vpack.c.b16 %v2754, %v2753
        %v2772 = vpack.c.b16 %v2756, %v2755
        %v2789 = vld [vmem:[%s1] sm:$0xf]
        %v2790 = vld [vmem:[%s1 + $0x4] sm:$0xf]
        %v2791 = vld [vmem:[%s1 + $0x8] sm:$0xf]
        %v2792 = vld [vmem:[%s1 + $0xc] sm:$0xf]
        %v2793 = vld [vmem:[%s1 + $0x10] sm:$0xf]
        %v2794 = vld [vmem:[%s1 + $0x14] sm:$0xf]
        %v2795 = vld [vmem:[%s1 + $0x18] sm:$0xf]
        %v2796 = vld [vmem:[%s1 + $0x1c] sm:$0xf]
        %v2797 = vld [vmem:[%s1 + $0x20] sm:$0xf]
        %v2798 = vld [vmem:[%s1 + $0x24] sm:$0xf]
        %v2799 = vld [vmem:[%s1 + $0x28] sm:$0xf]
        %v2800 = vld [vmem:[%s1 + $0x2c] sm:$0xf]
        %v2801 = vld [vmem:[%s1 + $0x30] sm:$0xf]
        %v2802 = vld [vmem:[%s1 + $0x34] sm:$0xf]
        %v2803 = vld [vmem:[%s1 + $0x38] sm:$0xf]
        %v2804 = vld [vmem:[%s1 + $0x3c] sm:$0xf]
        %v2805 = vld [vmem:[%s1 + $0x40] sm:$0xf]
        %v2806 = vld [vmem:[%s1 + $0x44] sm:$0xf]
        %v2807 = vld [vmem:[%s1 + $0x48] sm:$0xf]
        %v2808 = vld [vmem:[%s1 + $0x4c] sm:$0xf]
        %v2809 = vld [vmem:[%s1 + $0x50] sm:$0xf]
        %v2810 = vld [vmem:[%s1 + $0x54] sm:$0xf]
        %v2811 = vld [vmem:[%s1 + $0x58] sm:$0xf]
        %v2812 = vld [vmem:[%s1 + $0x5c] sm:$0xf]
        %v2813 = vld [vmem:[%s1 + $0x60] sm:$0xf]
        %v2814 = vld [vmem:[%s1 + $0x64] sm:$0xf]
        %v2815 = vld [vmem:[%s1 + $0x68] sm:$0xf]
        %v2816 = vld [vmem:[%s1 + $0x6c] sm:$0xf]
        %v2817 = vld [vmem:[%s1 + $0x70] sm:$0xf]
        %v2818 = vld [vmem:[%s1 + $0x74] sm:$0xf]
        %v2819 = vld [vmem:[%s1 + $0x78] sm:$0xf]
        %v2820 = vld [vmem:[%s1 + $0x7c] sm:$0xf]
        %v2821 = vld [vmem:[%s1 + $0x80] sm:$0xf]
        %v2822 = vld [vmem:[%s1 + $0x84] sm:$0xf]
        %v2823 = vld [vmem:[%s1 + $0x88] sm:$0xf]
        %v2824 = vld [vmem:[%s1 + $0x8c] sm:$0xf]
        %v2825 = vld [vmem:[%s1 + $0x90] sm:$0xf]
        %v2826 = vld [vmem:[%s1 + $0x94] sm:$0xf]
        %v2827 = vld [vmem:[%s1 + $0x98] sm:$0xf]
        %v2828 = vld [vmem:[%s1 + $0x9c] sm:$0xf]
        %v2829 = vld [vmem:[%s1 + $0xa0] sm:$0xf]
        %v2830 = vld [vmem:[%s1 + $0xa4] sm:$0xf]
        %v2831 = vld [vmem:[%s1 + $0xa8] sm:$0xf]
        %v2832 = vld [vmem:[%s1 + $0xac] sm:$0xf]
        %v2833 = vld [vmem:[%s1 + $0xb0] sm:$0xf]
        %v2834 = vld [vmem:[%s1 + $0xb4] sm:$0xf]
        %v2835 = vld [vmem:[%s1 + $0xb8] sm:$0xf]
        %v2836 = vld [vmem:[%s1 + $0xbc] sm:$0xf]
        %v2837 = vld [vmem:[%s1 + $0xc0] sm:$0xf]
        %v2838 = vld [vmem:[%s1 + $0xc4] sm:$0xf]
        %v2839 = vld [vmem:[%s1 + $0xc8] sm:$0xf]
        %v2840 = vld [vmem:[%s1 + $0xcc] sm:$0xf]
        %v2841 = vld [vmem:[%s1 + $0xd0] sm:$0xf]
        %v2842 = vld [vmem:[%s1 + $0xd4] sm:$0xf]
        %v2843 = vld [vmem:[%s1 + $0xd8] sm:$0xf]
        %v2844 = vld [vmem:[%s1 + $0xdc] sm:$0xf]
        %v2845 = vld [vmem:[%s1 + $0xe0] sm:$0xf]
        %v2846 = vld [vmem:[%s1 + $0xe4] sm:$0xf]
        %v2847 = vld [vmem:[%s1 + $0xe8] sm:$0xf]
        %v2848 = vld [vmem:[%s1 + $0xec] sm:$0xf]
        %v2849 = vld [vmem:[%s1 + $0xf0] sm:$0xf]
        %v2850 = vld [vmem:[%s1 + $0xf4] sm:$0xf]
        %v2851 = vld [vmem:[%s1 + $0xf8] sm:$0xf]
        %v2852 = vld [vmem:[%s1 + $0xfc] sm:$0xf]
        %v2853 = vld [vmem:[%s1 + $0x100] sm:$0xf]
        %v2854 = vld [vmem:[%s1 + $0x104] sm:$0xf]
        %v2855 = vld [vmem:[%s1 + $0x108] sm:$0xf]
        %v2856 = vld [vmem:[%s1 + $0x10c] sm:$0xf]
        %v2857 = vld [vmem:[%s1 + $0x110] sm:$0xf]
        %v2858 = vld [vmem:[%s1 + $0x114] sm:$0xf]
        %v2859 = vld [vmem:[%s1 + $0x118] sm:$0xf]
        %v2860 = vld [vmem:[%s1 + $0x11c] sm:$0xf]
        %v2861 = vld [vmem:[%s1 + $0x120] sm:$0xf]
        %v2862 = vld [vmem:[%s1 + $0x124] sm:$0xf]
        %v2863 = vld [vmem:[%s1 + $0x128] sm:$0xf]
        %v2864 = vld [vmem:[%s1 + $0x12c] sm:$0xf]
        %v2865 = vld [vmem:[%s1 + $0x130] sm:$0xf]
        %v2866 = vld [vmem:[%s1 + $0x134] sm:$0xf]
        %v2867 = vld [vmem:[%s1 + $0x138] sm:$0xf]
        %v2868 = vld [vmem:[%s1 + $0x13c] sm:$0xf]
        %v2869 = vld [vmem:[%s1 + $0x140] sm:$0xf]
        %v2870 = vld [vmem:[%s1 + $0x144] sm:$0xf]
        %v2871 = vld [vmem:[%s1 + $0x148] sm:$0xf]
        %v2872 = vld [vmem:[%s1 + $0x14c] sm:$0xf]
        %v2873 = vld [vmem:[%s1 + $0x150] sm:$0xf]
        %v2874 = vld [vmem:[%s1 + $0x154] sm:$0xf]
        %v2875 = vld [vmem:[%s1 + $0x158] sm:$0xf]
        %v2876 = vld [vmem:[%s1 + $0x15c] sm:$0xf]
        %v2877 = vld [vmem:[%s1 + $0x160] sm:$0xf]
        %v2878 = vld [vmem:[%s1 + $0x164] sm:$0xf]
        %v2879 = vld [vmem:[%s1 + $0x168] sm:$0xf]
        %v2880 = vld [vmem:[%s1 + $0x16c] sm:$0xf]
        %v2881 = vld [vmem:[%s1 + $0x170] sm:$0xf]
        %v2882 = vld [vmem:[%s1 + $0x174] sm:$0xf]
        %v2883 = vld [vmem:[%s1 + $0x178] sm:$0xf]
        %v2884 = vld [vmem:[%s1 + $0x17c] sm:$0xf]
        %v2885 = vld [vmem:[%s1 + $0x180] sm:$0xf]
        %v2886 = vld [vmem:[%s1 + $0x184] sm:$0xf]
        %v2887 = vld [vmem:[%s1 + $0x188] sm:$0xf]
        %v2888 = vld [vmem:[%s1 + $0x18c] sm:$0xf]
        %v2889 = vld [vmem:[%s1 + $0x190] sm:$0xf]
        %v2890 = vld [vmem:[%s1 + $0x194] sm:$0xf]
        %v2891 = vld [vmem:[%s1 + $0x198] sm:$0xf]
        %v2892 = vld [vmem:[%s1 + $0x19c] sm:$0xf]
        %v2893 = vld [vmem:[%s1 + $0x1a0] sm:$0xf]
        %v2894 = vld [vmem:[%s1 + $0x1a4] sm:$0xf]
        %v2895 = vld [vmem:[%s1 + $0x1a8] sm:$0xf]
        %v2896 = vld [vmem:[%s1 + $0x1ac] sm:$0xf]
        %v2897 = vld [vmem:[%s1 + $0x1b0] sm:$0xf]
        %v2898 = vld [vmem:[%s1 + $0x1b4] sm:$0xf]
        %v2899 = vld [vmem:[%s1 + $0x1b8] sm:$0xf]
        %v2900 = vld [vmem:[%s1 + $0x1bc] sm:$0xf]
        %v2901 = vld [vmem:[%s1 + $0x1c0] sm:$0xf]
        %v2902 = vld [vmem:[%s1 + $0x1c4] sm:$0xf]
        %v2903 = vld [vmem:[%s1 + $0x1c8] sm:$0xf]
        %v2904 = vld [vmem:[%s1 + $0x1cc] sm:$0xf]
        %v2905 = vld [vmem:[%s1 + $0x1d0] sm:$0xf]
        %v2906 = vld [vmem:[%s1 + $0x1d4] sm:$0xf]
        %v2907 = vld [vmem:[%s1 + $0x1d8] sm:$0xf]
        %v2908 = vld [vmem:[%s1 + $0x1dc] sm:$0xf]
        %v2909 = vld [vmem:[%s1 + $0x1e0] sm:$0xf]
        %v2910 = vld [vmem:[%s1 + $0x1e4] sm:$0xf]
        %v2911 = vld [vmem:[%s1 + $0x1e8] sm:$0xf]
        %v2912 = vld [vmem:[%s1 + $0x1ec] sm:$0xf]
        %v2913 = vld [vmem:[%s1 + $0x1f0] sm:$0xf]
        %v2914 = vld [vmem:[%s1 + $0x1f4] sm:$0xf]
        %v2915 = vld [vmem:[%s1 + $0x1f8] sm:$0xf]
        %v2916 = vld [vmem:[%s1 + $0x1fc] sm:$0xf]
        %v2917 = vld [vmem:[%s1 + $0x200] sm:$0xf]
        %v2918 = vld [vmem:[%s1 + $0x204] sm:$0xf]
        %v2919 = vld [vmem:[%s1 + $0x208] sm:$0xf]
        %v2920 = vld [vmem:[%s1 + $0x20c] sm:$0xf]
        %v2921 = vld [vmem:[%s1 + $0x210] sm:$0xf]
        %v2922 = vld [vmem:[%s1 + $0x214] sm:$0xf]
        %v2923 = vld [vmem:[%s1 + $0x218] sm:$0xf]
        %v2924 = vld [vmem:[%s1 + $0x21c] sm:$0xf]
        %v2925 = vld [vmem:[%s1 + $0x220] sm:$0xf]
        %v2926 = vld [vmem:[%s1 + $0x224] sm:$0xf]
        %v2927 = vld [vmem:[%s1 + $0x228] sm:$0xf]
        %v2928 = vld [vmem:[%s1 + $0x22c] sm:$0xf]
        %v2929 = vld [vmem:[%s1 + $0x230] sm:$0xf]
        %v2930 = vld [vmem:[%s1 + $0x234] sm:$0xf]
        %v2931 = vld [vmem:[%s1 + $0x238] sm:$0xf]
        %v2932 = vld [vmem:[%s1 + $0x23c] sm:$0xf]
        %v3077 = vunpack.c.l.b16 %v2789
        %v3078 = vunpack.c.l.b16 %v2790
        %v3079 = vunpack.c.l.b16 %v2791
        %v3080 = vunpack.c.l.b16 %v2792
        %v3081 = vunpack.c.l.b16 %v2793
        %v3082 = vunpack.c.l.b16 %v2794
        %v3083 = vunpack.c.l.b16 %v2795
        %v3084 = vunpack.c.l.b16 %v2796
        %v3085 = vunpack.c.l.b16 %v2797
        %v3086 = vunpack.c.l.b16 %v2798
        %v3087 = vunpack.c.l.b16 %v2799
        %v3088 = vunpack.c.l.b16 %v2800
        %v3089 = vunpack.c.l.b16 %v2801
        %v3090 = vunpack.c.l.b16 %v2802
        %v3091 = vunpack.c.l.b16 %v2803
        %v3092 = vunpack.c.l.b16 %v2804
        %v3093 = vunpack.c.l.b16 %v2805
        %v3094 = vunpack.c.l.b16 %v2806
        %v3095 = vunpack.c.l.b16 %v2807
        %v3096 = vunpack.c.l.b16 %v2808
        %v3097 = vunpack.c.l.b16 %v2809
        %v3098 = vunpack.c.l.b16 %v2810
        %v3099 = vunpack.c.l.b16 %v2811
        %v3100 = vunpack.c.l.b16 %v2812
        %v3101 = vunpack.c.l.b16 %v2813
        %v3102 = vunpack.c.l.b16 %v2814
        %v3103 = vunpack.c.l.b16 %v2815
        %v3104 = vunpack.c.l.b16 %v2816
        %v3105 = vunpack.c.l.b16 %v2817
        %v3106 = vunpack.c.l.b16 %v2818
        %v3107 = vunpack.c.l.b16 %v2819
        %v3108 = vunpack.c.l.b16 %v2820
        %v3109 = vunpack.c.l.b16 %v2821
        %v3110 = vunpack.c.l.b16 %v2822
        %v3111 = vunpack.c.l.b16 %v2823
        %v3112 = vunpack.c.l.b16 %v2824
        %v3113 = vunpack.c.l.b16 %v2825
        %v3114 = vunpack.c.l.b16 %v2826
        %v3115 = vunpack.c.l.b16 %v2827
        %v3116 = vunpack.c.l.b16 %v2828
        %v3117 = vunpack.c.l.b16 %v2829
        %v3118 = vunpack.c.l.b16 %v2830
        %v3119 = vunpack.c.l.b16 %v2831
        %v3120 = vunpack.c.l.b16 %v2832
        %v3121 = vunpack.c.l.b16 %v2833
        %v3122 = vunpack.c.l.b16 %v2834
        %v3123 = vunpack.c.l.b16 %v2835
        %v3124 = vunpack.c.l.b16 %v2836
        %v3125 = vunpack.c.l.b16 %v2837
        %v3126 = vunpack.c.l.b16 %v2838
        %v3127 = vunpack.c.l.b16 %v2839
        %v3128 = vunpack.c.l.b16 %v2840
        %v3129 = vunpack.c.l.b16 %v2841
        %v3130 = vunpack.c.l.b16 %v2842
        %v3131 = vunpack.c.l.b16 %v2843
        %v3132 = vunpack.c.l.b16 %v2844
        %v3133 = vunpack.c.l.b16 %v2845
        %v3134 = vunpack.c.l.b16 %v2846
        %v3135 = vunpack.c.l.b16 %v2847
        %v3136 = vunpack.c.l.b16 %v2848
        %v3137 = vunpack.c.l.b16 %v2849
        %v3138 = vunpack.c.l.b16 %v2850
        %v3139 = vunpack.c.l.b16 %v2851
        %v3140 = vunpack.c.l.b16 %v2852
        %v3141 = vunpack.c.l.b16 %v2853
        %v3142 = vunpack.c.l.b16 %v2854
        %v3143 = vunpack.c.l.b16 %v2855
        %v3144 = vunpack.c.l.b16 %v2856
        %v3145 = vunpack.c.l.b16 %v2857
        %v3146 = vunpack.c.l.b16 %v2858
        %v3147 = vunpack.c.l.b16 %v2859
        %v3148 = vunpack.c.l.b16 %v2860
        %v3149 = vunpack.c.l.b16 %v2861
        %v3150 = vunpack.c.l.b16 %v2862
        %v3151 = vunpack.c.l.b16 %v2863
        %v3152 = vunpack.c.l.b16 %v2864
        %v3153 = vunpack.c.l.b16 %v2865
        %v3154 = vunpack.c.l.b16 %v2866
        %v3155 = vunpack.c.l.b16 %v2867
        %v3156 = vunpack.c.l.b16 %v2868
        %v3157 = vunpack.c.l.b16 %v2869
        %v3158 = vunpack.c.l.b16 %v2870
        %v3159 = vunpack.c.l.b16 %v2871
        %v3160 = vunpack.c.l.b16 %v2872
        %v3161 = vunpack.c.l.b16 %v2873
        %v3162 = vunpack.c.l.b16 %v2874
        %v3163 = vunpack.c.l.b16 %v2875
        %v3164 = vunpack.c.l.b16 %v2876
        %v3165 = vunpack.c.l.b16 %v2877
        %v3166 = vunpack.c.l.b16 %v2878
        %v3167 = vunpack.c.l.b16 %v2879
        %v3168 = vunpack.c.l.b16 %v2880
        %v3169 = vunpack.c.l.b16 %v2881
        %v3170 = vunpack.c.l.b16 %v2882
        %v3171 = vunpack.c.l.b16 %v2883
        %v3172 = vunpack.c.l.b16 %v2884
        %v3173 = vunpack.c.l.b16 %v2885
        %v3174 = vunpack.c.l.b16 %v2886
        %v3175 = vunpack.c.l.b16 %v2887
        %v3176 = vunpack.c.l.b16 %v2888
        %v3177 = vunpack.c.l.b16 %v2889
        %v3178 = vunpack.c.l.b16 %v2890
        %v3179 = vunpack.c.l.b16 %v2891
        %v3180 = vunpack.c.l.b16 %v2892
        %v3181 = vunpack.c.l.b16 %v2893
        %v3182 = vunpack.c.l.b16 %v2894
        %v3183 = vunpack.c.l.b16 %v2895
        %v3184 = vunpack.c.l.b16 %v2896
        %v3185 = vunpack.c.l.b16 %v2897
        %v3186 = vunpack.c.l.b16 %v2898
        %v3187 = vunpack.c.l.b16 %v2899
        %v3188 = vunpack.c.l.b16 %v2900
        %v3189 = vunpack.c.l.b16 %v2901
        %v3190 = vunpack.c.l.b16 %v2902
        %v3191 = vunpack.c.l.b16 %v2903
        %v3192 = vunpack.c.l.b16 %v2904
        %v3193 = vunpack.c.l.b16 %v2905
        %v3194 = vunpack.c.l.b16 %v2906
        %v3195 = vunpack.c.l.b16 %v2907
        %v3196 = vunpack.c.l.b16 %v2908
        %v3197 = vunpack.c.l.b16 %v2909
        %v3198 = vunpack.c.l.b16 %v2910
        %v3199 = vunpack.c.l.b16 %v2911
        %v3200 = vunpack.c.l.b16 %v2912
        %v3201 = vunpack.c.l.b16 %v2913
        %v3202 = vunpack.c.l.b16 %v2914
        %v3203 = vunpack.c.l.b16 %v2915
        %v3204 = vunpack.c.l.b16 %v2916
        %v3205 = vunpack.c.l.b16 %v2917
        %v3206 = vunpack.c.l.b16 %v2918
        %v3207 = vunpack.c.l.b16 %v2919
        %v3208 = vunpack.c.l.b16 %v2920
        %v3209 = vunpack.c.l.b16 %v2921
        %v3210 = vunpack.c.l.b16 %v2922
        %v3211 = vunpack.c.l.b16 %v2923
        %v3212 = vunpack.c.l.b16 %v2924
        %v3213 = vunpack.c.l.b16 %v2925
        %v3214 = vunpack.c.l.b16 %v2926
        %v3215 = vunpack.c.l.b16 %v2927
        %v3216 = vunpack.c.l.b16 %v2928
        %v3217 = vunpack.c.l.b16 %v2929
        %v3218 = vunpack.c.l.b16 %v2930
        %v3219 = vunpack.c.l.b16 %v2931
        %v3220 = vunpack.c.l.b16 %v2932
        %v3221 = vpack.c.b16 %v3078, %v3077
        %v3222 = vpack.c.b16 %v3080, %v3079
        %v3223 = vpack.c.b16 %v3082, %v3081
        %v3224 = vpack.c.b16 %v3084, %v3083
        %v3225 = vpack.c.b16 %v3086, %v3085
        %v3226 = vpack.c.b16 %v3088, %v3087
        %v3227 = vpack.c.b16 %v3090, %v3089
        %v3228 = vpack.c.b16 %v3092, %v3091
        %v3229 = vpack.c.b16 %v3094, %v3093
        %v3230 = vpack.c.b16 %v3096, %v3095
        %v3231 = vpack.c.b16 %v3098, %v3097
        %v3232 = vpack.c.b16 %v3100, %v3099
        %v3233 = vpack.c.b16 %v3102, %v3101
        %v3234 = vpack.c.b16 %v3104, %v3103
        %v3235 = vpack.c.b16 %v3106, %v3105
        %v3236 = vpack.c.b16 %v3108, %v3107
        %v3237 = vpack.c.b16 %v3110, %v3109
        %v3238 = vpack.c.b16 %v3112, %v3111
        %v3239 = vpack.c.b16 %v3114, %v3113
        %v3240 = vpack.c.b16 %v3116, %v3115
        %v3241 = vpack.c.b16 %v3118, %v3117
        %v3242 = vpack.c.b16 %v3120, %v3119
        %v3243 = vpack.c.b16 %v3122, %v3121
        %v3244 = vpack.c.b16 %v3124, %v3123
        %v3245 = vpack.c.b16 %v3126, %v3125
        %v3246 = vpack.c.b16 %v3128, %v3127
        %v3247 = vpack.c.b16 %v3130, %v3129
        %v3248 = vpack.c.b16 %v3132, %v3131
        %v3249 = vpack.c.b16 %v3134, %v3133
        %v3250 = vpack.c.b16 %v3136, %v3135
        %v3251 = vpack.c.b16 %v3138, %v3137
        %v3252 = vpack.c.b16 %v3140, %v3139
        %v3253 = vpack.c.b16 %v3142, %v3141
        %v3254 = vpack.c.b16 %v3144, %v3143
        %v3255 = vpack.c.b16 %v3146, %v3145
        %v3256 = vpack.c.b16 %v3148, %v3147
        %v3257 = vpack.c.b16 %v3150, %v3149
        %v3258 = vpack.c.b16 %v3152, %v3151
        %v3259 = vpack.c.b16 %v3154, %v3153
        %v3260 = vpack.c.b16 %v3156, %v3155
        %v3261 = vpack.c.b16 %v3158, %v3157
        %v3262 = vpack.c.b16 %v3160, %v3159
        %v3263 = vpack.c.b16 %v3162, %v3161
        %v3264 = vpack.c.b16 %v3164, %v3163
        %v3265 = vpack.c.b16 %v3166, %v3165
        %v3266 = vpack.c.b16 %v3168, %v3167
        %v3267 = vpack.c.b16 %v3170, %v3169
        %v3268 = vpack.c.b16 %v3172, %v3171
        %v3269 = vpack.c.b16 %v3174, %v3173
        %v3270 = vpack.c.b16 %v3176, %v3175
        %v3271 = vpack.c.b16 %v3178, %v3177
        %v3272 = vpack.c.b16 %v3180, %v3179
        %v3273 = vpack.c.b16 %v3182, %v3181
        %v3274 = vpack.c.b16 %v3184, %v3183
        %v3275 = vpack.c.b16 %v3186, %v3185
        %v3276 = vpack.c.b16 %v3188, %v3187
        %v3277 = vpack.c.b16 %v3190, %v3189
        %v3278 = vpack.c.b16 %v3192, %v3191
        %v3279 = vpack.c.b16 %v3194, %v3193
        %v3280 = vpack.c.b16 %v3196, %v3195
        %v3281 = vpack.c.b16 %v3198, %v3197
        %v3282 = vpack.c.b16 %v3200, %v3199
        %v3283 = vpack.c.b16 %v3202, %v3201
        %v3284 = vpack.c.b16 %v3204, %v3203
        %v3285 = vpack.c.b16 %v3206, %v3205
        %v3286 = vpack.c.b16 %v3208, %v3207
        %v3287 = vpack.c.b16 %v3210, %v3209
        %v3288 = vpack.c.b16 %v3212, %v3211
        %v3289 = vpack.c.b16 %v3214, %v3213
        %v3290 = vpack.c.b16 %v3216, %v3215
        %v3291 = vpack.c.b16 %v3218, %v3217
        %v3292 = vpack.c.b16 %v3220, %v3219
        %3365 = vmatprep.subr.bf16.mxu0 0
        %3366 = vmatpush1.bf16.msra.mxu0 %v3221
        %3367 = vmatprep.subr.bf16.mxu0 0
        %3368 = vmatpush1.bf16.msra.mxu0 %v3222
        %3369 = vmatprep.subr.bf16.mxu0 0
        %3370 = vmatpush1.bf16.msra.mxu0 %v3223
        %3371 = vmatprep.subr.bf16.mxu0 0
        %3372 = vmatpush1.bf16.msra.mxu0 %v3224
        %3373 = vmatprep.subr.bf16.mxu0 0
        %3374 = vmatpush1.bf16.msra.mxu0 %v3225
        %3375 = vmatprep.subr.bf16.mxu0 0
        %3376 = vmatpush1.bf16.msra.mxu0 %v3226
        %3377 = vmatprep.subr.bf16.mxu0 0
        %3378 = vmatpush1.bf16.msra.mxu0 %v3227
        %3379 = vmatprep.subr.bf16.mxu0 0
        %3380 = vmatpush1.bf16.msra.mxu0 %v3228
        %3381 = vmatprep.subr.bf16.mxu0 0
        %3382 = vmatpush1.bf16.msra.mxu0 %v3229
        %3383 = vmatprep.subr.bf16.mxu0 0
        %3384 = vmatpush1.bf16.msra.mxu0 %v3230
        %3385 = vmatprep.subr.bf16.mxu0 0
        %3386 = vmatpush1.bf16.msra.mxu0 %v3231
        %3387 = vmatprep.subr.bf16.mxu0 0
        %3388 = vmatpush1.bf16.msra.mxu0 %v3232
        %3389 = vmatprep.subr.bf16.mxu0 0
        %3390 = vmatpush1.bf16.msra.mxu0 %v3233
        %3391 = vmatprep.subr.bf16.mxu0 0
        %3392 = vmatpush1.bf16.msra.mxu0 %v3234
        %3393 = vmatprep.subr.bf16.mxu0 0
        %3394 = vmatpush1.bf16.msra.mxu0 %v3235
        %3395 = vmatprep.subr.bf16.mxu0 0
        %3396 = vmatpush1.bf16.msra.mxu0 %v3236
        %3397 = vmatprep.mubr.bf16.mxu0 %v2277
        %3398 = vmatmul.mubr.bf16.gmra.mrb[0].mxu0 %v2213
        %v3399 = vpop.f32.mrb[0].mxu0
        %v3400 = vadd.f32 0.0, %v3399
        %v3401 = vpop.f32.mrb[0].mxu0
        %v3402 = vpop.f32.mrb[0].mxu0
        %v3403 = vadd.f32 0.0, %v3402
        %v3404 = vpop.f32.mrb[0].mxu0
        %3405 = vmatprep.mubr.bf16.mxu0 %v2278
        %3406 = vmatmul.mubr.bf16.gmra.mrb[0].mxu0 %v2214
        %v3407 = vpop.f32.mrb[0].mxu0
        %v3408 = vadd.f32 0.0, %v3407
        %v3409 = vpop.f32.mrb[0].mxu0
        %v3410 = vpop.f32.mrb[0].mxu0
        %v3411 = vadd.f32 0.0, %v3410
        %v3412 = vpop.f32.mrb[0].mxu0
        %3413 = vmatprep.mubr.bf16.mxu0 %v2279
        %3414 = vmatmul.mubr.bf16.gmra.mrb[0].mxu0 %v2215
        %v3415 = vpop.f32.mrb[0].mxu0
        %v3416 = vadd.f32 0.0, %v3415
        %v3417 = vpop.f32.mrb[0].mxu0
        %v3418 = vpop.f32.mrb[0].mxu0
        %v3419 = vadd.f32 0.0, %v3418
        %v3420 = vpop.f32.mrb[0].mxu0
        %3421 = vmatprep.mubr.bf16.mxu0 %v2280
        %3422 = vmatmul.mubr.bf16.gmra.mrb[0].mxu0 %v2216
        %v3423 = vpop.f32.mrb[0].mxu0
        %v3424 = vadd.f32 0.0, %v3423
        %v3425 = vpop.f32.mrb[0].mxu0
        %v3426 = vpop.f32.mrb[0].mxu0
        %v3427 = vadd.f32 0.0, %v3426
        %v3428 = vpop.f32.mrb[0].mxu0
        %3429 = vmatprep.mubr.bf16.mxu0 %v2281
        %3430 = vmatmul.mubr.bf16.gmra.mrb[0].mxu0 %v2217
        %v3431 = vpop.f32.mrb[0].mxu0
        %v3432 = vadd.f32 0.0, %v3431
        %v3433 = vpop.f32.mrb[0].mxu0
        %v3434 = vpop.f32.mrb[0].mxu0
        %v3435 = vadd.f32 0.0, %v3434
        %v3436 = vpop.f32.mrb[0].mxu0
        %3437 = vmatprep.mubr.bf16.mxu0 %v2282
        %3438 = vmatmul.mubr.bf16.gmra.mrb[0].mxu0 %v2218
        %v3439 = vpop.f32.mrb[0].mxu0
        %v3440 = vadd.f32 0.0, %v3439
        %v3441 = vpop.f32.mrb[0].mxu0
        %v3442 = vpop.f32.mrb[0].mxu0
        %v3443 = vadd.f32 0.0, %v3442
        %v3444 = vpop.f32.mrb[0].mxu0
        %3445 = vmatprep.mubr.bf16.mxu0 %v2283
        %3446 = vmatmul.mubr.bf16.gmra.mrb[0].mxu0 %v2219
        %v3447 = vpop.f32.mrb[0].mxu0
        %v3448 = vadd.f32 0.0, %v3447
        %v3449 = vpop.f32.mrb[0].mxu0
        %v3450 = vpop.f32.mrb[0].mxu0
        %v3451 = vadd.f32 0.0, %v3450
        %v3452 = vpop.f32.mrb[0].mxu0
        %3453 = vmatprep.mubr.bf16.mxu0 %v2284
        %3454 = vmatmul.mubr.bf16.gmra.mrb[0].mxu0 %v2220
        %v3455 = vpop.f32.mrb[0].mxu0
        %v3456 = vadd.f32 0.0, %v3455
        %v3457 = vpop.f32.mrb[0].mxu0
        %v3458 = vpop.f32.mrb[0].mxu0
        %v3459 = vadd.f32 0.0, %v3458
        %v3460 = vpop.f32.mrb[0].mxu0
        %3461 = vmatprep.mubr.bf16.mxu0 %v2285
        %3462 = vmatmul.mubr.bf16.gmra.mrb[0].mxu0 %v2221
        %v3463 = vpop.f32.mrb[0].mxu0
        %v3464 = vadd.f32 0.0, %v3463
        %v3465 = vpop.f32.mrb[0].mxu0
        %v3466 = vpop.f32.mrb[0].mxu0
        %v3467 = vadd.f32 0.0, %v3466
        %v3468 = vpop.f32.mrb[0].mxu0
        %3469 = vmatprep.mubr.bf16.mxu0 %v2286
        %3470 = vmatmul.mubr.bf16.gmra.mrb[0].mxu0 %v2222
        %v3471 = vpop.f32.mrb[0].mxu0
        %v3472 = vadd.f32 0.0, %v3471
        %v3473 = vpop.f32.mrb[0].mxu0
        %v3474 = vpop.f32.mrb[0].mxu0
        %v3475 = vadd.f32 0.0, %v3474
        %v3476 = vpop.f32.mrb[0].mxu0
        %3477 = vmatprep.mubr.bf16.mxu0 %v2287
        %3478 = vmatmul.mubr.bf16.gmra.mrb[0].mxu0 %v2223
        %v3479 = vpop.f32.mrb[0].mxu0
        %v3480 = vadd.f32 0.0, %v3479
        %v3481 = vpop.f32.mrb[0].mxu0
        %v3482 = vpop.f32.mrb[0].mxu0
        %v3483 = vadd.f32 0.0, %v3482
        %v3484 = vpop.f32.mrb[0].mxu0
        %3485 = vmatprep.mubr.bf16.mxu0 %v2288
        %3486 = vmatmul.mubr.bf16.gmra.mrb[0].mxu0 %v2224
        %v3487 = vpop.f32.mrb[0].mxu0
        %v3488 = vadd.f32 0.0, %v3487
        %v3489 = vpop.f32.mrb[0].mxu0
        %v3490 = vpop.f32.mrb[0].mxu0
        %v3491 = vadd.f32 0.0, %v3490
        %v3492 = vpop.f32.mrb[0].mxu0
        %3493 = vmatprep.mubr.bf16.mxu0 %v2289
        %3494 = vmatmul.mubr.bf16.gmra.mrb[0].mxu0 %v2225
        %v3495 = vpop.f32.mrb[0].mxu0
        %v3496 = vadd.f32 0.0, %v3495
        %v3497 = vpop.f32.mrb[0].mxu0
        %v3498 = vpop.f32.mrb[0].mxu0
        %v3499 = vadd.f32 0.0, %v3498
        %v3500 = vpop.f32.mrb[0].mxu0
        %3501 = vmatprep.mubr.bf16.mxu0 %v2290
        %3502 = vmatmul.mubr.bf16.gmra.mrb[0].mxu0 %v2226
        %v3503 = vpop.f32.mrb[0].mxu0
        %v3504 = vadd.f32 0.0, %v3503
        %v3505 = vpop.f32.mrb[0].mxu0
        %v3506 = vpop.f32.mrb[0].mxu0
        %v3507 = vadd.f32 0.0, %v3506
        %v3508 = vpop.f32.mrb[0].mxu0
        %3509 = vmatprep.mubr.bf16.mxu0 %v2291
        %3510 = vmatmul.mubr.bf16.gmra.mrb[0].mxu0 %v2227
        %v3511 = vpop.f32.mrb[0].mxu0
        %v3512 = vadd.f32 0.0, %v3511
        %v3513 = vpop.f32.mrb[0].mxu0
        %v3514 = vpop.f32.mrb[0].mxu0
        %v3515 = vadd.f32 0.0, %v3514
        %v3516 = vpop.f32.mrb[0].mxu0
        %3517 = vmatprep.mubr.bf16.mxu0 %v2292
        %3518 = vmatmul.mubr.bf16.gmra.mrb[0].mxu0 %v2228
        %v3519 = vpop.f32.mrb[0].mxu0
        %v3520 = vadd.f32 0.0, %v3519
        %v3521 = vpop.f32.mrb[0].mxu0
        %v3522 = vpop.f32.mrb[0].mxu0
        %v3523 = vadd.f32 0.0, %v3522
        %v3524 = vpop.f32.mrb[0].mxu0
        %3525 = vdwg.mxu0
        %3526 = vmatprep.subr.bf16.mxu0 0
        %3527 = vmatpush1.bf16.msra.mxu0 %v3237
        %3528 = vmatprep.subr.bf16.mxu0 0
        %3529 = vmatpush1.bf16.msra.mxu0 %v3238
        %3530 = vmatprep.subr.bf16.mxu0 0
        %3531 = vmatpush1.bf16.msra.mxu0 %v3239
        %3532 = vmatprep.subr.bf16.mxu0 0
        %3533 = vmatpush1.bf16.msra.mxu0 %v3240
        %3534 = vmatprep.subr.bf16.mxu0 0
        %3535 = vmatpush1.bf16.msra.mxu0 %v3241
        %3536 = vmatprep.subr.bf16.mxu0 0
        %3537 = vmatpush1.bf16.msra.mxu0 %v3242
        %3538 = vmatprep.subr.bf16.mxu0 0
        %3539 = vmatpush1.bf16.msra.mxu0 %v3243
        %3540 = vmatprep.subr.bf16.mxu0 0
        %3541 = vmatpush1.bf16.msra.mxu0 %v3244
        %3542 = vmatprep.subr.bf16.mxu0 0
        %3543 = vmatpush1.bf16.msra.mxu0 %v3245
        %3544 = vmatprep.subr.bf16.mxu0 0
        %3545 = vmatpush1.bf16.msra.mxu0 %v3246
        %3546 = vmatprep.subr.bf16.mxu0 0
        %3547 = vmatpush1.bf16.msra.mxu0 %v3247
        %3548 = vmatprep.subr.bf16.mxu0 0
        %3549 = vmatpush1.bf16.msra.mxu0 %v3248
        %3550 = vmatprep.subr.bf16.mxu0 0
        %3551 = vmatpush1.bf16.msra.mxu0 %v3249
        %3552 = vmatprep.subr.bf16.mxu0 0
        %3553 = vmatpush1.bf16.msra.mxu0 %v3250
        %3554 = vmatprep.subr.bf16.mxu0 0
        %3555 = vmatpush1.bf16.msra.mxu0 %v3251
        %3556 = vmatprep.subr.bf16.mxu0 0
        %3557 = vmatpush1.bf16.msra.mxu0 %v3252
        %3558 = vmatprep.mubr.bf16.mxu0 %v2421
        %3559 = vmatmul.mubr.bf16.gmra.mrb[0].mxu0 %v2341
        %v3560 = vpop.f32.mrb[0].mxu0
        %v3561 = vadd.f32 %v3400, %v3560
        %v3562 = vpop.f32.mrb[0].mxu0
        %v3563 = vpop.f32.mrb[0].mxu0
        %v3564 = vadd.f32 %v3403, %v3563
        %v3565 = vpop.f32.mrb[0].mxu0
        %3566 = vmatprep.mubr.bf16.mxu0 %v2422
        %3567 = vmatmul.mubr.bf16.gmra.mrb[0].mxu0 %v2342
        %v3568 = vpop.f32.mrb[0].mxu0
        %v3569 = vadd.f32 %v3408, %v3568
        %v3570 = vpop.f32.mrb[0].mxu0
        %v3571 = vpop.f32.mrb[0].mxu0
        %v3572 = vadd.f32 %v3411, %v3571
        %v3573 = vpop.f32.mrb[0].mxu0
        %3574 = vmatprep.mubr.bf16.mxu0 %v2423
        %3575 = vmatmul.mubr.bf16.gmra.mrb[0].mxu0 %v2343
        %v3576 = vpop.f32.mrb[0].mxu0
        %v3577 = vadd.f32 %v3416, %v3576
        %v3578 = vpop.f32.mrb[0].mxu0
        %v3579 = vpop.f32.mrb[0].mxu0
        %v3580 = vadd.f32 %v3419, %v3579
        %v3581 = vpop.f32.mrb[0].mxu0
        %3582 = vmatprep.mubr.bf16.mxu0 %v2424
        %3583 = vmatmul.mubr.bf16.gmra.mrb[0].mxu0 %v2344
        %v3584 = vpop.f32.mrb[0].mxu0
        %v3585 = vadd.f32 %v3424, %v3584
        %v3586 = vpop.f32.mrb[0].mxu0
        %v3587 = vpop.f32.mrb[0].mxu0
        %v3588 = vadd.f32 %v3427, %v3587
        %v3589 = vpop.f32.mrb[0].mxu0
        %3590 = vmatprep.mubr.bf16.mxu0 %v2425
        %3591 = vmatmul.mubr.bf16.gmra.mrb[0].mxu0 %v2345
        %v3592 = vpop.f32.mrb[0].mxu0
        %v3593 = vadd.f32 %v3432, %v3592
        %v3594 = vpop.f32.mrb[0].mxu0
        %v3595 = vpop.f32.mrb[0].mxu0
        %v3596 = vadd.f32 %v3435, %v3595
        %v3597 = vpop.f32.mrb[0].mxu0
        %3598 = vmatprep.mubr.bf16.mxu0 %v2426
        %3599 = vmatmul.mubr.bf16.gmra.mrb[0].mxu0 %v2346
        %v3600 = vpop.f32.mrb[0].mxu0
        %v3601 = vadd.f32 %v3440, %v3600
        %v3602 = vpop.f32.mrb[0].mxu0
        %v3603 = vpop.f32.mrb[0].mxu0
        %v3604 = vadd.f32 %v3443, %v3603
        %v3605 = vpop.f32.mrb[0].mxu0
        %3606 = vmatprep.mubr.bf16.mxu0 %v2427
        %3607 = vmatmul.mubr.bf16.gmra.mrb[0].mxu0 %v2347
        %v3608 = vpop.f32.mrb[0].mxu0
        %v3609 = vadd.f32 %v3448, %v3608
        %v3610 = vpop.f32.mrb[0].mxu0
        %v3611 = vpop.f32.mrb[0].mxu0
        %v3612 = vadd.f32 %v3451, %v3611
        %v3613 = vpop.f32.mrb[0].mxu0
        %3614 = vmatprep.mubr.bf16.mxu0 %v2428
        %3615 = vmatmul.mubr.bf16.gmra.mrb[0].mxu0 %v2348
        %v3616 = vpop.f32.mrb[0].mxu0
        %v3617 = vadd.f32 %v3456, %v3616
        %v3618 = vpop.f32.mrb[0].mxu0
        %v3619 = vpop.f32.mrb[0].mxu0
        %v3620 = vadd.f32 %v3459, %v3619
        %v3621 = vpop.f32.mrb[0].mxu0
        %3622 = vmatprep.mubr.bf16.mxu0 %v2429
        %3623 = vmatmul.mubr.bf16.gmra.mrb[0].mxu0 %v2349
        %v3624 = vpop.f32.mrb[0].mxu0
        %v3625 = vadd.f32 %v3464, %v3624
        %v3626 = vpop.f32.mrb[0].mxu0
        %v3627 = vpop.f32.mrb[0].mxu0
        %v3628 = vadd.f32 %v3467, %v3627
        %v3629 = vpop.f32.mrb[0].mxu0
        %3630 = vmatprep.mubr.bf16.mxu0 %v2430
        %3631 = vmatmul.mubr.bf16.gmra.mrb[0].mxu0 %v2350
        %v3632 = vpop.f32.mrb[0].mxu0
        %v3633 = vadd.f32 %v3472, %v3632
        %v3634 = vpop.f32.mrb[0].mxu0
        %v3635 = vpop.f32.mrb[0].mxu0
        %v3636 = vadd.f32 %v3475, %v3635
        %v3637 = vpop.f32.mrb[0].mxu0
        %3638 = vmatprep.mubr.bf16.mxu0 %v2431
        %3639 = vmatmul.mubr.bf16.gmra.mrb[0].mxu0 %v2351
        %v3640 = vpop.f32.mrb[0].mxu0
        %v3641 = vadd.f32 %v3480, %v3640
        %v3642 = vpop.f32.mrb[0].mxu0
        %v3643 = vpop.f32.mrb[0].mxu0
        %v3644 = vadd.f32 %v3483, %v3643
        %v3645 = vpop.f32.mrb[0].mxu0
        %3646 = vmatprep.mubr.bf16.mxu0 %v2432
        %3647 = vmatmul.mubr.bf16.gmra.mrb[0].mxu0 %v2352
        %v3648 = vpop.f32.mrb[0].mxu0
        %v3649 = vadd.f32 %v3488, %v3648
        %v3650 = vpop.f32.mrb[0].mxu0
        %v3651 = vpop.f32.mrb[0].mxu0
        %v3652 = vadd.f32 %v3491, %v3651
        %v3653 = vpop.f32.mrb[0].mxu0
        %3654 = vmatprep.mubr.bf16.mxu0 %v2433
        %3655 = vmatmul.mubr.bf16.gmra.mrb[0].mxu0 %v2353
        %v3656 = vpop.f32.mrb[0].mxu0
        %v3657 = vadd.f32 %v3496, %v3656
        %v3658 = vpop.f32.mrb[0].mxu0
        %v3659 = vpop.f32.mrb[0].mxu0
        %v3660 = vadd.f32 %v3499, %v3659
        %v3661 = vpop.f32.mrb[0].mxu0
        %3662 = vmatprep.mubr.bf16.mxu0 %v2434
        %3663 = vmatmul.mubr.bf16.gmra.mrb[0].mxu0 %v2354
        %v3664 = vpop.f32.mrb[0].mxu0
        %v3665 = vadd.f32 %v3504, %v3664
        %v3666 = vpop.f32.mrb[0].mxu0
        %v3667 = vpop.f32.mrb[0].mxu0
        %v3668 = vadd.f32 %v3507, %v3667
        %v3669 = vpop.f32.mrb[0].mxu0
        %3670 = vmatprep.mubr.bf16.mxu0 %v2435
        %3671 = vmatmul.mubr.bf16.gmra.mrb[0].mxu0 %v2355
        %v3672 = vpop.f32.mrb[0].mxu0
        %v3673 = vadd.f32 %v3512, %v3672
        %v3674 = vpop.f32.mrb[0].mxu0
        %v3675 = vpop.f32.mrb[0].mxu0
        %v3676 = vadd.f32 %v3515, %v3675
        %v3677 = vpop.f32.mrb[0].mxu0
        %3678 = vmatprep.mubr.bf16.mxu0 %v2436
        %3679 = vmatmul.mubr.bf16.gmra.mrb[0].mxu0 %v2356
        %v3680 = vpop.f32.mrb[0].mxu0
        %v3681 = vadd.f32 %v3520, %v3680
        %v3682 = vpop.f32.mrb[0].mxu0
        %v3683 = vpop.f32.mrb[0].mxu0
        %v3684 = vadd.f32 %v3523, %v3683
        %v3685 = vpop.f32.mrb[0].mxu0
        %3686 = vdwg.mxu0
        %3687 = vmatprep.subr.bf16.mxu0 0
        %3688 = vmatpush1.bf16.msra.mxu0 %v3253
        %3689 = vmatprep.subr.bf16.mxu0 0
        %3690 = vmatpush1.bf16.msra.mxu0 %v3254
        %3691 = vmatprep.subr.bf16.mxu0 0
        %3692 = vmatpush1.bf16.msra.mxu0 %v3255
        %3693 = vmatprep.subr.bf16.mxu0 0
        %3694 = vmatpush1.bf16.msra.mxu0 %v3256
        %3695 = vmatprep.subr.bf16.mxu0 0
        %3696 = vmatpush1.bf16.msra.mxu0 %v3257
        %3697 = vmatprep.subr.bf16.mxu0 0
        %3698 = vmatpush1.bf16.msra.mxu0 %v3258
        %3699 = vmatprep.subr.bf16.mxu0 0
        %3700 = vmatpush1.bf16.msra.mxu0 %v3259
        %3701 = vmatprep.subr.bf16.mxu0 0
        %3702 = vmatpush1.bf16.msra.mxu0 %v3260
        %3703 = vmatprep.subr.bf16.mxu0 0
        %3704 = vmatpush1.bf16.msra.mxu0 %v3261
        %3705 = vmatprep.subr.bf16.mxu0 0
        %3706 = vmatpush1.bf16.msra.mxu0 %v3262
        %3707 = vmatprep.subr.bf16.mxu0 0
        %3708 = vmatpush1.bf16.msra.mxu0 %v3263
        %3709 = vmatprep.subr.bf16.mxu0 0
        %3710 = vmatpush1.bf16.msra.mxu0 %v3264
        %3711 = vmatprep.subr.bf16.mxu0 0
        %3712 = vmatpush1.bf16.msra.mxu0 %v3265
        %3713 = vmatprep.subr.bf16.mxu0 0
        %3714 = vmatpush1.bf16.msra.mxu0 %v3266
        %3715 = vmatprep.subr.bf16.mxu0 0
        %3716 = vmatpush1.bf16.msra.mxu0 %v3267
        %3717 = vmatprep.subr.bf16.mxu0 0
        %3718 = vmatpush1.bf16.msra.mxu0 %v3268
        %3719 = vmatprep.mubr.bf16.mxu0 %v2549
        %3720 = vmatmul.mubr.bf16.gmra.mrb[0].mxu0 %v2485
        %v3721 = vpop.f32.mrb[0].mxu0
        %v3722 = vadd.f32 %v3561, %v3721
        %v3723 = vpop.f32.mrb[0].mxu0
        %v3724 = vpop.f32.mrb[0].mxu0
        %v3725 = vadd.f32 %v3564, %v3724
        %v3726 = vpop.f32.mrb[0].mxu0
        %3727 = vmatprep.mubr.bf16.mxu0 %v2550
        %3728 = vmatmul.mubr.bf16.gmra.mrb[0].mxu0 %v2486
        %v3729 = vpop.f32.mrb[0].mxu0
        %v3730 = vadd.f32 %v3569, %v3729
        %v3731 = vpop.f32.mrb[0].mxu0
        %v3732 = vpop.f32.mrb[0].mxu0
        %v3733 = vadd.f32 %v3572, %v3732
        %v3734 = vpop.f32.mrb[0].mxu0
        %3735 = vmatprep.mubr.bf16.mxu0 %v2551
        %3736 = vmatmul.mubr.bf16.gmra.mrb[0].mxu0 %v2487
        %v3737 = vpop.f32.mrb[0].mxu0
        %v3738 = vadd.f32 %v3577, %v3737
        %v3739 = vpop.f32.mrb[0].mxu0
        %v3740 = vpop.f32.mrb[0].mxu0
        %v3741 = vadd.f32 %v3580, %v3740
        %v3742 = vpop.f32.mrb[0].mxu0
        %3743 = vmatprep.mubr.bf16.mxu0 %v2552
        %3744 = vmatmul.mubr.bf16.gmra.mrb[0].mxu0 %v2488
        %v3745 = vpop.f32.mrb[0].mxu0
        %v3746 = vadd.f32 %v3585, %v3745
        %v3747 = vpop.f32.mrb[0].mxu0
        %v3748 = vpop.f32.mrb[0].mxu0
        %v3749 = vadd.f32 %v3588, %v3748
        %v3750 = vpop.f32.mrb[0].mxu0
        %3751 = vmatprep.mubr.bf16.mxu0 %v2553
        %3752 = vmatmul.mubr.bf16.gmra.mrb[0].mxu0 %v2489
        %v3753 = vpop.f32.mrb[0].mxu0
        %v3754 = vadd.f32 %v3593, %v3753
        %v3755 = vpop.f32.mrb[0].mxu0
        %v3756 = vpop.f32.mrb[0].mxu0
        %v3757 = vadd.f32 %v3596, %v3756
        %v3758 = vpop.f32.mrb[0].mxu0
        %3759 = vmatprep.mubr.bf16.mxu0 %v2554
        %3760 = vmatmul.mubr.bf16.gmra.mrb[0].mxu0 %v2490
        %v3761 = vpop.f32.mrb[0].mxu0
        %v3762 = vadd.f32 %v3601, %v3761
        %v3763 = vpop.f32.mrb[0].mxu0
        %v3764 = vpop.f32.mrb[0].mxu0
        %v3765 = vadd.f32 %v3604, %v3764
        %v3766 = vpop.f32.mrb[0].mxu0
        %3767 = vmatprep.mubr.bf16.mxu0 %v2555
        %3768 = vmatmul.mubr.bf16.gmra.mrb[0].mxu0 %v2491
        %v3769 = vpop.f32.mrb[0].mxu0
        %v3770 = vadd.f32 %v3609, %v3769
        %v3771 = vpop.f32.mrb[0].mxu0
        %v3772 = vpop.f32.mrb[0].mxu0
        %v3773 = vadd.f32 %v3612, %v3772
        %v3774 = vpop.f32.mrb[0].mxu0
        %3775 = vmatprep.mubr.bf16.mxu0 %v2556
        %3776 = vmatmul.mubr.bf16.gmra.mrb[0].mxu0 %v2492
        %v3777 = vpop.f32.mrb[0].mxu0
        %v3778 = vadd.f32 %v3617, %v3777
        %v3779 = vpop.f32.mrb[0].mxu0
        %v3780 = vpop.f32.mrb[0].mxu0
        %v3781 = vadd.f32 %v3620, %v3780
        %v3782 = vpop.f32.mrb[0].mxu0
        %3783 = vmatprep.mubr.bf16.mxu0 %v2557
        %3784 = vmatmul.mubr.bf16.gmra.mrb[0].mxu0 %v2493
        %v3785 = vpop.f32.mrb[0].mxu0
        %v3786 = vadd.f32 %v3625, %v3785
        %v3787 = vpop.f32.mrb[0].mxu0
        %v3788 = vpop.f32.mrb[0].mxu0
        %v3789 = vadd.f32 %v3628, %v3788
        %v3790 = vpop.f32.mrb[0].mxu0
        %3791 = vmatprep.mubr.bf16.mxu0 %v2558
        %3792 = vmatmul.mubr.bf16.gmra.mrb[0].mxu0 %v2494
        %v3793 = vpop.f32.mrb[0].mxu0
        %v3794 = vadd.f32 %v3633, %v3793
        %v3795 = vpop.f32.mrb[0].mxu0
        %v3796 = vpop.f32.mrb[0].mxu0
        %v3797 = vadd.f32 %v3636, %v3796
        %v3798 = vpop.f32.mrb[0].mxu0
        %3799 = vmatprep.mubr.bf16.mxu0 %v2559
        %3800 = vmatmul.mubr.bf16.gmra.mrb[0].mxu0 %v2495
        %v3801 = vpop.f32.mrb[0].mxu0
        %v3802 = vadd.f32 %v3641, %v3801
        %v3803 = vpop.f32.mrb[0].mxu0
        %v3804 = vpop.f32.mrb[0].mxu0
        %v3805 = vadd.f32 %v3644, %v3804
        %v3806 = vpop.f32.mrb[0].mxu0
        %3807 = vmatprep.mubr.bf16.mxu0 %v2560
        %3808 = vmatmul.mubr.bf16.gmra.mrb[0].mxu0 %v2496
        %v3809 = vpop.f32.mrb[0].mxu0
        %v3810 = vadd.f32 %v3649, %v3809
        %v3811 = vpop.f32.mrb[0].mxu0
        %v3812 = vpop.f32.mrb[0].mxu0
        %v3813 = vadd.f32 %v3652, %v3812
        %v3814 = vpop.f32.mrb[0].mxu0
        %3815 = vmatprep.mubr.bf16.mxu0 %v2561
        %3816 = vmatmul.mubr.bf16.gmra.mrb[0].mxu0 %v2497
        %v3817 = vpop.f32.mrb[0].mxu0
        %v3818 = vadd.f32 %v3657, %v3817
        %v3819 = vpop.f32.mrb[0].mxu0
        %v3820 = vpop.f32.mrb[0].mxu0
        %v3821 = vadd.f32 %v3660, %v3820
        %v3822 = vpop.f32.mrb[0].mxu0
        %3823 = vmatprep.mubr.bf16.mxu0 %v2562
        %3824 = vmatmul.mubr.bf16.gmra.mrb[0].mxu0 %v2498
        %v3825 = vpop.f32.mrb[0].mxu0
        %v3826 = vadd.f32 %v3665, %v3825
        %v3827 = vpop.f32.mrb[0].mxu0
        %v3828 = vpop.f32.mrb[0].mxu0
        %v3829 = vadd.f32 %v3668, %v3828
        %v3830 = vpop.f32.mrb[0].mxu0
        %3831 = vmatprep.mubr.bf16.mxu0 %v2563
        %3832 = vmatmul.mubr.bf16.gmra.mrb[0].mxu0 %v2499
        %v3833 = vpop.f32.mrb[0].mxu0
        %v3834 = vadd.f32 %v3673, %v3833
        %v3835 = vpop.f32.mrb[0].mxu0
        %v3836 = vpop.f32.mrb[0].mxu0
        %v3837 = vadd.f32 %v3676, %v3836
        %v3838 = vpop.f32.mrb[0].mxu0
        %3839 = vmatprep.mubr.bf16.mxu0 %v2564
        %3840 = vmatmul.mubr.bf16.gmra.mrb[0].mxu0 %v2500
        %v3841 = vpop.f32.mrb[0].mxu0
        %v3842 = vadd.f32 %v3681, %v3841
        %v3843 = vpop.f32.mrb[0].mxu0
        %v3844 = vpop.f32.mrb[0].mxu0
        %v3845 = vadd.f32 %v3684, %v3844
        %v3846 = vpop.f32.mrb[0].mxu0
        %3847 = vdwg.mxu0
        %3848 = vmatprep.subr.bf16.mxu0 0
        %3849 = vmatpush1.bf16.msra.mxu0 %v3269
        %3850 = vmatprep.subr.bf16.mxu0 0
        %3851 = vmatpush1.bf16.msra.mxu0 %v3270
        %3852 = vmatprep.subr.bf16.mxu0 0
        %3853 = vmatpush1.bf16.msra.mxu0 %v3271
        %3854 = vmatprep.subr.bf16.mxu0 0
        %3855 = vmatpush1.bf16.msra.mxu0 %v3272
        %3856 = vmatprep.subr.bf16.mxu0 0
        %3857 = vmatpush1.bf16.msra.mxu0 %v3273
        %3858 = vmatprep.subr.bf16.mxu0 0
        %3859 = vmatpush1.bf16.msra.mxu0 %v3274
        %3860 = vmatprep.subr.bf16.mxu0 0
        %3861 = vmatpush1.bf16.msra.mxu0 %v3275
        %3862 = vmatprep.subr.bf16.mxu0 0
        %3863 = vmatpush1.bf16.msra.mxu0 %v3276
        %3864 = vmatprep.subr.bf16.mxu0 0
        %3865 = vmatpush1.bf16.msra.mxu0 %v3277
        %3866 = vmatprep.subr.bf16.mxu0 0
        %3867 = vmatpush1.bf16.msra.mxu0 %v3278
        %3868 = vmatprep.subr.bf16.mxu0 0
        %3869 = vmatpush1.bf16.msra.mxu0 %v3279
        %3870 = vmatprep.subr.bf16.mxu0 0
        %3871 = vmatpush1.bf16.msra.mxu0 %v3280
        %3872 = vmatprep.subr.bf16.mxu0 0
        %3873 = vmatpush1.bf16.msra.mxu0 %v3281
        %3874 = vmatprep.subr.bf16.mxu0 0
        %3875 = vmatpush1.bf16.msra.mxu0 %v3282
        %3876 = vmatprep.subr.bf16.mxu0 0
        %3877 = vmatpush1.bf16.msra.mxu0 %v3283
        %3878 = vmatprep.subr.bf16.mxu0 0
        %3879 = vmatpush1.bf16.msra.mxu0 %v3284
        %3880 = vmatprep.mubr.bf16.mxu0 %v2693
        %3881 = vmatmul.mubr.bf16.gmra.mrb[0].mxu0 %v2629
        %v3882 = vpop.f32.mrb[0].mxu0
        %v3883 = vadd.f32 %v3722, %v3882
        %v3884 = vpop.f32.mrb[0].mxu0
        %v3885 = vpop.f32.mrb[0].mxu0
        %v3886 = vadd.f32 %v3725, %v3885
        %v3887 = vpop.f32.mrb[0].mxu0
        %3888 = vmatprep.mubr.bf16.mxu0 %v2694
        %3889 = vmatmul.mubr.bf16.gmra.mrb[0].mxu0 %v2630
        %v3890 = vpop.f32.mrb[0].mxu0
        %v3891 = vadd.f32 %v3730, %v3890
        %v3892 = vpop.f32.mrb[0].mxu0
        %v3893 = vpop.f32.mrb[0].mxu0
        %v3894 = vadd.f32 %v3733, %v3893
        %v3895 = vpop.f32.mrb[0].mxu0
        %3896 = vmatprep.mubr.bf16.mxu0 %v2695
        %3897 = vmatmul.mubr.bf16.gmra.mrb[0].mxu0 %v2631
        %v3898 = vpop.f32.mrb[0].mxu0
        %v3899 = vadd.f32 %v3738, %v3898
        %v3900 = vpop.f32.mrb[0].mxu0
        %v3901 = vpop.f32.mrb[0].mxu0
        %v3902 = vadd.f32 %v3741, %v3901
        %v3903 = vpop.f32.mrb[0].mxu0
        %3904 = vmatprep.mubr.bf16.mxu0 %v2696
        %3905 = vmatmul.mubr.bf16.gmra.mrb[0].mxu0 %v2632
        %v3906 = vpop.f32.mrb[0].mxu0
        %v3907 = vadd.f32 %v3746, %v3906
        %v3908 = vpop.f32.mrb[0].mxu0
        %v3909 = vpop.f32.mrb[0].mxu0
        %v3910 = vadd.f32 %v3749, %v3909
        %v3911 = vpop.f32.mrb[0].mxu0
        %3912 = vmatprep.mubr.bf16.mxu0 %v2697
        %3913 = vmatmul.mubr.bf16.gmra.mrb[0].mxu0 %v2633
        %v3914 = vpop.f32.mrb[0].mxu0
        %v3915 = vadd.f32 %v3754, %v3914
        %v3916 = vpop.f32.mrb[0].mxu0
        %v3917 = vpop.f32.mrb[0].mxu0
        %v3918 = vadd.f32 %v3757, %v3917
        %v3919 = vpop.f32.mrb[0].mxu0
        %3920 = vmatprep.mubr.bf16.mxu0 %v2698
        %3921 = vmatmul.mubr.bf16.gmra.mrb[0].mxu0 %v2634
        %v3922 = vpop.f32.mrb[0].mxu0
        %v3923 = vadd.f32 %v3762, %v3922
        %v3924 = vpop.f32.mrb[0].mxu0
        %v3925 = vpop.f32.mrb[0].mxu0
        %v3926 = vadd.f32 %v3765, %v3925
        %v3927 = vpop.f32.mrb[0].mxu0
        %3928 = vmatprep.mubr.bf16.mxu0 %v2699
        %3929 = vmatmul.mubr.bf16.gmra.mrb[0].mxu0 %v2635
        %v3930 = vpop.f32.mrb[0].mxu0
        %v3931 = vadd.f32 %v3770, %v3930
        %v3932 = vpop.f32.mrb[0].mxu0
        %v3933 = vpop.f32.mrb[0].mxu0
        %v3934 = vadd.f32 %v3773, %v3933
        %v3935 = vpop.f32.mrb[0].mxu0
        %3936 = vmatprep.mubr.bf16.mxu0 %v2700
        %3937 = vmatmul.mubr.bf16.gmra.mrb[0].mxu0 %v2636
        %v3938 = vpop.f32.mrb[0].mxu0
        %v3939 = vadd.f32 %v3778, %v3938
        %v3940 = vpop.f32.mrb[0].mxu0
        %v3941 = vpop.f32.mrb[0].mxu0
        %v3942 = vadd.f32 %v3781, %v3941
        %v3943 = vpop.f32.mrb[0].mxu0
        %3944 = vmatprep.mubr.bf16.mxu0 %v2701
        %3945 = vmatmul.mubr.bf16.gmra.mrb[0].mxu0 %v2637
        %v3946 = vpop.f32.mrb[0].mxu0
        %v3947 = vadd.f32 %v3786, %v3946
        %v3948 = vpop.f32.mrb[0].mxu0
        %v3949 = vpop.f32.mrb[0].mxu0
        %v3950 = vadd.f32 %v3789, %v3949
        %v3951 = vpop.f32.mrb[0].mxu0
        %3952 = vmatprep.mubr.bf16.mxu0 %v2702
        %3953 = vmatmul.mubr.bf16.gmra.mrb[0].mxu0 %v2638
        %v3954 = vpop.f32.mrb[0].mxu0
        %v3955 = vadd.f32 %v3794, %v3954
        %v3956 = vpop.f32.mrb[0].mxu0
        %v3957 = vpop.f32.mrb[0].mxu0
        %v3958 = vadd.f32 %v3797, %v3957
        %v3959 = vpop.f32.mrb[0].mxu0
        %3960 = vmatprep.mubr.bf16.mxu0 %v2703
        %3961 = vmatmul.mubr.bf16.gmra.mrb[0].mxu0 %v2639
        %v3962 = vpop.f32.mrb[0].mxu0
        %v3963 = vadd.f32 %v3802, %v3962
        %v3964 = vpop.f32.mrb[0].mxu0
        %v3965 = vpop.f32.mrb[0].mxu0
        %v3966 = vadd.f32 %v3805, %v3965
        %v3967 = vpop.f32.mrb[0].mxu0
        %3968 = vmatprep.mubr.bf16.mxu0 %v2704
        %3969 = vmatmul.mubr.bf16.gmra.mrb[0].mxu0 %v2640
        %v3970 = vpop.f32.mrb[0].mxu0
        %v3971 = vadd.f32 %v3810, %v3970
        %v3972 = vpop.f32.mrb[0].mxu0
        %v3973 = vpop.f32.mrb[0].mxu0
        %v3974 = vadd.f32 %v3813, %v3973
        %v3975 = vpop.f32.mrb[0].mxu0
        %3976 = vmatprep.mubr.bf16.mxu0 %v2705
        %3977 = vmatmul.mubr.bf16.gmra.mrb[0].mxu0 %v2641
        %v3978 = vpop.f32.mrb[0].mxu0
        %v3979 = vadd.f32 %v3818, %v3978
        %v3980 = vpop.f32.mrb[0].mxu0
        %v3981 = vpop.f32.mrb[0].mxu0
        %v3982 = vadd.f32 %v3821, %v3981
        %v3983 = vpop.f32.mrb[0].mxu0
        %3984 = vmatprep.mubr.bf16.mxu0 %v2706
        %3985 = vmatmul.mubr.bf16.gmra.mrb[0].mxu0 %v2642
        %v3986 = vpop.f32.mrb[0].mxu0
        %v3987 = vadd.f32 %v3826, %v3986
        %v3988 = vpop.f32.mrb[0].mxu0
        %v3989 = vpop.f32.mrb[0].mxu0
        %v3990 = vadd.f32 %v3829, %v3989
        %v3991 = vpop.f32.mrb[0].mxu0
        %3992 = vmatprep.mubr.bf16.mxu0 %v2707
        %3993 = vmatmul.mubr.bf16.gmra.mrb[0].mxu0 %v2643
        %v3994 = vpop.f32.mrb[0].mxu0
        %v3995 = vadd.f32 %v3834, %v3994
        %v3996 = vpop.f32.mrb[0].mxu0
        %v3997 = vpop.f32.mrb[0].mxu0
        %v3998 = vadd.f32 %v3837, %v3997
        %v3999 = vpop.f32.mrb[0].mxu0
        %4000 = vmatprep.mubr.bf16.mxu0 %v2708
        %4001 = vmatmul.mubr.bf16.gmra.mrb[0].mxu0 %v2644
        %v4002 = vpop.f32.mrb[0].mxu0
        %v4003 = vadd.f32 %v3842, %v4002
        %v4004 = vpop.f32.mrb[0].mxu0
        %v4005 = vpop.f32.mrb[0].mxu0
        %v4006 = vadd.f32 %v3845, %v4005
        %v4007 = vpop.f32.mrb[0].mxu0
        %4008 = vdwg.mxu0
        %4009 = vmatprep.subr.bf16.mxu0 0
        %4010 = vmatpush1.bf16.msra.mxu0 %v3285
        %4011 = vmatprep.subr.bf16.mxu0 0
        %4012 = vmatpush1.bf16.msra.mxu0 %v3286
        %4013 = vmatprep.subr.bf16.mxu0 0
        %4014 = vmatpush1.bf16.msra.mxu0 %v3287
        %4015 = vmatprep.subr.bf16.mxu0 0
        %4016 = vmatpush1.bf16.msra.mxu0 %v3288
        %4017 = vmatprep.subr.bf16.mxu0 0
        %4018 = vmatpush1.bf16.msra.mxu0 %v3289
        %4019 = vmatprep.subr.bf16.mxu0 0
        %4020 = vmatpush1.bf16.msra.mxu0 %v3290
        %4021 = vmatprep.subr.bf16.mxu0 0
        %4022 = vmatpush1.bf16.msra.mxu0 %v3291
        %4023 = vmatprep.subr.bf16.mxu0 0
        %4024 = vmatpush1.bf16.msra.mxu0 %v3292
        %4025 = vmatprep.subr.bf16.mxu0 0
        %4026 = vmatpush1.bf16.msra.mxu0 0
        %4027 = vmatprep.subr.bf16.mxu0 0
        %4028 = vmatpush1.bf16.msra.mxu0 0
        %4029 = vmatprep.subr.bf16.mxu0 0
        %4030 = vmatpush1.bf16.msra.mxu0 0
        %4031 = vmatprep.subr.bf16.mxu0 0
        %4032 = vmatpush1.bf16.msra.mxu0 0
        %4033 = vmatprep.subr.bf16.mxu0 0
        %4034 = vmatpush1.bf16.msra.mxu0 0
        %4035 = vmatprep.subr.bf16.mxu0 0
        %4036 = vmatpush1.bf16.msra.mxu0 0
        %4037 = vmatprep.subr.bf16.mxu0 0
        %4038 = vmatpush1.bf16.msra.mxu0 0
        %4039 = vmatprep.subr.bf16.mxu0 0
        %4040 = vmatpush1.bf16.msra.mxu0 0
        %4041 = vmatprep.mubr.bf16.mxu0 0
        %4042 = vmatmul.mubr.bf16.gmra.mrb[0].mxu0 %v2757
        %v4043 = vpop.f32.mrb[0].mxu0
        %v4044 = vadd.f32 %v3883, %v4043
        %v4045 = vpop.f32.mrb[0].mxu0
        %v4046 = vpop.f32.mrb[0].mxu0
        %v4047 = vadd.f32 %v3886, %v4046
        %v4048 = vpop.f32.mrb[0].mxu0
        %4049 = vmatprep.mubr.bf16.mxu0 0
        %4050 = vmatmul.mubr.bf16.gmra.mrb[0].mxu0 %v2758
        %v4051 = vpop.f32.mrb[0].mxu0
        %v4052 = vadd.f32 %v3891, %v4051
        %v4053 = vpop.f32.mrb[0].mxu0
        %v4054 = vpop.f32.mrb[0].mxu0
        %v4055 = vadd.f32 %v3894, %v4054
        %v4056 = vpop.f32.mrb[0].mxu0
        %4057 = vmatprep.mubr.bf16.mxu0 0
        %4058 = vmatmul.mubr.bf16.gmra.mrb[0].mxu0 %v2759
        %v4059 = vpop.f32.mrb[0].mxu0
        %v4060 = vadd.f32 %v3899, %v4059
        %v4061 = vpop.f32.mrb[0].mxu0
        %v4062 = vpop.f32.mrb[0].mxu0
        %v4063 = vadd.f32 %v3902, %v4062
        %v4064 = vpop.f32.mrb[0].mxu0
        %4065 = vmatprep.mubr.bf16.mxu0 0
        %4066 = vmatmul.mubr.bf16.gmra.mrb[0].mxu0 %v2760
        %v4067 = vpop.f32.mrb[0].mxu0
        %v4068 = vadd.f32 %v3907, %v4067
        %v4069 = vpop.f32.mrb[0].mxu0
        %v4070 = vpop.f32.mrb[0].mxu0
        %v4071 = vadd.f32 %v3910, %v4070
        %v4072 = vpop.f32.mrb[0].mxu0
        %4073 = vmatprep.mubr.bf16.mxu0 0
        %4074 = vmatmul.mubr.bf16.gmra.mrb[0].mxu0 %v2761
        %v4075 = vpop.f32.mrb[0].mxu0
        %v4076 = vadd.f32 %v3915, %v4075
        %v4077 = vpop.f32.mrb[0].mxu0
        %v4078 = vpop.f32.mrb[0].mxu0
        %v4079 = vadd.f32 %v3918, %v4078
        %v4080 = vpop.f32.mrb[0].mxu0
        %4081 = vmatprep.mubr.bf16.mxu0 0
        %4082 = vmatmul.mubr.bf16.gmra.mrb[0].mxu0 %v2762
        %v4083 = vpop.f32.mrb[0].mxu0
        %v4084 = vadd.f32 %v3923, %v4083
        %v4085 = vpop.f32.mrb[0].mxu0
        %v4086 = vpop.f32.mrb[0].mxu0
        %v4087 = vadd.f32 %v3926, %v4086
        %v4088 = vpop.f32.mrb[0].mxu0
        %4089 = vmatprep.mubr.bf16.mxu0 0
        %4090 = vmatmul.mubr.bf16.gmra.mrb[0].mxu0 %v2763
        %v4091 = vpop.f32.mrb[0].mxu0
        %v4092 = vadd.f32 %v3931, %v4091
        %v4093 = vpop.f32.mrb[0].mxu0
        %v4094 = vpop.f32.mrb[0].mxu0
        %v4095 = vadd.f32 %v3934, %v4094
        %v4096 = vpop.f32.mrb[0].mxu0
        %4097 = vmatprep.mubr.bf16.mxu0 0
        %4098 = vmatmul.mubr.bf16.gmra.mrb[0].mxu0 %v2764
        %v4099 = vpop.f32.mrb[0].mxu0
        %v4100 = vadd.f32 %v3939, %v4099
        %v4101 = vpop.f32.mrb[0].mxu0
        %v4102 = vpop.f32.mrb[0].mxu0
        %v4103 = vadd.f32 %v3942, %v4102
        %v4104 = vpop.f32.mrb[0].mxu0
        %4105 = vmatprep.mubr.bf16.mxu0 0
        %4106 = vmatmul.mubr.bf16.gmra.mrb[0].mxu0 %v2765
        %v4107 = vpop.f32.mrb[0].mxu0
        %v4108 = vadd.f32 %v3947, %v4107
        %v4109 = vpop.f32.mrb[0].mxu0
        %v4110 = vpop.f32.mrb[0].mxu0
        %v4111 = vadd.f32 %v3950, %v4110
        %v4112 = vpop.f32.mrb[0].mxu0
        %4113 = vmatprep.mubr.bf16.mxu0 0
        %4114 = vmatmul.mubr.bf16.gmra.mrb[0].mxu0 %v2766
        %v4115 = vpop.f32.mrb[0].mxu0
        %v4116 = vadd.f32 %v3955, %v4115
        %v4117 = vpop.f32.mrb[0].mxu0
        %v4118 = vpop.f32.mrb[0].mxu0
        %v4119 = vadd.f32 %v3958, %v4118
        %v4120 = vpop.f32.mrb[0].mxu0
        %4121 = vmatprep.mubr.bf16.mxu0 0
        %4122 = vmatmul.mubr.bf16.gmra.mrb[0].mxu0 %v2767
        %v4123 = vpop.f32.mrb[0].mxu0
        %v4124 = vadd.f32 %v3963, %v4123
        %v4125 = vpop.f32.mrb[0].mxu0
        %v4126 = vpop.f32.mrb[0].mxu0
        %v4127 = vadd.f32 %v3966, %v4126
        %v4128 = vpop.f32.mrb[0].mxu0
        %4129 = vmatprep.mubr.bf16.mxu0 0
        %4130 = vmatmul.mubr.bf16.gmra.mrb[0].mxu0 %v2768
        %v4131 = vpop.f32.mrb[0].mxu0
        %v4132 = vadd.f32 %v3971, %v4131
        %v4133 = vpop.f32.mrb[0].mxu0
        %v4134 = vpop.f32.mrb[0].mxu0
        %v4135 = vadd.f32 %v3974, %v4134
        %v4136 = vpop.f32.mrb[0].mxu0
        %4137 = vmatprep.mubr.bf16.mxu0 0
        %4138 = vmatmul.mubr.bf16.gmra.mrb[0].mxu0 %v2769
        %v4139 = vpop.f32.mrb[0].mxu0
        %v4140 = vadd.f32 %v3979, %v4139
        %v4141 = vpop.f32.mrb[0].mxu0
        %v4142 = vpop.f32.mrb[0].mxu0
        %v4143 = vadd.f32 %v3982, %v4142
        %v4144 = vpop.f32.mrb[0].mxu0
        %4145 = vmatprep.mubr.bf16.mxu0 0
        %4146 = vmatmul.mubr.bf16.gmra.mrb[0].mxu0 %v2770
        %v4147 = vpop.f32.mrb[0].mxu0
        %v4148 = vadd.f32 %v3987, %v4147
        %v4149 = vpop.f32.mrb[0].mxu0
        %v4150 = vpop.f32.mrb[0].mxu0
        %v4151 = vadd.f32 %v3990, %v4150
        %v4152 = vpop.f32.mrb[0].mxu0
        %4153 = vmatprep.mubr.bf16.mxu0 0
        %4154 = vmatmul.mubr.bf16.gmra.mrb[0].mxu0 %v2771
        %v4155 = vpop.f32.mrb[0].mxu0
        %v4156 = vadd.f32 %v3995, %v4155
        %v4157 = vpop.f32.mrb[0].mxu0
        %v4158 = vpop.f32.mrb[0].mxu0
        %v4159 = vadd.f32 %v3998, %v4158
        %v4160 = vpop.f32.mrb[0].mxu0
        %4161 = vmatprep.mubr.bf16.mxu0 0
        %4162 = vmatmul.mubr.bf16.gmra.mrb[0].mxu0 %v2772
        %v4163 = vpop.f32.mrb[0].mxu0
        %v4164 = vadd.f32 %v4003, %v4163
        %v4165 = vpop.f32.mrb[0].mxu0
        %v4166 = vpop.f32.mrb[0].mxu0
        %v4167 = vadd.f32 %v4006, %v4166
        %v4168 = vpop.f32.mrb[0].mxu0
        %4169 = vdwg.mxu0
        %v4170 = vld [vmem:[%s2] sm:$0x1]
        %v4172 = vlaneseq
        %v4173 = vshrl.u32 %v4172, 7
        %v4174 = vsub.s32 0, %v4173
        %v4175 = vrot.slane %v4170, %v4174
        %v4177 = vmul.f32 %v4044, %v4175
        %v4178 = vmul.f32 %v4047, %v4175
        %v4179 = vmul.f32 %v4052, %v4175
        %v4180 = vmul.f32 %v4055, %v4175
        %v4181 = vmul.f32 %v4060, %v4175
        %v4182 = vmul.f32 %v4063, %v4175
        %v4183 = vmul.f32 %v4068, %v4175
        %v4184 = vmul.f32 %v4071, %v4175
        %v4185 = vmul.f32 %v4076, %v4175
        %v4186 = vmul.f32 %v4079, %v4175
        %v4187 = vmul.f32 %v4084, %v4175
        %v4188 = vmul.f32 %v4087, %v4175
        %v4189 = vmul.f32 %v4092, %v4175
        %v4190 = vmul.f32 %v4095, %v4175
        %v4191 = vmul.f32 %v4100, %v4175
        %v4192 = vmul.f32 %v4103, %v4175
        %v4193 = vmul.f32 %v4108, %v4175
        %v4194 = vmul.f32 %v4111, %v4175
        %v4195 = vmul.f32 %v4116, %v4175
        %v4196 = vmul.f32 %v4119, %v4175
        %v4197 = vmul.f32 %v4124, %v4175
        %v4198 = vmul.f32 %v4127, %v4175
        %v4199 = vmul.f32 %v4132, %v4175
        %v4200 = vmul.f32 %v4135, %v4175
        %v4201 = vmul.f32 %v4140, %v4175
        %v4202 = vmul.f32 %v4143, %v4175
        %v4203 = vmul.f32 %v4148, %v4175
        %v4204 = vmul.f32 %v4151, %v4175
        %v4205 = vmul.f32 %v4156, %v4175
        %v4206 = vmul.f32 %v4159, %v4175
        %v4207 = vmul.f32 %v4164, %v4175
        %v4208 = vmul.f32 %v4167, %v4175
        %v4209 = vld [vmem:[%s3] sm:$0x1]
        %v4211 = vlaneseq
        %v4212 = vshrl.u32 %v4211, 7
        %v4213 = vsub.s32 0, %v4212
        %v4214 = vrot.slane %v4209, %v4213
        %v4216 = vadd.f32 %v4177, %v4214
        %v4217 = vadd.f32 %v4178, %v4214
        %v4218 = vadd.f32 %v4179, %v4214
        %v4219 = vadd.f32 %v4180, %v4214
        %v4220 = vadd.f32 %v4181, %v4214
        %v4221 = vadd.f32 %v4182, %v4214
        %v4222 = vadd.f32 %v4183, %v4214
        %v4223 = vadd.f32 %v4184, %v4214
        %v4224 = vadd.f32 %v4185, %v4214
        %v4225 = vadd.f32 %v4186, %v4214
        %v4226 = vadd.f32 %v4187, %v4214
        %v4227 = vadd.f32 %v4188, %v4214
        %v4228 = vadd.f32 %v4189, %v4214
        %v4229 = vadd.f32 %v4190, %v4214
        %v4230 = vadd.f32 %v4191, %v4214
        %v4231 = vadd.f32 %v4192, %v4214
        %v4232 = vadd.f32 %v4193, %v4214
        %v4233 = vadd.f32 %v4194, %v4214
        %v4234 = vadd.f32 %v4195, %v4214
        %v4235 = vadd.f32 %v4196, %v4214
        %v4236 = vadd.f32 %v4197, %v4214
        %v4237 = vadd.f32 %v4198, %v4214
        %v4238 = vadd.f32 %v4199, %v4214
        %v4239 = vadd.f32 %v4200, %v4214
        %v4240 = vadd.f32 %v4201, %v4214
        %v4241 = vadd.f32 %v4202, %v4214
        %v4242 = vadd.f32 %v4203, %v4214
        %v4243 = vadd.f32 %v4204, %v4214
        %v4244 = vadd.f32 %v4205, %v4214
        %v4245 = vadd.f32 %v4206, %v4214
        %v4246 = vadd.f32 %v4207, %v4214
        %v4247 = vadd.f32 %v4208, %v4214
        %v4248 = vmax.f32 %v4216, 0.0
        %v4249 = vmax.f32 %v4217, 0.0
        %v4250 = vmax.f32 %v4218, 0.0
        %v4251 = vmax.f32 %v4219, 0.0
        %v4252 = vmax.f32 %v4220, 0.0
        %v4253 = vmax.f32 %v4221, 0.0
        %v4254 = vmax.f32 %v4222, 0.0
        %v4255 = vmax.f32 %v4223, 0.0
        %v4256 = vmax.f32 %v4224, 0.0
        %v4257 = vmax.f32 %v4225, 0.0
        %v4258 = vmax.f32 %v4226, 0.0
        %v4259 = vmax.f32 %v4227, 0.0
        %v4260 = vmax.f32 %v4228, 0.0
        %v4261 = vmax.f32 %v4229, 0.0
        %v4262 = vmax.f32 %v4230, 0.0
        %v4263 = vmax.f32 %v4231, 0.0
        %v4264 = vmax.f32 %v4232, 0.0
        %v4265 = vmax.f32 %v4233, 0.0
        %v4266 = vmax.f32 %v4234, 0.0
        %v4267 = vmax.f32 %v4235, 0.0
        %v4268 = vmax.f32 %v4236, 0.0
        %v4269 = vmax.f32 %v4237, 0.0
        %v4270 = vmax.f32 %v4238, 0.0
        %v4271 = vmax.f32 %v4239, 0.0
        %v4272 = vmax.f32 %v4240, 0.0
        %v4273 = vmax.f32 %v4241, 0.0
        %v4274 = vmax.f32 %v4242, 0.0
        %v4275 = vmax.f32 %v4243, 0.0
        %v4276 = vmax.f32 %v4244, 0.0
        %v4277 = vmax.f32 %v4245, 0.0
        %v4278 = vmax.f32 %v4246, 0.0
        %v4279 = vmax.f32 %v4247, 0.0
        %v4280 = vpack.c.bf16 %v4249, %v4248
        %v4281 = vpack.c.bf16 %v4251, %v4250
        %v4282 = vpack.c.bf16 %v4253, %v4252
        %v4283 = vpack.c.bf16 %v4255, %v4254
        %v4284 = vpack.c.bf16 %v4257, %v4256
        %v4285 = vpack.c.bf16 %v4259, %v4258
        %v4286 = vpack.c.bf16 %v4261, %v4260
        %v4287 = vpack.c.bf16 %v4263, %v4262
        %v4288 = vpack.c.bf16 %v4265, %v4264
        %v4289 = vpack.c.bf16 %v4267, %v4266
        %v4290 = vpack.c.bf16 %v4269, %v4268
        %v4291 = vpack.c.bf16 %v4271, %v4270
        %v4292 = vpack.c.bf16 %v4273, %v4272
        %v4293 = vpack.c.bf16 %v4275, %v4274
        %v4294 = vpack.c.bf16 %v4277, %v4276
        %v4295 = vpack.c.bf16 %v4279, %v4278
        %v4312 = vrot.slane %v4280, 4
        %v4313 = vrot.slane %v4281, 4
        %v4314 = vrot.slane %v4282, 4
        %v4315 = vrot.slane %v4283, 4
        %v4316 = vrot.slane %v4284, 4
        %v4317 = vrot.slane %v4285, 4
        %v4318 = vrot.slane %v4286, 4
        %v4319 = vrot.slane %v4287, 4
        %v4320 = vrot.slane %v4288, 4
        %v4321 = vrot.slane %v4289, 4
        %v4322 = vrot.slane %v4290, 4
        %v4323 = vrot.slane %v4291, 4
        %v4324 = vrot.slane %v4292, 4
        %v4325 = vrot.slane %v4293, 4
        %v4326 = vrot.slane %v4294, 4
        %v4327 = vrot.slane %v4295, 4
        %s4344 = scalar_lea.vmem [#allocation2], 16
        %4345 = vst [vmem:[%s4344] sm:$0xf0] %v4312
        %4346 = vst [vmem:[%s4344 + $0x8] sm:$0xf] %v4312
        %4347 = vst [vmem:[%s4344 + $0x10] sm:$0xf0] %v4313
        %4348 = vst [vmem:[%s4344 + $0x18] sm:$0xf] %v4313
        %4349 = vst [vmem:[%s4344 + $0x20] sm:$0xf0] %v4314
        %4350 = vst [vmem:[%s4344 + $0x28] sm:$0xf] %v4314
        %4351 = vst [vmem:[%s4344 + $0x30] sm:$0xf0] %v4315
        %4352 = vst [vmem:[%s4344 + $0x38] sm:$0xf] %v4315
        %4353 = vst [vmem:[%s4344 + $0x40] sm:$0xf0] %v4316
        %4354 = vst [vmem:[%s4344 + $0x48] sm:$0xf] %v4316
        %4355 = vst [vmem:[%s4344 + $0x50] sm:$0xf0] %v4317
        %4356 = vst [vmem:[%s4344 + $0x58] sm:$0xf] %v4317
        %4357 = vst [vmem:[%s4344 + $0x60] sm:$0xf0] %v4318
        %4358 = vst [vmem:[%s4344 + $0x68] sm:$0xf] %v4318
        %4359 = vst [vmem:[%s4344 + $0x70] sm:$0xf0] %v4319
        %4360 = vst [vmem:[%s4344 + $0x78] sm:$0xf] %v4319
        %4361 = vst [vmem:[%s4344 + $0x80] sm:$0xf0] %v4320
        %4362 = vst [vmem:[%s4344 + $0x88] sm:$0xf] %v4320
        %4363 = vst [vmem:[%s4344 + $0x90] sm:$0xf0] %v4321
        %4364 = vst [vmem:[%s4344 + $0x98] sm:$0xf] %v4321
        %4365 = vst [vmem:[%s4344 + $0xa0] sm:$0xf0] %v4322
        %4366 = vst [vmem:[%s4344 + $0xa8] sm:$0xf] %v4322
        %4367 = vst [vmem:[%s4344 + $0xb0] sm:$0xf0] %v4323
        %4368 = vst [vmem:[%s4344 + $0xb8] sm:$0xf] %v4323
        %4369 = vst [vmem:[%s4344 + $0xc0] sm:$0xf0] %v4324
        %4370 = vst [vmem:[%s4344 + $0xc8] sm:$0xf] %v4324
        %4371 = vst [vmem:[%s4344 + $0xd0] sm:$0xf0] %v4325
        %4372 = vst [vmem:[%s4344 + $0xd8] sm:$0xf] %v4325
        %4373 = vst [vmem:[%s4344 + $0xe0] sm:$0xf0] %v4326
        %4374 = vst [vmem:[%s4344 + $0xe8] sm:$0xf] %v4326
        %4375 = vst [vmem:[%s4344 + $0xf0] sm:$0xf0] %v4327
        %4376 = vst [vmem:[%s4344 + $0xf8] sm:$0xf] %v4327
        %v4377 = vld [vmem:[#allocation2] sm:$0xf8]
        %v4378 = vld [vmem:[#allocation2 + $0x8] sm:$0xf]
        %v4379 = vld [vmem:[#allocation2 + $0x10] sm:$0xf8]
        %v4380 = vld [vmem:[#allocation2 + $0x18] sm:$0xf]
        %v4381 = vld [vmem:[#allocation2 + $0x20] sm:$0xf8]
        %v4382 = vld [vmem:[#allocation2 + $0x28] sm:$0xf]
        %v4383 = vld [vmem:[#allocation2 + $0x30] sm:$0xf8]
        %v4384 = vld [vmem:[#allocation2 + $0x38] sm:$0xf]
        %v4385 = vld [vmem:[#allocation2 + $0x40] sm:$0xf8]
        %v4386 = vld [vmem:[#allocation2 + $0x48] sm:$0xf]
        %v4387 = vld [vmem:[#allocation2 + $0x50] sm:$0xf8]
        %v4388 = vld [vmem:[#allocation2 + $0x58] sm:$0xf]
        %v4389 = vld [vmem:[#allocation2 + $0x60] sm:$0xf8]
        %v4390 = vld [vmem:[#allocation2 + $0x68] sm:$0xf]
        %v4391 = vld [vmem:[#allocation2 + $0x70] sm:$0xf8]
        %v4392 = vld [vmem:[#allocation2 + $0x78] sm:$0xf]
        %v4393 = vld [vmem:[#allocation2 + $0x80] sm:$0xf8]
        %v4394 = vld [vmem:[#allocation2 + $0x88] sm:$0xf]
        %v4395 = vld [vmem:[#allocation2 + $0x90] sm:$0xf8]
        %v4396 = vld [vmem:[#allocation2 + $0x98] sm:$0xf]
        %v4397 = vld [vmem:[#allocation2 + $0xa0] sm:$0xf8]
        %v4398 = vld [vmem:[#allocation2 + $0xa8] sm:$0xf]
        %v4399 = vld [vmem:[#allocation2 + $0xb0] sm:$0xf8]
        %v4400 = vld [vmem:[#allocation2 + $0xb8] sm:$0xf]
        %v4401 = vld [vmem:[#allocation2 + $0xc0] sm:$0xf8]
        %v4402 = vld [vmem:[#allocation2 + $0xc8] sm:$0xf]
        %v4403 = vld [vmem:[#allocation2 + $0xd0] sm:$0xf8]
        %v4404 = vld [vmem:[#allocation2 + $0xd8] sm:$0xf]
        %v4405 = vld [vmem:[#allocation2 + $0xe0] sm:$0xf8]
        %v4406 = vld [vmem:[#allocation2 + $0xe8] sm:$0xf]
        %v4407 = vld [vmem:[#allocation2 + $0xf0] sm:$0xf8]
        %v4408 = vld [vmem:[#allocation2 + $0xf8] sm:$0xf]
        %vm4409 = vsmask.f32 4352
        %v4411 = vshrl.u32 %v4377, 16
        %v4413 = vrot.slane %v4411, 3
        %v4414 = vshll.u32 %v4377, 16
        %v4416 = vrot.slane %v4414, 4
        %v4417 = vor.u32 %v4413, %v4416
        %v4419 = vshrl.u32 %v4378, 16
        %v4421 = vrot.slane %v4419, 3
        %v4422 = vshll.u32 %v4378, 16
        %v4424 = vrot.slane %v4422, 4
        %v4425 = vor.u32 %v4421, %v4424
        %v4426 = vsel %vm4409, %v4417, %v4425
        %v4428 = vshrl.u32 %v4379, 16
        %v4430 = vrot.slane %v4428, 3
        %v4431 = vshll.u32 %v4379, 16
        %v4433 = vrot.slane %v4431, 4
        %v4434 = vor.u32 %v4430, %v4433
        %v4436 = vshrl.u32 %v4380, 16
        %v4438 = vrot.slane %v4436, 3
        %v4439 = vshll.u32 %v4380, 16
        %v4441 = vrot.slane %v4439, 4
        %v4442 = vor.u32 %v4438, %v4441
        %v4443 = vsel %vm4409, %v4434, %v4442
        %v4445 = vshrl.u32 %v4381, 16
        %v4447 = vrot.slane %v4445, 3
        %v4448 = vshll.u32 %v4381, 16
        %v4450 = vrot.slane %v4448, 4
        %v4451 = vor.u32 %v4447, %v4450
        %v4453 = vshrl.u32 %v4382, 16
        %v4455 = vrot.slane %v4453, 3
        %v4456 = vshll.u32 %v4382, 16
        %v4458 = vrot.slane %v4456, 4
        %v4459 = vor.u32 %v4455, %v4458
        %v4460 = vsel %vm4409, %v4451, %v4459
        %v4462 = vshrl.u32 %v4383, 16
        %v4464 = vrot.slane %v4462, 3
        %v4465 = vshll.u32 %v4383, 16
        %v4467 = vrot.slane %v4465, 4
        %v4468 = vor.u32 %v4464, %v4467
        %v4470 = vshrl.u32 %v4384, 16
        %v4472 = vrot.slane %v4470, 3
        %v4473 = vshll.u32 %v4384, 16
        %v4475 = vrot.slane %v4473, 4
        %v4476 = vor.u32 %v4472, %v4475
        %v4477 = vsel %vm4409, %v4468, %v4476
        %v4479 = vshrl.u32 %v4385, 16
        %v4481 = vrot.slane %v4479, 3
        %v4482 = vshll.u32 %v4385, 16
        %v4484 = vrot.slane %v4482, 4
        %v4485 = vor.u32 %v4481, %v4484
        %v4487 = vshrl.u32 %v4386, 16
        %v4489 = vrot.slane %v4487, 3
        %v4490 = vshll.u32 %v4386, 16
        %v4492 = vrot.slane %v4490, 4
        %v4493 = vor.u32 %v4489, %v4492
        %v4494 = vsel %vm4409, %v4485, %v4493
        %v4496 = vshrl.u32 %v4387, 16
        %v4498 = vrot.slane %v4496, 3
        %v4499 = vshll.u32 %v4387, 16
        %v4501 = vrot.slane %v4499, 4
        %v4502 = vor.u32 %v4498, %v4501
        %v4504 = vshrl.u32 %v4388, 16
        %v4506 = vrot.slane %v4504, 3
        %v4507 = vshll.u32 %v4388, 16
        %v4509 = vrot.slane %v4507, 4
        %v4510 = vor.u32 %v4506, %v4509
        %v4511 = vsel %vm4409, %v4502, %v4510
        %v4513 = vshrl.u32 %v4389, 16
        %v4515 = vrot.slane %v4513, 3
        %v4516 = vshll.u32 %v4389, 16
        %v4518 = vrot.slane %v4516, 4
        %v4519 = vor.u32 %v4515, %v4518
        %v4521 = vshrl.u32 %v4390, 16
        %v4523 = vrot.slane %v4521, 3
        %v4524 = vshll.u32 %v4390, 16
        %v4526 = vrot.slane %v4524, 4
        %v4527 = vor.u32 %v4523, %v4526
        %v4528 = vsel %vm4409, %v4519, %v4527
        %v4530 = vshrl.u32 %v4391, 16
        %v4532 = vrot.slane %v4530, 3
        %v4533 = vshll.u32 %v4391, 16
        %v4535 = vrot.slane %v4533, 4
        %v4536 = vor.u32 %v4532, %v4535
        %v4538 = vshrl.u32 %v4392, 16
        %v4540 = vrot.slane %v4538, 3
        %v4541 = vshll.u32 %v4392, 16
        %v4543 = vrot.slane %v4541, 4
        %v4544 = vor.u32 %v4540, %v4543
        %v4545 = vsel %vm4409, %v4536, %v4544
        %v4547 = vshrl.u32 %v4393, 16
        %v4549 = vrot.slane %v4547, 3
        %v4550 = vshll.u32 %v4393, 16
        %v4552 = vrot.slane %v4550, 4
        %v4553 = vor.u32 %v4549, %v4552
        %v4555 = vshrl.u32 %v4394, 16
        %v4557 = vrot.slane %v4555, 3
        %v4558 = vshll.u32 %v4394, 16
        %v4560 = vrot.slane %v4558, 4
        %v4561 = vor.u32 %v4557, %v4560
        %v4562 = vsel %vm4409, %v4553, %v4561
        %v4564 = vshrl.u32 %v4395, 16
        %v4566 = vrot.slane %v4564, 3
        %v4567 = vshll.u32 %v4395, 16
        %v4569 = vrot.slane %v4567, 4
        %v4570 = vor.u32 %v4566, %v4569
        %v4572 = vshrl.u32 %v4396, 16
        %v4574 = vrot.slane %v4572, 3
        %v4575 = vshll.u32 %v4396, 16
        %v4577 = vrot.slane %v4575, 4
        %v4578 = vor.u32 %v4574, %v4577
        %v4579 = vsel %vm4409, %v4570, %v4578
        %v4581 = vshrl.u32 %v4397, 16
        %v4583 = vrot.slane %v4581, 3
        %v4584 = vshll.u32 %v4397, 16
        %v4586 = vrot.slane %v4584, 4
        %v4587 = vor.u32 %v4583, %v4586
        %v4589 = vshrl.u32 %v4398, 16
        %v4591 = vrot.slane %v4589, 3
        %v4592 = vshll.u32 %v4398, 16
        %v4594 = vrot.slane %v4592, 4
        %v4595 = vor.u32 %v4591, %v4594
        %v4596 = vsel %vm4409, %v4587, %v4595
        %v4598 = vshrl.u32 %v4399, 16
        %v4600 = vrot.slane %v4598, 3
        %v4601 = vshll.u32 %v4399, 16
        %v4603 = vrot.slane %v4601, 4
        %v4604 = vor.u32 %v4600, %v4603
        %v4606 = vshrl.u32 %v4400, 16
        %v4608 = vrot.slane %v4606, 3
        %v4609 = vshll.u32 %v4400, 16
        %v4611 = vrot.slane %v4609, 4
        %v4612 = vor.u32 %v4608, %v4611
        %v4613 = vsel %vm4409, %v4604, %v4612
        %v4615 = vshrl.u32 %v4401, 16
        %v4617 = vrot.slane %v4615, 3
        %v4618 = vshll.u32 %v4401, 16
        %v4620 = vrot.slane %v4618, 4
        %v4621 = vor.u32 %v4617, %v4620
        %v4623 = vshrl.u32 %v4402, 16
        %v4625 = vrot.slane %v4623, 3
        %v4626 = vshll.u32 %v4402, 16
        %v4628 = vrot.slane %v4626, 4
        %v4629 = vor.u32 %v4625, %v4628
        %v4630 = vsel %vm4409, %v4621, %v4629
        %v4632 = vshrl.u32 %v4403, 16
        %v4634 = vrot.slane %v4632, 3
        %v4635 = vshll.u32 %v4403, 16
        %v4637 = vrot.slane %v4635, 4
        %v4638 = vor.u32 %v4634, %v4637
        %v4640 = vshrl.u32 %v4404, 16
        %v4642 = vrot.slane %v4640, 3
        %v4643 = vshll.u32 %v4404, 16
        %v4645 = vrot.slane %v4643, 4
        %v4646 = vor.u32 %v4642, %v4645
        %v4647 = vsel %vm4409, %v4638, %v4646
        %v4649 = vshrl.u32 %v4405, 16
        %v4651 = vrot.slane %v4649, 3
        %v4652 = vshll.u32 %v4405, 16
        %v4654 = vrot.slane %v4652, 4
        %v4655 = vor.u32 %v4651, %v4654
        %v4657 = vshrl.u32 %v4406, 16
        %v4659 = vrot.slane %v4657, 3
        %v4660 = vshll.u32 %v4406, 16
        %v4662 = vrot.slane %v4660, 4
        %v4663 = vor.u32 %v4659, %v4662
        %v4664 = vsel %vm4409, %v4655, %v4663
        %v4666 = vshrl.u32 %v4407, 16
        %v4668 = vrot.slane %v4666, 3
        %v4669 = vshll.u32 %v4407, 16
        %v4671 = vrot.slane %v4669, 4
        %v4672 = vor.u32 %v4668, %v4671
        %v4674 = vshrl.u32 %v4408, 16
        %v4676 = vrot.slane %v4674, 3
        %v4677 = vshll.u32 %v4408, 16
        %v4679 = vrot.slane %v4677, 4
        %v4680 = vor.u32 %v4676, %v4679
        %v4681 = vsel %vm4409, %v4672, %v4680
        %v4698 = vld [vmem:[#allocation2] sm:$0xf0]
        %v4699 = vld [vmem:[#allocation2 + $0x10] sm:$0xf0]
        %v4700 = vld [vmem:[#allocation2 + $0x20] sm:$0xf0]
        %v4701 = vld [vmem:[#allocation2 + $0x30] sm:$0xf0]
        %v4702 = vld [vmem:[#allocation2 + $0x40] sm:$0xf0]
        %v4703 = vld [vmem:[#allocation2 + $0x50] sm:$0xf0]
        %v4704 = vld [vmem:[#allocation2 + $0x60] sm:$0xf0]
        %v4705 = vld [vmem:[#allocation2 + $0x70] sm:$0xf0]
        %v4706 = vld [vmem:[#allocation2 + $0x80] sm:$0xf0]
        %v4707 = vld [vmem:[#allocation2 + $0x90] sm:$0xf0]
        %v4708 = vld [vmem:[#allocation2 + $0xa0] sm:$0xf0]
        %v4709 = vld [vmem:[#allocation2 + $0xb0] sm:$0xf0]
        %v4710 = vld [vmem:[#allocation2 + $0xc0] sm:$0xf0]
        %v4711 = vld [vmem:[#allocation2 + $0xd0] sm:$0xf0]
        %v4712 = vld [vmem:[#allocation2 + $0xe0] sm:$0xf0]
        %v4713 = vld [vmem:[#allocation2 + $0xf0] sm:$0xf0]
        %vm4746 = vcmask 1043456
        %v4747 = vrot.slane %v4698, 4
        %v4748 = vrot.slane %v4378, 4
        %v4749 = vsel %vm4746, %v4747, %v4748
        %v4750 = vrot.slane %v4699, 4
        %v4751 = vrot.slane %v4380, 4
        %v4752 = vsel %vm4746, %v4750, %v4751
        %v4753 = vrot.slane %v4700, 4
        %v4754 = vrot.slane %v4382, 4
        %v4755 = vsel %vm4746, %v4753, %v4754
        %v4756 = vrot.slane %v4701, 4
        %v4757 = vrot.slane %v4384, 4
        %v4758 = vsel %vm4746, %v4756, %v4757
        %v4759 = vrot.slane %v4702, 4
        %v4760 = vrot.slane %v4386, 4
        %v4761 = vsel %vm4746, %v4759, %v4760
        %v4762 = vrot.slane %v4703, 4
        %v4763 = vrot.slane %v4388, 4
        %v4764 = vsel %vm4746, %v4762, %v4763
        %v4765 = vrot.slane %v4704, 4
        %v4766 = vrot.slane %v4390, 4
        %v4767 = vsel %vm4746, %v4765, %v4766
        %v4768 = vrot.slane %v4705, 4
        %v4769 = vrot.slane %v4392, 4
        %v4770 = vsel %vm4746, %v4768, %v4769
        %v4771 = vrot.slane %v4706, 4
        %v4772 = vrot.slane %v4394, 4
        %v4773 = vsel %vm4746, %v4771, %v4772
        %v4774 = vrot.slane %v4707, 4
        %v4775 = vrot.slane %v4396, 4
        %v4776 = vsel %vm4746, %v4774, %v4775
        %v4777 = vrot.slane %v4708, 4
        %v4778 = vrot.slane %v4398, 4
        %v4779 = vsel %vm4746, %v4777, %v4778
        %v4780 = vrot.slane %v4709, 4
        %v4781 = vrot.slane %v4400, 4
        %v4782 = vsel %vm4746, %v4780, %v4781
        %v4783 = vrot.slane %v4710, 4
        %v4784 = vrot.slane %v4402, 4
        %v4785 = vsel %vm4746, %v4783, %v4784
        %v4786 = vrot.slane %v4711, 4
        %v4787 = vrot.slane %v4404, 4
        %v4788 = vsel %vm4746, %v4786, %v4787
        %v4789 = vrot.slane %v4712, 4
        %v4790 = vrot.slane %v4406, 4
        %v4791 = vsel %vm4746, %v4789, %v4790
        %v4792 = vrot.slane %v4713, 4
        %v4793 = vrot.slane %v4408, 4
        %v4794 = vsel %vm4746, %v4792, %v4793
        %v4811 = vld [vmem:[#allocation2 + $0x8] sm:$0x1f]
        %v4812 = vld [vmem:[#allocation2 + $0x18] sm:$0x1f]
        %v4813 = vld [vmem:[#allocation2 + $0x28] sm:$0x1f]
        %v4814 = vld [vmem:[#allocation2 + $0x38] sm:$0x1f]
        %v4815 = vld [vmem:[#allocation2 + $0x48] sm:$0x1f]
        %v4816 = vld [vmem:[#allocation2 + $0x58] sm:$0x1f]
        %v4817 = vld [vmem:[#allocation2 + $0x68] sm:$0x1f]
        %v4818 = vld [vmem:[#allocation2 + $0x78] sm:$0x1f]
        %v4819 = vld [vmem:[#allocation2 + $0x88] sm:$0x1f]
        %v4820 = vld [vmem:[#allocation2 + $0x98] sm:$0x1f]
        %v4821 = vld [vmem:[#allocation2 + $0xa8] sm:$0x1f]
        %v4822 = vld [vmem:[#allocation2 + $0xb8] sm:$0x1f]
        %v4823 = vld [vmem:[#allocation2 + $0xc8] sm:$0x1f]
        %v4824 = vld [vmem:[#allocation2 + $0xd8] sm:$0x1f]
        %v4825 = vld [vmem:[#allocation2 + $0xe8] sm:$0x1f]
        %v4826 = vld [vmem:[#allocation2 + $0xf8] sm:$0x1f]
        %v4828 = vshrl.u32 %v4698, 16
        %v4830 = vrot.slane %v4828, 4
        %v4831 = vshll.u32 %v4698, 16
        %v4833 = vrot.slane %v4831, 5
        %v4834 = vor.u32 %v4830, %v4833
        %v4836 = vshrl.u32 %v4811, 16
        %v4838 = vrot.slane %v4836, 4
        %v4839 = vshll.u32 %v4811, 16
        %v4841 = vrot.slane %v4839, 5
        %v4842 = vor.u32 %v4838, %v4841
        %v4843 = vsel %vm381, %v4834, %v4842
        %v4845 = vshrl.u32 %v4699, 16
        %v4847 = vrot.slane %v4845, 4
        %v4848 = vshll.u32 %v4699, 16
        %v4850 = vrot.slane %v4848, 5
        %v4851 = vor.u32 %v4847, %v4850
        %v4853 = vshrl.u32 %v4812, 16
        %v4855 = vrot.slane %v4853, 4
        %v4856 = vshll.u32 %v4812, 16
        %v4858 = vrot.slane %v4856, 5
        %v4859 = vor.u32 %v4855, %v4858
        %v4860 = vsel %vm381, %v4851, %v4859
        %v4862 = vshrl.u32 %v4700, 16
        %v4864 = vrot.slane %v4862, 4
        %v4865 = vshll.u32 %v4700, 16
        %v4867 = vrot.slane %v4865, 5
        %v4868 = vor.u32 %v4864, %v4867
        %v4870 = vshrl.u32 %v4813, 16
        %v4872 = vrot.slane %v4870, 4
        %v4873 = vshll.u32 %v4813, 16
        %v4875 = vrot.slane %v4873, 5
        %v4876 = vor.u32 %v4872, %v4875
        %v4877 = vsel %vm381, %v4868, %v4876
        %v4879 = vshrl.u32 %v4701, 16
        %v4881 = vrot.slane %v4879, 4
        %v4882 = vshll.u32 %v4701, 16
        %v4884 = vrot.slane %v4882, 5
        %v4885 = vor.u32 %v4881, %v4884
        %v4887 = vshrl.u32 %v4814, 16
        %v4889 = vrot.slane %v4887, 4
        %v4890 = vshll.u32 %v4814, 16
        %v4892 = vrot.slane %v4890, 5
        %v4893 = vor.u32 %v4889, %v4892
        %v4894 = vsel %vm381, %v4885, %v4893
        %v4896 = vshrl.u32 %v4702, 16
        %v4898 = vrot.slane %v4896, 4
        %v4899 = vshll.u32 %v4702, 16
        %v4901 = vrot.slane %v4899, 5
        %v4902 = vor.u32 %v4898, %v4901
        %v4904 = vshrl.u32 %v4815, 16
        %v4906 = vrot.slane %v4904, 4
        %v4907 = vshll.u32 %v4815, 16
        %v4909 = vrot.slane %v4907, 5
        %v4910 = vor.u32 %v4906, %v4909
        %v4911 = vsel %vm381, %v4902, %v4910
        %v4913 = vshrl.u32 %v4703, 16
        %v4915 = vrot.slane %v4913, 4
        %v4916 = vshll.u32 %v4703, 16
        %v4918 = vrot.slane %v4916, 5
        %v4919 = vor.u32 %v4915, %v4918
        %v4921 = vshrl.u32 %v4816, 16
        %v4923 = vrot.slane %v4921, 4
        %v4924 = vshll.u32 %v4816, 16
        %v4926 = vrot.slane %v4924, 5
        %v4927 = vor.u32 %v4923, %v4926
        %v4928 = vsel %vm381, %v4919, %v4927
        %v4930 = vshrl.u32 %v4704, 16
        %v4932 = vrot.slane %v4930, 4
        %v4933 = vshll.u32 %v4704, 16
        %v4935 = vrot.slane %v4933, 5
        %v4936 = vor.u32 %v4932, %v4935
        %v4938 = vshrl.u32 %v4817, 16
        %v4940 = vrot.slane %v4938, 4
        %v4941 = vshll.u32 %v4817, 16
        %v4943 = vrot.slane %v4941, 5
        %v4944 = vor.u32 %v4940, %v4943
        %v4945 = vsel %vm381, %v4936, %v4944
        %v4947 = vshrl.u32 %v4705, 16
        %v4949 = vrot.slane %v4947, 4
        %v4950 = vshll.u32 %v4705, 16
        %v4952 = vrot.slane %v4950, 5
        %v4953 = vor.u32 %v4949, %v4952
        %v4955 = vshrl.u32 %v4818, 16
        %v4957 = vrot.slane %v4955, 4
        %v4958 = vshll.u32 %v4818, 16
        %v4960 = vrot.slane %v4958, 5
        %v4961 = vor.u32 %v4957, %v4960
        %v4962 = vsel %vm381, %v4953, %v4961
        %v4964 = vshrl.u32 %v4706, 16
        %v4966 = vrot.slane %v4964, 4
        %v4967 = vshll.u32 %v4706, 16
        %v4969 = vrot.slane %v4967, 5
        %v4970 = vor.u32 %v4966, %v4969
        %v4972 = vshrl.u32 %v4819, 16
        %v4974 = vrot.slane %v4972, 4
        %v4975 = vshll.u32 %v4819, 16
        %v4977 = vrot.slane %v4975, 5
        %v4978 = vor.u32 %v4974, %v4977
        %v4979 = vsel %vm381, %v4970, %v4978
        %v4981 = vshrl.u32 %v4707, 16
        %v4983 = vrot.slane %v4981, 4
        %v4984 = vshll.u32 %v4707, 16
        %v4986 = vrot.slane %v4984, 5
        %v4987 = vor.u32 %v4983, %v4986
        %v4989 = vshrl.u32 %v4820, 16
        %v4991 = vrot.slane %v4989, 4
        %v4992 = vshll.u32 %v4820, 16
        %v4994 = vrot.slane %v4992, 5
        %v4995 = vor.u32 %v4991, %v4994
        %v4996 = vsel %vm381, %v4987, %v4995
        %v4998 = vshrl.u32 %v4708, 16
        %v5000 = vrot.slane %v4998, 4
        %v5001 = vshll.u32 %v4708, 16
        %v5003 = vrot.slane %v5001, 5
        %v5004 = vor.u32 %v5000, %v5003
        %v5006 = vshrl.u32 %v4821, 16
        %v5008 = vrot.slane %v5006, 4
        %v5009 = vshll.u32 %v4821, 16
        %v5011 = vrot.slane %v5009, 5
        %v5012 = vor.u32 %v5008, %v5011
        %v5013 = vsel %vm381, %v5004, %v5012
        %v5015 = vshrl.u32 %v4709, 16
        %v5017 = vrot.slane %v5015, 4
        %v5018 = vshll.u32 %v4709, 16
        %v5020 = vrot.slane %v5018, 5
        %v5021 = vor.u32 %v5017, %v5020
        %v5023 = vshrl.u32 %v4822, 16
        %v5025 = vrot.slane %v5023, 4
        %v5026 = vshll.u32 %v4822, 16
        %v5028 = vrot.slane %v5026, 5
        %v5029 = vor.u32 %v5025, %v5028
        %v5030 = vsel %vm381, %v5021, %v5029
        %v5032 = vshrl.u32 %v4710, 16
        %v5034 = vrot.slane %v5032, 4
        %v5035 = vshll.u32 %v4710, 16
        %v5037 = vrot.slane %v5035, 5
        %v5038 = vor.u32 %v5034, %v5037
        %v5040 = vshrl.u32 %v4823, 16
        %v5042 = vrot.slane %v5040, 4
        %v5043 = vshll.u32 %v4823, 16
        %v5045 = vrot.slane %v5043, 5
        %v5046 = vor.u32 %v5042, %v5045
        %v5047 = vsel %vm381, %v5038, %v5046
        %v5049 = vshrl.u32 %v4711, 16
        %v5051 = vrot.slane %v5049, 4
        %v5052 = vshll.u32 %v4711, 16
        %v5054 = vrot.slane %v5052, 5
        %v5055 = vor.u32 %v5051, %v5054
        %v5057 = vshrl.u32 %v4824, 16
        %v5059 = vrot.slane %v5057, 4
        %v5060 = vshll.u32 %v4824, 16
        %v5062 = vrot.slane %v5060, 5
        %v5063 = vor.u32 %v5059, %v5062
        %v5064 = vsel %vm381, %v5055, %v5063
        %v5066 = vshrl.u32 %v4712, 16
        %v5068 = vrot.slane %v5066, 4
        %v5069 = vshll.u32 %v4712, 16
        %v5071 = vrot.slane %v5069, 5
        %v5072 = vor.u32 %v5068, %v5071
        %v5074 = vshrl.u32 %v4825, 16
        %v5076 = vrot.slane %v5074, 4
        %v5077 = vshll.u32 %v4825, 16
        %v5079 = vrot.slane %v5077, 5
        %v5080 = vor.u32 %v5076, %v5079
        %v5081 = vsel %vm381, %v5072, %v5080
        %v5083 = vshrl.u32 %v4713, 16
        %v5085 = vrot.slane %v5083, 4
        %v5086 = vshll.u32 %v4713, 16
        %v5088 = vrot.slane %v5086, 5
        %v5089 = vor.u32 %v5085, %v5088
        %v5091 = vshrl.u32 %v4826, 16
        %v5093 = vrot.slane %v5091, 4
        %v5094 = vshll.u32 %v4826, 16
        %v5096 = vrot.slane %v5094, 5
        %v5097 = vor.u32 %v5093, %v5096
        %v5098 = vsel %vm381, %v5089, %v5097
        %v5115 = vld [vmem:[%s4344] sm:$0xf8]
        %v5116 = vld [vmem:[%s4344 + $0x8] sm:$0xf]
        %v5117 = vld [vmem:[%s4344 + $0x10] sm:$0xf8]
        %v5118 = vld [vmem:[%s4344 + $0x18] sm:$0xf]
        %v5119 = vld [vmem:[%s4344 + $0x20] sm:$0xf8]
        %v5120 = vld [vmem:[%s4344 + $0x28] sm:$0xf]
        %v5121 = vld [vmem:[%s4344 + $0x30] sm:$0xf8]
        %v5122 = vld [vmem:[%s4344 + $0x38] sm:$0xf]
        %v5123 = vld [vmem:[%s4344 + $0x40] sm:$0xf8]
        %v5124 = vld [vmem:[%s4344 + $0x48] sm:$0xf]
        %v5125 = vld [vmem:[%s4344 + $0x50] sm:$0xf8]
        %v5126 = vld [vmem:[%s4344 + $0x58] sm:$0xf]
        %v5127 = vld [vmem:[%s4344 + $0x60] sm:$0xf8]
        %v5128 = vld [vmem:[%s4344 + $0x68] sm:$0xf]
        %v5129 = vld [vmem:[%s4344 + $0x70] sm:$0xf8]
        %v5130 = vld [vmem:[%s4344 + $0x78] sm:$0xf]
        %v5131 = vld [vmem:[%s4344 + $0x80] sm:$0xf8]
        %v5132 = vld [vmem:[%s4344 + $0x88] sm:$0xf]
        %v5133 = vld [vmem:[%s4344 + $0x90] sm:$0xf8]
        %v5134 = vld [vmem:[%s4344 + $0x98] sm:$0xf]
        %v5135 = vld [vmem:[%s4344 + $0xa0] sm:$0xf8]
        %v5136 = vld [vmem:[%s4344 + $0xa8] sm:$0xf]
        %v5137 = vld [vmem:[%s4344 + $0xb0] sm:$0xf8]
        %v5138 = vld [vmem:[%s4344 + $0xb8] sm:$0xf]
        %v5139 = vld [vmem:[%s4344 + $0xc0] sm:$0xf8]
        %v5140 = vld [vmem:[%s4344 + $0xc8] sm:$0xf]
        %v5141 = vld [vmem:[%s4344 + $0xd0] sm:$0xf8]
        %v5142 = vld [vmem:[%s4344 + $0xd8] sm:$0xf]
        %v5143 = vld [vmem:[%s4344 + $0xe0] sm:$0xf8]
        %v5144 = vld [vmem:[%s4344 + $0xe8] sm:$0xf]
        %v5145 = vld [vmem:[%s4344 + $0xf0] sm:$0xf8]
        %v5146 = vld [vmem:[%s4344 + $0xf8] sm:$0xf]
        %v5148 = vshrl.u32 %v5115, 16
        %v5150 = vrot.slane %v5148, 3
        %v5151 = vshll.u32 %v5115, 16
        %v5153 = vrot.slane %v5151, 4
        %v5154 = vor.u32 %v5150, %v5153
        %v5156 = vshrl.u32 %v5116, 16
        %v5158 = vrot.slane %v5156, 3
        %v5159 = vshll.u32 %v5116, 16
        %v5161 = vrot.slane %v5159, 4
        %v5162 = vor.u32 %v5158, %v5161
        %v5163 = vsel %vm4409, %v5154, %v5162
        %v5165 = vshrl.u32 %v5117, 16
        %v5167 = vrot.slane %v5165, 3
        %v5168 = vshll.u32 %v5117, 16
        %v5170 = vrot.slane %v5168, 4
        %v5171 = vor.u32 %v5167, %v5170
        %v5173 = vshrl.u32 %v5118, 16
        %v5175 = vrot.slane %v5173, 3
        %v5176 = vshll.u32 %v5118, 16
        %v5178 = vrot.slane %v5176, 4
        %v5179 = vor.u32 %v5175, %v5178
        %v5180 = vsel %vm4409, %v5171, %v5179
        %v5182 = vshrl.u32 %v5119, 16
        %v5184 = vrot.slane %v5182, 3
        %v5185 = vshll.u32 %v5119, 16
        %v5187 = vrot.slane %v5185, 4
        %v5188 = vor.u32 %v5184, %v5187
        %v5190 = vshrl.u32 %v5120, 16
        %v5192 = vrot.slane %v5190, 3
        %v5193 = vshll.u32 %v5120, 16
        %v5195 = vrot.slane %v5193, 4
        %v5196 = vor.u32 %v5192, %v5195
        %v5197 = vsel %vm4409, %v5188, %v5196
        %v5199 = vshrl.u32 %v5121, 16
        %v5201 = vrot.slane %v5199, 3
        %v5202 = vshll.u32 %v5121, 16
        %v5204 = vrot.slane %v5202, 4
        %v5205 = vor.u32 %v5201, %v5204
        %v5207 = vshrl.u32 %v5122, 16
        %v5209 = vrot.slane %v5207, 3
        %v5210 = vshll.u32 %v5122, 16
        %v5212 = vrot.slane %v5210, 4
        %v5213 = vor.u32 %v5209, %v5212
        %v5214 = vsel %vm4409, %v5205, %v5213
        %v5216 = vshrl.u32 %v5123, 16
        %v5218 = vrot.slane %v5216, 3
        %v5219 = vshll.u32 %v5123, 16
        %v5221 = vrot.slane %v5219, 4
        %v5222 = vor.u32 %v5218, %v5221
        %v5224 = vshrl.u32 %v5124, 16
        %v5226 = vrot.slane %v5224, 3
        %v5227 = vshll.u32 %v5124, 16
        %v5229 = vrot.slane %v5227, 4
        %v5230 = vor.u32 %v5226, %v5229
        %v5231 = vsel %vm4409, %v5222, %v5230
        %v5233 = vshrl.u32 %v5125, 16
        %v5235 = vrot.slane %v5233, 3
        %v5236 = vshll.u32 %v5125, 16
        %v5238 = vrot.slane %v5236, 4
        %v5239 = vor.u32 %v5235, %v5238
        %v5241 = vshrl.u32 %v5126, 16
        %v5243 = vrot.slane %v5241, 3
        %v5244 = vshll.u32 %v5126, 16
        %v5246 = vrot.slane %v5244, 4
        %v5247 = vor.u32 %v5243, %v5246
        %v5248 = vsel %vm4409, %v5239, %v5247
        %v5250 = vshrl.u32 %v5127, 16
        %v5252 = vrot.slane %v5250, 3
        %v5253 = vshll.u32 %v5127, 16
        %v5255 = vrot.slane %v5253, 4
        %v5256 = vor.u32 %v5252, %v5255
        %v5258 = vshrl.u32 %v5128, 16
        %v5260 = vrot.slane %v5258, 3
        %v5261 = vshll.u32 %v5128, 16
        %v5263 = vrot.slane %v5261, 4
        %v5264 = vor.u32 %v5260, %v5263
        %v5265 = vsel %vm4409, %v5256, %v5264
        %v5267 = vshrl.u32 %v5129, 16
        %v5269 = vrot.slane %v5267, 3
        %v5270 = vshll.u32 %v5129, 16
        %v5272 = vrot.slane %v5270, 4
        %v5273 = vor.u32 %v5269, %v5272
        %v5275 = vshrl.u32 %v5130, 16
        %v5277 = vrot.slane %v5275, 3
        %v5278 = vshll.u32 %v5130, 16
        %v5280 = vrot.slane %v5278, 4
        %v5281 = vor.u32 %v5277, %v5280
        %v5282 = vsel %vm4409, %v5273, %v5281
        %v5284 = vshrl.u32 %v5131, 16
        %v5286 = vrot.slane %v5284, 3
        %v5287 = vshll.u32 %v5131, 16
        %v5289 = vrot.slane %v5287, 4
        %v5290 = vor.u32 %v5286, %v5289
        %v5292 = vshrl.u32 %v5132, 16
        %v5294 = vrot.slane %v5292, 3
        %v5295 = vshll.u32 %v5132, 16
        %v5297 = vrot.slane %v5295, 4
        %v5298 = vor.u32 %v5294, %v5297
        %v5299 = vsel %vm4409, %v5290, %v5298
        %v5301 = vshrl.u32 %v5133, 16
        %v5303 = vrot.slane %v5301, 3
        %v5304 = vshll.u32 %v5133, 16
        %v5306 = vrot.slane %v5304, 4
        %v5307 = vor.u32 %v5303, %v5306
        %v5309 = vshrl.u32 %v5134, 16
        %v5311 = vrot.slane %v5309, 3
        %v5312 = vshll.u32 %v5134, 16
        %v5314 = vrot.slane %v5312, 4
        %v5315 = vor.u32 %v5311, %v5314
        %v5316 = vsel %vm4409, %v5307, %v5315
        %v5318 = vshrl.u32 %v5135, 16
        %v5320 = vrot.slane %v5318, 3
        %v5321 = vshll.u32 %v5135, 16
        %v5323 = vrot.slane %v5321, 4
        %v5324 = vor.u32 %v5320, %v5323
        %v5326 = vshrl.u32 %v5136, 16
        %v5328 = vrot.slane %v5326, 3
        %v5329 = vshll.u32 %v5136, 16
        %v5331 = vrot.slane %v5329, 4
        %v5332 = vor.u32 %v5328, %v5331
        %v5333 = vsel %vm4409, %v5324, %v5332
        %v5335 = vshrl.u32 %v5137, 16
        %v5337 = vrot.slane %v5335, 3
        %v5338 = vshll.u32 %v5137, 16
        %v5340 = vrot.slane %v5338, 4
        %v5341 = vor.u32 %v5337, %v5340
        %v5343 = vshrl.u32 %v5138, 16
        %v5345 = vrot.slane %v5343, 3
        %v5346 = vshll.u32 %v5138, 16
        %v5348 = vrot.slane %v5346, 4
        %v5349 = vor.u32 %v5345, %v5348
        %v5350 = vsel %vm4409, %v5341, %v5349
        %v5352 = vshrl.u32 %v5139, 16
        %v5354 = vrot.slane %v5352, 3
        %v5355 = vshll.u32 %v5139, 16
        %v5357 = vrot.slane %v5355, 4
        %v5358 = vor.u32 %v5354, %v5357
        %v5360 = vshrl.u32 %v5140, 16
        %v5362 = vrot.slane %v5360, 3
        %v5363 = vshll.u32 %v5140, 16
        %v5365 = vrot.slane %v5363, 4
        %v5366 = vor.u32 %v5362, %v5365
        %v5367 = vsel %vm4409, %v5358, %v5366
        %v5369 = vshrl.u32 %v5141, 16
        %v5371 = vrot.slane %v5369, 3
        %v5372 = vshll.u32 %v5141, 16
        %v5374 = vrot.slane %v5372, 4
        %v5375 = vor.u32 %v5371, %v5374
        %v5377 = vshrl.u32 %v5142, 16
        %v5379 = vrot.slane %v5377, 3
        %v5380 = vshll.u32 %v5142, 16
        %v5382 = vrot.slane %v5380, 4
        %v5383 = vor.u32 %v5379, %v5382
        %v5384 = vsel %vm4409, %v5375, %v5383
        %v5386 = vshrl.u32 %v5143, 16
        %v5388 = vrot.slane %v5386, 3
        %v5389 = vshll.u32 %v5143, 16
        %v5391 = vrot.slane %v5389, 4
        %v5392 = vor.u32 %v5388, %v5391
        %v5394 = vshrl.u32 %v5144, 16
        %v5396 = vrot.slane %v5394, 3
        %v5397 = vshll.u32 %v5144, 16
        %v5399 = vrot.slane %v5397, 4
        %v5400 = vor.u32 %v5396, %v5399
        %v5401 = vsel %vm4409, %v5392, %v5400
        %v5403 = vshrl.u32 %v5145, 16
        %v5405 = vrot.slane %v5403, 3
        %v5406 = vshll.u32 %v5145, 16
        %v5408 = vrot.slane %v5406, 4
        %v5409 = vor.u32 %v5405, %v5408
        %v5411 = vshrl.u32 %v5146, 16
        %v5413 = vrot.slane %v5411, 3
        %v5414 = vshll.u32 %v5146, 16
        %v5416 = vrot.slane %v5414, 4
        %v5417 = vor.u32 %v5413, %v5416
        %v5418 = vsel %vm4409, %v5409, %v5417
        %v5435 = vld [vmem:[%s4344] sm:$0xf0]
        %v5436 = vld [vmem:[%s4344 + $0x10] sm:$0xf0]
        %v5437 = vld [vmem:[%s4344 + $0x20] sm:$0xf0]
        %v5438 = vld [vmem:[%s4344 + $0x30] sm:$0xf0]
        %v5439 = vld [vmem:[%s4344 + $0x40] sm:$0xf0]
        %v5440 = vld [vmem:[%s4344 + $0x50] sm:$0xf0]
        %v5441 = vld [vmem:[%s4344 + $0x60] sm:$0xf0]
        %v5442 = vld [vmem:[%s4344 + $0x70] sm:$0xf0]
        %v5443 = vld [vmem:[%s4344 + $0x80] sm:$0xf0]
        %v5444 = vld [vmem:[%s4344 + $0x90] sm:$0xf0]
        %v5445 = vld [vmem:[%s4344 + $0xa0] sm:$0xf0]
        %v5446 = vld [vmem:[%s4344 + $0xb0] sm:$0xf0]
        %v5447 = vld [vmem:[%s4344 + $0xc0] sm:$0xf0]
        %v5448 = vld [vmem:[%s4344 + $0xd0] sm:$0xf0]
        %v5449 = vld [vmem:[%s4344 + $0xe0] sm:$0xf0]
        %v5450 = vld [vmem:[%s4344 + $0xf0] sm:$0xf0]
        %v5483 = vrot.slane %v5435, 4
        %v5484 = vrot.slane %v5116, 4
        %v5485 = vsel %vm4746, %v5483, %v5484
        %v5486 = vrot.slane %v5436, 4
        %v5487 = vrot.slane %v5118, 4
        %v5488 = vsel %vm4746, %v5486, %v5487
        %v5489 = vrot.slane %v5437, 4
        %v5490 = vrot.slane %v5120, 4
        %v5491 = vsel %vm4746, %v5489, %v5490
        %v5492 = vrot.slane %v5438, 4
        %v5493 = vrot.slane %v5122, 4
        %v5494 = vsel %vm4746, %v5492, %v5493
        %v5495 = vrot.slane %v5439, 4
        %v5496 = vrot.slane %v5124, 4
        %v5497 = vsel %vm4746, %v5495, %v5496
        %v5498 = vrot.slane %v5440, 4
        %v5499 = vrot.slane %v5126, 4
        %v5500 = vsel %vm4746, %v5498, %v5499
        %v5501 = vrot.slane %v5441, 4
        %v5502 = vrot.slane %v5128, 4
        %v5503 = vsel %vm4746, %v5501, %v5502
        %v5504 = vrot.slane %v5442, 4
        %v5505 = vrot.slane %v5130, 4
        %v5506 = vsel %vm4746, %v5504, %v5505
        %v5507 = vrot.slane %v5443, 4
        %v5508 = vrot.slane %v5132, 4
        %v5509 = vsel %vm4746, %v5507, %v5508
        %v5510 = vrot.slane %v5444, 4
        %v5511 = vrot.slane %v5134, 4
        %v5512 = vsel %vm4746, %v5510, %v5511
        %v5513 = vrot.slane %v5445, 4
        %v5514 = vrot.slane %v5136, 4
        %v5515 = vsel %vm4746, %v5513, %v5514
        %v5516 = vrot.slane %v5446, 4
        %v5517 = vrot.slane %v5138, 4
        %v5518 = vsel %vm4746, %v5516, %v5517
        %v5519 = vrot.slane %v5447, 4
        %v5520 = vrot.slane %v5140, 4
        %v5521 = vsel %vm4746, %v5519, %v5520
        %v5522 = vrot.slane %v5448, 4
        %v5523 = vrot.slane %v5142, 4
        %v5524 = vsel %vm4746, %v5522, %v5523
        %v5525 = vrot.slane %v5449, 4
        %v5526 = vrot.slane %v5144, 4
        %v5527 = vsel %vm4746, %v5525, %v5526
        %v5528 = vrot.slane %v5450, 4
        %v5529 = vrot.slane %v5146, 4
        %v5530 = vsel %vm4746, %v5528, %v5529
        %v5547 = vld [vmem:[%s4344 + $0x8] sm:$0x1f]
        %v5548 = vld [vmem:[%s4344 + $0x18] sm:$0x1f]
        %v5549 = vld [vmem:[%s4344 + $0x28] sm:$0x1f]
        %v5550 = vld [vmem:[%s4344 + $0x38] sm:$0x1f]
        %v5551 = vld [vmem:[%s4344 + $0x48] sm:$0x1f]
        %v5552 = vld [vmem:[%s4344 + $0x58] sm:$0x1f]
        %v5553 = vld [vmem:[%s4344 + $0x68] sm:$0x1f]
        %v5554 = vld [vmem:[%s4344 + $0x78] sm:$0x1f]
        %v5555 = vld [vmem:[%s4344 + $0x88] sm:$0x1f]
        %v5556 = vld [vmem:[%s4344 + $0x98] sm:$0x1f]
        %v5557 = vld [vmem:[%s4344 + $0xa8] sm:$0x1f]
        %v5558 = vld [vmem:[%s4344 + $0xb8] sm:$0x1f]
        %v5559 = vld [vmem:[%s4344 + $0xc8] sm:$0x1f]
        %v5560 = vld [vmem:[%s4344 + $0xd8] sm:$0x1f]
        %v5561 = vld [vmem:[%s4344 + $0xe8] sm:$0x1f]
        %v5562 = vld [vmem:[%s4344 + $0xf8] sm:$0x1f]
        %v5564 = vshrl.u32 %v5435, 16
        %v5566 = vrot.slane %v5564, 4
        %v5567 = vshll.u32 %v5435, 16
        %v5569 = vrot.slane %v5567, 5
        %v5570 = vor.u32 %v5566, %v5569
        %v5572 = vshrl.u32 %v5547, 16
        %v5574 = vrot.slane %v5572, 4
        %v5575 = vshll.u32 %v5547, 16
        %v5577 = vrot.slane %v5575, 5
        %v5578 = vor.u32 %v5574, %v5577
        %v5579 = vsel %vm381, %v5570, %v5578
        %v5581 = vshrl.u32 %v5436, 16
        %v5583 = vrot.slane %v5581, 4
        %v5584 = vshll.u32 %v5436, 16
        %v5586 = vrot.slane %v5584, 5
        %v5587 = vor.u32 %v5583, %v5586
        %v5589 = vshrl.u32 %v5548, 16
        %v5591 = vrot.slane %v5589, 4
        %v5592 = vshll.u32 %v5548, 16
        %v5594 = vrot.slane %v5592, 5
        %v5595 = vor.u32 %v5591, %v5594
        %v5596 = vsel %vm381, %v5587, %v5595
        %v5598 = vshrl.u32 %v5437, 16
        %v5600 = vrot.slane %v5598, 4
        %v5601 = vshll.u32 %v5437, 16
        %v5603 = vrot.slane %v5601, 5
        %v5604 = vor.u32 %v5600, %v5603
        %v5606 = vshrl.u32 %v5549, 16
        %v5608 = vrot.slane %v5606, 4
        %v5609 = vshll.u32 %v5549, 16
        %v5611 = vrot.slane %v5609, 5
        %v5612 = vor.u32 %v5608, %v5611
        %v5613 = vsel %vm381, %v5604, %v5612
        %v5615 = vshrl.u32 %v5438, 16
        %v5617 = vrot.slane %v5615, 4
        %v5618 = vshll.u32 %v5438, 16
        %v5620 = vrot.slane %v5618, 5
        %v5621 = vor.u32 %v5617, %v5620
        %v5623 = vshrl.u32 %v5550, 16
        %v5625 = vrot.slane %v5623, 4
        %v5626 = vshll.u32 %v5550, 16
        %v5628 = vrot.slane %v5626, 5
        %v5629 = vor.u32 %v5625, %v5628
        %v5630 = vsel %vm381, %v5621, %v5629
        %v5632 = vshrl.u32 %v5439, 16
        %v5634 = vrot.slane %v5632, 4
        %v5635 = vshll.u32 %v5439, 16
        %v5637 = vrot.slane %v5635, 5
        %v5638 = vor.u32 %v5634, %v5637
        %v5640 = vshrl.u32 %v5551, 16
        %v5642 = vrot.slane %v5640, 4
        %v5643 = vshll.u32 %v5551, 16
        %v5645 = vrot.slane %v5643, 5
        %v5646 = vor.u32 %v5642, %v5645
        %v5647 = vsel %vm381, %v5638, %v5646
        %v5649 = vshrl.u32 %v5440, 16
        %v5651 = vrot.slane %v5649, 4
        %v5652 = vshll.u32 %v5440, 16
        %v5654 = vrot.slane %v5652, 5
        %v5655 = vor.u32 %v5651, %v5654
        %v5657 = vshrl.u32 %v5552, 16
        %v5659 = vrot.slane %v5657, 4
        %v5660 = vshll.u32 %v5552, 16
        %v5662 = vrot.slane %v5660, 5
        %v5663 = vor.u32 %v5659, %v5662
        %v5664 = vsel %vm381, %v5655, %v5663
        %v5666 = vshrl.u32 %v5441, 16
        %v5668 = vrot.slane %v5666, 4
        %v5669 = vshll.u32 %v5441, 16
        %v5671 = vrot.slane %v5669, 5
        %v5672 = vor.u32 %v5668, %v5671
        %v5674 = vshrl.u32 %v5553, 16
        %v5676 = vrot.slane %v5674, 4
        %v5677 = vshll.u32 %v5553, 16
        %v5679 = vrot.slane %v5677, 5
        %v5680 = vor.u32 %v5676, %v5679
        %v5681 = vsel %vm381, %v5672, %v5680
        %v5683 = vshrl.u32 %v5442, 16
        %v5685 = vrot.slane %v5683, 4
        %v5686 = vshll.u32 %v5442, 16
        %v5688 = vrot.slane %v5686, 5
        %v5689 = vor.u32 %v5685, %v5688
        %v5691 = vshrl.u32 %v5554, 16
        %v5693 = vrot.slane %v5691, 4
        %v5694 = vshll.u32 %v5554, 16
        %v5696 = vrot.slane %v5694, 5
        %v5697 = vor.u32 %v5693, %v5696
        %v5698 = vsel %vm381, %v5689, %v5697
        %v5700 = vshrl.u32 %v5443, 16
        %v5702 = vrot.slane %v5700, 4
        %v5703 = vshll.u32 %v5443, 16
        %v5705 = vrot.slane %v5703, 5
        %v5706 = vor.u32 %v5702, %v5705
        %v5708 = vshrl.u32 %v5555, 16
        %v5710 = vrot.slane %v5708, 4
        %v5711 = vshll.u32 %v5555, 16
        %v5713 = vrot.slane %v5711, 5
        %v5714 = vor.u32 %v5710, %v5713
        %v5715 = vsel %vm381, %v5706, %v5714
        %v5717 = vshrl.u32 %v5444, 16
        %v5719 = vrot.slane %v5717, 4
        %v5720 = vshll.u32 %v5444, 16
        %v5722 = vrot.slane %v5720, 5
        %v5723 = vor.u32 %v5719, %v5722
        %v5725 = vshrl.u32 %v5556, 16
        %v5727 = vrot.slane %v5725, 4
        %v5728 = vshll.u32 %v5556, 16
        %v5730 = vrot.slane %v5728, 5
        %v5731 = vor.u32 %v5727, %v5730
        %v5732 = vsel %vm381, %v5723, %v5731
        %v5734 = vshrl.u32 %v5445, 16
        %v5736 = vrot.slane %v5734, 4
        %v5737 = vshll.u32 %v5445, 16
        %v5739 = vrot.slane %v5737, 5
        %v5740 = vor.u32 %v5736, %v5739
        %v5742 = vshrl.u32 %v5557, 16
        %v5744 = vrot.slane %v5742, 4
        %v5745 = vshll.u32 %v5557, 16
        %v5747 = vrot.slane %v5745, 5
        %v5748 = vor.u32 %v5744, %v5747
        %v5749 = vsel %vm381, %v5740, %v5748
        %v5751 = vshrl.u32 %v5446, 16
        %v5753 = vrot.slane %v5751, 4
        %v5754 = vshll.u32 %v5446, 16
        %v5756 = vrot.slane %v5754, 5
        %v5757 = vor.u32 %v5753, %v5756
        %v5759 = vshrl.u32 %v5558, 16
        %v5761 = vrot.slane %v5759, 4
        %v5762 = vshll.u32 %v5558, 16
        %v5764 = vrot.slane %v5762, 5
        %v5765 = vor.u32 %v5761, %v5764
        %v5766 = vsel %vm381, %v5757, %v5765
        %v5768 = vshrl.u32 %v5447, 16
        %v5770 = vrot.slane %v5768, 4
        %v5771 = vshll.u32 %v5447, 16
        %v5773 = vrot.slane %v5771, 5
        %v5774 = vor.u32 %v5770, %v5773
        %v5776 = vshrl.u32 %v5559, 16
        %v5778 = vrot.slane %v5776, 4
        %v5779 = vshll.u32 %v5559, 16
        %v5781 = vrot.slane %v5779, 5
        %v5782 = vor.u32 %v5778, %v5781
        %v5783 = vsel %vm381, %v5774, %v5782
        %v5785 = vshrl.u32 %v5448, 16
        %v5787 = vrot.slane %v5785, 4
        %v5788 = vshll.u32 %v5448, 16
        %v5790 = vrot.slane %v5788, 5
        %v5791 = vor.u32 %v5787, %v5790
        %v5793 = vshrl.u32 %v5560, 16
        %v5795 = vrot.slane %v5793, 4
        %v5796 = vshll.u32 %v5560, 16
        %v5798 = vrot.slane %v5796, 5
        %v5799 = vor.u32 %v5795, %v5798
        %v5800 = vsel %vm381, %v5791, %v5799
        %v5802 = vshrl.u32 %v5449, 16
        %v5804 = vrot.slane %v5802, 4
        %v5805 = vshll.u32 %v5449, 16
        %v5807 = vrot.slane %v5805, 5
        %v5808 = vor.u32 %v5804, %v5807
        %v5810 = vshrl.u32 %v5561, 16
        %v5812 = vrot.slane %v5810, 4
        %v5813 = vshll.u32 %v5561, 16
        %v5815 = vrot.slane %v5813, 5
        %v5816 = vor.u32 %v5812, %v5815
        %v5817 = vsel %vm381, %v5808, %v5816
        %v5819 = vshrl.u32 %v5450, 16
        %v5821 = vrot.slane %v5819, 4
        %v5822 = vshll.u32 %v5450, 16
        %v5824 = vrot.slane %v5822, 5
        %v5825 = vor.u32 %v5821, %v5824
        %v5827 = vshrl.u32 %v5562, 16
        %v5829 = vrot.slane %v5827, 4
        %v5830 = vshll.u32 %v5562, 16
        %v5832 = vrot.slane %v5830, 5
        %v5833 = vor.u32 %v5829, %v5832
        %v5834 = vsel %vm381, %v5825, %v5833
        %s5851 = scalar_lea.vmem [#allocation2], 32
        %v5852 = vld [vmem:[%s5851] sm:$0xf8]
        %v5853 = vld [vmem:[%s5851 + $0x8] sm:$0xf]
        %v5854 = vld [vmem:[%s5851 + $0x10] sm:$0xf8]
        %v5855 = vld [vmem:[%s5851 + $0x18] sm:$0xf]
        %v5856 = vld [vmem:[%s5851 + $0x20] sm:$0xf8]
        %v5857 = vld [vmem:[%s5851 + $0x28] sm:$0xf]
        %v5858 = vld [vmem:[%s5851 + $0x30] sm:$0xf8]
        %v5859 = vld [vmem:[%s5851 + $0x38] sm:$0xf]
        %v5860 = vld [vmem:[%s5851 + $0x40] sm:$0xf8]
        %v5861 = vld [vmem:[%s5851 + $0x48] sm:$0xf]
        %v5862 = vld [vmem:[%s5851 + $0x50] sm:$0xf8]
        %v5863 = vld [vmem:[%s5851 + $0x58] sm:$0xf]
        %v5864 = vld [vmem:[%s5851 + $0x60] sm:$0xf8]
        %v5865 = vld [vmem:[%s5851 + $0x68] sm:$0xf]
        %v5866 = vld [vmem:[%s5851 + $0x70] sm:$0xf8]
        %v5867 = vld [vmem:[%s5851 + $0x78] sm:$0xf]
        %v5868 = vld [vmem:[%s5851 + $0x80] sm:$0xf8]
        %v5869 = vld [vmem:[%s5851 + $0x88] sm:$0xf]
        %v5870 = vld [vmem:[%s5851 + $0x90] sm:$0xf8]
        %v5871 = vld [vmem:[%s5851 + $0x98] sm:$0xf]
        %v5872 = vld [vmem:[%s5851 + $0xa0] sm:$0xf8]
        %v5873 = vld [vmem:[%s5851 + $0xa8] sm:$0xf]
        %v5874 = vld [vmem:[%s5851 + $0xb0] sm:$0xf8]
        %v5875 = vld [vmem:[%s5851 + $0xb8] sm:$0xf]
        %v5876 = vld [vmem:[%s5851 + $0xc0] sm:$0xf8]
        %v5877 = vld [vmem:[%s5851 + $0xc8] sm:$0xf]
        %v5878 = vld [vmem:[%s5851 + $0xd0] sm:$0xf8]
        %v5879 = vld [vmem:[%s5851 + $0xd8] sm:$0xf]
        %v5880 = vld [vmem:[%s5851 + $0xe0] sm:$0xf8]
        %v5881 = vld [vmem:[%s5851 + $0xe8] sm:$0xf]
        %v5882 = vld [vmem:[%s5851 + $0xf0] sm:$0xf8]
        %v5883 = vld [vmem:[%s5851 + $0xf8] sm:$0xf]
        %v5885 = vshrl.u32 %v5852, 16
        %v5887 = vrot.slane %v5885, 3
        %v5888 = vshll.u32 %v5852, 16
        %v5890 = vrot.slane %v5888, 4
        %v5891 = vor.u32 %v5887, %v5890
        %v5893 = vshrl.u32 %v5853, 16
        %v5895 = vrot.slane %v5893, 3
        %v5896 = vshll.u32 %v5853, 16
        %v5898 = vrot.slane %v5896, 4
        %v5899 = vor.u32 %v5895, %v5898
        %v5900 = vsel %vm4409, %v5891, %v5899
        %v5902 = vshrl.u32 %v5854, 16
        %v5904 = vrot.slane %v5902, 3
        %v5905 = vshll.u32 %v5854, 16
        %v5907 = vrot.slane %v5905, 4
        %v5908 = vor.u32 %v5904, %v5907
        %v5910 = vshrl.u32 %v5855, 16
        %v5912 = vrot.slane %v5910, 3
        %v5913 = vshll.u32 %v5855, 16
        %v5915 = vrot.slane %v5913, 4
        %v5916 = vor.u32 %v5912, %v5915
        %v5917 = vsel %vm4409, %v5908, %v5916
        %v5919 = vshrl.u32 %v5856, 16
        %v5921 = vrot.slane %v5919, 3
        %v5922 = vshll.u32 %v5856, 16
        %v5924 = vrot.slane %v5922, 4
        %v5925 = vor.u32 %v5921, %v5924
        %v5927 = vshrl.u32 %v5857, 16
        %v5929 = vrot.slane %v5927, 3
        %v5930 = vshll.u32 %v5857, 16
        %v5932 = vrot.slane %v5930, 4
        %v5933 = vor.u32 %v5929, %v5932
        %v5934 = vsel %vm4409, %v5925, %v5933
        %v5936 = vshrl.u32 %v5858, 16
        %v5938 = vrot.slane %v5936, 3
        %v5939 = vshll.u32 %v5858, 16
        %v5941 = vrot.slane %v5939, 4
        %v5942 = vor.u32 %v5938, %v5941
        %v5944 = vshrl.u32 %v5859, 16
        %v5946 = vrot.slane %v5944, 3
        %v5947 = vshll.u32 %v5859, 16
        %v5949 = vrot.slane %v5947, 4
        %v5950 = vor.u32 %v5946, %v5949
        %v5951 = vsel %vm4409, %v5942, %v5950
        %v5953 = vshrl.u32 %v5860, 16
        %v5955 = vrot.slane %v5953, 3
        %v5956 = vshll.u32 %v5860, 16
        %v5958 = vrot.slane %v5956, 4
        %v5959 = vor.u32 %v5955, %v5958
        %v5961 = vshrl.u32 %v5861, 16
        %v5963 = vrot.slane %v5961, 3
        %v5964 = vshll.u32 %v5861, 16
        %v5966 = vrot.slane %v5964, 4
        %v5967 = vor.u32 %v5963, %v5966
        %v5968 = vsel %vm4409, %v5959, %v5967
        %v5970 = vshrl.u32 %v5862, 16
        %v5972 = vrot.slane %v5970, 3
        %v5973 = vshll.u32 %v5862, 16
        %v5975 = vrot.slane %v5973, 4
        %v5976 = vor.u32 %v5972, %v5975
        %v5978 = vshrl.u32 %v5863, 16
        %v5980 = vrot.slane %v5978, 3
        %v5981 = vshll.u32 %v5863, 16
        %v5983 = vrot.slane %v5981, 4
        %v5984 = vor.u32 %v5980, %v5983
        %v5985 = vsel %vm4409, %v5976, %v5984
        %v5987 = vshrl.u32 %v5864, 16
        %v5989 = vrot.slane %v5987, 3
        %v5990 = vshll.u32 %v5864, 16
        %v5992 = vrot.slane %v5990, 4
        %v5993 = vor.u32 %v5989, %v5992
        %v5995 = vshrl.u32 %v5865, 16
        %v5997 = vrot.slane %v5995, 3
        %v5998 = vshll.u32 %v5865, 16
        %v6000 = vrot.slane %v5998, 4
        %v6001 = vor.u32 %v5997, %v6000
        %v6002 = vsel %vm4409, %v5993, %v6001
        %v6004 = vshrl.u32 %v5866, 16
        %v6006 = vrot.slane %v6004, 3
        %v6007 = vshll.u32 %v5866, 16
        %v6009 = vrot.slane %v6007, 4
        %v6010 = vor.u32 %v6006, %v6009
        %v6012 = vshrl.u32 %v5867, 16
        %v6014 = vrot.slane %v6012, 3
        %v6015 = vshll.u32 %v5867, 16
        %v6017 = vrot.slane %v6015, 4
        %v6018 = vor.u32 %v6014, %v6017
        %v6019 = vsel %vm4409, %v6010, %v6018
        %v6021 = vshrl.u32 %v5868, 16
        %v6023 = vrot.slane %v6021, 3
        %v6024 = vshll.u32 %v5868, 16
        %v6026 = vrot.slane %v6024, 4
        %v6027 = vor.u32 %v6023, %v6026
        %v6029 = vshrl.u32 %v5869, 16
        %v6031 = vrot.slane %v6029, 3
        %v6032 = vshll.u32 %v5869, 16
        %v6034 = vrot.slane %v6032, 4
        %v6035 = vor.u32 %v6031, %v6034
        %v6036 = vsel %vm4409, %v6027, %v6035
        %v6038 = vshrl.u32 %v5870, 16
        %v6040 = vrot.slane %v6038, 3
        %v6041 = vshll.u32 %v5870, 16
        %v6043 = vrot.slane %v6041, 4
        %v6044 = vor.u32 %v6040, %v6043
        %v6046 = vshrl.u32 %v5871, 16
        %v6048 = vrot.slane %v6046, 3
        %v6049 = vshll.u32 %v5871, 16
        %v6051 = vrot.slane %v6049, 4
        %v6052 = vor.u32 %v6048, %v6051
        %v6053 = vsel %vm4409, %v6044, %v6052
        %v6055 = vshrl.u32 %v5872, 16
        %v6057 = vrot.slane %v6055, 3
        %v6058 = vshll.u32 %v5872, 16
        %v6060 = vrot.slane %v6058, 4
        %v6061 = vor.u32 %v6057, %v6060
        %v6063 = vshrl.u32 %v5873, 16
        %v6065 = vrot.slane %v6063, 3
        %v6066 = vshll.u32 %v5873, 16
        %v6068 = vrot.slane %v6066, 4
        %v6069 = vor.u32 %v6065, %v6068
        %v6070 = vsel %vm4409, %v6061, %v6069
        %v6072 = vshrl.u32 %v5874, 16
        %v6074 = vrot.slane %v6072, 3
        %v6075 = vshll.u32 %v5874, 16
        %v6077 = vrot.slane %v6075, 4
        %v6078 = vor.u32 %v6074, %v6077
        %v6080 = vshrl.u32 %v5875, 16
        %v6082 = vrot.slane %v6080, 3
        %v6083 = vshll.u32 %v5875, 16
        %v6085 = vrot.slane %v6083, 4
        %v6086 = vor.u32 %v6082, %v6085
        %v6087 = vsel %vm4409, %v6078, %v6086
        %v6089 = vshrl.u32 %v5876, 16
        %v6091 = vrot.slane %v6089, 3
        %v6092 = vshll.u32 %v5876, 16
        %v6094 = vrot.slane %v6092, 4
        %v6095 = vor.u32 %v6091, %v6094
        %v6097 = vshrl.u32 %v5877, 16
        %v6099 = vrot.slane %v6097, 3
        %v6100 = vshll.u32 %v5877, 16
        %v6102 = vrot.slane %v6100, 4
        %v6103 = vor.u32 %v6099, %v6102
        %v6104 = vsel %vm4409, %v6095, %v6103
        %v6106 = vshrl.u32 %v5878, 16
        %v6108 = vrot.slane %v6106, 3
        %v6109 = vshll.u32 %v5878, 16
        %v6111 = vrot.slane %v6109, 4
        %v6112 = vor.u32 %v6108, %v6111
        %v6114 = vshrl.u32 %v5879, 16
        %v6116 = vrot.slane %v6114, 3
        %v6117 = vshll.u32 %v5879, 16
        %v6119 = vrot.slane %v6117, 4
        %v6120 = vor.u32 %v6116, %v6119
        %v6121 = vsel %vm4409, %v6112, %v6120
        %v6123 = vshrl.u32 %v5880, 16
        %v6125 = vrot.slane %v6123, 3
        %v6126 = vshll.u32 %v5880, 16
        %v6128 = vrot.slane %v6126, 4
        %v6129 = vor.u32 %v6125, %v6128
        %v6131 = vshrl.u32 %v5881, 16
        %v6133 = vrot.slane %v6131, 3
        %v6134 = vshll.u32 %v5881, 16
        %v6136 = vrot.slane %v6134, 4
        %v6137 = vor.u32 %v6133, %v6136
        %v6138 = vsel %vm4409, %v6129, %v6137
        %v6140 = vshrl.u32 %v5882, 16
        %v6142 = vrot.slane %v6140, 3
        %v6143 = vshll.u32 %v5882, 16
        %v6145 = vrot.slane %v6143, 4
        %v6146 = vor.u32 %v6142, %v6145
        %v6148 = vshrl.u32 %v5883, 16
        %v6150 = vrot.slane %v6148, 3
        %v6151 = vshll.u32 %v5883, 16
        %v6153 = vrot.slane %v6151, 4
        %v6154 = vor.u32 %v6150, %v6153
        %v6155 = vsel %vm4409, %v6146, %v6154
        %v6172 = vld [vmem:[%s5851] sm:$0xf0]
        %v6173 = vld [vmem:[%s5851 + $0x10] sm:$0xf0]
        %v6174 = vld [vmem:[%s5851 + $0x20] sm:$0xf0]
        %v6175 = vld [vmem:[%s5851 + $0x30] sm:$0xf0]
        %v6176 = vld [vmem:[%s5851 + $0x40] sm:$0xf0]
        %v6177 = vld [vmem:[%s5851 + $0x50] sm:$0xf0]
        %v6178 = vld [vmem:[%s5851 + $0x60] sm:$0xf0]
        %v6179 = vld [vmem:[%s5851 + $0x70] sm:$0xf0]
        %v6180 = vld [vmem:[%s5851 + $0x80] sm:$0xf0]
        %v6181 = vld [vmem:[%s5851 + $0x90] sm:$0xf0]
        %v6182 = vld [vmem:[%s5851 + $0xa0] sm:$0xf0]
        %v6183 = vld [vmem:[%s5851 + $0xb0] sm:$0xf0]
        %v6184 = vld [vmem:[%s5851 + $0xc0] sm:$0xf0]
        %v6185 = vld [vmem:[%s5851 + $0xd0] sm:$0xf0]
        %v6186 = vld [vmem:[%s5851 + $0xe0] sm:$0xf0]
        %v6187 = vld [vmem:[%s5851 + $0xf0] sm:$0xf0]
        %v6220 = vrot.slane %v6172, 4
        %v6221 = vrot.slane %v5853, 4
        %v6222 = vsel %vm4746, %v6220, %v6221
        %v6223 = vrot.slane %v6173, 4
        %v6224 = vrot.slane %v5855, 4
        %v6225 = vsel %vm4746, %v6223, %v6224
        %v6226 = vrot.slane %v6174, 4
        %v6227 = vrot.slane %v5857, 4
        %v6228 = vsel %vm4746, %v6226, %v6227
        %v6229 = vrot.slane %v6175, 4
        %v6230 = vrot.slane %v5859, 4
        %v6231 = vsel %vm4746, %v6229, %v6230
        %v6232 = vrot.slane %v6176, 4
        %v6233 = vrot.slane %v5861, 4
        %v6234 = vsel %vm4746, %v6232, %v6233
        %v6235 = vrot.slane %v6177, 4
        %v6236 = vrot.slane %v5863, 4
        %v6237 = vsel %vm4746, %v6235, %v6236
        %v6238 = vrot.slane %v6178, 4
        %v6239 = vrot.slane %v5865, 4
        %v6240 = vsel %vm4746, %v6238, %v6239
        %v6241 = vrot.slane %v6179, 4
        %v6242 = vrot.slane %v5867, 4
        %v6243 = vsel %vm4746, %v6241, %v6242
        %v6244 = vrot.slane %v6180, 4
        %v6245 = vrot.slane %v5869, 4
        %v6246 = vsel %vm4746, %v6244, %v6245
        %v6247 = vrot.slane %v6181, 4
        %v6248 = vrot.slane %v5871, 4
        %v6249 = vsel %vm4746, %v6247, %v6248
        %v6250 = vrot.slane %v6182, 4
        %v6251 = vrot.slane %v5873, 4
        %v6252 = vsel %vm4746, %v6250, %v6251
        %v6253 = vrot.slane %v6183, 4
        %v6254 = vrot.slane %v5875, 4
        %v6255 = vsel %vm4746, %v6253, %v6254
        %v6256 = vrot.slane %v6184, 4
        %v6257 = vrot.slane %v5877, 4
        %v6258 = vsel %vm4746, %v6256, %v6257
        %v6259 = vrot.slane %v6185, 4
        %v6260 = vrot.slane %v5879, 4
        %v6261 = vsel %vm4746, %v6259, %v6260
        %v6262 = vrot.slane %v6186, 4
        %v6263 = vrot.slane %v5881, 4
        %v6264 = vsel %vm4746, %v6262, %v6263
        %v6265 = vrot.slane %v6187, 4
        %v6266 = vrot.slane %v5883, 4
        %v6267 = vsel %vm4746, %v6265, %v6266
        %v6284 = vld [vmem:[%s5851 + $0x8] sm:$0x1f]
        %v6285 = vld [vmem:[%s5851 + $0x18] sm:$0x1f]
        %v6286 = vld [vmem:[%s5851 + $0x28] sm:$0x1f]
        %v6287 = vld [vmem:[%s5851 + $0x38] sm:$0x1f]
        %v6288 = vld [vmem:[%s5851 + $0x48] sm:$0x1f]
        %v6289 = vld [vmem:[%s5851 + $0x58] sm:$0x1f]
        %v6290 = vld [vmem:[%s5851 + $0x68] sm:$0x1f]
        %v6291 = vld [vmem:[%s5851 + $0x78] sm:$0x1f]
        %v6292 = vld [vmem:[%s5851 + $0x88] sm:$0x1f]
        %v6293 = vld [vmem:[%s5851 + $0x98] sm:$0x1f]
        %v6294 = vld [vmem:[%s5851 + $0xa8] sm:$0x1f]
        %v6295 = vld [vmem:[%s5851 + $0xb8] sm:$0x1f]
        %v6296 = vld [vmem:[%s5851 + $0xc8] sm:$0x1f]
        %v6297 = vld [vmem:[%s5851 + $0xd8] sm:$0x1f]
        %v6298 = vld [vmem:[%s5851 + $0xe8] sm:$0x1f]
        %v6299 = vld [vmem:[%s5851 + $0xf8] sm:$0x1f]
        %v6301 = vshrl.u32 %v6172, 16
        %v6303 = vrot.slane %v6301, 4
        %v6304 = vshll.u32 %v6172, 16
        %v6306 = vrot.slane %v6304, 5
        %v6307 = vor.u32 %v6303, %v6306
        %v6309 = vshrl.u32 %v6284, 16
        %v6311 = vrot.slane %v6309, 4
        %v6312 = vshll.u32 %v6284, 16
        %v6314 = vrot.slane %v6312, 5
        %v6315 = vor.u32 %v6311, %v6314
        %v6316 = vsel %vm381, %v6307, %v6315
        %v6318 = vshrl.u32 %v6173, 16
        %v6320 = vrot.slane %v6318, 4
        %v6321 = vshll.u32 %v6173, 16
        %v6323 = vrot.slane %v6321, 5
        %v6324 = vor.u32 %v6320, %v6323
        %v6326 = vshrl.u32 %v6285, 16
        %v6328 = vrot.slane %v6326, 4
        %v6329 = vshll.u32 %v6285, 16
        %v6331 = vrot.slane %v6329, 5
        %v6332 = vor.u32 %v6328, %v6331
        %v6333 = vsel %vm381, %v6324, %v6332
        %v6335 = vshrl.u32 %v6174, 16
        %v6337 = vrot.slane %v6335, 4
        %v6338 = vshll.u32 %v6174, 16
        %v6340 = vrot.slane %v6338, 5
        %v6341 = vor.u32 %v6337, %v6340
        %v6343 = vshrl.u32 %v6286, 16
        %v6345 = vrot.slane %v6343, 4
        %v6346 = vshll.u32 %v6286, 16
        %v6348 = vrot.slane %v6346, 5
        %v6349 = vor.u32 %v6345, %v6348
        %v6350 = vsel %vm381, %v6341, %v6349
        %v6352 = vshrl.u32 %v6175, 16
        %v6354 = vrot.slane %v6352, 4
        %v6355 = vshll.u32 %v6175, 16
        %v6357 = vrot.slane %v6355, 5
        %v6358 = vor.u32 %v6354, %v6357
        %v6360 = vshrl.u32 %v6287, 16
        %v6362 = vrot.slane %v6360, 4
        %v6363 = vshll.u32 %v6287, 16
        %v6365 = vrot.slane %v6363, 5
        %v6366 = vor.u32 %v6362, %v6365
        %v6367 = vsel %vm381, %v6358, %v6366
        %v6369 = vshrl.u32 %v6176, 16
        %v6371 = vrot.slane %v6369, 4
        %v6372 = vshll.u32 %v6176, 16
        %v6374 = vrot.slane %v6372, 5
        %v6375 = vor.u32 %v6371, %v6374
        %v6377 = vshrl.u32 %v6288, 16
        %v6379 = vrot.slane %v6377, 4
        %v6380 = vshll.u32 %v6288, 16
        %v6382 = vrot.slane %v6380, 5
        %v6383 = vor.u32 %v6379, %v6382
        %v6384 = vsel %vm381, %v6375, %v6383
        %v6386 = vshrl.u32 %v6177, 16
        %v6388 = vrot.slane %v6386, 4
        %v6389 = vshll.u32 %v6177, 16
        %v6391 = vrot.slane %v6389, 5
        %v6392 = vor.u32 %v6388, %v6391
        %v6394 = vshrl.u32 %v6289, 16
        %v6396 = vrot.slane %v6394, 4
        %v6397 = vshll.u32 %v6289, 16
        %v6399 = vrot.slane %v6397, 5
        %v6400 = vor.u32 %v6396, %v6399
        %v6401 = vsel %vm381, %v6392, %v6400
        %v6403 = vshrl.u32 %v6178, 16
        %v6405 = vrot.slane %v6403, 4
        %v6406 = vshll.u32 %v6178, 16
        %v6408 = vrot.slane %v6406, 5
        %v6409 = vor.u32 %v6405, %v6408
        %v6411 = vshrl.u32 %v6290, 16
        %v6413 = vrot.slane %v6411, 4
        %v6414 = vshll.u32 %v6290, 16
        %v6416 = vrot.slane %v6414, 5
        %v6417 = vor.u32 %v6413, %v6416
        %v6418 = vsel %vm381, %v6409, %v6417
        %v6420 = vshrl.u32 %v6179, 16
        %v6422 = vrot.slane %v6420, 4
        %v6423 = vshll.u32 %v6179, 16
        %v6425 = vrot.slane %v6423, 5
        %v6426 = vor.u32 %v6422, %v6425
        %v6428 = vshrl.u32 %v6291, 16
        %v6430 = vrot.slane %v6428, 4
        %v6431 = vshll.u32 %v6291, 16
        %v6433 = vrot.slane %v6431, 5
        %v6434 = vor.u32 %v6430, %v6433
        %v6435 = vsel %vm381, %v6426, %v6434
        %v6437 = vshrl.u32 %v6180, 16
        %v6439 = vrot.slane %v6437, 4
        %v6440 = vshll.u32 %v6180, 16
        %v6442 = vrot.slane %v6440, 5
        %v6443 = vor.u32 %v6439, %v6442
        %v6445 = vshrl.u32 %v6292, 16
        %v6447 = vrot.slane %v6445, 4
        %v6448 = vshll.u32 %v6292, 16
        %v6450 = vrot.slane %v6448, 5
        %v6451 = vor.u32 %v6447, %v6450
        %v6452 = vsel %vm381, %v6443, %v6451
        %v6454 = vshrl.u32 %v6181, 16
        %v6456 = vrot.slane %v6454, 4
        %v6457 = vshll.u32 %v6181, 16
        %v6459 = vrot.slane %v6457, 5
        %v6460 = vor.u32 %v6456, %v6459
        %v6462 = vshrl.u32 %v6293, 16
        %v6464 = vrot.slane %v6462, 4
        %v6465 = vshll.u32 %v6293, 16
        %v6467 = vrot.slane %v6465, 5
        %v6468 = vor.u32 %v6464, %v6467
        %v6469 = vsel %vm381, %v6460, %v6468
        %v6471 = vshrl.u32 %v6182, 16
        %v6473 = vrot.slane %v6471, 4
        %v6474 = vshll.u32 %v6182, 16
        %v6476 = vrot.slane %v6474, 5
        %v6477 = vor.u32 %v6473, %v6476
        %v6479 = vshrl.u32 %v6294, 16
        %v6481 = vrot.slane %v6479, 4
        %v6482 = vshll.u32 %v6294, 16
        %v6484 = vrot.slane %v6482, 5
        %v6485 = vor.u32 %v6481, %v6484
        %v6486 = vsel %vm381, %v6477, %v6485
        %v6488 = vshrl.u32 %v6183, 16
        %v6490 = vrot.slane %v6488, 4
        %v6491 = vshll.u32 %v6183, 16
        %v6493 = vrot.slane %v6491, 5
        %v6494 = vor.u32 %v6490, %v6493
        %v6496 = vshrl.u32 %v6295, 16
        %v6498 = vrot.slane %v6496, 4
        %v6499 = vshll.u32 %v6295, 16
        %v6501 = vrot.slane %v6499, 5
        %v6502 = vor.u32 %v6498, %v6501
        %v6503 = vsel %vm381, %v6494, %v6502
        %v6505 = vshrl.u32 %v6184, 16
        %v6507 = vrot.slane %v6505, 4
        %v6508 = vshll.u32 %v6184, 16
        %v6510 = vrot.slane %v6508, 5
        %v6511 = vor.u32 %v6507, %v6510
        %v6513 = vshrl.u32 %v6296, 16
        %v6515 = vrot.slane %v6513, 4
        %v6516 = vshll.u32 %v6296, 16
        %v6518 = vrot.slane %v6516, 5
        %v6519 = vor.u32 %v6515, %v6518
        %v6520 = vsel %vm381, %v6511, %v6519
        %v6522 = vshrl.u32 %v6185, 16
        %v6524 = vrot.slane %v6522, 4
        %v6525 = vshll.u32 %v6185, 16
        %v6527 = vrot.slane %v6525, 5
        %v6528 = vor.u32 %v6524, %v6527
        %v6530 = vshrl.u32 %v6297, 16
        %v6532 = vrot.slane %v6530, 4
        %v6533 = vshll.u32 %v6297, 16
        %v6535 = vrot.slane %v6533, 5
        %v6536 = vor.u32 %v6532, %v6535
        %v6537 = vsel %vm381, %v6528, %v6536
        %v6539 = vshrl.u32 %v6186, 16
        %v6541 = vrot.slane %v6539, 4
        %v6542 = vshll.u32 %v6186, 16
        %v6544 = vrot.slane %v6542, 5
        %v6545 = vor.u32 %v6541, %v6544
        %v6547 = vshrl.u32 %v6298, 16
        %v6549 = vrot.slane %v6547, 4
        %v6550 = vshll.u32 %v6298, 16
        %v6552 = vrot.slane %v6550, 5
        %v6553 = vor.u32 %v6549, %v6552
        %v6554 = vsel %vm381, %v6545, %v6553
        %v6556 = vshrl.u32 %v6187, 16
        %v6558 = vrot.slane %v6556, 4
        %v6559 = vshll.u32 %v6187, 16
        %v6561 = vrot.slane %v6559, 5
        %v6562 = vor.u32 %v6558, %v6561
        %v6564 = vshrl.u32 %v6299, 16
        %v6566 = vrot.slane %v6564, 4
        %v6567 = vshll.u32 %v6299, 16
        %v6569 = vrot.slane %v6567, 5
        %v6570 = vor.u32 %v6566, %v6569
        %v6571 = vsel %vm381, %v6562, %v6570
        %v6588 = vld [vmem:[#allocation3] sm:$0xf]
        %v6589 = vld [vmem:[#allocation3 + $0x4] sm:$0xf]
        %v6590 = vld [vmem:[#allocation3 + $0x8] sm:$0xf]
        %v6591 = vld [vmem:[#allocation3 + $0xc] sm:$0xf]
        %v6592 = vld [vmem:[#allocation3 + $0x10] sm:$0xf]
        %v6593 = vld [vmem:[#allocation3 + $0x14] sm:$0xf]
        %v6594 = vld [vmem:[#allocation3 + $0x18] sm:$0xf]
        %v6595 = vld [vmem:[#allocation3 + $0x1c] sm:$0xf]
        %v6596 = vld [vmem:[#allocation3 + $0x20] sm:$0xf]
        %v6597 = vld [vmem:[#allocation3 + $0x24] sm:$0xf]
        %v6598 = vld [vmem:[#allocation3 + $0x28] sm:$0xf]
        %v6599 = vld [vmem:[#allocation3 + $0x2c] sm:$0xf]
        %v6600 = vld [vmem:[#allocation3 + $0x30] sm:$0xf]
        %v6601 = vld [vmem:[#allocation3 + $0x34] sm:$0xf]
        %v6602 = vld [vmem:[#allocation3 + $0x38] sm:$0xf]
        %v6603 = vld [vmem:[#allocation3 + $0x3c] sm:$0xf]
        %v6604 = vld [vmem:[#allocation3 + $0x40] sm:$0xf]
        %v6605 = vld [vmem:[#allocation3 + $0x44] sm:$0xf]
        %v6606 = vld [vmem:[#allocation3 + $0x48] sm:$0xf]
        %v6607 = vld [vmem:[#allocation3 + $0x4c] sm:$0xf]
        %v6608 = vld [vmem:[#allocation3 + $0x50] sm:$0xf]
        %v6609 = vld [vmem:[#allocation3 + $0x54] sm:$0xf]
        %v6610 = vld [vmem:[#allocation3 + $0x58] sm:$0xf]
        %v6611 = vld [vmem:[#allocation3 + $0x5c] sm:$0xf]
        %v6612 = vld [vmem:[#allocation3 + $0x60] sm:$0xf]
        %v6613 = vld [vmem:[#allocation3 + $0x64] sm:$0xf]
        %v6614 = vld [vmem:[#allocation3 + $0x68] sm:$0xf]
        %v6615 = vld [vmem:[#allocation3 + $0x6c] sm:$0xf]
        %v6616 = vld [vmem:[#allocation3 + $0x70] sm:$0xf]
        %v6617 = vld [vmem:[#allocation3 + $0x74] sm:$0xf]
        %v6618 = vld [vmem:[#allocation3 + $0x78] sm:$0xf]
        %v6619 = vld [vmem:[#allocation3 + $0x7c] sm:$0xf]
        %v6620 = vld [vmem:[#allocation3 + $0x80] sm:$0xf]
        %v6621 = vld [vmem:[#allocation3 + $0x84] sm:$0xf]
        %v6622 = vld [vmem:[#allocation3 + $0x88] sm:$0xf]
        %v6623 = vld [vmem:[#allocation3 + $0x8c] sm:$0xf]
        %v6624 = vld [vmem:[#allocation3 + $0x90] sm:$0xf]
        %v6625 = vld [vmem:[#allocation3 + $0x94] sm:$0xf]
        %v6626 = vld [vmem:[#allocation3 + $0x98] sm:$0xf]
        %v6627 = vld [vmem:[#allocation3 + $0x9c] sm:$0xf]
        %v6628 = vld [vmem:[#allocation3 + $0xa0] sm:$0xf]
        %v6629 = vld [vmem:[#allocation3 + $0xa4] sm:$0xf]
        %v6630 = vld [vmem:[#allocation3 + $0xa8] sm:$0xf]
        %v6631 = vld [vmem:[#allocation3 + $0xac] sm:$0xf]
        %v6632 = vld [vmem:[#allocation3 + $0xb0] sm:$0xf]
        %v6633 = vld [vmem:[#allocation3 + $0xb4] sm:$0xf]
        %v6634 = vld [vmem:[#allocation3 + $0xb8] sm:$0xf]
        %v6635 = vld [vmem:[#allocation3 + $0xbc] sm:$0xf]
        %v6636 = vld [vmem:[#allocation3 + $0xc0] sm:$0xf]
        %v6637 = vld [vmem:[#allocation3 + $0xc4] sm:$0xf]
        %v6638 = vld [vmem:[#allocation3 + $0xc8] sm:$0xf]
        %v6639 = vld [vmem:[#allocation3 + $0xcc] sm:$0xf]
        %v6640 = vld [vmem:[#allocation3 + $0xd0] sm:$0xf]
        %v6641 = vld [vmem:[#allocation3 + $0xd4] sm:$0xf]
        %v6642 = vld [vmem:[#allocation3 + $0xd8] sm:$0xf]
        %v6643 = vld [vmem:[#allocation3 + $0xdc] sm:$0xf]
        %v6644 = vld [vmem:[#allocation3 + $0xe0] sm:$0xf]
        %v6645 = vld [vmem:[#allocation3 + $0xe4] sm:$0xf]
        %v6646 = vld [vmem:[#allocation3 + $0xe8] sm:$0xf]
        %v6647 = vld [vmem:[#allocation3 + $0xec] sm:$0xf]
        %v6648 = vld [vmem:[#allocation3 + $0xf0] sm:$0xf]
        %v6649 = vld [vmem:[#allocation3 + $0xf4] sm:$0xf]
        %v6650 = vld [vmem:[#allocation3 + $0xf8] sm:$0xf]
        %v6651 = vld [vmem:[#allocation3 + $0xfc] sm:$0xf]
        %v6652 = vld [vmem:[#allocation3 + $0x100] sm:$0xf]
        %v6653 = vld [vmem:[#allocation3 + $0x104] sm:$0xf]
        %v6654 = vld [vmem:[#allocation3 + $0x108] sm:$0xf]
        %v6655 = vld [vmem:[#allocation3 + $0x10c] sm:$0xf]
        %v6656 = vld [vmem:[#allocation3 + $0x110] sm:$0xf]
        %v6657 = vld [vmem:[#allocation3 + $0x114] sm:$0xf]
        %v6658 = vld [vmem:[#allocation3 + $0x118] sm:$0xf]
        %v6659 = vld [vmem:[#allocation3 + $0x11c] sm:$0xf]
        %v6660 = vld [vmem:[#allocation3 + $0x120] sm:$0xf]
        %v6661 = vld [vmem:[#allocation3 + $0x124] sm:$0xf]
        %v6662 = vld [vmem:[#allocation3 + $0x128] sm:$0xf]
        %v6663 = vld [vmem:[#allocation3 + $0x12c] sm:$0xf]
        %v6664 = vld [vmem:[#allocation3 + $0x130] sm:$0xf]
        %v6665 = vld [vmem:[#allocation3 + $0x134] sm:$0xf]
        %v6666 = vld [vmem:[#allocation3 + $0x138] sm:$0xf]
        %v6667 = vld [vmem:[#allocation3 + $0x13c] sm:$0xf]
        %v6668 = vld [vmem:[#allocation3 + $0x140] sm:$0xf]
        %v6669 = vld [vmem:[#allocation3 + $0x144] sm:$0xf]
        %v6670 = vld [vmem:[#allocation3 + $0x148] sm:$0xf]
        %v6671 = vld [vmem:[#allocation3 + $0x14c] sm:$0xf]
        %v6672 = vld [vmem:[#allocation3 + $0x150] sm:$0xf]
        %v6673 = vld [vmem:[#allocation3 + $0x154] sm:$0xf]
        %v6674 = vld [vmem:[#allocation3 + $0x158] sm:$0xf]
        %v6675 = vld [vmem:[#allocation3 + $0x15c] sm:$0xf]
        %v6676 = vld [vmem:[#allocation3 + $0x160] sm:$0xf]
        %v6677 = vld [vmem:[#allocation3 + $0x164] sm:$0xf]
        %v6678 = vld [vmem:[#allocation3 + $0x168] sm:$0xf]
        %v6679 = vld [vmem:[#allocation3 + $0x16c] sm:$0xf]
        %v6680 = vld [vmem:[#allocation3 + $0x170] sm:$0xf]
        %v6681 = vld [vmem:[#allocation3 + $0x174] sm:$0xf]
        %v6682 = vld [vmem:[#allocation3 + $0x178] sm:$0xf]
        %v6683 = vld [vmem:[#allocation3 + $0x17c] sm:$0xf]
        %v6684 = vld [vmem:[#allocation3 + $0x180] sm:$0xf]
        %v6685 = vld [vmem:[#allocation3 + $0x184] sm:$0xf]
        %v6686 = vld [vmem:[#allocation3 + $0x188] sm:$0xf]
        %v6687 = vld [vmem:[#allocation3 + $0x18c] sm:$0xf]
        %v6688 = vld [vmem:[#allocation3 + $0x190] sm:$0xf]
        %v6689 = vld [vmem:[#allocation3 + $0x194] sm:$0xf]
        %v6690 = vld [vmem:[#allocation3 + $0x198] sm:$0xf]
        %v6691 = vld [vmem:[#allocation3 + $0x19c] sm:$0xf]
        %v6692 = vld [vmem:[#allocation3 + $0x1a0] sm:$0xf]
        %v6693 = vld [vmem:[#allocation3 + $0x1a4] sm:$0xf]
        %v6694 = vld [vmem:[#allocation3 + $0x1a8] sm:$0xf]
        %v6695 = vld [vmem:[#allocation3 + $0x1ac] sm:$0xf]
        %v6696 = vld [vmem:[#allocation3 + $0x1b0] sm:$0xf]
        %v6697 = vld [vmem:[#allocation3 + $0x1b4] sm:$0xf]
        %v6698 = vld [vmem:[#allocation3 + $0x1b8] sm:$0xf]
        %v6699 = vld [vmem:[#allocation3 + $0x1bc] sm:$0xf]
        %v6700 = vld [vmem:[#allocation3 + $0x1c0] sm:$0xf]
        %v6701 = vld [vmem:[#allocation3 + $0x1c4] sm:$0xf]
        %v6702 = vld [vmem:[#allocation3 + $0x1c8] sm:$0xf]
        %v6703 = vld [vmem:[#allocation3 + $0x1cc] sm:$0xf]
        %v6704 = vld [vmem:[#allocation3 + $0x1d0] sm:$0xf]
        %v6705 = vld [vmem:[#allocation3 + $0x1d4] sm:$0xf]
        %v6706 = vld [vmem:[#allocation3 + $0x1d8] sm:$0xf]
        %v6707 = vld [vmem:[#allocation3 + $0x1dc] sm:$0xf]
        %v6708 = vld [vmem:[#allocation3 + $0x1e0] sm:$0xf]
        %v6709 = vld [vmem:[#allocation3 + $0x1e4] sm:$0xf]
        %v6710 = vld [vmem:[#allocation3 + $0x1e8] sm:$0xf]
        %v6711 = vld [vmem:[#allocation3 + $0x1ec] sm:$0xf]
        %v6712 = vld [vmem:[#allocation3 + $0x1f0] sm:$0xf]
        %v6713 = vld [vmem:[#allocation3 + $0x1f4] sm:$0xf]
        %v6714 = vld [vmem:[#allocation3 + $0x1f8] sm:$0xf]
        %v6715 = vld [vmem:[#allocation3 + $0x1fc] sm:$0xf]
        %v6716 = vld [vmem:[#allocation3 + $0x200] sm:$0xf]
        %v6717 = vld [vmem:[#allocation3 + $0x204] sm:$0xf]
        %v6718 = vld [vmem:[#allocation3 + $0x208] sm:$0xf]
        %v6719 = vld [vmem:[#allocation3 + $0x20c] sm:$0xf]
        %v6720 = vld [vmem:[#allocation3 + $0x210] sm:$0xf]
        %v6721 = vld [vmem:[#allocation3 + $0x214] sm:$0xf]
        %v6722 = vld [vmem:[#allocation3 + $0x218] sm:$0xf]
        %v6723 = vld [vmem:[#allocation3 + $0x21c] sm:$0xf]
        %v6724 = vld [vmem:[#allocation3 + $0x220] sm:$0xf]
        %v6725 = vld [vmem:[#allocation3 + $0x224] sm:$0xf]
        %v6726 = vld [vmem:[#allocation3 + $0x228] sm:$0xf]
        %v6727 = vld [vmem:[#allocation3 + $0x22c] sm:$0xf]
        %v6728 = vld [vmem:[#allocation3 + $0x230] sm:$0xf]
        %v6729 = vld [vmem:[#allocation3 + $0x234] sm:$0xf]
        %v6730 = vld [vmem:[#allocation3 + $0x238] sm:$0xf]
        %v6731 = vld [vmem:[#allocation3 + $0x23c] sm:$0xf]
        %v6876 = vunpack.c.l.b16 %v6588
        %v6877 = vunpack.c.l.b16 %v6589
        %v6878 = vunpack.c.l.b16 %v6590
        %v6879 = vunpack.c.l.b16 %v6591
        %v6880 = vunpack.c.l.b16 %v6592
        %v6881 = vunpack.c.l.b16 %v6593
        %v6882 = vunpack.c.l.b16 %v6594
        %v6883 = vunpack.c.l.b16 %v6595
        %v6884 = vunpack.c.l.b16 %v6596
        %v6885 = vunpack.c.l.b16 %v6597
        %v6886 = vunpack.c.l.b16 %v6598
        %v6887 = vunpack.c.l.b16 %v6599
        %v6888 = vunpack.c.l.b16 %v6600
        %v6889 = vunpack.c.l.b16 %v6601
        %v6890 = vunpack.c.l.b16 %v6602
        %v6891 = vunpack.c.l.b16 %v6603
        %v6892 = vunpack.c.l.b16 %v6604
        %v6893 = vunpack.c.l.b16 %v6605
        %v6894 = vunpack.c.l.b16 %v6606
        %v6895 = vunpack.c.l.b16 %v6607
        %v6896 = vunpack.c.l.b16 %v6608
        %v6897 = vunpack.c.l.b16 %v6609
        %v6898 = vunpack.c.l.b16 %v6610
        %v6899 = vunpack.c.l.b16 %v6611
        %v6900 = vunpack.c.l.b16 %v6612
        %v6901 = vunpack.c.l.b16 %v6613
        %v6902 = vunpack.c.l.b16 %v6614
        %v6903 = vunpack.c.l.b16 %v6615
        %v6904 = vunpack.c.l.b16 %v6616
        %v6905 = vunpack.c.l.b16 %v6617
        %v6906 = vunpack.c.l.b16 %v6618
        %v6907 = vunpack.c.l.b16 %v6619
        %v6908 = vunpack.c.l.b16 %v6620
        %v6909 = vunpack.c.l.b16 %v6621
        %v6910 = vunpack.c.l.b16 %v6622
        %v6911 = vunpack.c.l.b16 %v6623
        %v6912 = vunpack.c.l.b16 %v6624
        %v6913 = vunpack.c.l.b16 %v6625
        %v6914 = vunpack.c.l.b16 %v6626
        %v6915 = vunpack.c.l.b16 %v6627
        %v6916 = vunpack.c.l.b16 %v6628
        %v6917 = vunpack.c.l.b16 %v6629
        %v6918 = vunpack.c.l.b16 %v6630
        %v6919 = vunpack.c.l.b16 %v6631
        %v6920 = vunpack.c.l.b16 %v6632
        %v6921 = vunpack.c.l.b16 %v6633
        %v6922 = vunpack.c.l.b16 %v6634
        %v6923 = vunpack.c.l.b16 %v6635
        %v6924 = vunpack.c.l.b16 %v6636
        %v6925 = vunpack.c.l.b16 %v6637
        %v6926 = vunpack.c.l.b16 %v6638
        %v6927 = vunpack.c.l.b16 %v6639
        %v6928 = vunpack.c.l.b16 %v6640
        %v6929 = vunpack.c.l.b16 %v6641
        %v6930 = vunpack.c.l.b16 %v6642
        %v6931 = vunpack.c.l.b16 %v6643
        %v6932 = vunpack.c.l.b16 %v6644
        %v6933 = vunpack.c.l.b16 %v6645
        %v6934 = vunpack.c.l.b16 %v6646
        %v6935 = vunpack.c.l.b16 %v6647
        %v6936 = vunpack.c.l.b16 %v6648
        %v6937 = vunpack.c.l.b16 %v6649
        %v6938 = vunpack.c.l.b16 %v6650
        %v6939 = vunpack.c.l.b16 %v6651
        %v6940 = vunpack.c.l.b16 %v6652
        %v6941 = vunpack.c.l.b16 %v6653
        %v6942 = vunpack.c.l.b16 %v6654
        %v6943 = vunpack.c.l.b16 %v6655
        %v6944 = vunpack.c.l.b16 %v6656
        %v6945 = vunpack.c.l.b16 %v6657
        %v6946 = vunpack.c.l.b16 %v6658
        %v6947 = vunpack.c.l.b16 %v6659
        %v6948 = vunpack.c.l.b16 %v6660
        %v6949 = vunpack.c.l.b16 %v6661
        %v6950 = vunpack.c.l.b16 %v6662
        %v6951 = vunpack.c.l.b16 %v6663
        %v6952 = vunpack.c.l.b16 %v6664
        %v6953 = vunpack.c.l.b16 %v6665
        %v6954 = vunpack.c.l.b16 %v6666
        %v6955 = vunpack.c.l.b16 %v6667
        %v6956 = vunpack.c.l.b16 %v6668
        %v6957 = vunpack.c.l.b16 %v6669
        %v6958 = vunpack.c.l.b16 %v6670
        %v6959 = vunpack.c.l.b16 %v6671
        %v6960 = vunpack.c.l.b16 %v6672
        %v6961 = vunpack.c.l.b16 %v6673
        %v6962 = vunpack.c.l.b16 %v6674
        %v6963 = vunpack.c.l.b16 %v6675
        %v6964 = vunpack.c.l.b16 %v6676
        %v6965 = vunpack.c.l.b16 %v6677
        %v6966 = vunpack.c.l.b16 %v6678
        %v6967 = vunpack.c.l.b16 %v6679
        %v6968 = vunpack.c.l.b16 %v6680
        %v6969 = vunpack.c.l.b16 %v6681
        %v6970 = vunpack.c.l.b16 %v6682
        %v6971 = vunpack.c.l.b16 %v6683
        %v6972 = vunpack.c.l.b16 %v6684
        %v6973 = vunpack.c.l.b16 %v6685
        %v6974 = vunpack.c.l.b16 %v6686
        %v6975 = vunpack.c.l.b16 %v6687
        %v6976 = vunpack.c.l.b16 %v6688
        %v6977 = vunpack.c.l.b16 %v6689
        %v6978 = vunpack.c.l.b16 %v6690
        %v6979 = vunpack.c.l.b16 %v6691
        %v6980 = vunpack.c.l.b16 %v6692
        %v6981 = vunpack.c.l.b16 %v6693
        %v6982 = vunpack.c.l.b16 %v6694
        %v6983 = vunpack.c.l.b16 %v6695
        %v6984 = vunpack.c.l.b16 %v6696
        %v6985 = vunpack.c.l.b16 %v6697
        %v6986 = vunpack.c.l.b16 %v6698
        %v6987 = vunpack.c.l.b16 %v6699
        %v6988 = vunpack.c.l.b16 %v6700
        %v6989 = vunpack.c.l.b16 %v6701
        %v6990 = vunpack.c.l.b16 %v6702
        %v6991 = vunpack.c.l.b16 %v6703
        %v6992 = vunpack.c.l.b16 %v6704
        %v6993 = vunpack.c.l.b16 %v6705
        %v6994 = vunpack.c.l.b16 %v6706
        %v6995 = vunpack.c.l.b16 %v6707
        %v6996 = vunpack.c.l.b16 %v6708
        %v6997 = vunpack.c.l.b16 %v6709
        %v6998 = vunpack.c.l.b16 %v6710
        %v6999 = vunpack.c.l.b16 %v6711
        %v7000 = vunpack.c.l.b16 %v6712
        %v7001 = vunpack.c.l.b16 %v6713
        %v7002 = vunpack.c.l.b16 %v6714
        %v7003 = vunpack.c.l.b16 %v6715
        %v7004 = vunpack.c.l.b16 %v6716
        %v7005 = vunpack.c.l.b16 %v6717
        %v7006 = vunpack.c.l.b16 %v6718
        %v7007 = vunpack.c.l.b16 %v6719
        %v7008 = vunpack.c.l.b16 %v6720
        %v7009 = vunpack.c.l.b16 %v6721
        %v7010 = vunpack.c.l.b16 %v6722
        %v7011 = vunpack.c.l.b16 %v6723
        %v7012 = vunpack.c.l.b16 %v6724
        %v7013 = vunpack.c.l.b16 %v6725
        %v7014 = vunpack.c.l.b16 %v6726
        %v7015 = vunpack.c.l.b16 %v6727
        %v7016 = vunpack.c.l.b16 %v6728
        %v7017 = vunpack.c.l.b16 %v6729
        %v7018 = vunpack.c.l.b16 %v6730
        %v7019 = vunpack.c.l.b16 %v6731
        %v7020 = vpack.c.b16 %v6877, %v6876
        %v7021 = vpack.c.b16 %v6879, %v6878
        %v7022 = vpack.c.b16 %v6881, %v6880
        %v7023 = vpack.c.b16 %v6883, %v6882
        %v7024 = vpack.c.b16 %v6885, %v6884
        %v7025 = vpack.c.b16 %v6887, %v6886
        %v7026 = vpack.c.b16 %v6889, %v6888
        %v7027 = vpack.c.b16 %v6891, %v6890
        %v7028 = vpack.c.b16 %v6893, %v6892
        %v7029 = vpack.c.b16 %v6895, %v6894
        %v7030 = vpack.c.b16 %v6897, %v6896
        %v7031 = vpack.c.b16 %v6899, %v6898
        %v7032 = vpack.c.b16 %v6901, %v6900
        %v7033 = vpack.c.b16 %v6903, %v6902
        %v7034 = vpack.c.b16 %v6905, %v6904
        %v7035 = vpack.c.b16 %v6907, %v6906
        %v7036 = vpack.c.b16 %v6909, %v6908
        %v7037 = vpack.c.b16 %v6911, %v6910
        %v7038 = vpack.c.b16 %v6913, %v6912
        %v7039 = vpack.c.b16 %v6915, %v6914
        %v7040 = vpack.c.b16 %v6917, %v6916
        %v7041 = vpack.c.b16 %v6919, %v6918
        %v7042 = vpack.c.b16 %v6921, %v6920
        %v7043 = vpack.c.b16 %v6923, %v6922
        %v7044 = vpack.c.b16 %v6925, %v6924
        %v7045 = vpack.c.b16 %v6927, %v6926
        %v7046 = vpack.c.b16 %v6929, %v6928
        %v7047 = vpack.c.b16 %v6931, %v6930
        %v7048 = vpack.c.b16 %v6933, %v6932
        %v7049 = vpack.c.b16 %v6935, %v6934
        %v7050 = vpack.c.b16 %v6937, %v6936
        %v7051 = vpack.c.b16 %v6939, %v6938
        %v7052 = vpack.c.b16 %v6941, %v6940
        %v7053 = vpack.c.b16 %v6943, %v6942
        %v7054 = vpack.c.b16 %v6945, %v6944
        %v7055 = vpack.c.b16 %v6947, %v6946
        %v7056 = vpack.c.b16 %v6949, %v6948
        %v7057 = vpack.c.b16 %v6951, %v6950
        %v7058 = vpack.c.b16 %v6953, %v6952
        %v7059 = vpack.c.b16 %v6955, %v6954
        %v7060 = vpack.c.b16 %v6957, %v6956
        %v7061 = vpack.c.b16 %v6959, %v6958
        %v7062 = vpack.c.b16 %v6961, %v6960
        %v7063 = vpack.c.b16 %v6963, %v6962
        %v7064 = vpack.c.b16 %v6965, %v6964
        %v7065 = vpack.c.b16 %v6967, %v6966
        %v7066 = vpack.c.b16 %v6969, %v6968
        %v7067 = vpack.c.b16 %v6971, %v6970
        %v7068 = vpack.c.b16 %v6973, %v6972
        %v7069 = vpack.c.b16 %v6975, %v6974
        %v7070 = vpack.c.b16 %v6977, %v6976
        %v7071 = vpack.c.b16 %v6979, %v6978
        %v7072 = vpack.c.b16 %v6981, %v6980
        %v7073 = vpack.c.b16 %v6983, %v6982
        %v7074 = vpack.c.b16 %v6985, %v6984
        %v7075 = vpack.c.b16 %v6987, %v6986
        %v7076 = vpack.c.b16 %v6989, %v6988
        %v7077 = vpack.c.b16 %v6991, %v6990
        %v7078 = vpack.c.b16 %v6993, %v6992
        %v7079 = vpack.c.b16 %v6995, %v6994
        %v7080 = vpack.c.b16 %v6997, %v6996
        %v7081 = vpack.c.b16 %v6999, %v6998
        %v7082 = vpack.c.b16 %v7001, %v7000
        %v7083 = vpack.c.b16 %v7003, %v7002
        %v7084 = vpack.c.b16 %v7005, %v7004
        %v7085 = vpack.c.b16 %v7007, %v7006
        %v7086 = vpack.c.b16 %v7009, %v7008
        %v7087 = vpack.c.b16 %v7011, %v7010
        %v7088 = vpack.c.b16 %v7013, %v7012
        %v7089 = vpack.c.b16 %v7015, %v7014
        %v7090 = vpack.c.b16 %v7017, %v7016
        %v7091 = vpack.c.b16 %v7019, %v7018
        %7164 = vmatprep.subr.bf16.mxu0 0
        %7165 = vmatpush1.bf16.msra.mxu0 %v7020
        %7166 = vmatprep.subr.bf16.mxu0 0
        %7167 = vmatpush1.bf16.msra.mxu0 %v7021
        %7168 = vmatprep.subr.bf16.mxu0 0
        %7169 = vmatpush1.bf16.msra.mxu0 %v7022
        %7170 = vmatprep.subr.bf16.mxu0 0
        %7171 = vmatpush1.bf16.msra.mxu0 %v7023
        %7172 = vmatprep.subr.bf16.mxu0 0
        %7173 = vmatpush1.bf16.msra.mxu0 %v7024
        %7174 = vmatprep.subr.bf16.mxu0 0
        %7175 = vmatpush1.bf16.msra.mxu0 %v7025
        %7176 = vmatprep.subr.bf16.mxu0 0
        %7177 = vmatpush1.bf16.msra.mxu0 %v7026
        %7178 = vmatprep.subr.bf16.mxu0 0
        %7179 = vmatpush1.bf16.msra.mxu0 %v7027
        %7180 = vmatprep.subr.bf16.mxu0 0
        %7181 = vmatpush1.bf16.msra.mxu0 %v7028
        %7182 = vmatprep.subr.bf16.mxu0 0
        %7183 = vmatpush1.bf16.msra.mxu0 %v7029
        %7184 = vmatprep.subr.bf16.mxu0 0
        %7185 = vmatpush1.bf16.msra.mxu0 %v7030
        %7186 = vmatprep.subr.bf16.mxu0 0
        %7187 = vmatpush1.bf16.msra.mxu0 %v7031
        %7188 = vmatprep.subr.bf16.mxu0 0
        %7189 = vmatpush1.bf16.msra.mxu0 %v7032
        %7190 = vmatprep.subr.bf16.mxu0 0
        %7191 = vmatpush1.bf16.msra.mxu0 %v7033
        %7192 = vmatprep.subr.bf16.mxu0 0
        %7193 = vmatpush1.bf16.msra.mxu0 %v7034
        %7194 = vmatprep.subr.bf16.mxu0 0
        %7195 = vmatpush1.bf16.msra.mxu0 %v7035
        %7196 = vmatprep.mubr.bf16.mxu0 %v4749
        %7197 = vmatmul.mubr.bf16.gmra.mrb[0].mxu0 %v4426
        %v7198 = vpop.f32.mrb[0].mxu0
        %v7199 = vadd.f32 0.0, %v7198
        %v7200 = vpop.f32.mrb[0].mxu0
        %v7201 = vpop.f32.mrb[0].mxu0
        %v7202 = vadd.f32 0.0, %v7201
        %v7203 = vpop.f32.mrb[0].mxu0
        %7204 = vmatprep.mubr.bf16.mxu0 %v4752
        %7205 = vmatmul.mubr.bf16.gmra.mrb[0].mxu0 %v4443
        %v7206 = vpop.f32.mrb[0].mxu0
        %v7207 = vadd.f32 0.0, %v7206
        %v7208 = vpop.f32.mrb[0].mxu0
        %v7209 = vpop.f32.mrb[0].mxu0
        %v7210 = vadd.f32 0.0, %v7209
        %v7211 = vpop.f32.mrb[0].mxu0
        %7212 = vmatprep.mubr.bf16.mxu0 %v4755
        %7213 = vmatmul.mubr.bf16.gmra.mrb[0].mxu0 %v4460
        %v7214 = vpop.f32.mrb[0].mxu0
        %v7215 = vadd.f32 0.0, %v7214
        %v7216 = vpop.f32.mrb[0].mxu0
        %v7217 = vpop.f32.mrb[0].mxu0
        %v7218 = vadd.f32 0.0, %v7217
        %v7219 = vpop.f32.mrb[0].mxu0
        %7220 = vmatprep.mubr.bf16.mxu0 %v4758
        %7221 = vmatmul.mubr.bf16.gmra.mrb[0].mxu0 %v4477
        %v7222 = vpop.f32.mrb[0].mxu0
        %v7223 = vadd.f32 0.0, %v7222
        %v7224 = vpop.f32.mrb[0].mxu0
        %v7225 = vpop.f32.mrb[0].mxu0
        %v7226 = vadd.f32 0.0, %v7225
        %v7227 = vpop.f32.mrb[0].mxu0
        %7228 = vmatprep.mubr.bf16.mxu0 %v4761
        %7229 = vmatmul.mubr.bf16.gmra.mrb[0].mxu0 %v4494
        %v7230 = vpop.f32.mrb[0].mxu0
        %v7231 = vadd.f32 0.0, %v7230
        %v7232 = vpop.f32.mrb[0].mxu0
        %v7233 = vpop.f32.mrb[0].mxu0
        %v7234 = vadd.f32 0.0, %v7233
        %v7235 = vpop.f32.mrb[0].mxu0
        %7236 = vmatprep.mubr.bf16.mxu0 %v4764
        %7237 = vmatmul.mubr.bf16.gmra.mrb[0].mxu0 %v4511
        %v7238 = vpop.f32.mrb[0].mxu0
        %v7239 = vadd.f32 0.0, %v7238
        %v7240 = vpop.f32.mrb[0].mxu0
        %v7241 = vpop.f32.mrb[0].mxu0
        %v7242 = vadd.f32 0.0, %v7241
        %v7243 = vpop.f32.mrb[0].mxu0
        %7244 = vmatprep.mubr.bf16.mxu0 %v4767
        %7245 = vmatmul.mubr.bf16.gmra.mrb[0].mxu0 %v4528
        %v7246 = vpop.f32.mrb[0].mxu0
        %v7247 = vadd.f32 0.0, %v7246
        %v7248 = vpop.f32.mrb[0].mxu0
        %v7249 = vpop.f32.mrb[0].mxu0
        %v7250 = vadd.f32 0.0, %v7249
        %v7251 = vpop.f32.mrb[0].mxu0
        %7252 = vmatprep.mubr.bf16.mxu0 %v4770
        %7253 = vmatmul.mubr.bf16.gmra.mrb[0].mxu0 %v4545
        %v7254 = vpop.f32.mrb[0].mxu0
        %v7255 = vadd.f32 0.0, %v7254
        %v7256 = vpop.f32.mrb[0].mxu0
        %v7257 = vpop.f32.mrb[0].mxu0
        %v7258 = vadd.f32 0.0, %v7257
        %v7259 = vpop.f32.mrb[0].mxu0
        %7260 = vmatprep.mubr.bf16.mxu0 %v4773
        %7261 = vmatmul.mubr.bf16.gmra.mrb[0].mxu0 %v4562
        %v7262 = vpop.f32.mrb[0].mxu0
        %v7263 = vadd.f32 0.0, %v7262
        %v7264 = vpop.f32.mrb[0].mxu0
        %v7265 = vpop.f32.mrb[0].mxu0
        %v7266 = vadd.f32 0.0, %v7265
        %v7267 = vpop.f32.mrb[0].mxu0
        %7268 = vmatprep.mubr.bf16.mxu0 %v4776
        %7269 = vmatmul.mubr.bf16.gmra.mrb[0].mxu0 %v4579
        %v7270 = vpop.f32.mrb[0].mxu0
        %v7271 = vadd.f32 0.0, %v7270
        %v7272 = vpop.f32.mrb[0].mxu0
        %v7273 = vpop.f32.mrb[0].mxu0
        %v7274 = vadd.f32 0.0, %v7273
        %v7275 = vpop.f32.mrb[0].mxu0
        %7276 = vmatprep.mubr.bf16.mxu0 %v4779
        %7277 = vmatmul.mubr.bf16.gmra.mrb[0].mxu0 %v4596
        %v7278 = vpop.f32.mrb[0].mxu0
        %v7279 = vadd.f32 0.0, %v7278
        %v7280 = vpop.f32.mrb[0].mxu0
        %v7281 = vpop.f32.mrb[0].mxu0
        %v7282 = vadd.f32 0.0, %v7281
        %v7283 = vpop.f32.mrb[0].mxu0
        %7284 = vmatprep.mubr.bf16.mxu0 %v4782
        %7285 = vmatmul.mubr.bf16.gmra.mrb[0].mxu0 %v4613
        %v7286 = vpop.f32.mrb[0].mxu0
        %v7287 = vadd.f32 0.0, %v7286
        %v7288 = vpop.f32.mrb[0].mxu0
        %v7289 = vpop.f32.mrb[0].mxu0
        %v7290 = vadd.f32 0.0, %v7289
        %v7291 = vpop.f32.mrb[0].mxu0
        %7292 = vmatprep.mubr.bf16.mxu0 %v4785
        %7293 = vmatmul.mubr.bf16.gmra.mrb[0].mxu0 %v4630
        %v7294 = vpop.f32.mrb[0].mxu0
        %v7295 = vadd.f32 0.0, %v7294
        %v7296 = vpop.f32.mrb[0].mxu0
        %v7297 = vpop.f32.mrb[0].mxu0
        %v7298 = vadd.f32 0.0, %v7297
        %v7299 = vpop.f32.mrb[0].mxu0
        %7300 = vmatprep.mubr.bf16.mxu0 %v4788
        %7301 = vmatmul.mubr.bf16.gmra.mrb[0].mxu0 %v4647
        %v7302 = vpop.f32.mrb[0].mxu0
        %v7303 = vadd.f32 0.0, %v7302
        %v7304 = vpop.f32.mrb[0].mxu0
        %v7305 = vpop.f32.mrb[0].mxu0
        %v7306 = vadd.f32 0.0, %v7305
        %v7307 = vpop.f32.mrb[0].mxu0
        %7308 = vmatprep.mubr.bf16.mxu0 %v4791
        %7309 = vmatmul.mubr.bf16.gmra.mrb[0].mxu0 %v4664
        %v7310 = vpop.f32.mrb[0].mxu0
        %v7311 = vadd.f32 0.0, %v7310
        %v7312 = vpop.f32.mrb[0].mxu0
        %v7313 = vpop.f32.mrb[0].mxu0
        %v7314 = vadd.f32 0.0, %v7313
        %v7315 = vpop.f32.mrb[0].mxu0
        %7316 = vmatprep.mubr.bf16.mxu0 %v4794
        %7317 = vmatmul.mubr.bf16.gmra.mrb[0].mxu0 %v4681
        %v7318 = vpop.f32.mrb[0].mxu0
        %v7319 = vadd.f32 0.0, %v7318
        %v7320 = vpop.f32.mrb[0].mxu0
        %v7321 = vpop.f32.mrb[0].mxu0
        %v7322 = vadd.f32 0.0, %v7321
        %v7323 = vpop.f32.mrb[0].mxu0
        %7324 = vdwg.mxu0
        %7325 = vmatprep.subr.bf16.mxu0 0
        %7326 = vmatpush1.bf16.msra.mxu0 %v7036
        %7327 = vmatprep.subr.bf16.mxu0 0
        %7328 = vmatpush1.bf16.msra.mxu0 %v7037
        %7329 = vmatprep.subr.bf16.mxu0 0
        %7330 = vmatpush1.bf16.msra.mxu0 %v7038
        %7331 = vmatprep.subr.bf16.mxu0 0
        %7332 = vmatpush1.bf16.msra.mxu0 %v7039
        %7333 = vmatprep.subr.bf16.mxu0 0
        %7334 = vmatpush1.bf16.msra.mxu0 %v7040
        %7335 = vmatprep.subr.bf16.mxu0 0
        %7336 = vmatpush1.bf16.msra.mxu0 %v7041
        %7337 = vmatprep.subr.bf16.mxu0 0
        %7338 = vmatpush1.bf16.msra.mxu0 %v7042
        %7339 = vmatprep.subr.bf16.mxu0 0
        %7340 = vmatpush1.bf16.msra.mxu0 %v7043
        %7341 = vmatprep.subr.bf16.mxu0 0
        %7342 = vmatpush1.bf16.msra.mxu0 %v7044
        %7343 = vmatprep.subr.bf16.mxu0 0
        %7344 = vmatpush1.bf16.msra.mxu0 %v7045
        %7345 = vmatprep.subr.bf16.mxu0 0
        %7346 = vmatpush1.bf16.msra.mxu0 %v7046
        %7347 = vmatprep.subr.bf16.mxu0 0
        %7348 = vmatpush1.bf16.msra.mxu0 %v7047
        %7349 = vmatprep.subr.bf16.mxu0 0
        %7350 = vmatpush1.bf16.msra.mxu0 %v7048
        %7351 = vmatprep.subr.bf16.mxu0 0
        %7352 = vmatpush1.bf16.msra.mxu0 %v7049
        %7353 = vmatprep.subr.bf16.mxu0 0
        %7354 = vmatpush1.bf16.msra.mxu0 %v7050
        %7355 = vmatprep.subr.bf16.mxu0 0
        %7356 = vmatpush1.bf16.msra.mxu0 %v7051
        %7357 = vmatprep.mubr.bf16.mxu0 %v5163
        %7358 = vmatmul.mubr.bf16.gmra.mrb[0].mxu0 %v4843
        %v7359 = vpop.f32.mrb[0].mxu0
        %v7360 = vadd.f32 %v7199, %v7359
        %v7361 = vpop.f32.mrb[0].mxu0
        %v7362 = vpop.f32.mrb[0].mxu0
        %v7363 = vadd.f32 %v7202, %v7362
        %v7364 = vpop.f32.mrb[0].mxu0
        %7365 = vmatprep.mubr.bf16.mxu0 %v5180
        %7366 = vmatmul.mubr.bf16.gmra.mrb[0].mxu0 %v4860
        %v7367 = vpop.f32.mrb[0].mxu0
        %v7368 = vadd.f32 %v7207, %v7367
        %v7369 = vpop.f32.mrb[0].mxu0
        %v7370 = vpop.f32.mrb[0].mxu0
        %v7371 = vadd.f32 %v7210, %v7370
        %v7372 = vpop.f32.mrb[0].mxu0
        %7373 = vmatprep.mubr.bf16.mxu0 %v5197
        %7374 = vmatmul.mubr.bf16.gmra.mrb[0].mxu0 %v4877
        %v7375 = vpop.f32.mrb[0].mxu0
        %v7376 = vadd.f32 %v7215, %v7375
        %v7377 = vpop.f32.mrb[0].mxu0
        %v7378 = vpop.f32.mrb[0].mxu0
        %v7379 = vadd.f32 %v7218, %v7378
        %v7380 = vpop.f32.mrb[0].mxu0
        %7381 = vmatprep.mubr.bf16.mxu0 %v5214
        %7382 = vmatmul.mubr.bf16.gmra.mrb[0].mxu0 %v4894
        %v7383 = vpop.f32.mrb[0].mxu0
        %v7384 = vadd.f32 %v7223, %v7383
        %v7385 = vpop.f32.mrb[0].mxu0
        %v7386 = vpop.f32.mrb[0].mxu0
        %v7387 = vadd.f32 %v7226, %v7386
        %v7388 = vpop.f32.mrb[0].mxu0
        %7389 = vmatprep.mubr.bf16.mxu0 %v5231
        %7390 = vmatmul.mubr.bf16.gmra.mrb[0].mxu0 %v4911
        %v7391 = vpop.f32.mrb[0].mxu0
        %v7392 = vadd.f32 %v7231, %v7391
        %v7393 = vpop.f32.mrb[0].mxu0
        %v7394 = vpop.f32.mrb[0].mxu0
        %v7395 = vadd.f32 %v7234, %v7394
        %v7396 = vpop.f32.mrb[0].mxu0
        %7397 = vmatprep.mubr.bf16.mxu0 %v5248
        %7398 = vmatmul.mubr.bf16.gmra.mrb[0].mxu0 %v4928
        %v7399 = vpop.f32.mrb[0].mxu0
        %v7400 = vadd.f32 %v7239, %v7399
        %v7401 = vpop.f32.mrb[0].mxu0
        %v7402 = vpop.f32.mrb[0].mxu0
        %v7403 = vadd.f32 %v7242, %v7402
        %v7404 = vpop.f32.mrb[0].mxu0
        %7405 = vmatprep.mubr.bf16.mxu0 %v5265
        %7406 = vmatmul.mubr.bf16.gmra.mrb[0].mxu0 %v4945
        %v7407 = vpop.f32.mrb[0].mxu0
        %v7408 = vadd.f32 %v7247, %v7407
        %v7409 = vpop.f32.mrb[0].mxu0
        %v7410 = vpop.f32.mrb[0].mxu0
        %v7411 = vadd.f32 %v7250, %v7410
        %v7412 = vpop.f32.mrb[0].mxu0
        %7413 = vmatprep.mubr.bf16.mxu0 %v5282
        %7414 = vmatmul.mubr.bf16.gmra.mrb[0].mxu0 %v4962
        %v7415 = vpop.f32.mrb[0].mxu0
        %v7416 = vadd.f32 %v7255, %v7415
        %v7417 = vpop.f32.mrb[0].mxu0
        %v7418 = vpop.f32.mrb[0].mxu0
        %v7419 = vadd.f32 %v7258, %v7418
        %v7420 = vpop.f32.mrb[0].mxu0
        %7421 = vmatprep.mubr.bf16.mxu0 %v5299
        %7422 = vmatmul.mubr.bf16.gmra.mrb[0].mxu0 %v4979
        %v7423 = vpop.f32.mrb[0].mxu0
        %v7424 = vadd.f32 %v7263, %v7423
        %v7425 = vpop.f32.mrb[0].mxu0
        %v7426 = vpop.f32.mrb[0].mxu0
        %v7427 = vadd.f32 %v7266, %v7426
        %v7428 = vpop.f32.mrb[0].mxu0
        %7429 = vmatprep.mubr.bf16.mxu0 %v5316
        %7430 = vmatmul.mubr.bf16.gmra.mrb[0].mxu0 %v4996
        %v7431 = vpop.f32.mrb[0].mxu0
        %v7432 = vadd.f32 %v7271, %v7431
        %v7433 = vpop.f32.mrb[0].mxu0
        %v7434 = vpop.f32.mrb[0].mxu0
        %v7435 = vadd.f32 %v7274, %v7434
        %v7436 = vpop.f32.mrb[0].mxu0
        %7437 = vmatprep.mubr.bf16.mxu0 %v5333
        %7438 = vmatmul.mubr.bf16.gmra.mrb[0].mxu0 %v5013
        %v7439 = vpop.f32.mrb[0].mxu0
        %v7440 = vadd.f32 %v7279, %v7439
        %v7441 = vpop.f32.mrb[0].mxu0
        %v7442 = vpop.f32.mrb[0].mxu0
        %v7443 = vadd.f32 %v7282, %v7442
        %v7444 = vpop.f32.mrb[0].mxu0
        %7445 = vmatprep.mubr.bf16.mxu0 %v5350
        %7446 = vmatmul.mubr.bf16.gmra.mrb[0].mxu0 %v5030
        %v7447 = vpop.f32.mrb[0].mxu0
        %v7448 = vadd.f32 %v7287, %v7447
        %v7449 = vpop.f32.mrb[0].mxu0
        %v7450 = vpop.f32.mrb[0].mxu0
        %v7451 = vadd.f32 %v7290, %v7450
        %v7452 = vpop.f32.mrb[0].mxu0
        %7453 = vmatprep.mubr.bf16.mxu0 %v5367
        %7454 = vmatmul.mubr.bf16.gmra.mrb[0].mxu0 %v5047
        %v7455 = vpop.f32.mrb[0].mxu0
        %v7456 = vadd.f32 %v7295, %v7455
        %v7457 = vpop.f32.mrb[0].mxu0
        %v7458 = vpop.f32.mrb[0].mxu0
        %v7459 = vadd.f32 %v7298, %v7458
        %v7460 = vpop.f32.mrb[0].mxu0
        %7461 = vmatprep.mubr.bf16.mxu0 %v5384
        %7462 = vmatmul.mubr.bf16.gmra.mrb[0].mxu0 %v5064
        %v7463 = vpop.f32.mrb[0].mxu0
        %v7464 = vadd.f32 %v7303, %v7463
        %v7465 = vpop.f32.mrb[0].mxu0
        %v7466 = vpop.f32.mrb[0].mxu0
        %v7467 = vadd.f32 %v7306, %v7466
        %v7468 = vpop.f32.mrb[0].mxu0
        %7469 = vmatprep.mubr.bf16.mxu0 %v5401
        %7470 = vmatmul.mubr.bf16.gmra.mrb[0].mxu0 %v5081
        %v7471 = vpop.f32.mrb[0].mxu0
        %v7472 = vadd.f32 %v7311, %v7471
        %v7473 = vpop.f32.mrb[0].mxu0
        %v7474 = vpop.f32.mrb[0].mxu0
        %v7475 = vadd.f32 %v7314, %v7474
        %v7476 = vpop.f32.mrb[0].mxu0
        %7477 = vmatprep.mubr.bf16.mxu0 %v5418
        %7478 = vmatmul.mubr.bf16.gmra.mrb[0].mxu0 %v5098
        %v7479 = vpop.f32.mrb[0].mxu0
        %v7480 = vadd.f32 %v7319, %v7479
        %v7481 = vpop.f32.mrb[0].mxu0
        %v7482 = vpop.f32.mrb[0].mxu0
        %v7483 = vadd.f32 %v7322, %v7482
        %v7484 = vpop.f32.mrb[0].mxu0
        %7485 = vdwg.mxu0
        %7486 = vmatprep.subr.bf16.mxu0 0
        %7487 = vmatpush1.bf16.msra.mxu0 %v7052
        %7488 = vmatprep.subr.bf16.mxu0 0
        %7489 = vmatpush1.bf16.msra.mxu0 %v7053
        %7490 = vmatprep.subr.bf16.mxu0 0
        %7491 = vmatpush1.bf16.msra.mxu0 %v7054
        %7492 = vmatprep.subr.bf16.mxu0 0
        %7493 = vmatpush1.bf16.msra.mxu0 %v7055
        %7494 = vmatprep.subr.bf16.mxu0 0
        %7495 = vmatpush1.bf16.msra.mxu0 %v7056
        %7496 = vmatprep.subr.bf16.mxu0 0
        %7497 = vmatpush1.bf16.msra.mxu0 %v7057
        %7498 = vmatprep.subr.bf16.mxu0 0
        %7499 = vmatpush1.bf16.msra.mxu0 %v7058
        %7500 = vmatprep.subr.bf16.mxu0 0
        %7501 = vmatpush1.bf16.msra.mxu0 %v7059
        %7502 = vmatprep.subr.bf16.mxu0 0
        %7503 = vmatpush1.bf16.msra.mxu0 %v7060
        %7504 = vmatprep.subr.bf16.mxu0 0
        %7505 = vmatpush1.bf16.msra.mxu0 %v7061
        %7506 = vmatprep.subr.bf16.mxu0 0
        %7507 = vmatpush1.bf16.msra.mxu0 %v7062
        %7508 = vmatprep.subr.bf16.mxu0 0
        %7509 = vmatpush1.bf16.msra.mxu0 %v7063
        %7510 = vmatprep.subr.bf16.mxu0 0
        %7511 = vmatpush1.bf16.msra.mxu0 %v7064
        %7512 = vmatprep.subr.bf16.mxu0 0
        %7513 = vmatpush1.bf16.msra.mxu0 %v7065
        %7514 = vmatprep.subr.bf16.mxu0 0
        %7515 = vmatpush1.bf16.msra.mxu0 %v7066
        %7516 = vmatprep.subr.bf16.mxu0 0
        %7517 = vmatpush1.bf16.msra.mxu0 %v7067
        %7518 = vmatprep.mubr.bf16.mxu0 %v5579
        %7519 = vmatmul.mubr.bf16.gmra.mrb[0].mxu0 %v5485
        %v7520 = vpop.f32.mrb[0].mxu0
        %v7521 = vadd.f32 %v7360, %v7520
        %v7522 = vpop.f32.mrb[0].mxu0
        %v7523 = vpop.f32.mrb[0].mxu0
        %v7524 = vadd.f32 %v7363, %v7523
        %v7525 = vpop.f32.mrb[0].mxu0
        %7526 = vmatprep.mubr.bf16.mxu0 %v5596
        %7527 = vmatmul.mubr.bf16.gmra.mrb[0].mxu0 %v5488
        %v7528 = vpop.f32.mrb[0].mxu0
        %v7529 = vadd.f32 %v7368, %v7528
        %v7530 = vpop.f32.mrb[0].mxu0
        %v7531 = vpop.f32.mrb[0].mxu0
        %v7532 = vadd.f32 %v7371, %v7531
        %v7533 = vpop.f32.mrb[0].mxu0
        %7534 = vmatprep.mubr.bf16.mxu0 %v5613
        %7535 = vmatmul.mubr.bf16.gmra.mrb[0].mxu0 %v5491
        %v7536 = vpop.f32.mrb[0].mxu0
        %v7537 = vadd.f32 %v7376, %v7536
        %v7538 = vpop.f32.mrb[0].mxu0
        %v7539 = vpop.f32.mrb[0].mxu0
        %v7540 = vadd.f32 %v7379, %v7539
        %v7541 = vpop.f32.mrb[0].mxu0
        %7542 = vmatprep.mubr.bf16.mxu0 %v5630
        %7543 = vmatmul.mubr.bf16.gmra.mrb[0].mxu0 %v5494
        %v7544 = vpop.f32.mrb[0].mxu0
        %v7545 = vadd.f32 %v7384, %v7544
        %v7546 = vpop.f32.mrb[0].mxu0
        %v7547 = vpop.f32.mrb[0].mxu0
        %v7548 = vadd.f32 %v7387, %v7547
        %v7549 = vpop.f32.mrb[0].mxu0
        %7550 = vmatprep.mubr.bf16.mxu0 %v5647
        %7551 = vmatmul.mubr.bf16.gmra.mrb[0].mxu0 %v5497
        %v7552 = vpop.f32.mrb[0].mxu0
        %v7553 = vadd.f32 %v7392, %v7552
        %v7554 = vpop.f32.mrb[0].mxu0
        %v7555 = vpop.f32.mrb[0].mxu0
        %v7556 = vadd.f32 %v7395, %v7555
        %v7557 = vpop.f32.mrb[0].mxu0
        %7558 = vmatprep.mubr.bf16.mxu0 %v5664
        %7559 = vmatmul.mubr.bf16.gmra.mrb[0].mxu0 %v5500
        %v7560 = vpop.f32.mrb[0].mxu0
        %v7561 = vadd.f32 %v7400, %v7560
        %v7562 = vpop.f32.mrb[0].mxu0
        %v7563 = vpop.f32.mrb[0].mxu0
        %v7564 = vadd.f32 %v7403, %v7563
        %v7565 = vpop.f32.mrb[0].mxu0
        %7566 = vmatprep.mubr.bf16.mxu0 %v5681
        %7567 = vmatmul.mubr.bf16.gmra.mrb[0].mxu0 %v5503
        %v7568 = vpop.f32.mrb[0].mxu0
        %v7569 = vadd.f32 %v7408, %v7568
        %v7570 = vpop.f32.mrb[0].mxu0
        %v7571 = vpop.f32.mrb[0].mxu0
        %v7572 = vadd.f32 %v7411, %v7571
        %v7573 = vpop.f32.mrb[0].mxu0
        %7574 = vmatprep.mubr.bf16.mxu0 %v5698
        %7575 = vmatmul.mubr.bf16.gmra.mrb[0].mxu0 %v5506
        %v7576 = vpop.f32.mrb[0].mxu0
        %v7577 = vadd.f32 %v7416, %v7576
        %v7578 = vpop.f32.mrb[0].mxu0
        %v7579 = vpop.f32.mrb[0].mxu0
        %v7580 = vadd.f32 %v7419, %v7579
        %v7581 = vpop.f32.mrb[0].mxu0
        %7582 = vmatprep.mubr.bf16.mxu0 %v5715
        %7583 = vmatmul.mubr.bf16.gmra.mrb[0].mxu0 %v5509
        %v7584 = vpop.f32.mrb[0].mxu0
        %v7585 = vadd.f32 %v7424, %v7584
        %v7586 = vpop.f32.mrb[0].mxu0
        %v7587 = vpop.f32.mrb[0].mxu0
        %v7588 = vadd.f32 %v7427, %v7587
        %v7589 = vpop.f32.mrb[0].mxu0
        %7590 = vmatprep.mubr.bf16.mxu0 %v5732
        %7591 = vmatmul.mubr.bf16.gmra.mrb[0].mxu0 %v5512
        %v7592 = vpop.f32.mrb[0].mxu0
        %v7593 = vadd.f32 %v7432, %v7592
        %v7594 = vpop.f32.mrb[0].mxu0
        %v7595 = vpop.f32.mrb[0].mxu0
        %v7596 = vadd.f32 %v7435, %v7595
        %v7597 = vpop.f32.mrb[0].mxu0
        %7598 = vmatprep.mubr.bf16.mxu0 %v5749
        %7599 = vmatmul.mubr.bf16.gmra.mrb[0].mxu0 %v5515
        %v7600 = vpop.f32.mrb[0].mxu0
        %v7601 = vadd.f32 %v7440, %v7600
        %v7602 = vpop.f32.mrb[0].mxu0
        %v7603 = vpop.f32.mrb[0].mxu0
        %v7604 = vadd.f32 %v7443, %v7603
        %v7605 = vpop.f32.mrb[0].mxu0
        %7606 = vmatprep.mubr.bf16.mxu0 %v5766
        %7607 = vmatmul.mubr.bf16.gmra.mrb[0].mxu0 %v5518
        %v7608 = vpop.f32.mrb[0].mxu0
        %v7609 = vadd.f32 %v7448, %v7608
        %v7610 = vpop.f32.mrb[0].mxu0
        %v7611 = vpop.f32.mrb[0].mxu0
        %v7612 = vadd.f32 %v7451, %v7611
        %v7613 = vpop.f32.mrb[0].mxu0
        %7614 = vmatprep.mubr.bf16.mxu0 %v5783
        %7615 = vmatmul.mubr.bf16.gmra.mrb[0].mxu0 %v5521
        %v7616 = vpop.f32.mrb[0].mxu0
        %v7617 = vadd.f32 %v7456, %v7616
        %v7618 = vpop.f32.mrb[0].mxu0
        %v7619 = vpop.f32.mrb[0].mxu0
        %v7620 = vadd.f32 %v7459, %v7619
        %v7621 = vpop.f32.mrb[0].mxu0
        %7622 = vmatprep.mubr.bf16.mxu0 %v5800
        %7623 = vmatmul.mubr.bf16.gmra.mrb[0].mxu0 %v5524
        %v7624 = vpop.f32.mrb[0].mxu0
        %v7625 = vadd.f32 %v7464, %v7624
        %v7626 = vpop.f32.mrb[0].mxu0
        %v7627 = vpop.f32.mrb[0].mxu0
        %v7628 = vadd.f32 %v7467, %v7627
        %v7629 = vpop.f32.mrb[0].mxu0
        %7630 = vmatprep.mubr.bf16.mxu0 %v5817
        %7631 = vmatmul.mubr.bf16.gmra.mrb[0].mxu0 %v5527
        %v7632 = vpop.f32.mrb[0].mxu0
        %v7633 = vadd.f32 %v7472, %v7632
        %v7634 = vpop.f32.mrb[0].mxu0
        %v7635 = vpop.f32.mrb[0].mxu0
        %v7636 = vadd.f32 %v7475, %v7635
        %v7637 = vpop.f32.mrb[0].mxu0
        %7638 = vmatprep.mubr.bf16.mxu0 %v5834
        %7639 = vmatmul.mubr.bf16.gmra.mrb[0].mxu0 %v5530
        %v7640 = vpop.f32.mrb[0].mxu0
        %v7641 = vadd.f32 %v7480, %v7640
        %v7642 = vpop.f32.mrb[0].mxu0
        %v7643 = vpop.f32.mrb[0].mxu0
        %v7644 = vadd.f32 %v7483, %v7643
        %v7645 = vpop.f32.mrb[0].mxu0
        %7646 = vdwg.mxu0
        %7647 = vmatprep.subr.bf16.mxu0 0
        %7648 = vmatpush1.bf16.msra.mxu0 %v7068
        %7649 = vmatprep.subr.bf16.mxu0 0
        %7650 = vmatpush1.bf16.msra.mxu0 %v7069
        %7651 = vmatprep.subr.bf16.mxu0 0
        %7652 = vmatpush1.bf16.msra.mxu0 %v7070
        %7653 = vmatprep.subr.bf16.mxu0 0
        %7654 = vmatpush1.bf16.msra.mxu0 %v7071
        %7655 = vmatprep.subr.bf16.mxu0 0
        %7656 = vmatpush1.bf16.msra.mxu0 %v7072
        %7657 = vmatprep.subr.bf16.mxu0 0
        %7658 = vmatpush1.bf16.msra.mxu0 %v7073
        %7659 = vmatprep.subr.bf16.mxu0 0
        %7660 = vmatpush1.bf16.msra.mxu0 %v7074
        %7661 = vmatprep.subr.bf16.mxu0 0
        %7662 = vmatpush1.bf16.msra.mxu0 %v7075
        %7663 = vmatprep.subr.bf16.mxu0 0
        %7664 = vmatpush1.bf16.msra.mxu0 %v7076
        %7665 = vmatprep.subr.bf16.mxu0 0
        %7666 = vmatpush1.bf16.msra.mxu0 %v7077
        %7667 = vmatprep.subr.bf16.mxu0 0
        %7668 = vmatpush1.bf16.msra.mxu0 %v7078
        %7669 = vmatprep.subr.bf16.mxu0 0
        %7670 = vmatpush1.bf16.msra.mxu0 %v7079
        %7671 = vmatprep.subr.bf16.mxu0 0
        %7672 = vmatpush1.bf16.msra.mxu0 %v7080
        %7673 = vmatprep.subr.bf16.mxu0 0
        %7674 = vmatpush1.bf16.msra.mxu0 %v7081
        %7675 = vmatprep.subr.bf16.mxu0 0
        %7676 = vmatpush1.bf16.msra.mxu0 %v7082
        %7677 = vmatprep.subr.bf16.mxu0 0
        %7678 = vmatpush1.bf16.msra.mxu0 %v7083
        %7679 = vmatprep.mubr.bf16.mxu0 %v6222
        %7680 = vmatmul.mubr.bf16.gmra.mrb[0].mxu0 %v5900
        %v7681 = vpop.f32.mrb[0].mxu0
        %v7682 = vadd.f32 %v7521, %v7681
        %v7683 = vpop.f32.mrb[0].mxu0
        %v7684 = vpop.f32.mrb[0].mxu0
        %v7685 = vadd.f32 %v7524, %v7684
        %v7686 = vpop.f32.mrb[0].mxu0
        %7687 = vmatprep.mubr.bf16.mxu0 %v6225
        %7688 = vmatmul.mubr.bf16.gmra.mrb[0].mxu0 %v5917
        %v7689 = vpop.f32.mrb[0].mxu0
        %v7690 = vadd.f32 %v7529, %v7689
        %v7691 = vpop.f32.mrb[0].mxu0
        %v7692 = vpop.f32.mrb[0].mxu0
        %v7693 = vadd.f32 %v7532, %v7692
        %v7694 = vpop.f32.mrb[0].mxu0
        %7695 = vmatprep.mubr.bf16.mxu0 %v6228
        %7696 = vmatmul.mubr.bf16.gmra.mrb[0].mxu0 %v5934
        %v7697 = vpop.f32.mrb[0].mxu0
        %v7698 = vadd.f32 %v7537, %v7697
        %v7699 = vpop.f32.mrb[0].mxu0
        %v7700 = vpop.f32.mrb[0].mxu0
        %v7701 = vadd.f32 %v7540, %v7700
        %v7702 = vpop.f32.mrb[0].mxu0
        %7703 = vmatprep.mubr.bf16.mxu0 %v6231
        %7704 = vmatmul.mubr.bf16.gmra.mrb[0].mxu0 %v5951
        %v7705 = vpop.f32.mrb[0].mxu0
        %v7706 = vadd.f32 %v7545, %v7705
        %v7707 = vpop.f32.mrb[0].mxu0
        %v7708 = vpop.f32.mrb[0].mxu0
        %v7709 = vadd.f32 %v7548, %v7708
        %v7710 = vpop.f32.mrb[0].mxu0
        %7711 = vmatprep.mubr.bf16.mxu0 %v6234
        %7712 = vmatmul.mubr.bf16.gmra.mrb[0].mxu0 %v5968
        %v7713 = vpop.f32.mrb[0].mxu0
        %v7714 = vadd.f32 %v7553, %v7713
        %v7715 = vpop.f32.mrb[0].mxu0
        %v7716 = vpop.f32.mrb[0].mxu0
        %v7717 = vadd.f32 %v7556, %v7716
        %v7718 = vpop.f32.mrb[0].mxu0
        %7719 = vmatprep.mubr.bf16.mxu0 %v6237
        %7720 = vmatmul.mubr.bf16.gmra.mrb[0].mxu0 %v5985
        %v7721 = vpop.f32.mrb[0].mxu0
        %v7722 = vadd.f32 %v7561, %v7721
        %v7723 = vpop.f32.mrb[0].mxu0
        %v7724 = vpop.f32.mrb[0].mxu0
        %v7725 = vadd.f32 %v7564, %v7724
        %v7726 = vpop.f32.mrb[0].mxu0
        %7727 = vmatprep.mubr.bf16.mxu0 %v6240
        %7728 = vmatmul.mubr.bf16.gmra.mrb[0].mxu0 %v6002
        %v7729 = vpop.f32.mrb[0].mxu0
        %v7730 = vadd.f32 %v7569, %v7729
        %v7731 = vpop.f32.mrb[0].mxu0
        %v7732 = vpop.f32.mrb[0].mxu0
        %v7733 = vadd.f32 %v7572, %v7732
        %v7734 = vpop.f32.mrb[0].mxu0
        %7735 = vmatprep.mubr.bf16.mxu0 %v6243
        %7736 = vmatmul.mubr.bf16.gmra.mrb[0].mxu0 %v6019
        %v7737 = vpop.f32.mrb[0].mxu0
        %v7738 = vadd.f32 %v7577, %v7737
        %v7739 = vpop.f32.mrb[0].mxu0
        %v7740 = vpop.f32.mrb[0].mxu0
        %v7741 = vadd.f32 %v7580, %v7740
        %v7742 = vpop.f32.mrb[0].mxu0
        %7743 = vmatprep.mubr.bf16.mxu0 %v6246
        %7744 = vmatmul.mubr.bf16.gmra.mrb[0].mxu0 %v6036
        %v7745 = vpop.f32.mrb[0].mxu0
        %v7746 = vadd.f32 %v7585, %v7745
        %v7747 = vpop.f32.mrb[0].mxu0
        %v7748 = vpop.f32.mrb[0].mxu0
        %v7749 = vadd.f32 %v7588, %v7748
        %v7750 = vpop.f32.mrb[0].mxu0
        %7751 = vmatprep.mubr.bf16.mxu0 %v6249
        %7752 = vmatmul.mubr.bf16.gmra.mrb[0].mxu0 %v6053
        %v7753 = vpop.f32.mrb[0].mxu0
        %v7754 = vadd.f32 %v7593, %v7753
        %v7755 = vpop.f32.mrb[0].mxu0
        %v7756 = vpop.f32.mrb[0].mxu0
        %v7757 = vadd.f32 %v7596, %v7756
        %v7758 = vpop.f32.mrb[0].mxu0
        %7759 = vmatprep.mubr.bf16.mxu0 %v6252
        %7760 = vmatmul.mubr.bf16.gmra.mrb[0].mxu0 %v6070
        %v7761 = vpop.f32.mrb[0].mxu0
        %v7762 = vadd.f32 %v7601, %v7761
        %v7763 = vpop.f32.mrb[0].mxu0
        %v7764 = vpop.f32.mrb[0].mxu0
        %v7765 = vadd.f32 %v7604, %v7764
        %v7766 = vpop.f32.mrb[0].mxu0
        %7767 = vmatprep.mubr.bf16.mxu0 %v6255
        %7768 = vmatmul.mubr.bf16.gmra.mrb[0].mxu0 %v6087
        %v7769 = vpop.f32.mrb[0].mxu0
        %v7770 = vadd.f32 %v7609, %v7769
        %v7771 = vpop.f32.mrb[0].mxu0
        %v7772 = vpop.f32.mrb[0].mxu0
        %v7773 = vadd.f32 %v7612, %v7772
        %v7774 = vpop.f32.mrb[0].mxu0
        %7775 = vmatprep.mubr.bf16.mxu0 %v6258
        %7776 = vmatmul.mubr.bf16.gmra.mrb[0].mxu0 %v6104
        %v7777 = vpop.f32.mrb[0].mxu0
        %v7778 = vadd.f32 %v7617, %v7777
        %v7779 = vpop.f32.mrb[0].mxu0
        %v7780 = vpop.f32.mrb[0].mxu0
        %v7781 = vadd.f32 %v7620, %v7780
        %v7782 = vpop.f32.mrb[0].mxu0
        %7783 = vmatprep.mubr.bf16.mxu0 %v6261
        %7784 = vmatmul.mubr.bf16.gmra.mrb[0].mxu0 %v6121
        %v7785 = vpop.f32.mrb[0].mxu0
        %v7786 = vadd.f32 %v7625, %v7785
        %v7787 = vpop.f32.mrb[0].mxu0
        %v7788 = vpop.f32.mrb[0].mxu0
        %v7789 = vadd.f32 %v7628, %v7788
        %v7790 = vpop.f32.mrb[0].mxu0
        %7791 = vmatprep.mubr.bf16.mxu0 %v6264
        %7792 = vmatmul.mubr.bf16.gmra.mrb[0].mxu0 %v6138
        %v7793 = vpop.f32.mrb[0].mxu0
        %v7794 = vadd.f32 %v7633, %v7793
        %v7795 = vpop.f32.mrb[0].mxu0
        %v7796 = vpop.f32.mrb[0].mxu0
        %v7797 = vadd.f32 %v7636, %v7796
        %v7798 = vpop.f32.mrb[0].mxu0
        %7799 = vmatprep.mubr.bf16.mxu0 %v6267
        %7800 = vmatmul.mubr.bf16.gmra.mrb[0].mxu0 %v6155
        %v7801 = vpop.f32.mrb[0].mxu0
        %v7802 = vadd.f32 %v7641, %v7801
        %v7803 = vpop.f32.mrb[0].mxu0
        %v7804 = vpop.f32.mrb[0].mxu0
        %v7805 = vadd.f32 %v7644, %v7804
        %v7806 = vpop.f32.mrb[0].mxu0
        %7807 = vdwg.mxu0
        %7808 = vmatprep.subr.bf16.mxu0 0
        %7809 = vmatpush1.bf16.msra.mxu0 %v7084
        %7810 = vmatprep.subr.bf16.mxu0 0
        %7811 = vmatpush1.bf16.msra.mxu0 %v7085
        %7812 = vmatprep.subr.bf16.mxu0 0
        %7813 = vmatpush1.bf16.msra.mxu0 %v7086
        %7814 = vmatprep.subr.bf16.mxu0 0
        %7815 = vmatpush1.bf16.msra.mxu0 %v7087
        %7816 = vmatprep.subr.bf16.mxu0 0
        %7817 = vmatpush1.bf16.msra.mxu0 %v7088
        %7818 = vmatprep.subr.bf16.mxu0 0
        %7819 = vmatpush1.bf16.msra.mxu0 %v7089
        %7820 = vmatprep.subr.bf16.mxu0 0
        %7821 = vmatpush1.bf16.msra.mxu0 %v7090
        %7822 = vmatprep.subr.bf16.mxu0 0
        %7823 = vmatpush1.bf16.msra.mxu0 %v7091
        %7824 = vmatprep.subr.bf16.mxu0 0
        %7825 = vmatpush1.bf16.msra.mxu0 0
        %7826 = vmatprep.subr.bf16.mxu0 0
        %7827 = vmatpush1.bf16.msra.mxu0 0
        %7828 = vmatprep.subr.bf16.mxu0 0
        %7829 = vmatpush1.bf16.msra.mxu0 0
        %7830 = vmatprep.subr.bf16.mxu0 0
        %7831 = vmatpush1.bf16.msra.mxu0 0
        %7832 = vmatprep.subr.bf16.mxu0 0
        %7833 = vmatpush1.bf16.msra.mxu0 0
        %7834 = vmatprep.subr.bf16.mxu0 0
        %7835 = vmatpush1.bf16.msra.mxu0 0
        %7836 = vmatprep.subr.bf16.mxu0 0
        %7837 = vmatpush1.bf16.msra.mxu0 0
        %7838 = vmatprep.subr.bf16.mxu0 0
        %7839 = vmatpush1.bf16.msra.mxu0 0
        %7840 = vmatprep.mubr.bf16.mxu0 0
        %7841 = vmatmul.mubr.bf16.gmra.mrb[0].mxu0 %v6316
        %v7842 = vpop.f32.mrb[0].mxu0
        %v7843 = vadd.f32 %v7682, %v7842
        %v7844 = vpop.f32.mrb[0].mxu0
        %v7845 = vpop.f32.mrb[0].mxu0
        %v7846 = vadd.f32 %v7685, %v7845
        %v7847 = vpop.f32.mrb[0].mxu0
        %7848 = vmatprep.mubr.bf16.mxu0 0
        %7849 = vmatmul.mubr.bf16.gmra.mrb[0].mxu0 %v6333
        %v7850 = vpop.f32.mrb[0].mxu0
        %v7851 = vadd.f32 %v7690, %v7850
        %v7852 = vpop.f32.mrb[0].mxu0
        %v7853 = vpop.f32.mrb[0].mxu0
        %v7854 = vadd.f32 %v7693, %v7853
        %v7855 = vpop.f32.mrb[0].mxu0
        %7856 = vmatprep.mubr.bf16.mxu0 0
        %7857 = vmatmul.mubr.bf16.gmra.mrb[0].mxu0 %v6350
        %v7858 = vpop.f32.mrb[0].mxu0
        %v7859 = vadd.f32 %v7698, %v7858
        %v7860 = vpop.f32.mrb[0].mxu0
        %v7861 = vpop.f32.mrb[0].mxu0
        %v7862 = vadd.f32 %v7701, %v7861
        %v7863 = vpop.f32.mrb[0].mxu0
        %7864 = vmatprep.mubr.bf16.mxu0 0
        %7865 = vmatmul.mubr.bf16.gmra.mrb[0].mxu0 %v6367
        %v7866 = vpop.f32.mrb[0].mxu0
        %v7867 = vadd.f32 %v7706, %v7866
        %v7868 = vpop.f32.mrb[0].mxu0
        %v7869 = vpop.f32.mrb[0].mxu0
        %v7870 = vadd.f32 %v7709, %v7869
        %v7871 = vpop.f32.mrb[0].mxu0
        %7872 = vmatprep.mubr.bf16.mxu0 0
        %7873 = vmatmul.mubr.bf16.gmra.mrb[0].mxu0 %v6384
        %v7874 = vpop.f32.mrb[0].mxu0
        %v7875 = vadd.f32 %v7714, %v7874
        %v7876 = vpop.f32.mrb[0].mxu0
        %v7877 = vpop.f32.mrb[0].mxu0
        %v7878 = vadd.f32 %v7717, %v7877
        %v7879 = vpop.f32.mrb[0].mxu0
        %7880 = vmatprep.mubr.bf16.mxu0 0
        %7881 = vmatmul.mubr.bf16.gmra.mrb[0].mxu0 %v6401
        %v7882 = vpop.f32.mrb[0].mxu0
        %v7883 = vadd.f32 %v7722, %v7882
        %v7884 = vpop.f32.mrb[0].mxu0
        %v7885 = vpop.f32.mrb[0].mxu0
        %v7886 = vadd.f32 %v7725, %v7885
        %v7887 = vpop.f32.mrb[0].mxu0
        %7888 = vmatprep.mubr.bf16.mxu0 0
        %7889 = vmatmul.mubr.bf16.gmra.mrb[0].mxu0 %v6418
        %v7890 = vpop.f32.mrb[0].mxu0
        %v7891 = vadd.f32 %v7730, %v7890
        %v7892 = vpop.f32.mrb[0].mxu0
        %v7893 = vpop.f32.mrb[0].mxu0
        %v7894 = vadd.f32 %v7733, %v7893
        %v7895 = vpop.f32.mrb[0].mxu0
        %7896 = vmatprep.mubr.bf16.mxu0 0
        %7897 = vmatmul.mubr.bf16.gmra.mrb[0].mxu0 %v6435
        %v7898 = vpop.f32.mrb[0].mxu0
        %v7899 = vadd.f32 %v7738, %v7898
        %v7900 = vpop.f32.mrb[0].mxu0
        %v7901 = vpop.f32.mrb[0].mxu0
        %v7902 = vadd.f32 %v7741, %v7901
        %v7903 = vpop.f32.mrb[0].mxu0
        %7904 = vmatprep.mubr.bf16.mxu0 0
        %7905 = vmatmul.mubr.bf16.gmra.mrb[0].mxu0 %v6452
        %v7906 = vpop.f32.mrb[0].mxu0
        %v7907 = vadd.f32 %v7746, %v7906
        %v7908 = vpop.f32.mrb[0].mxu0
        %v7909 = vpop.f32.mrb[0].mxu0
        %v7910 = vadd.f32 %v7749, %v7909
        %v7911 = vpop.f32.mrb[0].mxu0
        %7912 = vmatprep.mubr.bf16.mxu0 0
        %7913 = vmatmul.mubr.bf16.gmra.mrb[0].mxu0 %v6469
        %v7914 = vpop.f32.mrb[0].mxu0
        %v7915 = vadd.f32 %v7754, %v7914
        %v7916 = vpop.f32.mrb[0].mxu0
        %v7917 = vpop.f32.mrb[0].mxu0
        %v7918 = vadd.f32 %v7757, %v7917
        %v7919 = vpop.f32.mrb[0].mxu0
        %7920 = vmatprep.mubr.bf16.mxu0 0
        %7921 = vmatmul.mubr.bf16.gmra.mrb[0].mxu0 %v6486
        %v7922 = vpop.f32.mrb[0].mxu0
        %v7923 = vadd.f32 %v7762, %v7922
        %v7924 = vpop.f32.mrb[0].mxu0
        %v7925 = vpop.f32.mrb[0].mxu0
        %v7926 = vadd.f32 %v7765, %v7925
        %v7927 = vpop.f32.mrb[0].mxu0
        %7928 = vmatprep.mubr.bf16.mxu0 0
        %7929 = vmatmul.mubr.bf16.gmra.mrb[0].mxu0 %v6503
        %v7930 = vpop.f32.mrb[0].mxu0
        %v7931 = vadd.f32 %v7770, %v7930
        %v7932 = vpop.f32.mrb[0].mxu0
        %v7933 = vpop.f32.mrb[0].mxu0
        %v7934 = vadd.f32 %v7773, %v7933
        %v7935 = vpop.f32.mrb[0].mxu0
        %7936 = vmatprep.mubr.bf16.mxu0 0
        %7937 = vmatmul.mubr.bf16.gmra.mrb[0].mxu0 %v6520
        %v7938 = vpop.f32.mrb[0].mxu0
        %v7939 = vadd.f32 %v7778, %v7938
        %v7940 = vpop.f32.mrb[0].mxu0
        %v7941 = vpop.f32.mrb[0].mxu0
        %v7942 = vadd.f32 %v7781, %v7941
        %v7943 = vpop.f32.mrb[0].mxu0
        %7944 = vmatprep.mubr.bf16.mxu0 0
        %7945 = vmatmul.mubr.bf16.gmra.mrb[0].mxu0 %v6537
        %v7946 = vpop.f32.mrb[0].mxu0
        %v7947 = vadd.f32 %v7786, %v7946
        %v7948 = vpop.f32.mrb[0].mxu0
        %v7949 = vpop.f32.mrb[0].mxu0
        %v7950 = vadd.f32 %v7789, %v7949
        %v7951 = vpop.f32.mrb[0].mxu0
        %7952 = vmatprep.mubr.bf16.mxu0 0
        %7953 = vmatmul.mubr.bf16.gmra.mrb[0].mxu0 %v6554
        %v7954 = vpop.f32.mrb[0].mxu0
        %v7955 = vadd.f32 %v7794, %v7954
        %v7956 = vpop.f32.mrb[0].mxu0
        %v7957 = vpop.f32.mrb[0].mxu0
        %v7958 = vadd.f32 %v7797, %v7957
        %v7959 = vpop.f32.mrb[0].mxu0
        %7960 = vmatprep.mubr.bf16.mxu0 0
        %7961 = vmatmul.mubr.bf16.gmra.mrb[0].mxu0 %v6571
        %v7962 = vpop.f32.mrb[0].mxu0
        %v7963 = vadd.f32 %v7802, %v7962
        %v7964 = vpop.f32.mrb[0].mxu0
        %v7965 = vpop.f32.mrb[0].mxu0
        %v7966 = vadd.f32 %v7805, %v7965
        %v7967 = vpop.f32.mrb[0].mxu0
        %7968 = vdwg.mxu0
        %v7969 = vld [vmem:[%s5] sm:$0x1]
        %v7971 = vlaneseq
        %v7972 = vshrl.u32 %v7971, 7
        %v7973 = vsub.s32 0, %v7972
        %v7974 = vrot.slane %v7969, %v7973
        %v7976 = vmul.f32 %v7843, %v7974
        %v7977 = vmul.f32 %v7846, %v7974
        %v7978 = vmul.f32 %v7851, %v7974
        %v7979 = vmul.f32 %v7854, %v7974
        %v7980 = vmul.f32 %v7859, %v7974
        %v7981 = vmul.f32 %v7862, %v7974
        %v7982 = vmul.f32 %v7867, %v7974
        %v7983 = vmul.f32 %v7870, %v7974
        %v7984 = vmul.f32 %v7875, %v7974
        %v7985 = vmul.f32 %v7878, %v7974
        %v7986 = vmul.f32 %v7883, %v7974
        %v7987 = vmul.f32 %v7886, %v7974
        %v7988 = vmul.f32 %v7891, %v7974
        %v7989 = vmul.f32 %v7894, %v7974
        %v7990 = vmul.f32 %v7899, %v7974
        %v7991 = vmul.f32 %v7902, %v7974
        %v7992 = vmul.f32 %v7907, %v7974
        %v7993 = vmul.f32 %v7910, %v7974
        %v7994 = vmul.f32 %v7915, %v7974
        %v7995 = vmul.f32 %v7918, %v7974
        %v7996 = vmul.f32 %v7923, %v7974
        %v7997 = vmul.f32 %v7926, %v7974
        %v7998 = vmul.f32 %v7931, %v7974
        %v7999 = vmul.f32 %v7934, %v7974
        %v8000 = vmul.f32 %v7939, %v7974
        %v8001 = vmul.f32 %v7942, %v7974
        %v8002 = vmul.f32 %v7947, %v7974
        %v8003 = vmul.f32 %v7950, %v7974
        %v8004 = vmul.f32 %v7955, %v7974
        %v8005 = vmul.f32 %v7958, %v7974
        %v8006 = vmul.f32 %v7963, %v7974
        %v8007 = vmul.f32 %v7966, %v7974
        %v8008 = vld [vmem:[%s6] sm:$0x1]
        %v8010 = vlaneseq
        %v8011 = vshrl.u32 %v8010, 7
        %v8012 = vsub.s32 0, %v8011
        %v8013 = vrot.slane %v8008, %v8012
        %v8015 = vadd.f32 %v7976, %v8013
        %v8016 = vadd.f32 %v7977, %v8013
        %v8017 = vadd.f32 %v7978, %v8013
        %v8018 = vadd.f32 %v7979, %v8013
        %v8019 = vadd.f32 %v7980, %v8013
        %v8020 = vadd.f32 %v7981, %v8013
        %v8021 = vadd.f32 %v7982, %v8013
        %v8022 = vadd.f32 %v7983, %v8013
        %v8023 = vadd.f32 %v7984, %v8013
        %v8024 = vadd.f32 %v7985, %v8013
        %v8025 = vadd.f32 %v7986, %v8013
        %v8026 = vadd.f32 %v7987, %v8013
        %v8027 = vadd.f32 %v7988, %v8013
        %v8028 = vadd.f32 %v7989, %v8013
        %v8029 = vadd.f32 %v7990, %v8013
        %v8030 = vadd.f32 %v7991, %v8013
        %v8031 = vadd.f32 %v7992, %v8013
        %v8032 = vadd.f32 %v7993, %v8013
        %v8033 = vadd.f32 %v7994, %v8013
        %v8034 = vadd.f32 %v7995, %v8013
        %v8035 = vadd.f32 %v7996, %v8013
        %v8036 = vadd.f32 %v7997, %v8013
        %v8037 = vadd.f32 %v7998, %v8013
        %v8038 = vadd.f32 %v7999, %v8013
        %v8039 = vadd.f32 %v8000, %v8013
        %v8040 = vadd.f32 %v8001, %v8013
        %v8041 = vadd.f32 %v8002, %v8013
        %v8042 = vadd.f32 %v8003, %v8013
        %v8043 = vadd.f32 %v8004, %v8013
        %v8044 = vadd.f32 %v8005, %v8013
        %v8045 = vadd.f32 %v8006, %v8013
        %v8046 = vadd.f32 %v8007, %v8013
        %v8047 = vld [vmem:[%s947] sm:$0xf]
        %v8048 = vld [vmem:[%s947 + $0x4] sm:$0xf]
        %v8049 = vld [vmem:[%s947 + $0x8] sm:$0x1]
        %v8050 = vld [vmem:[%s947 + $0xc] sm:$0xf]
        %v8051 = vld [vmem:[%s947 + $0x10] sm:$0xf]
        %v8052 = vld [vmem:[%s947 + $0x14] sm:$0x1]
        %v8053 = vld [vmem:[%s947 + $0x18] sm:$0xf]
        %v8054 = vld [vmem:[%s947 + $0x1c] sm:$0xf]
        %v8055 = vld [vmem:[%s947 + $0x20] sm:$0x1]
        %v8056 = vld [vmem:[%s947 + $0x24] sm:$0xf]
        %v8057 = vld [vmem:[%s947 + $0x28] sm:$0xf]
        %v8058 = vld [vmem:[%s947 + $0x2c] sm:$0x1]
        %v8059 = vld [vmem:[%s947 + $0x30] sm:$0xf]
        %v8060 = vld [vmem:[%s947 + $0x34] sm:$0xf]
        %v8061 = vld [vmem:[%s947 + $0x38] sm:$0x1]
        %v8062 = vld [vmem:[%s947 + $0x3c] sm:$0xf]
        %v8063 = vld [vmem:[%s947 + $0x40] sm:$0xf]
        %v8064 = vld [vmem:[%s947 + $0x44] sm:$0x1]
        %v8065 = vld [vmem:[%s947 + $0x48] sm:$0xf]
        %v8066 = vld [vmem:[%s947 + $0x4c] sm:$0xf]
        %v8067 = vld [vmem:[%s947 + $0x50] sm:$0x1]
        %v8068 = vld [vmem:[%s947 + $0x54] sm:$0xf]
        %v8069 = vld [vmem:[%s947 + $0x58] sm:$0xf]
        %v8070 = vld [vmem:[%s947 + $0x5c] sm:$0x1]
        %v8071 = vld [vmem:[%s947 + $0x60] sm:$0xf]
        %v8072 = vld [vmem:[%s947 + $0x64] sm:$0xf]
        %v8073 = vld [vmem:[%s947 + $0x68] sm:$0x1]
        %v8074 = vld [vmem:[%s947 + $0x6c] sm:$0xf]
        %v8075 = vld [vmem:[%s947 + $0x70] sm:$0xf]
        %v8076 = vld [vmem:[%s947 + $0x74] sm:$0x1]
        %v8077 = vld [vmem:[%s947 + $0x78] sm:$0xf]
        %v8078 = vld [vmem:[%s947 + $0x7c] sm:$0xf]
        %v8079 = vld [vmem:[%s947 + $0x80] sm:$0x1]
        %v8080 = vld [vmem:[%s947 + $0x84] sm:$0xf]
        %v8081 = vld [vmem:[%s947 + $0x88] sm:$0xf]
        %v8082 = vld [vmem:[%s947 + $0x8c] sm:$0x1]
        %v8083 = vld [vmem:[%s947 + $0x90] sm:$0xf]
        %v8084 = vld [vmem:[%s947 + $0x94] sm:$0xf]
        %v8085 = vld [vmem:[%s947 + $0x98] sm:$0x1]
        %v8086 = vld [vmem:[%s947 + $0x9c] sm:$0xf]
        %v8087 = vld [vmem:[%s947 + $0xa0] sm:$0xf]
        %v8088 = vld [vmem:[%s947 + $0xa4] sm:$0x1]
        %v8089 = vld [vmem:[%s947 + $0xa8] sm:$0xf]
        %v8090 = vld [vmem:[%s947 + $0xac] sm:$0xf]
        %v8091 = vld [vmem:[%s947 + $0xb0] sm:$0x1]
        %v8092 = vld [vmem:[%s947 + $0xb4] sm:$0xf]
        %v8093 = vld [vmem:[%s947 + $0xb8] sm:$0xf]
        %v8094 = vld [vmem:[%s947 + $0xbc] sm:$0x1]
        %v8096 = vshrl.u32 %v8047, 16
        %v8098 = vrot.slane %v8096, 4
        %v8099 = vshll.u32 %v8047, 16
        %v8101 = vrot.slane %v8099, 5
        %v8102 = vor.u32 %v8098, %v8101
        %v8103 = vrot.slane %v8102, 4
        %v8105 = vshll.u32 %v8048, 16
        %v8107 = vrot.slane %v8105, 5
        %v8108 = vsel %vm383, %v8103, %v8107
        %v8109 = vshrl.u32 %v8048, 16
        %v8111 = vrot.slane %v8109, 4
        %v8112 = vor.u32 %v8111, %v8107
        %v8113 = vrot.slane %v8112, 4
        %v8115 = vshll.u32 %v8049, 16
        %v8117 = vrot.slane %v8115, 5
        %v8118 = vsel %vm383, %v8113, %v8117
        %v8120 = vshrl.u32 %v8050, 16
        %v8122 = vrot.slane %v8120, 4
        %v8123 = vshll.u32 %v8050, 16
        %v8125 = vrot.slane %v8123, 5
        %v8126 = vor.u32 %v8122, %v8125
        %v8127 = vrot.slane %v8126, 4
        %v8129 = vshll.u32 %v8051, 16
        %v8131 = vrot.slane %v8129, 5
        %v8132 = vsel %vm383, %v8127, %v8131
        %v8133 = vshrl.u32 %v8051, 16
        %v8135 = vrot.slane %v8133, 4
        %v8136 = vor.u32 %v8135, %v8131
        %v8137 = vrot.slane %v8136, 4
        %v8139 = vshll.u32 %v8052, 16
        %v8141 = vrot.slane %v8139, 5
        %v8142 = vsel %vm383, %v8137, %v8141
        %v8144 = vshrl.u32 %v8053, 16
        %v8146 = vrot.slane %v8144, 4
        %v8147 = vshll.u32 %v8053, 16
        %v8149 = vrot.slane %v8147, 5
        %v8150 = vor.u32 %v8146, %v8149
        %v8151 = vrot.slane %v8150, 4
        %v8153 = vshll.u32 %v8054, 16
        %v8155 = vrot.slane %v8153, 5
        %v8156 = vsel %vm383, %v8151, %v8155
        %v8157 = vshrl.u32 %v8054, 16
        %v8159 = vrot.slane %v8157, 4
        %v8160 = vor.u32 %v8159, %v8155
        %v8161 = vrot.slane %v8160, 4
        %v8163 = vshll.u32 %v8055, 16
        %v8165 = vrot.slane %v8163, 5
        %v8166 = vsel %vm383, %v8161, %v8165
        %v8168 = vshrl.u32 %v8056, 16
        %v8170 = vrot.slane %v8168, 4
        %v8171 = vshll.u32 %v8056, 16
        %v8173 = vrot.slane %v8171, 5
        %v8174 = vor.u32 %v8170, %v8173
        %v8175 = vrot.slane %v8174, 4
        %v8177 = vshll.u32 %v8057, 16
        %v8179 = vrot.slane %v8177, 5
        %v8180 = vsel %vm383, %v8175, %v8179
        %v8181 = vshrl.u32 %v8057, 16
        %v8183 = vrot.slane %v8181, 4
        %v8184 = vor.u32 %v8183, %v8179
        %v8185 = vrot.slane %v8184, 4
        %v8187 = vshll.u32 %v8058, 16
        %v8189 = vrot.slane %v8187, 5
        %v8190 = vsel %vm383, %v8185, %v8189
        %v8192 = vshrl.u32 %v8059, 16
        %v8194 = vrot.slane %v8192, 4
        %v8195 = vshll.u32 %v8059, 16
        %v8197 = vrot.slane %v8195, 5
        %v8198 = vor.u32 %v8194, %v8197
        %v8199 = vrot.slane %v8198, 4
        %v8201 = vshll.u32 %v8060, 16
        %v8203 = vrot.slane %v8201, 5
        %v8204 = vsel %vm383, %v8199, %v8203
        %v8205 = vshrl.u32 %v8060, 16
        %v8207 = vrot.slane %v8205, 4
        %v8208 = vor.u32 %v8207, %v8203
        %v8209 = vrot.slane %v8208, 4
        %v8211 = vshll.u32 %v8061, 16
        %v8213 = vrot.slane %v8211, 5
        %v8214 = vsel %vm383, %v8209, %v8213
        %v8216 = vshrl.u32 %v8062, 16
        %v8218 = vrot.slane %v8216, 4
        %v8219 = vshll.u32 %v8062, 16
        %v8221 = vrot.slane %v8219, 5
        %v8222 = vor.u32 %v8218, %v8221
        %v8223 = vrot.slane %v8222, 4
        %v8225 = vshll.u32 %v8063, 16
        %v8227 = vrot.slane %v8225, 5
        %v8228 = vsel %vm383, %v8223, %v8227
        %v8229 = vshrl.u32 %v8063, 16
        %v8231 = vrot.slane %v8229, 4
        %v8232 = vor.u32 %v8231, %v8227
        %v8233 = vrot.slane %v8232, 4
        %v8235 = vshll.u32 %v8064, 16
        %v8237 = vrot.slane %v8235, 5
        %v8238 = vsel %vm383, %v8233, %v8237
        %v8240 = vshrl.u32 %v8065, 16
        %v8242 = vrot.slane %v8240, 4
        %v8243 = vshll.u32 %v8065, 16
        %v8245 = vrot.slane %v8243, 5
        %v8246 = vor.u32 %v8242, %v8245
        %v8247 = vrot.slane %v8246, 4
        %v8249 = vshll.u32 %v8066, 16
        %v8251 = vrot.slane %v8249, 5
        %v8252 = vsel %vm383, %v8247, %v8251
        %v8253 = vshrl.u32 %v8066, 16
        %v8255 = vrot.slane %v8253, 4
        %v8256 = vor.u32 %v8255, %v8251
        %v8257 = vrot.slane %v8256, 4
        %v8259 = vshll.u32 %v8067, 16
        %v8261 = vrot.slane %v8259, 5
        %v8262 = vsel %vm383, %v8257, %v8261
        %v8264 = vshrl.u32 %v8068, 16
        %v8266 = vrot.slane %v8264, 4
        %v8267 = vshll.u32 %v8068, 16
        %v8269 = vrot.slane %v8267, 5
        %v8270 = vor.u32 %v8266, %v8269
        %v8271 = vrot.slane %v8270, 4
        %v8273 = vshll.u32 %v8069, 16
        %v8275 = vrot.slane %v8273, 5
        %v8276 = vsel %vm383, %v8271, %v8275
        %v8277 = vshrl.u32 %v8069, 16
        %v8279 = vrot.slane %v8277, 4
        %v8280 = vor.u32 %v8279, %v8275
        %v8281 = vrot.slane %v8280, 4
        %v8283 = vshll.u32 %v8070, 16
        %v8285 = vrot.slane %v8283, 5
        %v8286 = vsel %vm383, %v8281, %v8285
        %v8288 = vshrl.u32 %v8071, 16
        %v8290 = vrot.slane %v8288, 4
        %v8291 = vshll.u32 %v8071, 16
        %v8293 = vrot.slane %v8291, 5
        %v8294 = vor.u32 %v8290, %v8293
        %v8295 = vrot.slane %v8294, 4
        %v8297 = vshll.u32 %v8072, 16
        %v8299 = vrot.slane %v8297, 5
        %v8300 = vsel %vm383, %v8295, %v8299
        %v8301 = vshrl.u32 %v8072, 16
        %v8303 = vrot.slane %v8301, 4
        %v8304 = vor.u32 %v8303, %v8299
        %v8305 = vrot.slane %v8304, 4
        %v8307 = vshll.u32 %v8073, 16
        %v8309 = vrot.slane %v8307, 5
        %v8310 = vsel %vm383, %v8305, %v8309
        %v8312 = vshrl.u32 %v8074, 16
        %v8314 = vrot.slane %v8312, 4
        %v8315 = vshll.u32 %v8074, 16
        %v8317 = vrot.slane %v8315, 5
        %v8318 = vor.u32 %v8314, %v8317
        %v8319 = vrot.slane %v8318, 4
        %v8321 = vshll.u32 %v8075, 16
        %v8323 = vrot.slane %v8321, 5
        %v8324 = vsel %vm383, %v8319, %v8323
        %v8325 = vshrl.u32 %v8075, 16
        %v8327 = vrot.slane %v8325, 4
        %v8328 = vor.u32 %v8327, %v8323
        %v8329 = vrot.slane %v8328, 4
        %v8331 = vshll.u32 %v8076, 16
        %v8333 = vrot.slane %v8331, 5
        %v8334 = vsel %vm383, %v8329, %v8333
        %v8336 = vshrl.u32 %v8077, 16
        %v8338 = vrot.slane %v8336, 4
        %v8339 = vshll.u32 %v8077, 16
        %v8341 = vrot.slane %v8339, 5
        %v8342 = vor.u32 %v8338, %v8341
        %v8343 = vrot.slane %v8342, 4
        %v8345 = vshll.u32 %v8078, 16
        %v8347 = vrot.slane %v8345, 5
        %v8348 = vsel %vm383, %v8343, %v8347
        %v8349 = vshrl.u32 %v8078, 16
        %v8351 = vrot.slane %v8349, 4
        %v8352 = vor.u32 %v8351, %v8347
        %v8353 = vrot.slane %v8352, 4
        %v8355 = vshll.u32 %v8079, 16
        %v8357 = vrot.slane %v8355, 5
        %v8358 = vsel %vm383, %v8353, %v8357
        %v8360 = vshrl.u32 %v8080, 16
        %v8362 = vrot.slane %v8360, 4
        %v8363 = vshll.u32 %v8080, 16
        %v8365 = vrot.slane %v8363, 5
        %v8366 = vor.u32 %v8362, %v8365
        %v8367 = vrot.slane %v8366, 4
        %v8369 = vshll.u32 %v8081, 16
        %v8371 = vrot.slane %v8369, 5
        %v8372 = vsel %vm383, %v8367, %v8371
        %v8373 = vshrl.u32 %v8081, 16
        %v8375 = vrot.slane %v8373, 4
        %v8376 = vor.u32 %v8375, %v8371
        %v8377 = vrot.slane %v8376, 4
        %v8379 = vshll.u32 %v8082, 16
        %v8381 = vrot.slane %v8379, 5
        %v8382 = vsel %vm383, %v8377, %v8381
        %v8384 = vshrl.u32 %v8083, 16
        %v8386 = vrot.slane %v8384, 4
        %v8387 = vshll.u32 %v8083, 16
        %v8389 = vrot.slane %v8387, 5
        %v8390 = vor.u32 %v8386, %v8389
        %v8391 = vrot.slane %v8390, 4
        %v8393 = vshll.u32 %v8084, 16
        %v8395 = vrot.slane %v8393, 5
        %v8396 = vsel %vm383, %v8391, %v8395
        %v8397 = vshrl.u32 %v8084, 16
        %v8399 = vrot.slane %v8397, 4
        %v8400 = vor.u32 %v8399, %v8395
        %v8401 = vrot.slane %v8400, 4
        %v8403 = vshll.u32 %v8085, 16
        %v8405 = vrot.slane %v8403, 5
        %v8406 = vsel %vm383, %v8401, %v8405
        %v8408 = vshrl.u32 %v8086, 16
        %v8410 = vrot.slane %v8408, 4
        %v8411 = vshll.u32 %v8086, 16
        %v8413 = vrot.slane %v8411, 5
        %v8414 = vor.u32 %v8410, %v8413
        %v8415 = vrot.slane %v8414, 4
        %v8417 = vshll.u32 %v8087, 16
        %v8419 = vrot.slane %v8417, 5
        %v8420 = vsel %vm383, %v8415, %v8419
        %v8421 = vshrl.u32 %v8087, 16
        %v8423 = vrot.slane %v8421, 4
        %v8424 = vor.u32 %v8423, %v8419
        %v8425 = vrot.slane %v8424, 4
        %v8427 = vshll.u32 %v8088, 16
        %v8429 = vrot.slane %v8427, 5
        %v8430 = vsel %vm383, %v8425, %v8429
        %v8432 = vshrl.u32 %v8089, 16
        %v8434 = vrot.slane %v8432, 4
        %v8435 = vshll.u32 %v8089, 16
        %v8437 = vrot.slane %v8435, 5
        %v8438 = vor.u32 %v8434, %v8437
        %v8439 = vrot.slane %v8438, 4
        %v8441 = vshll.u32 %v8090, 16
        %v8443 = vrot.slane %v8441, 5
        %v8444 = vsel %vm383, %v8439, %v8443
        %v8445 = vshrl.u32 %v8090, 16
        %v8447 = vrot.slane %v8445, 4
        %v8448 = vor.u32 %v8447, %v8443
        %v8449 = vrot.slane %v8448, 4
        %v8451 = vshll.u32 %v8091, 16
        %v8453 = vrot.slane %v8451, 5
        %v8454 = vsel %vm383, %v8449, %v8453
        %v8456 = vshrl.u32 %v8092, 16
        %v8458 = vrot.slane %v8456, 4
        %v8459 = vshll.u32 %v8092, 16
        %v8461 = vrot.slane %v8459, 5
        %v8462 = vor.u32 %v8458, %v8461
        %v8463 = vrot.slane %v8462, 4
        %v8465 = vshll.u32 %v8093, 16
        %v8467 = vrot.slane %v8465, 5
        %v8468 = vsel %vm383, %v8463, %v8467
        %v8469 = vshrl.u32 %v8093, 16
        %v8471 = vrot.slane %v8469, 4
        %v8472 = vor.u32 %v8471, %v8467
        %v8473 = vrot.slane %v8472, 4
        %v8475 = vshll.u32 %v8094, 16
        %v8477 = vrot.slane %v8475, 5
        %v8478 = vsel %vm383, %v8473, %v8477
        %v8511 = vunpack.c.l.bf16 %v8108
        %v8512 = vunpack.c.l.bf16 %v8118
        %v8513 = vunpack.c.l.bf16 %v8132
        %v8514 = vunpack.c.l.bf16 %v8142
        %v8515 = vunpack.c.l.bf16 %v8156
        %v8516 = vunpack.c.l.bf16 %v8166
        %v8517 = vunpack.c.l.bf16 %v8180
        %v8518 = vunpack.c.l.bf16 %v8190
        %v8519 = vunpack.c.l.bf16 %v8204
        %v8520 = vunpack.c.l.bf16 %v8214
        %v8521 = vunpack.c.l.bf16 %v8228
        %v8522 = vunpack.c.l.bf16 %v8238
        %v8523 = vunpack.c.l.bf16 %v8252
        %v8524 = vunpack.c.l.bf16 %v8262
        %v8525 = vunpack.c.l.bf16 %v8276
        %v8526 = vunpack.c.l.bf16 %v8286
        %v8527 = vunpack.c.l.bf16 %v8300
        %v8528 = vunpack.c.l.bf16 %v8310
        %v8529 = vunpack.c.l.bf16 %v8324
        %v8530 = vunpack.c.l.bf16 %v8334
        %v8531 = vunpack.c.l.bf16 %v8348
        %v8532 = vunpack.c.l.bf16 %v8358
        %v8533 = vunpack.c.l.bf16 %v8372
        %v8534 = vunpack.c.l.bf16 %v8382
        %v8535 = vunpack.c.l.bf16 %v8396
        %v8536 = vunpack.c.l.bf16 %v8406
        %v8537 = vunpack.c.l.bf16 %v8420
        %v8538 = vunpack.c.l.bf16 %v8430
        %v8539 = vunpack.c.l.bf16 %v8444
        %v8540 = vunpack.c.l.bf16 %v8454
        %v8541 = vunpack.c.l.bf16 %v8468
        %v8542 = vunpack.c.l.bf16 %v8478
        %v8543 = vadd.f32 %v8015, %v8511
        %v8544 = vadd.f32 %v8016, %v8512
        %v8545 = vadd.f32 %v8017, %v8513
        %v8546 = vadd.f32 %v8018, %v8514
        %v8547 = vadd.f32 %v8019, %v8515
        %v8548 = vadd.f32 %v8020, %v8516
        %v8549 = vadd.f32 %v8021, %v8517
        %v8550 = vadd.f32 %v8022, %v8518
        %v8551 = vadd.f32 %v8023, %v8519
        %v8552 = vadd.f32 %v8024, %v8520
        %v8553 = vadd.f32 %v8025, %v8521
        %v8554 = vadd.f32 %v8026, %v8522
        %v8555 = vadd.f32 %v8027, %v8523
        %v8556 = vadd.f32 %v8028, %v8524
        %v8557 = vadd.f32 %v8029, %v8525
        %v8558 = vadd.f32 %v8030, %v8526
        %v8559 = vadd.f32 %v8031, %v8527
        %v8560 = vadd.f32 %v8032, %v8528
        %v8561 = vadd.f32 %v8033, %v8529
        %v8562 = vadd.f32 %v8034, %v8530
        %v8563 = vadd.f32 %v8035, %v8531
        %v8564 = vadd.f32 %v8036, %v8532
        %v8565 = vadd.f32 %v8037, %v8533
        %v8566 = vadd.f32 %v8038, %v8534
        %v8567 = vadd.f32 %v8039, %v8535
        %v8568 = vadd.f32 %v8040, %v8536
        %v8569 = vadd.f32 %v8041, %v8537
        %v8570 = vadd.f32 %v8042, %v8538
        %v8571 = vadd.f32 %v8043, %v8539
        %v8572 = vadd.f32 %v8044, %v8540
        %v8573 = vadd.f32 %v8045, %v8541
        %v8574 = vadd.f32 %v8046, %v8542
        %v8575 = vmax.f32 %v8543, 0.0
        %v8576 = vmax.f32 %v8544, 0.0
        %v8577 = vmax.f32 %v8545, 0.0
        %v8578 = vmax.f32 %v8546, 0.0
        %v8579 = vmax.f32 %v8547, 0.0
        %v8580 = vmax.f32 %v8548, 0.0
        %v8581 = vmax.f32 %v8549, 0.0
        %v8582 = vmax.f32 %v8550, 0.0
        %v8583 = vmax.f32 %v8551, 0.0
        %v8584 = vmax.f32 %v8552, 0.0
        %v8585 = vmax.f32 %v8553, 0.0
        %v8586 = vmax.f32 %v8554, 0.0
        %v8587 = vmax.f32 %v8555, 0.0
        %v8588 = vmax.f32 %v8556, 0.0
        %v8589 = vmax.f32 %v8557, 0.0
        %v8590 = vmax.f32 %v8558, 0.0
        %v8591 = vmax.f32 %v8559, 0.0
        %v8592 = vmax.f32 %v8560, 0.0
        %v8593 = vmax.f32 %v8561, 0.0
        %v8594 = vmax.f32 %v8562, 0.0
        %v8595 = vmax.f32 %v8563, 0.0
        %v8596 = vmax.f32 %v8564, 0.0
        %v8597 = vmax.f32 %v8565, 0.0
        %v8598 = vmax.f32 %v8566, 0.0
        %v8599 = vmax.f32 %v8567, 0.0
        %v8600 = vmax.f32 %v8568, 0.0
        %v8601 = vmax.f32 %v8569, 0.0
        %v8602 = vmax.f32 %v8570, 0.0
        %v8603 = vmax.f32 %v8571, 0.0
        %v8604 = vmax.f32 %v8572, 0.0
        %v8605 = vmax.f32 %v8573, 0.0
        %v8606 = vmax.f32 %v8574, 0.0
        %v8607 = vpack.c.bf16 %v8576, %v8575
        %v8608 = vpack.c.bf16 %v8578, %v8577
        %v8609 = vpack.c.bf16 %v8580, %v8579
        %v8610 = vpack.c.bf16 %v8582, %v8581
        %v8611 = vpack.c.bf16 %v8584, %v8583
        %v8612 = vpack.c.bf16 %v8586, %v8585
        %v8613 = vpack.c.bf16 %v8588, %v8587
        %v8614 = vpack.c.bf16 %v8590, %v8589
        %v8615 = vpack.c.bf16 %v8592, %v8591
        %v8616 = vpack.c.bf16 %v8594, %v8593
        %v8617 = vpack.c.bf16 %v8596, %v8595
        %v8618 = vpack.c.bf16 %v8598, %v8597
        %v8619 = vpack.c.bf16 %v8600, %v8599
        %v8620 = vpack.c.bf16 %v8602, %v8601
        %v8621 = vpack.c.bf16 %v8604, %v8603
        %v8622 = vpack.c.bf16 %v8606, %v8605
        %v8639 = vunpack.c.l.b16 %v8607
        %v8640 = vunpack.c.h.b16 %v8607
        %v8641 = vunpack.c.l.b16 %v8608
        %v8642 = vunpack.c.h.b16 %v8608
        %v8643 = vunpack.c.l.b16 %v8609
        %v8644 = vunpack.c.h.b16 %v8609
        %v8645 = vunpack.c.l.b16 %v8610
        %v8646 = vunpack.c.h.b16 %v8610
        %v8647 = vunpack.c.l.b16 %v8611
        %v8648 = vunpack.c.h.b16 %v8611
        %v8649 = vunpack.c.l.b16 %v8612
        %v8650 = vunpack.c.h.b16 %v8612
        %v8651 = vunpack.c.l.b16 %v8613
        %v8652 = vunpack.c.h.b16 %v8613
        %v8653 = vunpack.c.l.b16 %v8614
        %v8654 = vunpack.c.h.b16 %v8614
        %v8655 = vunpack.c.l.b16 %v8615
        %v8656 = vunpack.c.h.b16 %v8615
        %v8657 = vunpack.c.l.b16 %v8616
        %v8658 = vunpack.c.h.b16 %v8616
        %v8659 = vunpack.c.l.b16 %v8617
        %v8660 = vunpack.c.h.b16 %v8617
        %v8661 = vunpack.c.l.b16 %v8618
        %v8662 = vunpack.c.h.b16 %v8618
        %v8663 = vunpack.c.l.b16 %v8619
        %v8664 = vunpack.c.h.b16 %v8619
        %v8665 = vunpack.c.l.b16 %v8620
        %v8666 = vunpack.c.h.b16 %v8620
        %v8667 = vunpack.c.l.b16 %v8621
        %v8668 = vunpack.c.h.b16 %v8621
        %v8669 = vunpack.c.l.b16 %v8622
        %v8670 = vunpack.c.h.b16 %v8622
        %v8671 = vpack.c.b16 %v8639, %v8639
        %v8672 = vpack.c.b16 %v8640, %v8640
        %v8673 = vpack.c.b16 %v8641, %v8641
        %v8674 = vpack.c.b16 %v8642, %v8642
        %v8675 = vpack.c.b16 %v8643, %v8643
        %v8676 = vpack.c.b16 %v8644, %v8644
        %v8677 = vpack.c.b16 %v8645, %v8645
        %v8678 = vpack.c.b16 %v8646, %v8646
        %v8679 = vpack.c.b16 %v8647, %v8647
        %v8680 = vpack.c.b16 %v8648, %v8648
        %v8681 = vpack.c.b16 %v8649, %v8649
        %v8682 = vpack.c.b16 %v8650, %v8650
        %v8683 = vpack.c.b16 %v8651, %v8651
        %v8684 = vpack.c.b16 %v8652, %v8652
        %v8685 = vpack.c.b16 %v8653, %v8653
        %v8686 = vpack.c.b16 %v8654, %v8654
        %v8687 = vpack.c.b16 %v8655, %v8655
        %v8688 = vpack.c.b16 %v8656, %v8656
        %v8689 = vpack.c.b16 %v8657, %v8657
        %v8690 = vpack.c.b16 %v8658, %v8658
        %v8691 = vpack.c.b16 %v8659, %v8659
        %v8692 = vpack.c.b16 %v8660, %v8660
        %v8693 = vpack.c.b16 %v8661, %v8661
        %v8694 = vpack.c.b16 %v8662, %v8662
        %v8695 = vpack.c.b16 %v8663, %v8663
        %v8696 = vpack.c.b16 %v8664, %v8664
        %v8697 = vpack.c.b16 %v8665, %v8665
        %v8698 = vpack.c.b16 %v8666, %v8666
        %v8699 = vpack.c.b16 %v8667, %v8667
        %v8700 = vpack.c.b16 %v8668, %v8668
        %v8701 = vpack.c.b16 %v8669, %v8669
        %v8702 = vpack.c.b16 %v8670, %v8670
        %8735 = vst [vmem:[%s286] sm:$0xf] %v8671
        %8736 = vst [vmem:[%s286 + $0x4] sm:$0xf] %v8672
        %8737 = vst [vmem:[%s286 + $0x8] sm:$0xf] %v8673
        %8738 = vst [vmem:[%s286 + $0xc] sm:$0xf] %v8674
        %8739 = vst [vmem:[%s286 + $0x10] sm:$0xf] %v8675
        %8740 = vst [vmem:[%s286 + $0x14] sm:$0xf] %v8676
        %8741 = vst [vmem:[%s286 + $0x18] sm:$0xf] %v8677
        %8742 = vst [vmem:[%s286 + $0x1c] sm:$0xf] %v8678
        %8743 = vst [vmem:[%s286 + $0x20] sm:$0xf] %v8679
        %8744 = vst [vmem:[%s286 + $0x24] sm:$0xf] %v8680
        %8745 = vst [vmem:[%s286 + $0x28] sm:$0xf] %v8681
        %8746 = vst [vmem:[%s286 + $0x2c] sm:$0xf] %v8682
        %8747 = vst [vmem:[%s286 + $0x30] sm:$0xf] %v8683
        %8748 = vst [vmem:[%s286 + $0x34] sm:$0xf] %v8684
        %8749 = vst [vmem:[%s286 + $0x38] sm:$0xf] %v8685
        %8750 = vst [vmem:[%s286 + $0x3c] sm:$0xf] %v8686
        %8751 = vst [vmem:[%s286 + $0x40] sm:$0xf] %v8687
        %8752 = vst [vmem:[%s286 + $0x44] sm:$0xf] %v8688
        %8753 = vst [vmem:[%s286 + $0x48] sm:$0xf] %v8689
        %8754 = vst [vmem:[%s286 + $0x4c] sm:$0xf] %v8690
        %8755 = vst [vmem:[%s286 + $0x50] sm:$0xf] %v8691
        %8756 = vst [vmem:[%s286 + $0x54] sm:$0xf] %v8692
        %8757 = vst [vmem:[%s286 + $0x58] sm:$0xf] %v8693
        %8758 = vst [vmem:[%s286 + $0x5c] sm:$0xf] %v8694
        %8759 = vst [vmem:[%s286 + $0x60] sm:$0xf] %v8695
        %8760 = vst [vmem:[%s286 + $0x64] sm:$0xf] %v8696
        %8761 = vst [vmem:[%s286 + $0x68] sm:$0xf] %v8697
        %8762 = vst [vmem:[%s286 + $0x6c] sm:$0xf] %v8698
        %8763 = vst [vmem:[%s286 + $0x70] sm:$0xf] %v8699
        %8764 = vst [vmem:[%s286 + $0x74] sm:$0xf] %v8700
        %8765 = vst [vmem:[%s286 + $0x78] sm:$0xf] %v8701
        %8766 = vst [vmem:[%s286 + $0x7c] sm:$0xf] %v8702
        %s8767 = sand.u32 %s182, 1
        %s8768 = scalar_lea.sflag [#allocation5], %s8767
        %s8769 = sand.u32 %s182, 1
        %s8770 = smul.addr %s8769, 128
        %s8771 = scalar_lea.vmem [#allocation6], %s8770
        // Predicated region
        $region57: #{tpu_custom_call.1} parent=47 // pred_check
          %p8772 = pneg %p192
        $region58: #{tpu_custom_call.1} parent=47 // pred_check_branch
          %8774 = sbr.rel (%p8772) target = $region60
        $region59: #{tpu_custom_call.1} parent=47 // pred_region
          %s8776 = ssub.s32 2048, 2048
          %8777 = vsyncadd %s8768, %s8776
          %s8778 = smul.addr %s22, 32
          %s8779 = smul.addr %s8778, 64
          %s8780 = scalar_lea.hbm %s7, %s8779
          %s8781 = sshll.u32 %s8771, 4
          %s8782 = int_to_ptr.vmem [resolvable:$true] %s8781
          %8787 = dma.vmem_to_hbm [thread:$0]  %s8782, 2048, %s8780, %s8768, 64, 64, 4
        $region60: #{tpu_custom_call.1} parent=47 // pred_fallthru
          _
      $region48: #{tpu_custom_call.1} parent=5 // pred_fallthru
        _
      %p8788 = scmp.le.s32.totalorder 2, %s17
      // Predicated region
      $region61: #{tpu_custom_call.1} parent=5 // pred_check
        %p8789 = pneg %p8788
      $region62: #{tpu_custom_call.1} parent=5 // pred_check_branch
        %8791 = sbr.rel (%p8789) target = $region64
      $region63: #{tpu_custom_call.1} parent=5 // pred_region
        %s8792 = ssub.s32 %s17, 2
        // Predicated region
        $region65: #{tpu_custom_call.1} parent=63 // pred_check
          %p8793 = pneg %p198
        $region66: #{tpu_custom_call.1} parent=63 // pred_check_branch
          %8795 = sbr.rel (%p8793) target = $region68
        $region67: #{tpu_custom_call.1} parent=63 // pred_region
          %s8796 = sand.u32 %s183, 1
          %s8797 = scalar_lea.sflag [#allocation5], %s8796
          %s8798 = sand.u32 %s183, 1
          %s8799 = smul.addr %s8798, 128
          %s8800 = scalar_lea.vmem [#allocation6], %s8799
          %8801 = dma.done %s8797, 2048
        $region68: #{tpu_custom_call.1} parent=63 // pred_fallthru
          _
      $region64: #{tpu_custom_call.1} parent=5 // pred_fallthru
        _
    $region6: #{tpu_custom_call.1} parent=1 // loop_footer
      %s21 = sadd.s32 1, %s17
    $region7: #{tpu_custom_call.1} parent=1 // loop_footer_branch
      %16 = sbr.rel target = $region3
    $region8: #{tpu_custom_call.1} parent=1 // loop_exit
      _
    %8802 = vsyncpa [#allocation4], 1
    %s8803 = scalar_lea.sflag [#allocation4], 1
    %8804 = vsyncpa %s8803, 1
    %8805 = vsyncpa [#allocation5], 1
    %s8806 = scalar_lea.sflag [#allocation5], 1
    %8807 = vsyncpa %s8806, 1

</llo_original>
